<compile_context>
chip_gen: v7x
topology: tpu7x:2x2x1
jax: 0.10.0
libtpu: 0.0.40
codegen_flags: <defaults>
</compile_context>

<pallas_src>
import functools

import jax
import jax.numpy as jnp
from jax.experimental import pallas as pl
from jax.experimental.pallas import tpu as pltpu


# ------------------------------ Pallas kernels ------------------------------

def _linear_kernel(x_ref, w_ref, b_ref, o_ref, *, relu):
    y = jnp.dot(x_ref[...], w_ref[...], preferred_element_type=jnp.float32)
    y = y + b_ref[...]
    if relu:
        y = jnp.maximum(y, 0.0)
    o_ref[...] = y


def pallas_linear(x, w, b, relu=True):
    """Point-wise (1x1-conv) linear layer: [M, Cin] @ [Cin, Cout] + b (+ ReLU).

    bf16 operands on the MXU, f32 accumulation; large row tiles; no pad/slice
    bracketing around the call.
    """
    M, Cin = x.shape
    Cout = w.shape[1]
    tm = min(M, 512)
    return pl.pallas_call(
        functools.partial(_linear_kernel, relu=relu),
        out_shape=jax.ShapeDtypeStruct((M, Cout), jnp.float32),
        grid=(pl.cdiv(M, tm),),
        in_specs=[
            pl.BlockSpec((tm, Cin), lambda i: (i, 0)),
            pl.BlockSpec((Cin, Cout), lambda i: (0, 0)),
            pl.BlockSpec((1, Cout), lambda i: (0, 0)),
        ],
        out_specs=pl.BlockSpec((tm, Cout), lambda i: (i, 0)),
        compiler_params=pltpu.CompilerParams(dimension_semantics=("parallel",)),
    )(x.astype(jnp.bfloat16), w.astype(jnp.bfloat16), b.reshape(1, Cout))


def _sa_mlp_pool_kernel(x_ref, w1_ref, b1_ref, w2_ref, b2_ref, o_ref, *, k):
    # Fused 2-layer shared MLP + neighbourhood max-pool.  The hidden activation
    # and the pre-pool result stay in vregs/VMEM; only pooled rows hit HBM.
    h = jnp.dot(x_ref[...], w1_ref[...], preferred_element_type=jnp.float32)
    h = jnp.maximum(h + b1_ref[...], 0.0)
    y = jnp.dot(h.astype(w2_ref.dtype), w2_ref[...],
                preferred_element_type=jnp.float32)
    y = jnp.maximum(y + b2_ref[...], 0.0)
    tm, cout = y.shape
    # tm is a multiple of k, so the tile holds whole groups of k neighbours;
    # k is a multiple of 8, so the split stays sublane-aligned.
    o_ref[...] = jnp.max(y.reshape(tm // k, k, cout), axis=1)


def pallas_sa_mlp_pool(grouped, params, k):
    """Fused set-abstraction MLP: grouped [G*k, Cin] -> pooled [G, Cout]."""
    (w1, b1), (w2, b2) = params
    R, Cin = grouped.shape
    C1 = w1.shape[1]
    Cout = w2.shape[1]
    G = R // k
    tm = min(R, k * 64)        # 512 (k=8) / 1024 (k=16) rows per tile; multiple of k and 8
    return pl.pallas_call(
        functools.partial(_sa_mlp_pool_kernel, k=k),
        out_shape=jax.ShapeDtypeStruct((G, Cout), jnp.float32),
        grid=(pl.cdiv(R, tm),),
        in_specs=[
            pl.BlockSpec((tm, Cin), lambda i: (i, 0)),
            pl.BlockSpec((Cin, C1), lambda i: (0, 0)),
            pl.BlockSpec((1, C1), lambda i: (0, 0)),
            pl.BlockSpec((C1, Cout), lambda i: (0, 0)),
            pl.BlockSpec((1, Cout), lambda i: (0, 0)),
        ],
        out_specs=pl.BlockSpec((tm // k, Cout), lambda i: (i, 0)),
        compiler_params=pltpu.CompilerParams(dimension_semantics=("parallel",)),
    )(grouped.astype(jnp.bfloat16), w1.astype(jnp.bfloat16), b1.reshape(1, C1),
      w2.astype(jnp.bfloat16), b2.reshape(1, Cout))


def _sqdist_kernel(q_ref, pt_ref, o_ref):
    q = q_ref[0]                                   # [tm, 8]  (xyz zero-padded to 8)
    pt = pt_ref[0]                                 # [8, N]   (transposed, lane-dense)
    qn = jnp.sum(q * q, axis=-1, keepdims=True)    # [tm, 1]
    pn = jnp.sum(pt * pt, axis=0, keepdims=True)   # [1, N]
    qp = jnp.dot(q, pt, preferred_element_type=jnp.float32)   # [tm, N]
    o_ref[0] = jnp.maximum(qn + pn - 2.0 * qp, 0.0)


def pallas_sqdist(q, p):
    """Pairwise squared distances (clamped >= 0). q: [B,M,3], p: [B,N,3] -> [B,M,N]."""
    B, M, _ = q.shape
    N = p.shape[1]
    q8 = jnp.pad(q, ((0, 0), (0, 0), (0, 5)))                      # [B, M, 8]
    p8t = jnp.pad(p, ((0, 0), (0, 0), (0, 5))).transpose(0, 2, 1)  # [B, 8, N]
    tm = min(M, 256)
    # TODO(synk): for very large point clouds also tile N so the (tm, N) f32
    #             output block stays within the scoped VMEM limit (v7x: 64 MiB).
    return pl.pallas_call(
        _sqdist_kernel,
        out_shape=jax.ShapeDtypeStruct((B, M, N), jnp.float32),
        grid=(B, pl.cdiv(M, tm)),
        in_specs=[
            pl.BlockSpec((1, tm, 8), lambda b, i: (b, i, 0)),
            pl.BlockSpec((1, 8, N), lambda b, i: (b, 0, 0)),
        ],
        out_specs=pl.BlockSpec((1, tm, N), lambda b, i: (b, i, 0)),
        compiler_params=pltpu.CompilerParams(
            dimension_semantics=("parallel", "parallel")),
    )(q8, p8t)


# ------------------------- parameter initialization ------------------------

def init_linear(key, cin, cout):
    w = jax.random.normal(key, (cin, cout), jnp.float32) * jnp.sqrt(2.0 / cin)
    b = jnp.zeros((cout,), jnp.float32)
    return (w, b)


def init_mlp(key, dims):
    keys = jax.random.split(key, len(dims) - 1)
    return [init_linear(k, ci, co) for k, ci, co in zip(keys, dims[:-1], dims[1:])]


def init_pointnet2_params(key, in_out_feat=32):
    ks = jax.random.split(key, 9)
    p = {}
    # multiscale (MSG) set-abstraction MLPs, 2 scales per down layer
    p["sa1"] = [init_mlp(ks[0], (1 + 3, 8, 16)), init_mlp(ks[1], (1 + 3, 8, 16))]
    p["sa2"] = [init_mlp(ks[2], (32 + 3, 16, 32)), init_mlp(ks[3], (32 + 3, 16, 32))]
    p["sa3"] = [init_mlp(ks[4], (64 + 3, 32, 64)), init_mlp(ks[5], (64 + 3, 32, 64))]
    # feature-propagation (up) MLPs
    p["fp3"] = init_mlp(ks[6], (128 + 64, 64))
    p["fp2"] = init_mlp(ks[7], (64 + 32, 32))
    p["fp1"] = init_mlp(ks[8], (32 + 1, in_out_feat))
    return p


# --------------------------------- modules ---------------------------------

def apply_mlp(x, params):
    for (w, b) in params:
        x = pallas_linear(x, w, b, relu=True)
    return x


def sa_module(pos, feat, n_centroids, ks, scale_params):
    """Multi-scale set abstraction: subsample, group kNN, fused shared-MLP+max-pool."""
    B, N, _ = pos.shape
    C = feat.shape[-1]
    cidx = jnp.arange(n_centroids) * (N // n_centroids)       # stride subsampling
    new_pos = pos[:, cidx]                                     # [B, M, 3]
    d = pallas_sqdist(new_pos, pos)                            # [B, M, N]
    outs = []
    for k, params in zip(ks, scale_params):
        _, nn_idx = jax.lax.top_k(-d, k)                       # [B, M, k]
        # Pad the neighbour count to a multiple of 8 by duplicating indices:
        # max-pool over duplicates is unchanged, and the fused kernel's group
        # reshape stays sublane-aligned.
        keff = ((k + 7) // 8) * 8
        if keff != k:
            pad = keff - k
            nn_idx = jnp.concatenate(
                [nn_idx, jnp.repeat(nn_idx[..., -1:], pad, axis=-1)], axis=-1)
        g_pos = jax.vmap(lambda p, i: p[i])(pos, nn_idx)       # [B, M, keff, 3]
        g_feat = jax.vmap(lambda f, i: f[i])(feat, nn_idx)     # [B, M, keff, C]
        rel = g_pos - new_pos[:, :, None, :]                   # centre on centroid
        grouped = jnp.concatenate([g_feat, rel], axis=-1)      # [B, M, keff, C+3]
        grouped = grouped.reshape(B * n_centroids * keff, C + 3)
        h = pallas_sa_mlp_pool(grouped, params, keff)          # [B*M, Cout]
        outs.append(h.reshape(B, n_centroids, -1))
    return new_pos, jnp.concatenate(outs, axis=-1)


def fp_module(pos_dense, feat_dense, pos_sparse, feat_sparse, params):
    """Feature propagation: 3-NN inverse-distance interpolation + shared MLP."""
    B, Nd, _ = pos_dense.shape
    d = pallas_sqdist(pos_dense, pos_sparse)                   # [B, Nd, Ms], >= 0
    neg, idx = jax.lax.top_k(-d, 3)
    w = 1.0 / (jnp.maximum(-neg, 0.0) + 1e-8)
    w = w / jnp.sum(w, axis=-1, keepdims=True)                 # [B, Nd, 3]
    g = jax.vmap(lambda f, i: f[i])(feat_sparse, idx)          # [B, Nd, 3, C]
    interp = jnp.sum(g * w[..., None], axis=2)                 # [B, Nd, C]
    cat = jnp.concatenate([interp, feat_dense], axis=-1)
    h = apply_mlp(cat.reshape(B * Nd, cat.shape[-1]), params)
    return h.reshape(B, Nd, -1)


def pointnet2_layer_forward(params, pos, x):
    """Mirrors PointNet2Layer.forward (unsqueeze-to-batch, then the UNet)."""
    if pos.ndim < 3:
        pos = pos[None]
    if x.ndim < 3:
        x = x[None]
    pos1, f1 = sa_module(pos, x, pos.shape[1] // 2, (8, 16), params["sa1"])
    pos2, f2 = sa_module(pos1, f1, pos1.shape[1] // 2, (8, 16), params["sa2"])
    pos3, f3 = sa_module(pos2, f2, pos2.shape[1] // 2, (4, 8), params["sa3"])
    u2 = fp_module(pos2, f2, pos3, f3, params["fp3"])
    u1 = fp_module(pos1, f1, pos2, u2, params["fp2"])
    u0 = fp_module(pos, x, pos1, u1, params["fp1"])
    return u0  # [B, N, in_out_feat]


# ----------------------------------- main -----------------------------------

if __name__ == "__main__":
    key = jax.random.PRNGKey(0)
    kpos, kx, kparam = jax.random.split(key, 3)
    B, N, in_out_feat = 2, 64, 32
    pos = jax.random.uniform(kpos, (B, N, 3), jnp.float32)   # data.pos
    x = jax.random.normal(kx, (B, N, 1), jnp.float32)        # data.x (input_nc=1)
    params = init_pointnet2_params(kparam, in_out_feat=in_out_feat)

    out = jax.jit(pointnet2_layer_forward)(params, pos, x)
    out = jax.block_until_ready(out)
    assert out.shape == (B, N, in_out_feat)
    assert bool(jnp.all(jnp.isfinite(out)))
    print("KERNEL_OK")
</pallas_src>

<mosaic_0001>
module attributes {stable_mosaic.version = 11 : i64} {
  func.func @_sqdist_kernel(%arg0: i32, %arg1: i32, %arg2: memref<1x32x8xf32, #tpu.memory_space<vmem>>, %arg3: memref<1x8x64xf32, #tpu.memory_space<vmem>>, %arg4: memref<1x32x64xf32, #tpu.memory_space<vmem>>) attributes {dimension_semantics = [#tpu.dimension_semantics<parallel>, #tpu.dimension_semantics<parallel>], iteration_bounds = array<i64: 2, 1>, scalar_prefetch = 0 : i64, scratch_operands = 0 : i64, tpu.core_type = #tpu.core_type<tc>, window_params = [{transform_indices = @transform_0, window_bounds = array<i64: 1, 32, 8>}, {transform_indices = @transform_1, window_bounds = array<i64: 1, 8, 64>}, {transform_indices = @transform_2, window_bounds = array<i64: 1, 32, 64>}]} {
    %c0 = arith.constant 0 : index
    %c0_0 = arith.constant 0 : index
    %c0_1 = arith.constant 0 : index
    %0 = vector.load %arg2[%c0, %c0_0, %c0_1] : memref<1x32x8xf32, #tpu.memory_space<vmem>>, vector<1x32x8xf32>
    %1 = vector.shape_cast %0 : vector<1x32x8xf32> to vector<32x8xf32>
    %c0_2 = arith.constant 0 : index
    %c0_3 = arith.constant 0 : index
    %c0_4 = arith.constant 0 : index
    %2 = vector.load %arg3[%c0_2, %c0_3, %c0_4] : memref<1x8x64xf32, #tpu.memory_space<vmem>>, vector<1x8x64xf32>
    %3 = vector.shape_cast %2 : vector<1x8x64xf32> to vector<8x64xf32>
    %4 = arith.mulf %1, %1 : vector<32x8xf32>
    %cst = arith.constant dense<0.000000e+00> : vector<32xf32>
    %5 = vector.multi_reduction <add>, %4, %cst [1] : vector<32x8xf32> to vector<32xf32>
    %6 = vector.shape_cast %5 : vector<32xf32> to vector<32x1xf32>
    %7 = arith.mulf %3, %3 : vector<8x64xf32>
    %cst_5 = arith.constant dense<0.000000e+00> : vector<64xf32>
    %8 = vector.multi_reduction <add>, %7, %cst_5 [0] : vector<8x64xf32> to vector<64xf32>
    %9 = vector.shape_cast %8 : vector<64xf32> to vector<1x64xf32>
    %cst_6 = arith.constant dense<0.000000e+00> : vector<32x64xf32>
    %10 = tpu.matmul %1, %3, %cst_6 {dimension_numbers = #tpu.dot_dimension_numbers<[1], [0], [0], [1], [0, 0, 1, 1], [], []>} : vector<32x8xf32>, vector<8x64xf32>, vector<32x64xf32> -> vector<32x64xf32>
    %11 = vector.broadcast %6 : vector<32x1xf32> to vector<32x64xf32>
    %12 = vector.broadcast %9 : vector<1x64xf32> to vector<32x64xf32>
    %13 = arith.addf %11, %12 : vector<32x64xf32>
    %cst_7 = arith.constant 2.000000e+00 : f32
    %14 = vector.broadcast %cst_7 : f32 to vector<32x64xf32>
    %15 = arith.mulf %14, %10 : vector<32x64xf32>
    %16 = arith.subf %13, %15 : vector<32x64xf32>
    %cst_8 = arith.constant 0.000000e+00 : f32
    %17 = vector.broadcast %cst_8 : f32 to vector<32x64xf32>
    %18 = arith.maximumf %16, %17 : vector<32x64xf32>
    %c0_9 = arith.constant 0 : index
    %c0_10 = arith.constant 0 : index
    %c0_11 = arith.constant 0 : index
    %19 = vector.load %arg4[%c0_9, %c0_10, %c0_11] : memref<1x32x64xf32, #tpu.memory_space<vmem>>, vector<1x32x64xf32>
    %20 = vector.shape_cast %19 : vector<1x32x64xf32> to vector<32x64xf32>
    %21 = vector.shape_cast %18 : vector<32x64xf32> to vector<1x32x64xf32>
    tpu.vector_store %arg4[%c0_9, %c0_10, %c0_11], %21 {strides = array<i32>} : memref<1x32x64xf32, #tpu.memory_space<vmem>>, vector<1x32x64xf32>,
    return
  }
  func.func @transform_0(%arg0: i32, %arg1: i32) -> (i32, i32, i32) {
    %c0_i32 = arith.constant 0 : i32
    %c0_i32_0 = arith.constant 0 : i32
    return %arg0, %arg1, %c0_i32 : i32, i32, i32
  }
  func.func @transform_1(%arg0: i32, %arg1: i32) -> (i32, i32, i32) {
    %c0_i32 = arith.constant 0 : i32
    %c0_i32_0 = arith.constant 0 : i32
    %c0_i32_1 = arith.constant 0 : i32
    return %arg0, %c0_i32, %c0_i32_0 : i32, i32, i32
  }
  func.func @transform_2(%arg0: i32, %arg1: i32) -> (i32, i32, i32) {
    %c0_i32 = arith.constant 0 : i32
    %c0_i32_0 = arith.constant 0 : i32
    return %arg0, %arg1, %c0_i32 : i32, i32, i32
  }
}

module attributes {stable_mosaic.version = 11 : i64} {
  func.func @_sa_mlp_pool_kernel(%arg0: i32, %arg1: memref<512x4xbf16, #tpu.memory_space<vmem>>, %arg2: memref<4x8xbf16, #tpu.memory_space<vmem>>, %arg3: memref<1x8xf32, #tpu.memory_space<vmem>>, %arg4: memref<8x16xbf16, #tpu.memory_space<vmem>>, %arg5: memref<1x16xf32, #tpu.memory_space<vmem>>, %arg6: memref<64x16xf32, #tpu.memory_space<vmem>>) attributes {dimension_semantics = [#tpu.dimension_semantics<parallel>], iteration_bounds = array<i64: 1>, scalar_prefetch = 0 : i64, scratch_operands = 0 : i64, tpu.core_type = #tpu.core_type<tc>, window_params = [{transform_indices = @transform_0, window_bounds = array<i64: 512, 4>}, {pipeline_mode = #tpu.pipeline_mode<synchronous>, transform_indices = @transform_1, window_bounds = array<i64: 4, 8>}, {pipeline_mode = #tpu.pipeline_mode<synchronous>, transform_indices = @transform_2, window_bounds = array<i64: 1, 8>}, {pipeline_mode = #tpu.pipeline_mode<synchronous>, transform_indices = @transform_3, window_bounds = array<i64: 8, 16>}, {pipeline_mode = #tpu.pipeline_mode<synchronous>, transform_indices = @transform_4, window_bounds = array<i64: 1, 16>}, {transform_indices = @transform_5, window_bounds = array<i64: 64, 16>}]} {
    %c0 = arith.constant 0 : index
    %c0_0 = arith.constant 0 : index
    %0 = vector.load %arg1[%c0, %c0_0] : memref<512x4xbf16, #tpu.memory_space<vmem>>, vector<512x4xbf16>
    %c0_1 = arith.constant 0 : index
    %c0_2 = arith.constant 0 : index
    %1 = vector.load %arg2[%c0_1, %c0_2] : memref<4x8xbf16, #tpu.memory_space<vmem>>, vector<4x8xbf16>
    %cst = arith.constant dense<0.000000e+00> : vector<512x8xf32>
    %2 = tpu.matmul %0, %1, %cst {dimension_numbers = #tpu.dot_dimension_numbers<[1], [0], [0], [1], [0, 0, 1, 1], [], []>} : vector<512x4xbf16>, vector<4x8xbf16>, vector<512x8xf32> -> vector<512x8xf32>
    %c0_3 = arith.constant 0 : index
    %c0_4 = arith.constant 0 : index
    %3 = vector.load %arg3[%c0_3, %c0_4] : memref<1x8xf32, #tpu.memory_space<vmem>>, vector<1x8xf32>
    %4 = vector.broadcast %3 : vector<1x8xf32> to vector<512x8xf32>
    %5 = arith.addf %2, %4 : vector<512x8xf32>
    %cst_5 = arith.constant 0.000000e+00 : f32
    %6 = vector.broadcast %cst_5 : f32 to vector<512x8xf32>
    %7 = arith.maximumf %5, %6 : vector<512x8xf32>
    %8 = arith.truncf %7 : vector<512x8xf32> to vector<512x8xbf16>
    %c0_6 = arith.constant 0 : index
    %c0_7 = arith.constant 0 : index
    %9 = vector.load %arg4[%c0_6, %c0_7] : memref<8x16xbf16, #tpu.memory_space<vmem>>, vector<8x16xbf16>
    %cst_8 = arith.constant dense<0.000000e+00> : vector<512x16xf32>
    %10 = tpu.matmul %8, %9, %cst_8 {dimension_numbers = #tpu.dot_dimension_numbers<[1], [0], [0], [1], [0, 0, 1, 1], [], []>} : vector<512x8xbf16>, vector<8x16xbf16>, vector<512x16xf32> -> vector<512x16xf32>
    %c0_9 = arith.constant 0 : index
    %c0_10 = arith.constant 0 : index
    %11 = vector.load %arg5[%c0_9, %c0_10] : memref<1x16xf32, #tpu.memory_space<vmem>>, vector<1x16xf32>
    %12 = vector.broadcast %11 : vector<1x16xf32> to vector<512x16xf32>
    %13 = arith.addf %10, %12 : vector<512x16xf32>
    %cst_11 = arith.constant 0.000000e+00 : f32
    %14 = vector.broadcast %cst_11 : f32 to vector<512x16xf32>
    %15 = arith.maximumf %13, %14 : vector<512x16xf32>
    %16 = vector.shape_cast %15 : vector<512x16xf32> to vector<64x8x16xf32>
    %cst_12 = arith.constant dense<0xFF800000> : vector<64x16xf32>
    %17 = vector.multi_reduction <maximumf>, %16, %cst_12 [1] : vector<64x8x16xf32> to vector<64x16xf32>
    %c0_13 = arith.constant 0 : index
    %c0_14 = arith.constant 0 : index
    %18 = vector.load %arg6[%c0_13, %c0_14] : memref<64x16xf32, #tpu.memory_space<vmem>>, vector<64x16xf32>
    tpu.vector_store %arg6[%c0_13, %c0_14], %17 {strides = array<i32>} : memref<64x16xf32, #tpu.memory_space<vmem>>, vector<64x16xf32>,
    return
  }
  func.func @transform_0(%arg0: i32) -> (i32, i32) {
    %c0_i32 = arith.constant 0 : i32
    %c0_i32_0 = arith.constant 0 : i32
    return %arg0, %c0_i32 : i32, i32
  }
  func.func @transform_1(%arg0: i32) -> (i32, i32) {
    %c0_i32 = arith.constant 0 : i32
    %c0_i32_0 = arith.constant 0 : i32
    %c0_i32_1 = arith.constant 0 : i32
    return %c0_i32, %c0_i32_0 : i32, i32
  }
  func.func @transform_2(%arg0: i32) -> (i32, i32) {
    %c0_i32 = arith.constant 0 : i32
    %c0_i32_0 = arith.constant 0 : i32
    %c0_i32_1 = arith.constant 0 : i32
    return %c0_i32, %c0_i32_0 : i32, i32
  }
  func.func @transform_3(%arg0: i32) -> (i32, i32) {
    %c0_i32 = arith.constant 0 : i32
    %c0_i32_0 = arith.constant 0 : i32
    %c0_i32_1 = arith.constant 0 : i32
    return %c0_i32, %c0_i32_0 : i32, i32
  }
  func.func @transform_4(%arg0: i32) -> (i32, i32) {
    %c0_i32 = arith.constant 0 : i32
    %c0_i32_0 = arith.constant 0 : i32
    %c0_i32_1 = arith.constant 0 : i32
    return %c0_i32, %c0_i32_0 : i32, i32
  }
  func.func @transform_5(%arg0: i32) -> (i32, i32) {
    %c0_i32 = arith.constant 0 : i32
    %c0_i32_0 = arith.constant 0 : i32
    return %arg0, %c0_i32 : i32, i32
  }
}

module attributes {stable_mosaic.version = 11 : i64} {
  func.func @_sa_mlp_pool_kernel(%arg0: i32, %arg1: memref<1024x4xbf16, #tpu.memory_space<vmem>>, %arg2: memref<4x8xbf16, #tpu.memory_space<vmem>>, %arg3: memref<1x8xf32, #tpu.memory_space<vmem>>, %arg4: memref<8x16xbf16, #tpu.memory_space<vmem>>, %arg5: memref<1x16xf32, #tpu.memory_space<vmem>>, %arg6: memref<64x16xf32, #tpu.memory_space<vmem>>) attributes {dimension_semantics = [#tpu.dimension_semantics<parallel>], iteration_bounds = array<i64: 1>, scalar_prefetch = 0 : i64, scratch_operands = 0 : i64, tpu.core_type = #tpu.core_type<tc>, window_params = [{transform_indices = @transform_0, window_bounds = array<i64: 1024, 4>}, {pipeline_mode = #tpu.pipeline_mode<synchronous>, transform_indices = @transform_1, window_bounds = array<i64: 4, 8>}, {pipeline_mode = #tpu.pipeline_mode<synchronous>, transform_indices = @transform_2, window_bounds = array<i64: 1, 8>}, {pipeline_mode = #tpu.pipeline_mode<synchronous>, transform_indices = @transform_3, window_bounds = array<i64: 8, 16>}, {pipeline_mode = #tpu.pipeline_mode<synchronous>, transform_indices = @transform_4, window_bounds = array<i64: 1, 16>}, {transform_indices = @transform_5, window_bounds = array<i64: 64, 16>}]} {
    %c0 = arith.constant 0 : index
    %c0_0 = arith.constant 0 : index
    %0 = vector.load %arg1[%c0, %c0_0] : memref<1024x4xbf16, #tpu.memory_space<vmem>>, vector<1024x4xbf16>
    %c0_1 = arith.constant 0 : index
    %c0_2 = arith.constant 0 : index
    %1 = vector.load %arg2[%c0_1, %c0_2] : memref<4x8xbf16, #tpu.memory_space<vmem>>, vector<4x8xbf16>
    %cst = arith.constant dense<0.000000e+00> : vector<1024x8xf32>
    %2 = tpu.matmul %0, %1, %cst {dimension_numbers = #tpu.dot_dimension_numbers<[1], [0], [0], [1], [0, 0, 1, 1], [], []>} : vector<1024x4xbf16>, vector<4x8xbf16>, vector<1024x8xf32> -> vector<1024x8xf32>
    %c0_3 = arith.constant 0 : index
    %c0_4 = arith.constant 0 : index
    %3 = vector.load %arg3[%c0_3, %c0_4] : memref<1x8xf32, #tpu.memory_space<vmem>>, vector<1x8xf32>
    %4 = vector.broadcast %3 : vector<1x8xf32> to vector<1024x8xf32>
    %5 = arith.addf %2, %4 : vector<1024x8xf32>
    %cst_5 = arith.constant 0.000000e+00 : f32
    %6 = vector.broadcast %cst_5 : f32 to vector<1024x8xf32>
    %7 = arith.maximumf %5, %6 : vector<1024x8xf32>
    %8 = arith.truncf %7 : vector<1024x8xf32> to vector<1024x8xbf16>
    %c0_6 = arith.constant 0 : index
    %c0_7 = arith.constant 0 : index
    %9 = vector.load %arg4[%c0_6, %c0_7] : memref<8x16xbf16, #tpu.memory_space<vmem>>, vector<8x16xbf16>
    %cst_8 = arith.constant dense<0.000000e+00> : vector<1024x16xf32>
    %10 = tpu.matmul %8, %9, %cst_8 {dimension_numbers = #tpu.dot_dimension_numbers<[1], [0], [0], [1], [0, 0, 1, 1], [], []>} : vector<1024x8xbf16>, vector<8x16xbf16>, vector<1024x16xf32> -> vector<1024x16xf32>
    %c0_9 = arith.constant 0 : index
    %c0_10 = arith.constant 0 : index
    %11 = vector.load %arg5[%c0_9, %c0_10] : memref<1x16xf32, #tpu.memory_space<vmem>>, vector<1x16xf32>
    %12 = vector.broadcast %11 : vector<1x16xf32> to vector<1024x16xf32>
    %13 = arith.addf %10, %12 : vector<1024x16xf32>
    %cst_11 = arith.constant 0.000000e+00 : f32
    %14 = vector.broadcast %cst_11 : f32 to vector<1024x16xf32>
    %15 = arith.maximumf %13, %14 : vector<1024x16xf32>
    %16 = vector.shape_cast %15 : vector<1024x16xf32> to vector<64x16x16xf32>
    %cst_12 = arith.constant dense<0xFF800000> : vector<64x16xf32>
    %17 = vector.multi_reduction <maximumf>, %16, %cst_12 [1] : vector<64x16x16xf32> to vector<64x16xf32>
    %c0_13 = arith.constant 0 : index
    %c0_14 = arith.constant 0 : index
    %18 = vector.load %arg6[%c0_13, %c0_14] : memref<64x16xf32, #tpu.memory_space<vmem>>, vector<64x16xf32>
    tpu.vector_store %arg6[%c0_13, %c0_14], %17 {strides = array<i32>} : memref<64x16xf32, #tpu.memory_space<vmem>>, vector<64x16xf32>,
    return
  }
  func.func @transform_0(%arg0: i32) -> (i32, i32) {
    %c0_i32 = arith.constant 0 : i32
    %c0_i32_0 = arith.constant 0 : i32
    return %arg0, %c0_i32 : i32, i32
  }
  func.func @transform_1(%arg0: i32) -> (i32, i32) {
    %c0_i32 = arith.constant 0 : i32
    %c0_i32_0 = arith.constant 0 : i32
    %c0_i32_1 = arith.constant 0 : i32
    return %c0_i32, %c0_i32_0 : i32, i32
  }
  func.func @transform_2(%arg0: i32) -> (i32, i32) {
    %c0_i32 = arith.constant 0 : i32
    %c0_i32_0 = arith.constant 0 : i32
    %c0_i32_1 = arith.constant 0 : i32
    return %c0_i32, %c0_i32_0 : i32, i32
  }
  func.func @transform_3(%arg0: i32) -> (i32, i32) {
    %c0_i32 = arith.constant 0 : i32
    %c0_i32_0 = arith.constant 0 : i32
    %c0_i32_1 = arith.constant 0 : i32
    return %c0_i32, %c0_i32_0 : i32, i32
  }
  func.func @transform_4(%arg0: i32) -> (i32, i32) {
    %c0_i32 = arith.constant 0 : i32
    %c0_i32_0 = arith.constant 0 : i32
    %c0_i32_1 = arith.constant 0 : i32
    return %c0_i32, %c0_i32_0 : i32, i32
  }
  func.func @transform_5(%arg0: i32) -> (i32, i32) {
    %c0_i32 = arith.constant 0 : i32
    %c0_i32_0 = arith.constant 0 : i32
    return %arg0, %c0_i32 : i32, i32
  }
}

module attributes {stable_mosaic.version = 11 : i64} {
  func.func @_sqdist_kernel(%arg0: i32, %arg1: i32, %arg2: memref<1x16x8xf32, #tpu.memory_space<vmem>>, %arg3: memref<1x8x32xf32, #tpu.memory_space<vmem>>, %arg4: memref<1x16x32xf32, #tpu.memory_space<vmem>>) attributes {dimension_semantics = [#tpu.dimension_semantics<parallel>, #tpu.dimension_semantics<parallel>], iteration_bounds = array<i64: 2, 1>, scalar_prefetch = 0 : i64, scratch_operands = 0 : i64, tpu.core_type = #tpu.core_type<tc>, window_params = [{transform_indices = @transform_0, window_bounds = array<i64: 1, 16, 8>}, {transform_indices = @transform_1, window_bounds = array<i64: 1, 8, 32>}, {transform_indices = @transform_2, window_bounds = array<i64: 1, 16, 32>}]} {
    %c0 = arith.constant 0 : index
    %c0_0 = arith.constant 0 : index
    %c0_1 = arith.constant 0 : index
    %0 = vector.load %arg2[%c0, %c0_0, %c0_1] : memref<1x16x8xf32, #tpu.memory_space<vmem>>, vector<1x16x8xf32>
    %1 = vector.shape_cast %0 : vector<1x16x8xf32> to vector<16x8xf32>
    %c0_2 = arith.constant 0 : index
    %c0_3 = arith.constant 0 : index
    %c0_4 = arith.constant 0 : index
    %2 = vector.load %arg3[%c0_2, %c0_3, %c0_4] : memref<1x8x32xf32, #tpu.memory_space<vmem>>, vector<1x8x32xf32>
    %3 = vector.shape_cast %2 : vector<1x8x32xf32> to vector<8x32xf32>
    %4 = arith.mulf %1, %1 : vector<16x8xf32>
    %cst = arith.constant dense<0.000000e+00> : vector<16xf32>
    %5 = vector.multi_reduction <add>, %4, %cst [1] : vector<16x8xf32> to vector<16xf32>
    %6 = vector.shape_cast %5 : vector<16xf32> to vector<16x1xf32>
    %7 = arith.mulf %3, %3 : vector<8x32xf32>
    %cst_5 = arith.constant dense<0.000000e+00> : vector<32xf32>
    %8 = vector.multi_reduction <add>, %7, %cst_5 [0] : vector<8x32xf32> to vector<32xf32>
    %9 = vector.shape_cast %8 : vector<32xf32> to vector<1x32xf32>
    %cst_6 = arith.constant dense<0.000000e+00> : vector<16x32xf32>
    %10 = tpu.matmul %1, %3, %cst_6 {dimension_numbers = #tpu.dot_dimension_numbers<[1], [0], [0], [1], [0, 0, 1, 1], [], []>} : vector<16x8xf32>, vector<8x32xf32>, vector<16x32xf32> -> vector<16x32xf32>
    %11 = vector.broadcast %6 : vector<16x1xf32> to vector<16x32xf32>
    %12 = vector.broadcast %9 : vector<1x32xf32> to vector<16x32xf32>
    %13 = arith.addf %11, %12 : vector<16x32xf32>
    %cst_7 = arith.constant 2.000000e+00 : f32
    %14 = vector.broadcast %cst_7 : f32 to vector<16x32xf32>
    %15 = arith.mulf %14, %10 : vector<16x32xf32>
    %16 = arith.subf %13, %15 : vector<16x32xf32>
    %cst_8 = arith.constant 0.000000e+00 : f32
    %17 = vector.broadcast %cst_8 : f32 to vector<16x32xf32>
    %18 = arith.maximumf %16, %17 : vector<16x32xf32>
    %c0_9 = arith.constant 0 : index
    %c0_10 = arith.constant 0 : index
    %c0_11 = arith.constant 0 : index
    %19 = vector.load %arg4[%c0_9, %c0_10, %c0_11] : memref<1x16x32xf32, #tpu.memory_space<vmem>>, vector<1x16x32xf32>
    %20 = vector.shape_cast %19 : vector<1x16x32xf32> to vector<16x32xf32>
    %21 = vector.shape_cast %18 : vector<16x32xf32> to vector<1x16x32xf32>
    tpu.vector_store %arg4[%c0_9, %c0_10, %c0_11], %21 {strides = array<i32>} : memref<1x16x32xf32, #tpu.memory_space<vmem>>, vector<1x16x32xf32>,
    return
  }
  func.func @transform_0(%arg0: i32, %arg1: i32) -> (i32, i32, i32) {
    %c0_i32 = arith.constant 0 : i32
    %c0_i32_0 = arith.constant 0 : i32
    return %arg0, %arg1, %c0_i32 : i32, i32, i32
  }
  func.func @transform_1(%arg0: i32, %arg1: i32) -> (i32, i32, i32) {
    %c0_i32 = arith.constant 0 : i32
    %c0_i32_0 = arith.constant 0 : i32
    %c0_i32_1 = arith.constant 0 : i32
    return %arg0, %c0_i32, %c0_i32_0 : i32, i32, i32
  }
  func.func @transform_2(%arg0: i32, %arg1: i32) -> (i32, i32, i32) {
    %c0_i32 = arith.constant 0 : i32
    %c0_i32_0 = arith.constant 0 : i32
    return %arg0, %arg1, %c0_i32 : i32, i32, i32
  }
}

module attributes {stable_mosaic.version = 11 : i64} {
  func.func @_sa_mlp_pool_kernel(%arg0: i32, %arg1: memref<512x35xbf16, #tpu.memory_space<vmem>>, %arg2: memref<35x16xbf16, #tpu.memory_space<vmem>>, %arg3: memref<1x16xf32, #tpu.memory_space<vmem>>, %arg4: memref<16x32xbf16, #tpu.memory_space<vmem>>, %arg5: memref<1x32xf32, #tpu.memory_space<vmem>>, %arg6: memref<32x32xf32, #tpu.memory_space<vmem>>) attributes {dimension_semantics = [#tpu.dimension_semantics<parallel>], iteration_bounds = array<i64: 1>, scalar_prefetch = 0 : i64, scratch_operands = 0 : i64, tpu.core_type = #tpu.core_type<tc>, window_params = [{transform_indices = @transform_0, window_bounds = array<i64: 512, 35>}, {pipeline_mode = #tpu.pipeline_mode<synchronous>, transform_indices = @transform_1, window_bounds = array<i64: 35, 16>}, {pipeline_mode = #tpu.pipeline_mode<synchronous>, transform_indices = @transform_2, window_bounds = array<i64: 1, 16>}, {pipeline_mode = #tpu.pipeline_mode<synchronous>, transform_indices = @transform_3, window_bounds = array<i64: 16, 32>}, {pipeline_mode = #tpu.pipeline_mode<synchronous>, transform_indices = @transform_4, window_bounds = array<i64: 1, 32>}, {transform_indices = @transform_5, window_bounds = array<i64: 32, 32>}]} {
    %c0 = arith.constant 0 : index
    %c0_0 = arith.constant 0 : index
    %0 = vector.load %arg1[%c0, %c0_0] : memref<512x35xbf16, #tpu.memory_space<vmem>>, vector<512x35xbf16>
    %c0_1 = arith.constant 0 : index
    %c0_2 = arith.constant 0 : index
    %1 = vector.load %arg2[%c0_1, %c0_2] : memref<35x16xbf16, #tpu.memory_space<vmem>>, vector<35x16xbf16>
    %cst = arith.constant dense<0.000000e+00> : vector<512x16xf32>
    %2 = tpu.matmul %0, %1, %cst {dimension_numbers = #tpu.dot_dimension_numbers<[1], [0], [0], [1], [0, 0, 1, 1], [], []>} : vector<512x35xbf16>, vector<35x16xbf16>, vector<512x16xf32> -> vector<512x16xf32>
    %c0_3 = arith.constant 0 : index
    %c0_4 = arith.constant 0 : index
    %3 = vector.load %arg3[%c0_3, %c0_4] : memref<1x16xf32, #tpu.memory_space<vmem>>, vector<1x16xf32>
    %4 = vector.broadcast %3 : vector<1x16xf32> to vector<512x16xf32>
    %5 = arith.addf %2, %4 : vector<512x16xf32>
    %cst_5 = arith.constant 0.000000e+00 : f32
    %6 = vector.broadcast %cst_5 : f32 to vector<512x16xf32>
    %7 = arith.maximumf %5, %6 : vector<512x16xf32>
    %8 = arith.truncf %7 : vector<512x16xf32> to vector<512x16xbf16>
    %c0_6 = arith.constant 0 : index
    %c0_7 = arith.constant 0 : index
    %9 = vector.load %arg4[%c0_6, %c0_7] : memref<16x32xbf16, #tpu.memory_space<vmem>>, vector<16x32xbf16>
    %cst_8 = arith.constant dense<0.000000e+00> : vector<512x32xf32>
    %10 = tpu.matmul %8, %9, %cst_8 {dimension_numbers = #tpu.dot_dimension_numbers<[1], [0], [0], [1], [0, 0, 1, 1], [], []>} : vector<512x16xbf16>, vector<16x32xbf16>, vector<512x32xf32> -> vector<512x32xf32>
    %c0_9 = arith.constant 0 : index
    %c0_10 = arith.constant 0 : index
    %11 = vector.load %arg5[%c0_9, %c0_10] : memref<1x32xf32, #tpu.memory_space<vmem>>, vector<1x32xf32>
    %12 = vector.broadcast %11 : vector<1x32xf32> to vector<512x32xf32>
    %13 = arith.addf %10, %12 : vector<512x32xf32>
    %cst_11 = arith.constant 0.000000e+00 : f32
    %14 = vector.broadcast %cst_11 : f32 to vector<512x32xf32>
    %15 = arith.maximumf %13, %14 : vector<512x32xf32>
    %16 = vector.shape_cast %15 : vector<512x32xf32> to vector<32x16x32xf32>
    %cst_12 = arith.constant dense<0xFF800000> : vector<32x32xf32>
    %17 = vector.multi_reduction <maximumf>, %16, %cst_12 [1] : vector<32x16x32xf32> to vector<32x32xf32>
    %c0_13 = arith.constant 0 : index
    %c0_14 = arith.constant 0 : index
    %18 = vector.load %arg6[%c0_13, %c0_14] : memref<32x32xf32, #tpu.memory_space<vmem>>, vector<32x32xf32>
    tpu.vector_store %arg6[%c0_13, %c0_14], %17 {strides = array<i32>} : memref<32x32xf32, #tpu.memory_space<vmem>>, vector<32x32xf32>,
    return
  }
  func.func @transform_0(%arg0: i32) -> (i32, i32) {
    %c0_i32 = arith.constant 0 : i32
    %c0_i32_0 = arith.constant 0 : i32
    return %arg0, %c0_i32 : i32, i32
  }
  func.func @transform_1(%arg0: i32) -> (i32, i32) {
    %c0_i32 = arith.constant 0 : i32
    %c0_i32_0 = arith.constant 0 : i32
    %c0_i32_1 = arith.constant 0 : i32
    return %c0_i32, %c0_i32_0 : i32, i32
  }
  func.func @transform_2(%arg0: i32) -> (i32, i32) {
    %c0_i32 = arith.constant 0 : i32
    %c0_i32_0 = arith.constant 0 : i32
    %c0_i32_1 = arith.constant 0 : i32
    return %c0_i32, %c0_i32_0 : i32, i32
  }
  func.func @transform_3(%arg0: i32) -> (i32, i32) {
    %c0_i32 = arith.constant 0 : i32
    %c0_i32_0 = arith.constant 0 : i32
    %c0_i32_1 = arith.constant 0 : i32
    return %c0_i32, %c0_i32_0 : i32, i32
  }
  func.func @transform_4(%arg0: i32) -> (i32, i32) {
    %c0_i32 = arith.constant 0 : i32
    %c0_i32_0 = arith.constant 0 : i32
    %c0_i32_1 = arith.constant 0 : i32
    return %c0_i32, %c0_i32_0 : i32, i32
  }
  func.func @transform_5(%arg0: i32) -> (i32, i32) {
    %c0_i32 = arith.constant 0 : i32
    %c0_i32_0 = arith.constant 0 : i32
    return %arg0, %c0_i32 : i32, i32
  }
}

module attributes {stable_mosaic.version = 11 : i64} {
  func.func @_sa_mlp_pool_kernel(%arg0: i32, %arg1: memref<256x35xbf16, #tpu.memory_space<vmem>>, %arg2: memref<35x16xbf16, #tpu.memory_space<vmem>>, %arg3: memref<1x16xf32, #tpu.memory_space<vmem>>, %arg4: memref<16x32xbf16, #tpu.memory_space<vmem>>, %arg5: memref<1x32xf32, #tpu.memory_space<vmem>>, %arg6: memref<32x32xf32, #tpu.memory_space<vmem>>) attributes {dimension_semantics = [#tpu.dimension_semantics<parallel>], iteration_bounds = array<i64: 1>, scalar_prefetch = 0 : i64, scratch_operands = 0 : i64, tpu.core_type = #tpu.core_type<tc>, window_params = [{transform_indices = @transform_0, window_bounds = array<i64: 256, 35>}, {pipeline_mode = #tpu.pipeline_mode<synchronous>, transform_indices = @transform_1, window_bounds = array<i64: 35, 16>}, {pipeline_mode = #tpu.pipeline_mode<synchronous>, transform_indices = @transform_2, window_bounds = array<i64: 1, 16>}, {pipeline_mode = #tpu.pipeline_mode<synchronous>, transform_indices = @transform_3, window_bounds = array<i64: 16, 32>}, {pipeline_mode = #tpu.pipeline_mode<synchronous>, transform_indices = @transform_4, window_bounds = array<i64: 1, 32>}, {transform_indices = @transform_5, window_bounds = array<i64: 32, 32>}]} {
    %c0 = arith.constant 0 : index
    %c0_0 = arith.constant 0 : index
    %0 = vector.load %arg1[%c0, %c0_0] : memref<256x35xbf16, #tpu.memory_space<vmem>>, vector<256x35xbf16>
    %c0_1 = arith.constant 0 : index
    %c0_2 = arith.constant 0 : index
    %1 = vector.load %arg2[%c0_1, %c0_2] : memref<35x16xbf16, #tpu.memory_space<vmem>>, vector<35x16xbf16>
    %cst = arith.constant dense<0.000000e+00> : vector<256x16xf32>
    %2 = tpu.matmul %0, %1, %cst {dimension_numbers = #tpu.dot_dimension_numbers<[1], [0], [0], [1], [0, 0, 1, 1], [], []>} : vector<256x35xbf16>, vector<35x16xbf16>, vector<256x16xf32> -> vector<256x16xf32>
    %c0_3 = arith.constant 0 : index
    %c0_4 = arith.constant 0 : index
    %3 = vector.load %arg3[%c0_3, %c0_4] : memref<1x16xf32, #tpu.memory_space<vmem>>, vector<1x16xf32>
    %4 = vector.broadcast %3 : vector<1x16xf32> to vector<256x16xf32>
    %5 = arith.addf %2, %4 : vector<256x16xf32>
    %cst_5 = arith.constant 0.000000e+00 : f32
    %6 = vector.broadcast %cst_5 : f32 to vector<256x16xf32>
    %7 = arith.maximumf %5, %6 : vector<256x16xf32>
    %8 = arith.truncf %7 : vector<256x16xf32> to vector<256x16xbf16>
    %c0_6 = arith.constant 0 : index
    %c0_7 = arith.constant 0 : index
    %9 = vector.load %arg4[%c0_6, %c0_7] : memref<16x32xbf16, #tpu.memory_space<vmem>>, vector<16x32xbf16>
    %cst_8 = arith.constant dense<0.000000e+00> : vector<256x32xf32>
    %10 = tpu.matmul %8, %9, %cst_8 {dimension_numbers = #tpu.dot_dimension_numbers<[1], [0], [0], [1], [0, 0, 1, 1], [], []>} : vector<256x16xbf16>, vector<16x32xbf16>, vector<256x32xf32> -> vector<256x32xf32>
    %c0_9 = arith.constant 0 : index
    %c0_10 = arith.constant 0 : index
    %11 = vector.load %arg5[%c0_9, %c0_10] : memref<1x32xf32, #tpu.memory_space<vmem>>, vector<1x32xf32>
    %12 = vector.broadcast %11 : vector<1x32xf32> to vector<256x32xf32>
    %13 = arith.addf %10, %12 : vector<256x32xf32>
    %cst_11 = arith.constant 0.000000e+00 : f32
    %14 = vector.broadcast %cst_11 : f32 to vector<256x32xf32>
    %15 = arith.maximumf %13, %14 : vector<256x32xf32>
    %16 = vector.shape_cast %15 : vector<256x32xf32> to vector<32x8x32xf32>
    %cst_12 = arith.constant dense<0xFF800000> : vector<32x32xf32>
    %17 = vector.multi_reduction <maximumf>, %16, %cst_12 [1] : vector<32x8x32xf32> to vector<32x32xf32>
    %c0_13 = arith.constant 0 : index
    %c0_14 = arith.constant 0 : index
    %18 = vector.load %arg6[%c0_13, %c0_14] : memref<32x32xf32, #tpu.memory_space<vmem>>, vector<32x32xf32>
    tpu.vector_store %arg6[%c0_13, %c0_14], %17 {strides = array<i32>} : memref<32x32xf32, #tpu.memory_space<vmem>>, vector<32x32xf32>,
    return
  }
  func.func @transform_0(%arg0: i32) -> (i32, i32) {
    %c0_i32 = arith.constant 0 : i32
    %c0_i32_0 = arith.constant 0 : i32
    return %arg0, %c0_i32 : i32, i32
  }
  func.func @transform_1(%arg0: i32) -> (i32, i32) {
    %c0_i32 = arith.constant 0 : i32
    %c0_i32_0 = arith.constant 0 : i32
    %c0_i32_1 = arith.constant 0 : i32
    return %c0_i32, %c0_i32_0 : i32, i32
  }
  func.func @transform_2(%arg0: i32) -> (i32, i32) {
    %c0_i32 = arith.constant 0 : i32
    %c0_i32_0 = arith.constant 0 : i32
    %c0_i32_1 = arith.constant 0 : i32
    return %c0_i32, %c0_i32_0 : i32, i32
  }
  func.func @transform_3(%arg0: i32) -> (i32, i32) {
    %c0_i32 = arith.constant 0 : i32
    %c0_i32_0 = arith.constant 0 : i32
    %c0_i32_1 = arith.constant 0 : i32
    return %c0_i32, %c0_i32_0 : i32, i32
  }
  func.func @transform_4(%arg0: i32) -> (i32, i32) {
    %c0_i32 = arith.constant 0 : i32
    %c0_i32_0 = arith.constant 0 : i32
    %c0_i32_1 = arith.constant 0 : i32
    return %c0_i32, %c0_i32_0 : i32, i32
  }
  func.func @transform_5(%arg0: i32) -> (i32, i32) {
    %c0_i32 = arith.constant 0 : i32
    %c0_i32_0 = arith.constant 0 : i32
    return %arg0, %c0_i32 : i32, i32
  }
}

module attributes {stable_mosaic.version = 11 : i64} {
  func.func @_sqdist_kernel(%arg0: i32, %arg1: i32, %arg2: memref<1x8x8xf32, #tpu.memory_space<vmem>>, %arg3: memref<1x8x16xf32, #tpu.memory_space<vmem>>, %arg4: memref<1x8x16xf32, #tpu.memory_space<vmem>>) attributes {dimension_semantics = [#tpu.dimension_semantics<parallel>, #tpu.dimension_semantics<parallel>], iteration_bounds = array<i64: 2, 1>, scalar_prefetch = 0 : i64, scratch_operands = 0 : i64, tpu.core_type = #tpu.core_type<tc>, window_params = [{transform_indices = @transform_0, window_bounds = array<i64: 1, 8, 8>}, {transform_indices = @transform_1, window_bounds = array<i64: 1, 8, 16>}, {transform_indices = @transform_2, window_bounds = array<i64: 1, 8, 16>}]} {
    %c0 = arith.constant 0 : index
    %c0_0 = arith.constant 0 : index
    %c0_1 = arith.constant 0 : index
    %0 = vector.load %arg2[%c0, %c0_0, %c0_1] : memref<1x8x8xf32, #tpu.memory_space<vmem>>, vector<1x8x8xf32>
    %1 = vector.shape_cast %0 : vector<1x8x8xf32> to vector<8x8xf32>
    %c0_2 = arith.constant 0 : index
    %c0_3 = arith.constant 0 : index
    %c0_4 = arith.constant 0 : index
    %2 = vector.load %arg3[%c0_2, %c0_3, %c0_4] : memref<1x8x16xf32, #tpu.memory_space<vmem>>, vector<1x8x16xf32>
    %3 = vector.shape_cast %2 : vector<1x8x16xf32> to vector<8x16xf32>
    %4 = arith.mulf %1, %1 : vector<8x8xf32>
    %cst = arith.constant dense<0.000000e+00> : vector<8xf32>
    %5 = vector.multi_reduction <add>, %4, %cst [1] : vector<8x8xf32> to vector<8xf32>
    %6 = vector.shape_cast %5 : vector<8xf32> to vector<8x1xf32>
    %7 = arith.mulf %3, %3 : vector<8x16xf32>
    %cst_5 = arith.constant dense<0.000000e+00> : vector<16xf32>
    %8 = vector.multi_reduction <add>, %7, %cst_5 [0] : vector<8x16xf32> to vector<16xf32>
    %9 = vector.shape_cast %8 : vector<16xf32> to vector<1x16xf32>
    %cst_6 = arith.constant dense<0.000000e+00> : vector<8x16xf32>
    %10 = tpu.matmul %1, %3, %cst_6 {dimension_numbers = #tpu.dot_dimension_numbers<[1], [0], [0], [1], [0, 0, 1, 1], [], []>} : vector<8x8xf32>, vector<8x16xf32>, vector<8x16xf32> -> vector<8x16xf32>
    %11 = vector.broadcast %6 : vector<8x1xf32> to vector<8x16xf32>
    %12 = vector.broadcast %9 : vector<1x16xf32> to vector<8x16xf32>
    %13 = arith.addf %11, %12 : vector<8x16xf32>
    %cst_7 = arith.constant 2.000000e+00 : f32
    %14 = vector.broadcast %cst_7 : f32 to vector<8x16xf32>
    %15 = arith.mulf %14, %10 : vector<8x16xf32>
    %16 = arith.subf %13, %15 : vector<8x16xf32>
    %cst_8 = arith.constant 0.000000e+00 : f32
    %17 = vector.broadcast %cst_8 : f32 to vector<8x16xf32>
    %18 = arith.maximumf %16, %17 : vector<8x16xf32>
    %c0_9 = arith.constant 0 : index
    %c0_10 = arith.constant 0 : index
    %c0_11 = arith.constant 0 : index
    %19 = vector.load %arg4[%c0_9, %c0_10, %c0_11] : memref<1x8x16xf32, #tpu.memory_space<vmem>>, vector<1x8x16xf32>
    %20 = vector.shape_cast %19 : vector<1x8x16xf32> to vector<8x16xf32>
    %21 = vector.shape_cast %18 : vector<8x16xf32> to vector<1x8x16xf32>
    tpu.vector_store %arg4[%c0_9, %c0_10, %c0_11], %21 {strides = array<i32>} : memref<1x8x16xf32, #tpu.memory_space<vmem>>, vector<1x8x16xf32>,
    return
  }
  func.func @transform_0(%arg0: i32, %arg1: i32) -> (i32, i32, i32) {
    %c0_i32 = arith.constant 0 : i32
    %c0_i32_0 = arith.constant 0 : i32
    return %arg0, %arg1, %c0_i32 : i32, i32, i32
  }
  func.func @transform_1(%arg0: i32, %arg1: i32) -> (i32, i32, i32) {
    %c0_i32 = arith.constant 0 : i32
    %c0_i32_0 = arith.constant 0 : i32
    %c0_i32_1 = arith.constant 0 : i32
    return %arg0, %c0_i32, %c0_i32_0 : i32, i32, i32
  }
  func.func @transform_2(%arg0: i32, %arg1: i32) -> (i32, i32, i32) {
    %c0_i32 = arith.constant 0 : i32
    %c0_i32_0 = arith.constant 0 : i32
    return %arg0, %arg1, %c0_i32 : i32, i32, i32
  }
}

module attributes {stable_mosaic.version = 11 : i64} {
  func.func @_sa_mlp_pool_kernel(%arg0: i32, %arg1: memref<128x67xbf16, #tpu.memory_space<vmem>>, %arg2: memref<67x32xbf16, #tpu.memory_space<vmem>>, %arg3: memref<1x32xf32, #tpu.memory_space<vmem>>, %arg4: memref<32x64xbf16, #tpu.memory_space<vmem>>, %arg5: memref<1x64xf32, #tpu.memory_space<vmem>>, %arg6: memref<16x64xf32, #tpu.memory_space<vmem>>) attributes {dimension_semantics = [#tpu.dimension_semantics<parallel>], iteration_bounds = array<i64: 1>, scalar_prefetch = 0 : i64, scratch_operands = 0 : i64, tpu.core_type = #tpu.core_type<tc>, window_params = [{transform_indices = @transform_0, window_bounds = array<i64: 128, 67>}, {pipeline_mode = #tpu.pipeline_mode<synchronous>, transform_indices = @transform_1, window_bounds = array<i64: 67, 32>}, {pipeline_mode = #tpu.pipeline_mode<synchronous>, transform_indices = @transform_2, window_bounds = array<i64: 1, 32>}, {pipeline_mode = #tpu.pipeline_mode<synchronous>, transform_indices = @transform_3, window_bounds = array<i64: 32, 64>}, {pipeline_mode = #tpu.pipeline_mode<synchronous>, transform_indices = @transform_4, window_bounds = array<i64: 1, 64>}, {transform_indices = @transform_5, window_bounds = array<i64: 16, 64>}]} {
    %c0 = arith.constant 0 : index
    %c0_0 = arith.constant 0 : index
    %0 = vector.load %arg1[%c0, %c0_0] : memref<128x67xbf16, #tpu.memory_space<vmem>>, vector<128x67xbf16>
    %c0_1 = arith.constant 0 : index
    %c0_2 = arith.constant 0 : index
    %1 = vector.load %arg2[%c0_1, %c0_2] : memref<67x32xbf16, #tpu.memory_space<vmem>>, vector<67x32xbf16>
    %cst = arith.constant dense<0.000000e+00> : vector<128x32xf32>
    %2 = tpu.matmul %0, %1, %cst {dimension_numbers = #tpu.dot_dimension_numbers<[1], [0], [0], [1], [0, 0, 1, 1], [], []>} : vector<128x67xbf16>, vector<67x32xbf16>, vector<128x32xf32> -> vector<128x32xf32>
    %c0_3 = arith.constant 0 : index
    %c0_4 = arith.constant 0 : index
    %3 = vector.load %arg3[%c0_3, %c0_4] : memref<1x32xf32, #tpu.memory_space<vmem>>, vector<1x32xf32>
    %4 = vector.broadcast %3 : vector<1x32xf32> to vector<128x32xf32>
    %5 = arith.addf %2, %4 : vector<128x32xf32>
    %cst_5 = arith.constant 0.000000e+00 : f32
    %6 = vector.broadcast %cst_5 : f32 to vector<128x32xf32>
    %7 = arith.maximumf %5, %6 : vector<128x32xf32>
    %8 = arith.truncf %7 : vector<128x32xf32> to vector<128x32xbf16>
    %c0_6 = arith.constant 0 : index
    %c0_7 = arith.constant 0 : index
    %9 = vector.load %arg4[%c0_6, %c0_7] : memref<32x64xbf16, #tpu.memory_space<vmem>>, vector<32x64xbf16>
    %cst_8 = arith.constant dense<0.000000e+00> : vector<128x64xf32>
    %10 = tpu.matmul %8, %9, %cst_8 {dimension_numbers = #tpu.dot_dimension_numbers<[1], [0], [0], [1], [0, 0, 1, 1], [], []>} : vector<128x32xbf16>, vector<32x64xbf16>, vector<128x64xf32> -> vector<128x64xf32>
    %c0_9 = arith.constant 0 : index
    %c0_10 = arith.constant 0 : index
    %11 = vector.load %arg5[%c0_9, %c0_10] : memref<1x64xf32, #tpu.memory_space<vmem>>, vector<1x64xf32>
    %12 = vector.broadcast %11 : vector<1x64xf32> to vector<128x64xf32>
    %13 = arith.addf %10, %12 : vector<128x64xf32>
    %cst_11 = arith.constant 0.000000e+00 : f32
    %14 = vector.broadcast %cst_11 : f32 to vector<128x64xf32>
    %15 = arith.maximumf %13, %14 : vector<128x64xf32>
    %16 = vector.shape_cast %15 : vector<128x64xf32> to vector<16x8x64xf32>
    %cst_12 = arith.constant dense<0xFF800000> : vector<16x64xf32>
    %17 = vector.multi_reduction <maximumf>, %16, %cst_12 [1] : vector<16x8x64xf32> to vector<16x64xf32>
    %c0_13 = arith.constant 0 : index
    %c0_14 = arith.constant 0 : index
    %18 = vector.load %arg6[%c0_13, %c0_14] : memref<16x64xf32, #tpu.memory_space<vmem>>, vector<16x64xf32>
    tpu.vector_store %arg6[%c0_13, %c0_14], %17 {strides = array<i32>} : memref<16x64xf32, #tpu.memory_space<vmem>>, vector<16x64xf32>,
    return
  }
  func.func @transform_0(%arg0: i32) -> (i32, i32) {
    %c0_i32 = arith.constant 0 : i32
    %c0_i32_0 = arith.constant 0 : i32
    return %arg0, %c0_i32 : i32, i32
  }
  func.func @transform_1(%arg0: i32) -> (i32, i32) {
    %c0_i32 = arith.constant 0 : i32
    %c0_i32_0 = arith.constant 0 : i32
    %c0_i32_1 = arith.constant 0 : i32
    return %c0_i32, %c0_i32_0 : i32, i32
  }
  func.func @transform_2(%arg0: i32) -> (i32, i32) {
    %c0_i32 = arith.constant 0 : i32
    %c0_i32_0 = arith.constant 0 : i32
    %c0_i32_1 = arith.constant 0 : i32
    return %c0_i32, %c0_i32_0 : i32, i32
  }
  func.func @transform_3(%arg0: i32) -> (i32, i32) {
    %c0_i32 = arith.constant 0 : i32
    %c0_i32_0 = arith.constant 0 : i32
    %c0_i32_1 = arith.constant 0 : i32
    return %c0_i32, %c0_i32_0 : i32, i32
  }
  func.func @transform_4(%arg0: i32) -> (i32, i32) {
    %c0_i32 = arith.constant 0 : i32
    %c0_i32_0 = arith.constant 0 : i32
    %c0_i32_1 = arith.constant 0 : i32
    return %c0_i32, %c0_i32_0 : i32, i32
  }
  func.func @transform_5(%arg0: i32) -> (i32, i32) {
    %c0_i32 = arith.constant 0 : i32
    %c0_i32_0 = arith.constant 0 : i32
    return %arg0, %c0_i32 : i32, i32
  }
}

module attributes {stable_mosaic.version = 11 : i64} {
  func.func @_sqdist_kernel(%arg0: i32, %arg1: i32, %arg2: memref<1x16x8xf32, #tpu.memory_space<vmem>>, %arg3: memref<1x8x8xf32, #tpu.memory_space<vmem>>, %arg4: memref<1x16x8xf32, #tpu.memory_space<vmem>>) attributes {dimension_semantics = [#tpu.dimension_semantics<parallel>, #tpu.dimension_semantics<parallel>], iteration_bounds = array<i64: 2, 1>, scalar_prefetch = 0 : i64, scratch_operands = 0 : i64, tpu.core_type = #tpu.core_type<tc>, window_params = [{transform_indices = @transform_0, window_bounds = array<i64: 1, 16, 8>}, {transform_indices = @transform_1, window_bounds = array<i64: 1, 8, 8>}, {transform_indices = @transform_2, window_bounds = array<i64: 1, 16, 8>}]} {
    %c0 = arith.constant 0 : index
    %c0_0 = arith.constant 0 : index
    %c0_1 = arith.constant 0 : index
    %0 = vector.load %arg2[%c0, %c0_0, %c0_1] : memref<1x16x8xf32, #tpu.memory_space<vmem>>, vector<1x16x8xf32>
    %1 = vector.shape_cast %0 : vector<1x16x8xf32> to vector<16x8xf32>
    %c0_2 = arith.constant 0 : index
    %c0_3 = arith.constant 0 : index
    %c0_4 = arith.constant 0 : index
    %2 = vector.load %arg3[%c0_2, %c0_3, %c0_4] : memref<1x8x8xf32, #tpu.memory_space<vmem>>, vector<1x8x8xf32>
    %3 = vector.shape_cast %2 : vector<1x8x8xf32> to vector<8x8xf32>
    %4 = arith.mulf %1, %1 : vector<16x8xf32>
    %cst = arith.constant dense<0.000000e+00> : vector<16xf32>
    %5 = vector.multi_reduction <add>, %4, %cst [1] : vector<16x8xf32> to vector<16xf32>
    %6 = vector.shape_cast %5 : vector<16xf32> to vector<16x1xf32>
    %7 = arith.mulf %3, %3 : vector<8x8xf32>
    %cst_5 = arith.constant dense<0.000000e+00> : vector<8xf32>
    %8 = vector.multi_reduction <add>, %7, %cst_5 [0] : vector<8x8xf32> to vector<8xf32>
    %9 = vector.shape_cast %8 : vector<8xf32> to vector<1x8xf32>
    %cst_6 = arith.constant dense<0.000000e+00> : vector<16x8xf32>
    %10 = tpu.matmul %1, %3, %cst_6 {dimension_numbers = #tpu.dot_dimension_numbers<[1], [0], [0], [1], [0, 0, 1, 1], [], []>} : vector<16x8xf32>, vector<8x8xf32>, vector<16x8xf32> -> vector<16x8xf32>
    %11 = vector.broadcast %6 : vector<16x1xf32> to vector<16x8xf32>
    %12 = vector.broadcast %9 : vector<1x8xf32> to vector<16x8xf32>
    %13 = arith.addf %11, %12 : vector<16x8xf32>
    %cst_7 = arith.constant 2.000000e+00 : f32
    %14 = vector.broadcast %cst_7 : f32 to vector<16x8xf32>
    %15 = arith.mulf %14, %10 : vector<16x8xf32>
    %16 = arith.subf %13, %15 : vector<16x8xf32>
    %cst_8 = arith.constant 0.000000e+00 : f32
    %17 = vector.broadcast %cst_8 : f32 to vector<16x8xf32>
    %18 = arith.maximumf %16, %17 : vector<16x8xf32>
    %c0_9 = arith.constant 0 : index
    %c0_10 = arith.constant 0 : index
    %c0_11 = arith.constant 0 : index
    %19 = vector.load %arg4[%c0_9, %c0_10, %c0_11] : memref<1x16x8xf32, #tpu.memory_space<vmem>>, vector<1x16x8xf32>
    %20 = vector.shape_cast %19 : vector<1x16x8xf32> to vector<16x8xf32>
    %21 = vector.shape_cast %18 : vector<16x8xf32> to vector<1x16x8xf32>
    tpu.vector_store %arg4[%c0_9, %c0_10, %c0_11], %21 {strides = array<i32>} : memref<1x16x8xf32, #tpu.memory_space<vmem>>, vector<1x16x8xf32>,
    return
  }
  func.func @transform_0(%arg0: i32, %arg1: i32) -> (i32, i32, i32) {
    %c0_i32 = arith.constant 0 : i32
    %c0_i32_0 = arith.constant 0 : i32
    return %arg0, %arg1, %c0_i32 : i32, i32, i32
  }
  func.func @transform_1(%arg0: i32, %arg1: i32) -> (i32, i32, i32) {
    %c0_i32 = arith.constant 0 : i32
    %c0_i32_0 = arith.constant 0 : i32
    %c0_i32_1 = arith.constant 0 : i32
    return %arg0, %c0_i32, %c0_i32_0 : i32, i32, i32
  }
  func.func @transform_2(%arg0: i32, %arg1: i32) -> (i32, i32, i32) {
    %c0_i32 = arith.constant 0 : i32
    %c0_i32_0 = arith.constant 0 : i32
    return %arg0, %arg1, %c0_i32 : i32, i32, i32
  }
}

module attributes {stable_mosaic.version = 11 : i64} {
  func.func @_linear_kernel(%arg0: i32, %arg1: memref<32x192xbf16, #tpu.memory_space<vmem>>, %arg2: memref<192x64xbf16, #tpu.memory_space<vmem>>, %arg3: memref<1x64xf32, #tpu.memory_space<vmem>>, %arg4: memref<32x64xf32, #tpu.memory_space<vmem>>) attributes {dimension_semantics = [#tpu.dimension_semantics<parallel>], iteration_bounds = array<i64: 1>, scalar_prefetch = 0 : i64, scratch_operands = 0 : i64, tpu.core_type = #tpu.core_type<tc>, window_params = [{transform_indices = @transform_0, window_bounds = array<i64: 32, 192>}, {pipeline_mode = #tpu.pipeline_mode<synchronous>, transform_indices = @transform_1, window_bounds = array<i64: 192, 64>}, {pipeline_mode = #tpu.pipeline_mode<synchronous>, transform_indices = @transform_2, window_bounds = array<i64: 1, 64>}, {transform_indices = @transform_3, window_bounds = array<i64: 32, 64>}]} {
    %c0 = arith.constant 0 : index
    %c0_0 = arith.constant 0 : index
    %0 = vector.load %arg1[%c0, %c0_0] : memref<32x192xbf16, #tpu.memory_space<vmem>>, vector<32x192xbf16>
    %c0_1 = arith.constant 0 : index
    %c0_2 = arith.constant 0 : index
    %1 = vector.load %arg2[%c0_1, %c0_2] : memref<192x64xbf16, #tpu.memory_space<vmem>>, vector<192x64xbf16>
    %cst = arith.constant dense<0.000000e+00> : vector<32x64xf32>
    %2 = tpu.matmul %0, %1, %cst {dimension_numbers = #tpu.dot_dimension_numbers<[1], [0], [0], [1], [0, 0, 1, 1], [], []>} : vector<32x192xbf16>, vector<192x64xbf16>, vector<32x64xf32> -> vector<32x64xf32>
    %c0_3 = arith.constant 0 : index
    %c0_4 = arith.constant 0 : index
    %3 = vector.load %arg3[%c0_3, %c0_4] : memref<1x64xf32, #tpu.memory_space<vmem>>, vector<1x64xf32>
    %4 = vector.broadcast %3 : vector<1x64xf32> to vector<32x64xf32>
    %5 = arith.addf %2, %4 : vector<32x64xf32>
    %cst_5 = arith.constant 0.000000e+00 : f32
    %6 = vector.broadcast %cst_5 : f32 to vector<32x64xf32>
    %7 = arith.maximumf %5, %6 : vector<32x64xf32>
    %c0_6 = arith.constant 0 : index
    %c0_7 = arith.constant 0 : index
    %8 = vector.load %arg4[%c0_6, %c0_7] : memref<32x64xf32, #tpu.memory_space<vmem>>, vector<32x64xf32>
    tpu.vector_store %arg4[%c0_6, %c0_7], %7 {strides = array<i32>} : memref<32x64xf32, #tpu.memory_space<vmem>>, vector<32x64xf32>,
    return
  }
  func.func @transform_0(%arg0: i32) -> (i32, i32) {
    %c0_i32 = arith.constant 0 : i32
    %c0_i32_0 = arith.constant 0 : i32
    return %arg0, %c0_i32 : i32, i32
  }
  func.func @transform_1(%arg0: i32) -> (i32, i32) {
    %c0_i32 = arith.constant 0 : i32
    %c0_i32_0 = arith.constant 0 : i32
    %c0_i32_1 = arith.constant 0 : i32
    return %c0_i32, %c0_i32_0 : i32, i32
  }
  func.func @transform_2(%arg0: i32) -> (i32, i32) {
    %c0_i32 = arith.constant 0 : i32
    %c0_i32_0 = arith.constant 0 : i32
    %c0_i32_1 = arith.constant 0 : i32
    return %c0_i32, %c0_i32_0 : i32, i32
  }
  func.func @transform_3(%arg0: i32) -> (i32, i32) {
    %c0_i32 = arith.constant 0 : i32
    %c0_i32_0 = arith.constant 0 : i32
    return %arg0, %c0_i32 : i32, i32
  }
}

module attributes {stable_mosaic.version = 11 : i64} {
  func.func @_sqdist_kernel(%arg0: i32, %arg1: i32, %arg2: memref<1x32x8xf32, #tpu.memory_space<vmem>>, %arg3: memref<1x8x16xf32, #tpu.memory_space<vmem>>, %arg4: memref<1x32x16xf32, #tpu.memory_space<vmem>>) attributes {dimension_semantics = [#tpu.dimension_semantics<parallel>, #tpu.dimension_semantics<parallel>], iteration_bounds = array<i64: 2, 1>, scalar_prefetch = 0 : i64, scratch_operands = 0 : i64, tpu.core_type = #tpu.core_type<tc>, window_params = [{transform_indices = @transform_0, window_bounds = array<i64: 1, 32, 8>}, {transform_indices = @transform_1, window_bounds = array<i64: 1, 8, 16>}, {transform_indices = @transform_2, window_bounds = array<i64: 1, 32, 16>}]} {
    %c0 = arith.constant 0 : index
    %c0_0 = arith.constant 0 : index
    %c0_1 = arith.constant 0 : index
    %0 = vector.load %arg2[%c0, %c0_0, %c0_1] : memref<1x32x8xf32, #tpu.memory_space<vmem>>, vector<1x32x8xf32>
    %1 = vector.shape_cast %0 : vector<1x32x8xf32> to vector<32x8xf32>
    %c0_2 = arith.constant 0 : index
    %c0_3 = arith.constant 0 : index
    %c0_4 = arith.constant 0 : index
    %2 = vector.load %arg3[%c0_2, %c0_3, %c0_4] : memref<1x8x16xf32, #tpu.memory_space<vmem>>, vector<1x8x16xf32>
    %3 = vector.shape_cast %2 : vector<1x8x16xf32> to vector<8x16xf32>
    %4 = arith.mulf %1, %1 : vector<32x8xf32>
    %cst = arith.constant dense<0.000000e+00> : vector<32xf32>
    %5 = vector.multi_reduction <add>, %4, %cst [1] : vector<32x8xf32> to vector<32xf32>
    %6 = vector.shape_cast %5 : vector<32xf32> to vector<32x1xf32>
    %7 = arith.mulf %3, %3 : vector<8x16xf32>
    %cst_5 = arith.constant dense<0.000000e+00> : vector<16xf32>
    %8 = vector.multi_reduction <add>, %7, %cst_5 [0] : vector<8x16xf32> to vector<16xf32>
    %9 = vector.shape_cast %8 : vector<16xf32> to vector<1x16xf32>
    %cst_6 = arith.constant dense<0.000000e+00> : vector<32x16xf32>
    %10 = tpu.matmul %1, %3, %cst_6 {dimension_numbers = #tpu.dot_dimension_numbers<[1], [0], [0], [1], [0, 0, 1, 1], [], []>} : vector<32x8xf32>, vector<8x16xf32>, vector<32x16xf32> -> vector<32x16xf32>
    %11 = vector.broadcast %6 : vector<32x1xf32> to vector<32x16xf32>
    %12 = vector.broadcast %9 : vector<1x16xf32> to vector<32x16xf32>
    %13 = arith.addf %11, %12 : vector<32x16xf32>
    %cst_7 = arith.constant 2.000000e+00 : f32
    %14 = vector.broadcast %cst_7 : f32 to vector<32x16xf32>
    %15 = arith.mulf %14, %10 : vector<32x16xf32>
    %16 = arith.subf %13, %15 : vector<32x16xf32>
    %cst_8 = arith.constant 0.000000e+00 : f32
    %17 = vector.broadcast %cst_8 : f32 to vector<32x16xf32>
    %18 = arith.maximumf %16, %17 : vector<32x16xf32>
    %c0_9 = arith.constant 0 : index
    %c0_10 = arith.constant 0 : index
    %c0_11 = arith.constant 0 : index
    %19 = vector.load %arg4[%c0_9, %c0_10, %c0_11] : memref<1x32x16xf32, #tpu.memory_space<vmem>>, vector<1x32x16xf32>
    %20 = vector.shape_cast %19 : vector<1x32x16xf32> to vector<32x16xf32>
    %21 = vector.shape_cast %18 : vector<32x16xf32> to vector<1x32x16xf32>
    tpu.vector_store %arg4[%c0_9, %c0_10, %c0_11], %21 {strides = array<i32>} : memref<1x32x16xf32, #tpu.memory_space<vmem>>, vector<1x32x16xf32>,
    return
  }
  func.func @transform_0(%arg0: i32, %arg1: i32) -> (i32, i32, i32) {
    %c0_i32 = arith.constant 0 : i32
    %c0_i32_0 = arith.constant 0 : i32
    return %arg0, %arg1, %c0_i32 : i32, i32, i32
  }
  func.func @transform_1(%arg0: i32, %arg1: i32) -> (i32, i32, i32) {
    %c0_i32 = arith.constant 0 : i32
    %c0_i32_0 = arith.constant 0 : i32
    %c0_i32_1 = arith.constant 0 : i32
    return %arg0, %c0_i32, %c0_i32_0 : i32, i32, i32
  }
  func.func @transform_2(%arg0: i32, %arg1: i32) -> (i32, i32, i32) {
    %c0_i32 = arith.constant 0 : i32
    %c0_i32_0 = arith.constant 0 : i32
    return %arg0, %arg1, %c0_i32 : i32, i32, i32
  }
}

module attributes {stable_mosaic.version = 11 : i64} {
  func.func @_linear_kernel(%arg0: i32, %arg1: memref<64x96xbf16, #tpu.memory_space<vmem>>, %arg2: memref<96x32xbf16, #tpu.memory_space<vmem>>, %arg3: memref<1x32xf32, #tpu.memory_space<vmem>>, %arg4: memref<64x32xf32, #tpu.memory_space<vmem>>) attributes {dimension_semantics = [#tpu.dimension_semantics<parallel>], iteration_bounds = array<i64: 1>, scalar_prefetch = 0 : i64, scratch_operands = 0 : i64, tpu.core_type = #tpu.core_type<tc>, window_params = [{transform_indices = @transform_0, window_bounds = array<i64: 64, 96>}, {pipeline_mode = #tpu.pipeline_mode<synchronous>, transform_indices = @transform_1, window_bounds = array<i64: 96, 32>}, {pipeline_mode = #tpu.pipeline_mode<synchronous>, transform_indices = @transform_2, window_bounds = array<i64: 1, 32>}, {transform_indices = @transform_3, window_bounds = array<i64: 64, 32>}]} {
    %c0 = arith.constant 0 : index
    %c0_0 = arith.constant 0 : index
    %0 = vector.load %arg1[%c0, %c0_0] : memref<64x96xbf16, #tpu.memory_space<vmem>>, vector<64x96xbf16>
    %c0_1 = arith.constant 0 : index
    %c0_2 = arith.constant 0 : index
    %1 = vector.load %arg2[%c0_1, %c0_2] : memref<96x32xbf16, #tpu.memory_space<vmem>>, vector<96x32xbf16>
    %cst = arith.constant dense<0.000000e+00> : vector<64x32xf32>
    %2 = tpu.matmul %0, %1, %cst {dimension_numbers = #tpu.dot_dimension_numbers<[1], [0], [0], [1], [0, 0, 1, 1], [], []>} : vector<64x96xbf16>, vector<96x32xbf16>, vector<64x32xf32> -> vector<64x32xf32>
    %c0_3 = arith.constant 0 : index
    %c0_4 = arith.constant 0 : index
    %3 = vector.load %arg3[%c0_3, %c0_4] : memref<1x32xf32, #tpu.memory_space<vmem>>, vector<1x32xf32>
    %4 = vector.broadcast %3 : vector<1x32xf32> to vector<64x32xf32>
    %5 = arith.addf %2, %4 : vector<64x32xf32>
    %cst_5 = arith.constant 0.000000e+00 : f32
    %6 = vector.broadcast %cst_5 : f32 to vector<64x32xf32>
    %7 = arith.maximumf %5, %6 : vector<64x32xf32>
    %c0_6 = arith.constant 0 : index
    %c0_7 = arith.constant 0 : index
    %8 = vector.load %arg4[%c0_6, %c0_7] : memref<64x32xf32, #tpu.memory_space<vmem>>, vector<64x32xf32>
    tpu.vector_store %arg4[%c0_6, %c0_7], %7 {strides = array<i32>} : memref<64x32xf32, #tpu.memory_space<vmem>>, vector<64x32xf32>,
    return
  }
  func.func @transform_0(%arg0: i32) -> (i32, i32) {
    %c0_i32 = arith.constant 0 : i32
    %c0_i32_0 = arith.constant 0 : i32
    return %arg0, %c0_i32 : i32, i32
  }
  func.func @transform_1(%arg0: i32) -> (i32, i32) {
    %c0_i32 = arith.constant 0 : i32
    %c0_i32_0 = arith.constant 0 : i32
    %c0_i32_1 = arith.constant 0 : i32
    return %c0_i32, %c0_i32_0 : i32, i32
  }
  func.func @transform_2(%arg0: i32) -> (i32, i32) {
    %c0_i32 = arith.constant 0 : i32
    %c0_i32_0 = arith.constant 0 : i32
    %c0_i32_1 = arith.constant 0 : i32
    return %c0_i32, %c0_i32_0 : i32, i32
  }
  func.func @transform_3(%arg0: i32) -> (i32, i32) {
    %c0_i32 = arith.constant 0 : i32
    %c0_i32_0 = arith.constant 0 : i32
    return %arg0, %c0_i32 : i32, i32
  }
}

module attributes {stable_mosaic.version = 11 : i64} {
  func.func @_sqdist_kernel(%arg0: i32, %arg1: i32, %arg2: memref<1x64x8xf32, #tpu.memory_space<vmem>>, %arg3: memref<1x8x32xf32, #tpu.memory_space<vmem>>, %arg4: memref<1x64x32xf32, #tpu.memory_space<vmem>>) attributes {dimension_semantics = [#tpu.dimension_semantics<parallel>, #tpu.dimension_semantics<parallel>], iteration_bounds = array<i64: 2, 1>, scalar_prefetch = 0 : i64, scratch_operands = 0 : i64, tpu.core_type = #tpu.core_type<tc>, window_params = [{transform_indices = @transform_0, window_bounds = array<i64: 1, 64, 8>}, {transform_indices = @transform_1, window_bounds = array<i64: 1, 8, 32>}, {transform_indices = @transform_2, window_bounds = array<i64: 1, 64, 32>}]} {
    %c0 = arith.constant 0 : index
    %c0_0 = arith.constant 0 : index
    %c0_1 = arith.constant 0 : index
    %0 = vector.load %arg2[%c0, %c0_0, %c0_1] : memref<1x64x8xf32, #tpu.memory_space<vmem>>, vector<1x64x8xf32>
    %1 = vector.shape_cast %0 : vector<1x64x8xf32> to vector<64x8xf32>
    %c0_2 = arith.constant 0 : index
    %c0_3 = arith.constant 0 : index
    %c0_4 = arith.constant 0 : index
    %2 = vector.load %arg3[%c0_2, %c0_3, %c0_4] : memref<1x8x32xf32, #tpu.memory_space<vmem>>, vector<1x8x32xf32>
    %3 = vector.shape_cast %2 : vector<1x8x32xf32> to vector<8x32xf32>
    %4 = arith.mulf %1, %1 : vector<64x8xf32>
    %cst = arith.constant dense<0.000000e+00> : vector<64xf32>
    %5 = vector.multi_reduction <add>, %4, %cst [1] : vector<64x8xf32> to vector<64xf32>
    %6 = vector.shape_cast %5 : vector<64xf32> to vector<64x1xf32>
    %7 = arith.mulf %3, %3 : vector<8x32xf32>
    %cst_5 = arith.constant dense<0.000000e+00> : vector<32xf32>
    %8 = vector.multi_reduction <add>, %7, %cst_5 [0] : vector<8x32xf32> to vector<32xf32>
    %9 = vector.shape_cast %8 : vector<32xf32> to vector<1x32xf32>
    %cst_6 = arith.constant dense<0.000000e+00> : vector<64x32xf32>
    %10 = tpu.matmul %1, %3, %cst_6 {dimension_numbers = #tpu.dot_dimension_numbers<[1], [0], [0], [1], [0, 0, 1, 1], [], []>} : vector<64x8xf32>, vector<8x32xf32>, vector<64x32xf32> -> vector<64x32xf32>
    %11 = vector.broadcast %6 : vector<64x1xf32> to vector<64x32xf32>
    %12 = vector.broadcast %9 : vector<1x32xf32> to vector<64x32xf32>
    %13 = arith.addf %11, %12 : vector<64x32xf32>
    %cst_7 = arith.constant 2.000000e+00 : f32
    %14 = vector.broadcast %cst_7 : f32 to vector<64x32xf32>
    %15 = arith.mulf %14, %10 : vector<64x32xf32>
    %16 = arith.subf %13, %15 : vector<64x32xf32>
    %cst_8 = arith.constant 0.000000e+00 : f32
    %17 = vector.broadcast %cst_8 : f32 to vector<64x32xf32>
    %18 = arith.maximumf %16, %17 : vector<64x32xf32>
    %c0_9 = arith.constant 0 : index
    %c0_10 = arith.constant 0 : index
    %c0_11 = arith.constant 0 : index
    %19 = vector.load %arg4[%c0_9, %c0_10, %c0_11] : memref<1x64x32xf32, #tpu.memory_space<vmem>>, vector<1x64x32xf32>
    %20 = vector.shape_cast %19 : vector<1x64x32xf32> to vector<64x32xf32>
    %21 = vector.shape_cast %18 : vector<64x32xf32> to vector<1x64x32xf32>
    tpu.vector_store %arg4[%c0_9, %c0_10, %c0_11], %21 {strides = array<i32>} : memref<1x64x32xf32, #tpu.memory_space<vmem>>, vector<1x64x32xf32>,
    return
  }
  func.func @transform_0(%arg0: i32, %arg1: i32) -> (i32, i32, i32) {
    %c0_i32 = arith.constant 0 : i32
    %c0_i32_0 = arith.constant 0 : i32
    return %arg0, %arg1, %c0_i32 : i32, i32, i32
  }
  func.func @transform_1(%arg0: i32, %arg1: i32) -> (i32, i32, i32) {
    %c0_i32 = arith.constant 0 : i32
    %c0_i32_0 = arith.constant 0 : i32
    %c0_i32_1 = arith.constant 0 : i32
    return %arg0, %c0_i32, %c0_i32_0 : i32, i32, i32
  }
  func.func @transform_2(%arg0: i32, %arg1: i32) -> (i32, i32, i32) {
    %c0_i32 = arith.constant 0 : i32
    %c0_i32_0 = arith.constant 0 : i32
    return %arg0, %arg1, %c0_i32 : i32, i32, i32
  }
}

module attributes {stable_mosaic.version = 11 : i64} {
  func.func @_linear_kernel(%arg0: i32, %arg1: memref<128x33xbf16, #tpu.memory_space<vmem>>, %arg2: memref<33x32xbf16, #tpu.memory_space<vmem>>, %arg3: memref<1x32xf32, #tpu.memory_space<vmem>>, %arg4: memref<128x32xf32, #tpu.memory_space<vmem>>) attributes {dimension_semantics = [#tpu.dimension_semantics<parallel>], iteration_bounds = array<i64: 1>, scalar_prefetch = 0 : i64, scratch_operands = 0 : i64, tpu.core_type = #tpu.core_type<tc>, window_params = [{transform_indices = @transform_0, window_bounds = array<i64: 128, 33>}, {pipeline_mode = #tpu.pipeline_mode<synchronous>, transform_indices = @transform_1, window_bounds = array<i64: 33, 32>}, {pipeline_mode = #tpu.pipeline_mode<synchronous>, transform_indices = @transform_2, window_bounds = array<i64: 1, 32>}, {transform_indices = @transform_3, window_bounds = array<i64: 128, 32>}]} {
    %c0 = arith.constant 0 : index
    %c0_0 = arith.constant 0 : index
    %0 = vector.load %arg1[%c0, %c0_0] : memref<128x33xbf16, #tpu.memory_space<vmem>>, vector<128x33xbf16>
    %c0_1 = arith.constant 0 : index
    %c0_2 = arith.constant 0 : index
    %1 = vector.load %arg2[%c0_1, %c0_2] : memref<33x32xbf16, #tpu.memory_space<vmem>>, vector<33x32xbf16>
    %cst = arith.constant dense<0.000000e+00> : vector<128x32xf32>
    %2 = tpu.matmul %0, %1, %cst {dimension_numbers = #tpu.dot_dimension_numbers<[1], [0], [0], [1], [0, 0, 1, 1], [], []>} : vector<128x33xbf16>, vector<33x32xbf16>, vector<128x32xf32> -> vector<128x32xf32>
    %c0_3 = arith.constant 0 : index
    %c0_4 = arith.constant 0 : index
    %3 = vector.load %arg3[%c0_3, %c0_4] : memref<1x32xf32, #tpu.memory_space<vmem>>, vector<1x32xf32>
    %4 = vector.broadcast %3 : vector<1x32xf32> to vector<128x32xf32>
    %5 = arith.addf %2, %4 : vector<128x32xf32>
    %cst_5 = arith.constant 0.000000e+00 : f32
    %6 = vector.broadcast %cst_5 : f32 to vector<128x32xf32>
    %7 = arith.maximumf %5, %6 : vector<128x32xf32>
    %c0_6 = arith.constant 0 : index
    %c0_7 = arith.constant 0 : index
    %8 = vector.load %arg4[%c0_6, %c0_7] : memref<128x32xf32, #tpu.memory_space<vmem>>, vector<128x32xf32>
    tpu.vector_store %arg4[%c0_6, %c0_7], %7 {strides = array<i32>} : memref<128x32xf32, #tpu.memory_space<vmem>>, vector<128x32xf32>,
    return
  }
  func.func @transform_0(%arg0: i32) -> (i32, i32) {
    %c0_i32 = arith.constant 0 : i32
    %c0_i32_0 = arith.constant 0 : i32
    return %arg0, %c0_i32 : i32, i32
  }
  func.func @transform_1(%arg0: i32) -> (i32, i32) {
    %c0_i32 = arith.constant 0 : i32
    %c0_i32_0 = arith.constant 0 : i32
    %c0_i32_1 = arith.constant 0 : i32
    return %c0_i32, %c0_i32_0 : i32, i32
  }
  func.func @transform_2(%arg0: i32) -> (i32, i32) {
    %c0_i32 = arith.constant 0 : i32
    %c0_i32_0 = arith.constant 0 : i32
    %c0_i32_1 = arith.constant 0 : i32
    return %c0_i32, %c0_i32_0 : i32, i32
  }
  func.func @transform_3(%arg0: i32) -> (i32, i32) {
    %c0_i32 = arith.constant 0 : i32
    %c0_i32_0 = arith.constant 0 : i32
    return %arg0, %c0_i32 : i32, i32
  }
}

</mosaic_0001>

<llo_original>
// kernel: neg.12
$region0: #{neg.12}
  #allocation0 [shape = 's32[1]{0}', space=sflag, size = 0x4, scoped, tag = 'scoped memory for neg.12']
  %s0 = inlined_call_operand.vmem [shape: f32[2,32,64], index: 0, kind: input, shape index: {}]
  %s1 = inlined_call_operand.vmem [shape: f32[2,32,64], index: 1, kind: output, shape index: {}]
  %v2 = vld [vmem:[%s0] sm:$0xff]
  %3 = xla_tuple %v2
  %4 = xla_tuple %3
  %v5 = vxor.u32 %v2, 2147483648
  %6 = xla_tuple %v5
  %7 = vst [vmem:[%s1] sm:$0xff] %v5
  %s8 = scalar_lea.vmem %s0, 32
  %v9 = vld [vmem:[%s8] sm:$0xff]
  %10 = xla_tuple %v9
  %11 = xla_tuple %10
  %v12 = vxor.u32 %v9, 2147483648
  %13 = xla_tuple %v12
  %s14 = scalar_lea.vmem %s1, 32
  %15 = vst [vmem:[%s14] sm:$0xff] %v12
  %s16 = scalar_lea.vmem %s0, 8
  %v17 = vld [vmem:[%s16] sm:$0xff]
  %18 = xla_tuple %v17
  %19 = xla_tuple %18
  %v20 = vxor.u32 %v17, 2147483648
  %21 = xla_tuple %v20
  %s22 = scalar_lea.vmem %s1, 8
  %23 = vst [vmem:[%s22] sm:$0xff] %v20
  %s24 = scalar_lea.vmem %s0, 40
  %v25 = vld [vmem:[%s24] sm:$0xff]
  %26 = xla_tuple %v25
  %27 = xla_tuple %26
  %v28 = vxor.u32 %v25, 2147483648
  %29 = xla_tuple %v28
  %s30 = scalar_lea.vmem %s1, 40
  %31 = vst [vmem:[%s30] sm:$0xff] %v28
  %s32 = scalar_lea.vmem %s0, 16
  %v33 = vld [vmem:[%s32] sm:$0xff]
  %34 = xla_tuple %v33
  %35 = xla_tuple %34
  %v36 = vxor.u32 %v33, 2147483648
  %37 = xla_tuple %v36
  %s38 = scalar_lea.vmem %s1, 16
  %39 = vst [vmem:[%s38] sm:$0xff] %v36
  %s40 = scalar_lea.vmem %s0, 48
  %v41 = vld [vmem:[%s40] sm:$0xff]
  %42 = xla_tuple %v41
  %43 = xla_tuple %42
  %v44 = vxor.u32 %v41, 2147483648
  %45 = xla_tuple %v44
  %s46 = scalar_lea.vmem %s1, 48
  %47 = vst [vmem:[%s46] sm:$0xff] %v44
  %s48 = scalar_lea.vmem %s0, 24
  %v49 = vld [vmem:[%s48] sm:$0xff]
  %50 = xla_tuple %v49
  %51 = xla_tuple %50
  %v52 = vxor.u32 %v49, 2147483648
  %53 = xla_tuple %v52
  %s54 = scalar_lea.vmem %s1, 24
  %55 = vst [vmem:[%s54] sm:$0xff] %v52
  %s56 = scalar_lea.vmem %s0, 56
  %v57 = vld [vmem:[%s56] sm:$0xff]
  %58 = xla_tuple %v57
  %59 = xla_tuple %58
  %v60 = vxor.u32 %v57, 2147483648
  %61 = xla_tuple %v60
  %s62 = scalar_lea.vmem %s1, 56
  %63 = vst [vmem:[%s62] sm:$0xff] %v60

// kernel: pointnet2_layer_forward.15
$region0: #{pointnet2_layer_forward.15}
  #allocation0 [shape = 'u32[]', space=smem, size = 0x4, offset = 0x4, fixed_abs, tag = 'smem constant byte address 0x4 - core index']
  #allocation1 [shape = 'u32[144,128]{1,0:T(1,128)}', space=vmem, size = 0x12000, scoped, tag = 'internal scratch']
  %s0 = inlined_call_operand.vmem [shape: f32[2,32,8], index: 0, kind: input, shape index: {}]
  %s1 = inlined_call_operand.vmem [shape: f32[2,8,64], index: 1, kind: input, shape index: {}]
  %s2 = inlined_call_operand.vmem [shape: f32[2,32,64], index: 2, kind: output, shape index: {}]
  %s3 = sld [smem:[#allocation0]]
  $region41: #{pointnet2_layer_forward.15} parent=0
    _
  %s5 = ssub.s32 1, %s3
  %s6 = scalar_select 0, %s5, %s3
  loop: start=0, step=1, limit=4
  $region2: #{pointnet2_layer_forward.15} parent=0 // loop_pre_header
    _
  $region3: #{pointnet2_layer_forward.15} parent=0 // loop_header
    %s8 = sphi 0, %s12
    %p9 = scmp.ge.s32.totalorder %s8, 4
    %s15 = sphi 0, %s27
    %s16 = sphi 0, %s23
    %s17 = sphi 0, %s15
    %s18 = sphi 0, %s16
    %s19 = sphi 0, %s17
    %s20 = sphi 0, %s18
    %s32 = sphi 0, %s34
    %s35 = sphi 0, %s32
    %s36 = sphi 0, %s35
    %s52 = sphi 0, %s36
    %s58 = sphi 0, %s60
    %s61 = sphi 0, %s58
    %s62 = sphi 0, %s61
    %s78 = sphi 0, %s62
    %s86 = sphi 0, %s88
    %s89 = sphi 0, %s86
    %s90 = sphi 0, %s89
    %s106 = sphi 0, %s90
  $region4: #{pointnet2_layer_forward.15} parent=0 // loop_header_branch
    %11 = sbr.rel (%p9) target = $region8
  $region5: #{pointnet2_layer_forward.15} parent=0 // loop_body
    %s13 = ssub.s32 %s8, 1
    %s14 = ssub.s32 %s8, 2
    %s21 = sadd.s32 1, %s16
    %p22 = scmp.ge.s32.totalorder %s21, 1
    %s23 = scalar_select %p22, 0, %s21
    %s24 = sadd.s32 1, %s15
    %s25 = scalar_select %p22, %s24, %s15
    %p26 = scmp.ge.s32.totalorder %s25, 2
    %s27 = scalar_select %p26, 0, %s25
    %s28 = ssub.s32 %s15, %s27
    %s29 = ssub.s32 %s16, %s23
    %s30 = sor.u32 %s28, %s29
    %p31 = scmp.eq.s32.totalorder %s30, 0
    %s33 = sadd.s32 %s32, 1
    %s34 = scalar_select %p31, %s32, %s33
    %p37 = pneg %p31
    %p38 = scmp.eq.s32.totalorder %s8, 1
    %p39 = por %p37, %p38
    %p40 = scmp.ne.s32.totalorder %s32, %s35
    %p41 = scmp.eq.s32.totalorder %s8, 0
    %p42 = por %p40, %p41
    %p43 = scmp.ne.s32.totalorder %s32, %s35
    %p44 = scmp.eq.s32.totalorder %s13, 1
    %p45 = por %p43, %p44
    %p46 = scmp.ne.s32.totalorder %s35, %s36
    %p47 = scmp.eq.s32.totalorder %s13, 0
    %p48 = por %p46, %p47
    %p49 = scmp.ne.s32.totalorder %s35, %s36
    %p50 = scmp.eq.s32.totalorder %s14, 1
    %p51 = por %p49, %p50
    %p53 = scmp.ne.s32.totalorder %s36, %s52
    %p54 = scmp.eq.s32.totalorder %s14, 0
    %p55 = por %p53, %p54
    %s56 = ssub.s32 %s15, %s27
    %p57 = scmp.eq.s32.totalorder %s56, 0
    %s59 = sadd.s32 %s58, 1
    %s60 = scalar_select %p57, %s58, %s59
    %p63 = pneg %p57
    %p64 = scmp.eq.s32.totalorder %s8, 1
    %p65 = por %p63, %p64
    %p66 = scmp.ne.s32.totalorder %s58, %s61
    %p67 = scmp.eq.s32.totalorder %s8, 0
    %p68 = por %p66, %p67
    %p69 = scmp.ne.s32.totalorder %s58, %s61
    %p70 = scmp.eq.s32.totalorder %s13, 1
    %p71 = por %p69, %p70
    %p72 = scmp.ne.s32.totalorder %s61, %s62
    %p73 = scmp.eq.s32.totalorder %s13, 0
    %p74 = por %p72, %p73
    %p75 = scmp.ne.s32.totalorder %s61, %s62
    %p76 = scmp.eq.s32.totalorder %s14, 1
    %p77 = por %p75, %p76
    %p79 = scmp.ne.s32.totalorder %s62, %s78
    %p80 = scmp.eq.s32.totalorder %s14, 0
    %p81 = por %p79, %p80
    %s82 = ssub.s32 %s15, %s27
    %s83 = ssub.s32 %s16, %s23
    %s84 = sor.u32 %s82, %s83
    %p85 = scmp.eq.s32.totalorder %s84, 0
    %s87 = sadd.s32 %s86, 1
    %s88 = scalar_select %p85, %s86, %s87
    %p91 = pneg %p85
    %p92 = scmp.eq.s32.totalorder %s8, 1
    %p93 = por %p91, %p92
    %p94 = scmp.ne.s32.totalorder %s86, %s89
    %p95 = scmp.eq.s32.totalorder %s8, 0
    %p96 = por %p94, %p95
    %p97 = scmp.ne.s32.totalorder %s86, %s89
    %p98 = scmp.eq.s32.totalorder %s13, 1
    %p99 = por %p97, %p98
    %p100 = scmp.ne.s32.totalorder %s89, %s90
    %p101 = scmp.eq.s32.totalorder %s13, 0
    %p102 = por %p100, %p101
    %p103 = scmp.ne.s32.totalorder %s89, %s90
    %p104 = scmp.eq.s32.totalorder %s14, 1
    %p105 = por %p103, %p104
    %p107 = scmp.ne.s32.totalorder %s90, %s106
    %p108 = scmp.eq.s32.totalorder %s14, 0
    %p109 = por %p107, %p108
    %p110 = scmp.le.s32.totalorder 1, %s8
    %p111 = scmp.lt.s32.totalorder %s8, 3
    %p112 = pnand %p110, %p111
    %p113 = pneg %p112
    // Predicated region
    $region9: #{pointnet2_layer_forward.15} parent=5 // pred_check
      _
    $region10: #{pointnet2_layer_forward.15} parent=5 // pred_check_branch
      %115 = sbr.rel (%p112) target = $region12
    $region11: #{pointnet2_layer_forward.15} parent=5 // pred_region
      %s116 = ssub.s32 %s8, 1
    $region12: #{pointnet2_layer_forward.15} parent=5 // pred_fallthru
      _
    %p117 = scmp.lt.s32.totalorder %s8, 2
    // Predicated region
    $region13: #{pointnet2_layer_forward.15} parent=5 // pred_check
      %p118 = pneg %p117
    $region14: #{pointnet2_layer_forward.15} parent=5 // pred_check_branch
      %120 = sbr.rel (%p118) target = $region16
    $region15: #{pointnet2_layer_forward.15} parent=5 // pred_region
      // Predicated region
      $region17: #{pointnet2_layer_forward.15} parent=15 // pred_check
        %p121 = pneg %p42
      $region18: #{pointnet2_layer_forward.15} parent=15 // pred_check_branch
        %123 = sbr.rel (%p121) target = $region20
      $region19: #{pointnet2_layer_forward.15} parent=15 // pred_region
        %s124 = smul.u32 4, %s16
        %p125 = scmp.lt.s32.totalorder %s15, 1
        %s126 = scalar_select %p125, %s15, 1
        %p127 = scmp.lt.s32.totalorder %s124, 3
        %s128 = scalar_select %p127, %s124, 3
        %s129 = smul.addr %s126, 4
        %s130 = sadd.s32 %s128, %s129
        %s131 = smul.addr %s130, 8
        %s132 = scalar_lea.vmem %s0, %s131
        %s133 = smul.u32 4, %s16
      $region20: #{pointnet2_layer_forward.15} parent=15 // pred_fallthru
        _
      // Predicated region
      $region21: #{pointnet2_layer_forward.15} parent=15 // pred_check
        %p134 = pneg %p68
      $region22: #{pointnet2_layer_forward.15} parent=15 // pred_check_branch
        %136 = sbr.rel (%p134) target = $region24
      $region23: #{pointnet2_layer_forward.15} parent=15 // pred_region
        %p137 = scmp.lt.s32.totalorder %s15, 1
        %s138 = scalar_select %p137, %s15, 1
        %s139 = smul.addr %s138, 8
        %s140 = scalar_lea.vmem %s1, %s139
      $region24: #{pointnet2_layer_forward.15} parent=15 // pred_fallthru
        _
    $region16: #{pointnet2_layer_forward.15} parent=5 // pred_fallthru
      _
    %p141 = scmp.le.s32.totalorder 1, %s8
    %p142 = scmp.lt.s32.totalorder %s8, 3
    %p143 = pnand %p141, %p142
    %p144 = pneg %p143
    // Predicated region
    $region25: #{pointnet2_layer_forward.15} parent=5 // pred_check
      _
    $region26: #{pointnet2_layer_forward.15} parent=5 // pred_check_branch
      %146 = sbr.rel (%p143) target = $region28
    $region27: #{pointnet2_layer_forward.15} parent=5 // pred_region
      %s147 = ssub.s32 %s8, 1
      %s148 = smul.u32 4, %s18
      %p149 = scmp.lt.s32.totalorder %s17, 1
      %s150 = scalar_select %p149, %s17, 1
      %p151 = scmp.lt.s32.totalorder %s148, 3
      %s152 = scalar_select %p151, %s148, 3
      %s153 = smul.addr %s150, 4
      %s154 = sadd.s32 %s152, %s153
      %s155 = smul.addr %s154, 8
      %s156 = scalar_lea.vmem %s0, %s155
      %p157 = pneg %p48
      %p158 = pneg %p45
      %p159 = scmp.lt.s32.totalorder %s17, 1
      %s160 = scalar_select %p159, %s17, 1
      %s161 = smul.addr %s160, 8
      %s162 = scalar_lea.vmem %s1, %s161
      %p163 = pneg %p74
      %p164 = pneg %p71
      %p165 = pneg %p102
      %p166 = pneg %p99
      %s167 = smul.u32 4, %s18
      %p168 = scmp.lt.s32.totalorder %s17, 1
      %s169 = scalar_select %p168, %s17, 1
      %p170 = scmp.lt.s32.totalorder %s167, 3
      %s171 = scalar_select %p170, %s167, 3
      %s172 = smul.addr %s169, 4
      %s173 = sadd.s32 %s171, %s172
      %s174 = smul.addr %s173, 8
      %s175 = scalar_lea.vmem %s2, %s174
      %s176 = smul.u32 4, %s18
      %p177 = scmp.lt.s32.totalorder %s17, 1
      %s178 = scalar_select %p177, %s17, 1
      %p179 = scmp.lt.s32.totalorder %s176, 3
      %s180 = scalar_select %p179, %s176, 3
      %s181 = smul.addr %s178, 4
      %s182 = sadd.s32 %s180, %s181
      %s183 = smul.addr %s182, 8
      %s184 = scalar_lea.vmem %s0, %s183
      %s185 = smul.u32 4, %s18
      %p186 = scmp.lt.s32.totalorder %s17, 1
      %s187 = scalar_select %p186, %s17, 1
      %s188 = smul.addr %s187, 8
      %s189 = scalar_lea.vmem %s1, %s188
      %s190 = smul.u32 4, %s18
      %p191 = scmp.lt.s32.totalorder %s17, 1
      %s192 = scalar_select %p191, %s17, 1
      %p193 = scmp.lt.s32.totalorder %s190, 3
      %s194 = scalar_select %p193, %s190, 3
      %s195 = smul.addr %s192, 4
      %s196 = sadd.s32 %s194, %s195
      %s197 = smul.addr %s196, 8
      %s198 = scalar_lea.vmem %s2, %s197
      %s199 = smul.u32 4, %s18
      %v200 = vld [vmem:[%s184] sm:$0xff]
      %v201 = vld [vmem:[%s184 + $0x8] sm:$0xff]
      %v202 = vld [vmem:[%s184 + $0x10] sm:$0xff]
      %v203 = vld [vmem:[%s184 + $0x18] sm:$0xff]
      %v204 = vld [vmem:[%s189] sm:$0xff]
      %v205 = vmul.f32 %v200, %v200
      %v206 = vmul.f32 %v201, %v201
      %v207 = vmul.f32 %v202, %v202
      %v208 = vmul.f32 %v203, %v203
      %vm209 = vcmask 64512
      %v210 = vsel %vm209, %v205, 0.0
      %211 = vadd.xlane.f32.xlu0 %v210
      %v212 = vpop.xlane.xlu0 %211
      %v213 = vsel %vm209, %v206, 0.0
      %214 = vadd.xlane.f32.xlu0 %v213
      %v215 = vpop.xlane.xlu0 %214
      %v216 = vsel %vm209, %v207, 0.0
      %217 = vadd.xlane.f32.xlu0 %v216
      %v218 = vpop.xlane.xlu0 %217
      %v219 = vsel %vm209, %v208, 0.0
      %220 = vadd.xlane.f32.xlu0 %v219
      %v221 = vpop.xlane.xlu0 %220
      %v222 = vmul.f32 %v204, %v204
      %vm223 = vcmask 523264
      %v224 = vsel %vm223, %v222, 0.0
      %v225 = vrot.slane %v224, 4
      %v226 = vadd.f32 %v224, %v225
      %v227 = vrot.slane %v226, 2
      %v228 = vadd.f32 %v226, %v227
      %v229 = vrot.slane %v228, 1
      %v230 = vadd.f32 %v228, %v229
      %v232 = vsel %vm209, %v200, 0
      %v235 = vsel %vm209, %v201, 0
      %v238 = vsel %vm209, %v202, 0
      %v241 = vsel %vm209, %v203, 0
      %243 = vmatprep.subr.mxu0 0.0
      %244 = vmatpush1.msra.mxu0 %v204
      %245 = vmatprep.subr.mxu0 0.0
      %246 = vmatpush1.msra.mxu0 0.0
      %247 = vmatprep.subr.mxu0 0.0
      %248 = vmatpush1.msra.mxu0 0.0
      %249 = vmatprep.subr.mxu0 0.0
      %250 = vmatpush1.msra.mxu0 0.0
      %251 = vmatprep.subr.mxu0 0.0
      %252 = vmatpush1.msra.mxu0 0.0
      %253 = vmatprep.subr.mxu0 0.0
      %254 = vmatpush1.msra.mxu0 0.0
      %255 = vmatprep.subr.mxu0 0.0
      %256 = vmatpush1.msra.mxu0 0.0
      %257 = vmatprep.subr.mxu0 0.0
      %258 = vmatpush1.msra.mxu0 0.0
      %259 = vmatprep.subr.mxu0 0.0
      %260 = vmatpush1.msra.mxu0 0.0
      %261 = vmatprep.subr.mxu0 0.0
      %262 = vmatpush1.msra.mxu0 0.0
      %263 = vmatprep.subr.mxu0 0.0
      %264 = vmatpush1.msra.mxu0 0.0
      %265 = vmatprep.subr.mxu0 0.0
      %266 = vmatpush1.msra.mxu0 0.0
      %267 = vmatprep.subr.mxu0 0.0
      %268 = vmatpush1.msra.mxu0 0.0
      %269 = vmatprep.subr.mxu0 0.0
      %270 = vmatpush1.msra.mxu0 0.0
      %271 = vmatprep.subr.mxu0 0.0
      %272 = vmatpush1.msra.mxu0 0.0
      %273 = vmatprep.subr.mxu0 0.0
      %274 = vmatpush1.msra.mxu0 0.0
      %275 = vmatprep.subr.mxu0 0.0
      %276 = vmatpush1.msra.mxu0 0.0
      %277 = vmatprep.subr.mxu0 0.0
      %278 = vmatpush1.msra.mxu0 0.0
      %279 = vmatprep.subr.mxu0 0.0
      %280 = vmatpush1.msra.mxu0 0.0
      %281 = vmatprep.subr.mxu0 0.0
      %282 = vmatpush1.msra.mxu0 0.0
      %283 = vmatprep.subr.mxu0 0.0
      %284 = vmatpush1.msra.mxu0 0.0
      %285 = vmatprep.subr.mxu0 0.0
      %286 = vmatpush1.msra.mxu0 0.0
      %287 = vmatprep.subr.mxu0 0.0
      %288 = vmatpush1.msra.mxu0 0.0
      %289 = vmatprep.subr.mxu0 0.0
      %290 = vmatpush1.msra.mxu0 0.0
      %291 = vmatprep.subr.mxu0 0.0
      %292 = vmatpush1.msra.mxu0 0.0
      %293 = vmatprep.subr.mxu0 0.0
      %294 = vmatpush1.msra.mxu0 0.0
      %295 = vmatprep.subr.mxu0 0.0
      %296 = vmatpush1.msra.mxu0 0.0
      %297 = vmatprep.subr.mxu0 0.0
      %298 = vmatpush1.msra.mxu0 0.0
      %299 = vmatprep.subr.mxu0 0.0
      %300 = vmatpush1.msra.mxu0 0.0
      %301 = vmatprep.subr.mxu0 0.0
      %302 = vmatpush1.msra.mxu0 0.0
      %303 = vmatprep.subr.mxu0 0.0
      %304 = vmatpush1.msra.mxu0 0.0
      %305 = vmatprep.subr.mxu0 0.0
      %306 = vmatpush1.msra.mxu0 0.0
      %307 = vmatprep.mubr.f32.mxu0 0.0
      %308 = vmatmul.mubr.f32.gmra.mrb[0].mxu0 %v232
      %v309 = vpop.f32.mrb[0].mxu0
      %v310 = vadd.f32 0.0, %v309
      %v311 = vpop.f32.mrb[0].mxu0
      %312 = vmatprep.mubr.f32.mxu0 0.0
      %313 = vmatmul.mubr.f32.gmra.mrb[0].mxu0 %v235
      %v314 = vpop.f32.mrb[0].mxu0
      %v315 = vadd.f32 0.0, %v314
      %v316 = vpop.f32.mrb[0].mxu0
      %317 = vmatprep.mubr.f32.mxu0 0.0
      %318 = vmatmul.mubr.f32.gmra.mrb[0].mxu0 %v238
      %v319 = vpop.f32.mrb[0].mxu0
      %v320 = vadd.f32 0.0, %v319
      %v321 = vpop.f32.mrb[0].mxu0
      %322 = vmatprep.mubr.f32.mxu0 0.0
      %323 = vmatmul.mubr.f32.gmra.mrb[0].mxu0 %v241
      %v324 = vpop.f32.mrb[0].mxu0
      %v325 = vadd.f32 0.0, %v324
      %v326 = vpop.f32.mrb[0].mxu0
      %327 = vdwg.mxu0
      %v328 = vadd.f32 %v212, %v230
      %v329 = vadd.f32 %v215, %v230
      %v330 = vadd.f32 %v218, %v230
      %v331 = vadd.f32 %v221, %v230
      %v332 = vmul.f32 %v310, 2.0
      %v333 = vmul.f32 %v315, 2.0
      %v334 = vmul.f32 %v320, 2.0
      %v335 = vmul.f32 %v325, 2.0
      %v336 = vsub.f32 %v328, %v332
      %v337 = vsub.f32 %v329, %v333
      %v338 = vsub.f32 %v330, %v334
      %v339 = vsub.f32 %v331, %v335
      %v340 = vmax.f32 %v336, 0.0
      %v341 = vmax.f32 %v337, 0.0
      %v342 = vmax.f32 %v338, 0.0
      %v343 = vmax.f32 %v339, 0.0
      %344 = vst.msk [vmem:[%s198] sm:$0xff] %vm223, %v340
      %345 = vst.msk [vmem:[%s198 + $0x8] sm:$0xff] %vm223, %v341
      %346 = vst.msk [vmem:[%s198 + $0x10] sm:$0xff] %vm223, %v342
      %347 = vst.msk [vmem:[%s198 + $0x18] sm:$0xff] %vm223, %v343
      %s348 = smul.u32 4, %s18
      %p349 = scmp.lt.s32.totalorder %s17, 1
      %s350 = scalar_select %p349, %s17, 1
      %p351 = scmp.lt.s32.totalorder %s348, 3
      %s352 = scalar_select %p351, %s348, 3
      %s353 = smul.addr %s350, 4
      %s354 = sadd.s32 %s352, %s353
      %s355 = smul.addr %s354, 8
      %s356 = scalar_lea.vmem %s2, %s355
      // Predicated region
      $region29: #{pointnet2_layer_forward.15} parent=27 // pred_check
        %p357 = pneg %p99
      $region30: #{pointnet2_layer_forward.15} parent=27 // pred_check_branch
        %359 = sbr.rel (%p357) target = $region32
      $region31: #{pointnet2_layer_forward.15} parent=27 // pred_region
        %s360 = smul.u32 4, %s18
      $region32: #{pointnet2_layer_forward.15} parent=27 // pred_fallthru
        _
    $region28: #{pointnet2_layer_forward.15} parent=5 // pred_fallthru
      _
    %p361 = scmp.le.s32.totalorder 2, %s8
    // Predicated region
    $region33: #{pointnet2_layer_forward.15} parent=5 // pred_check
      %p362 = pneg %p361
    $region34: #{pointnet2_layer_forward.15} parent=5 // pred_check_branch
      %364 = sbr.rel (%p362) target = $region36
    $region35: #{pointnet2_layer_forward.15} parent=5 // pred_region
      %s365 = ssub.s32 %s8, 2
      // Predicated region
      $region37: #{pointnet2_layer_forward.15} parent=35 // pred_check
        %p366 = pneg %p105
      $region38: #{pointnet2_layer_forward.15} parent=35 // pred_check_branch
        %368 = sbr.rel (%p366) target = $region40
      $region39: #{pointnet2_layer_forward.15} parent=35 // pred_region
        %s369 = smul.u32 4, %s20
        %p370 = scmp.lt.s32.totalorder %s19, 1
        %s371 = scalar_select %p370, %s19, 1
        %p372 = scmp.lt.s32.totalorder %s369, 3
        %s373 = scalar_select %p372, %s369, 3
        %s374 = smul.addr %s371, 4
        %s375 = sadd.s32 %s373, %s374
        %s376 = smul.addr %s375, 8
        %s377 = scalar_lea.vmem %s2, %s376
      $region40: #{pointnet2_layer_forward.15} parent=35 // pred_fallthru
        _
    $region36: #{pointnet2_layer_forward.15} parent=5 // pred_fallthru
      _
  $region6: #{pointnet2_layer_forward.15} parent=0 // loop_footer
    %s12 = sadd.s32 1, %s8
  $region7: #{pointnet2_layer_forward.15} parent=0 // loop_footer_branch
    %7 = sbr.rel target = $region3
  $region8: #{pointnet2_layer_forward.15} parent=0 // loop_exit
    _

// kernel: pointnet2_layer_forward.16
$region0: #{pointnet2_layer_forward.16}
  #allocation0 [shape = 'u32[]', space=smem, size = 0x4, offset = 0x4, fixed_abs, tag = 'smem constant byte address 0x4 - core index']
  #allocation1 [shape = 'u32[144,128]{1,0:T(1,128)}', space=vmem, size = 0x12000, scoped, tag = 'internal scratch']
  %s0 = inlined_call_operand.vmem [shape: bf16[512,4], index: 0, kind: input, shape index: {}]
  %s1 = inlined_call_operand.vmem [shape: bf16[4,8], index: 1, kind: input, shape index: {}]
  %s2 = inlined_call_operand.vmem [shape: f32[1,8], index: 2, kind: input, shape index: {}]
  %s3 = inlined_call_operand.vmem [shape: bf16[8,16], index: 3, kind: input, shape index: {}]
  %s4 = inlined_call_operand.vmem [shape: f32[1,16], index: 4, kind: input, shape index: {}]
  %s5 = inlined_call_operand.vmem [shape: f32[64,16], index: 5, kind: output, shape index: {}]
  %s6 = sld [smem:[#allocation0]]
  $region30: #{pointnet2_layer_forward.16} parent=0
    _
  %s8 = ssub.s32 1, %s6
  %s9 = scalar_select 0, %s8, %s6
  // Predicated region
  $region2: #{pointnet2_layer_forward.16} parent=0 // pred_check
    _
  $region3: #{pointnet2_layer_forward.16} parent=0 // pred_check_branch
    %11 = sbr.rel (0) target = $region5
  $region4: #{pointnet2_layer_forward.16} parent=0 // pred_region
    _
  $region5: #{pointnet2_layer_forward.16} parent=0 // pred_fallthru
    _
  // Predicated region
  $region6: #{pointnet2_layer_forward.16} parent=0 // pred_check
    _
  $region7: #{pointnet2_layer_forward.16} parent=0 // pred_check_branch
    %13 = sbr.rel (0) target = $region9
  $region8: #{pointnet2_layer_forward.16} parent=0 // pred_region
    _
  $region9: #{pointnet2_layer_forward.16} parent=0 // pred_fallthru
    _
  // Predicated region
  $region10: #{pointnet2_layer_forward.16} parent=0 // pred_check
    _
  $region11: #{pointnet2_layer_forward.16} parent=0 // pred_check_branch
    %15 = sbr.rel (0) target = $region13
  $region12: #{pointnet2_layer_forward.16} parent=0 // pred_region
    _
  $region13: #{pointnet2_layer_forward.16} parent=0 // pred_fallthru
    _
  // Predicated region
  $region14: #{pointnet2_layer_forward.16} parent=0 // pred_check
    _
  $region15: #{pointnet2_layer_forward.16} parent=0 // pred_check_branch
    %17 = sbr.rel (0) target = $region17
  $region16: #{pointnet2_layer_forward.16} parent=0 // pred_region
    _
  $region17: #{pointnet2_layer_forward.16} parent=0 // pred_fallthru
    _
  // Predicated region
  $region18: #{pointnet2_layer_forward.16} parent=0 // pred_check
    _
  $region19: #{pointnet2_layer_forward.16} parent=0 // pred_check_branch
    %19 = sbr.rel (0) target = $region21
  $region20: #{pointnet2_layer_forward.16} parent=0 // pred_region
    _
  $region21: #{pointnet2_layer_forward.16} parent=0 // pred_fallthru
    _
  %v21 = vld [vmem:[%s0] sm:$0xf]
  %v22 = vld [vmem:[%s0 + $0x4] sm:$0xf]
  %v23 = vld [vmem:[%s0 + $0x8] sm:$0xf]
  %v24 = vld [vmem:[%s0 + $0xc] sm:$0xf]
  %v25 = vld [vmem:[%s0 + $0x10] sm:$0xf]
  %v26 = vld [vmem:[%s0 + $0x14] sm:$0xf]
  %v27 = vld [vmem:[%s0 + $0x18] sm:$0xf]
  %v28 = vld [vmem:[%s0 + $0x1c] sm:$0xf]
  %v29 = vld [vmem:[%s0 + $0x20] sm:$0xf]
  %v30 = vld [vmem:[%s0 + $0x24] sm:$0xf]
  %v31 = vld [vmem:[%s0 + $0x28] sm:$0xf]
  %v32 = vld [vmem:[%s0 + $0x2c] sm:$0xf]
  %v33 = vld [vmem:[%s0 + $0x30] sm:$0xf]
  %v34 = vld [vmem:[%s0 + $0x34] sm:$0xf]
  %v35 = vld [vmem:[%s0 + $0x38] sm:$0xf]
  %v36 = vld [vmem:[%s0 + $0x3c] sm:$0xf]
  %v37 = vld [vmem:[%s0 + $0x40] sm:$0xf]
  %v38 = vld [vmem:[%s0 + $0x44] sm:$0xf]
  %v39 = vld [vmem:[%s0 + $0x48] sm:$0xf]
  %v40 = vld [vmem:[%s0 + $0x4c] sm:$0xf]
  %v41 = vld [vmem:[%s0 + $0x50] sm:$0xf]
  %v42 = vld [vmem:[%s0 + $0x54] sm:$0xf]
  %v43 = vld [vmem:[%s0 + $0x58] sm:$0xf]
  %v44 = vld [vmem:[%s0 + $0x5c] sm:$0xf]
  %v45 = vld [vmem:[%s0 + $0x60] sm:$0xf]
  %v46 = vld [vmem:[%s0 + $0x64] sm:$0xf]
  %v47 = vld [vmem:[%s0 + $0x68] sm:$0xf]
  %v48 = vld [vmem:[%s0 + $0x6c] sm:$0xf]
  %v49 = vld [vmem:[%s0 + $0x70] sm:$0xf]
  %v50 = vld [vmem:[%s0 + $0x74] sm:$0xf]
  %v51 = vld [vmem:[%s0 + $0x78] sm:$0xf]
  %v52 = vld [vmem:[%s0 + $0x7c] sm:$0xf]
  %v53 = vld [vmem:[%s0 + $0x80] sm:$0xf]
  %v54 = vld [vmem:[%s0 + $0x84] sm:$0xf]
  %v55 = vld [vmem:[%s0 + $0x88] sm:$0xf]
  %v56 = vld [vmem:[%s0 + $0x8c] sm:$0xf]
  %v57 = vld [vmem:[%s0 + $0x90] sm:$0xf]
  %v58 = vld [vmem:[%s0 + $0x94] sm:$0xf]
  %v59 = vld [vmem:[%s0 + $0x98] sm:$0xf]
  %v60 = vld [vmem:[%s0 + $0x9c] sm:$0xf]
  %v61 = vld [vmem:[%s0 + $0xa0] sm:$0xf]
  %v62 = vld [vmem:[%s0 + $0xa4] sm:$0xf]
  %v63 = vld [vmem:[%s0 + $0xa8] sm:$0xf]
  %v64 = vld [vmem:[%s0 + $0xac] sm:$0xf]
  %v65 = vld [vmem:[%s0 + $0xb0] sm:$0xf]
  %v66 = vld [vmem:[%s0 + $0xb4] sm:$0xf]
  %v67 = vld [vmem:[%s0 + $0xb8] sm:$0xf]
  %v68 = vld [vmem:[%s0 + $0xbc] sm:$0xf]
  %v69 = vld [vmem:[%s0 + $0xc0] sm:$0xf]
  %v70 = vld [vmem:[%s0 + $0xc4] sm:$0xf]
  %v71 = vld [vmem:[%s0 + $0xc8] sm:$0xf]
  %v72 = vld [vmem:[%s0 + $0xcc] sm:$0xf]
  %v73 = vld [vmem:[%s0 + $0xd0] sm:$0xf]
  %v74 = vld [vmem:[%s0 + $0xd4] sm:$0xf]
  %v75 = vld [vmem:[%s0 + $0xd8] sm:$0xf]
  %v76 = vld [vmem:[%s0 + $0xdc] sm:$0xf]
  %v77 = vld [vmem:[%s0 + $0xe0] sm:$0xf]
  %v78 = vld [vmem:[%s0 + $0xe4] sm:$0xf]
  %v79 = vld [vmem:[%s0 + $0xe8] sm:$0xf]
  %v80 = vld [vmem:[%s0 + $0xec] sm:$0xf]
  %v81 = vld [vmem:[%s0 + $0xf0] sm:$0xf]
  %v82 = vld [vmem:[%s0 + $0xf4] sm:$0xf]
  %v83 = vld [vmem:[%s0 + $0xf8] sm:$0xf]
  %v84 = vld [vmem:[%s0 + $0xfc] sm:$0xf]
  %v85 = vld [vmem:[%s1] sm:$0x3]
  %v86 = vld [vmem:[%s2] sm:$0x1]
  %v88 = vlaneseq
  %v89 = vshrl.u32 %v88, 7
  %v90 = vsub.s32 0, %v89
  %v91 = vrot.slane %v86, %v90
  %v157 = vunpack.c.l.b16 %v21
  %v158 = vunpack.c.l.b16 %v22
  %v159 = vunpack.c.l.b16 %v23
  %v160 = vunpack.c.l.b16 %v24
  %v161 = vunpack.c.l.b16 %v25
  %v162 = vunpack.c.l.b16 %v26
  %v163 = vunpack.c.l.b16 %v27
  %v164 = vunpack.c.l.b16 %v28
  %v165 = vunpack.c.l.b16 %v29
  %v166 = vunpack.c.l.b16 %v30
  %v167 = vunpack.c.l.b16 %v31
  %v168 = vunpack.c.l.b16 %v32
  %v169 = vunpack.c.l.b16 %v33
  %v170 = vunpack.c.l.b16 %v34
  %v171 = vunpack.c.l.b16 %v35
  %v172 = vunpack.c.l.b16 %v36
  %v173 = vunpack.c.l.b16 %v37
  %v174 = vunpack.c.l.b16 %v38
  %v175 = vunpack.c.l.b16 %v39
  %v176 = vunpack.c.l.b16 %v40
  %v177 = vunpack.c.l.b16 %v41
  %v178 = vunpack.c.l.b16 %v42
  %v179 = vunpack.c.l.b16 %v43
  %v180 = vunpack.c.l.b16 %v44
  %v181 = vunpack.c.l.b16 %v45
  %v182 = vunpack.c.l.b16 %v46
  %v183 = vunpack.c.l.b16 %v47
  %v184 = vunpack.c.l.b16 %v48
  %v185 = vunpack.c.l.b16 %v49
  %v186 = vunpack.c.l.b16 %v50
  %v187 = vunpack.c.l.b16 %v51
  %v188 = vunpack.c.l.b16 %v52
  %v189 = vunpack.c.l.b16 %v53
  %v190 = vunpack.c.l.b16 %v54
  %v191 = vunpack.c.l.b16 %v55
  %v192 = vunpack.c.l.b16 %v56
  %v193 = vunpack.c.l.b16 %v57
  %v194 = vunpack.c.l.b16 %v58
  %v195 = vunpack.c.l.b16 %v59
  %v196 = vunpack.c.l.b16 %v60
  %v197 = vunpack.c.l.b16 %v61
  %v198 = vunpack.c.l.b16 %v62
  %v199 = vunpack.c.l.b16 %v63
  %v200 = vunpack.c.l.b16 %v64
  %v201 = vunpack.c.l.b16 %v65
  %v202 = vunpack.c.l.b16 %v66
  %v203 = vunpack.c.l.b16 %v67
  %v204 = vunpack.c.l.b16 %v68
  %v205 = vunpack.c.l.b16 %v69
  %v206 = vunpack.c.l.b16 %v70
  %v207 = vunpack.c.l.b16 %v71
  %v208 = vunpack.c.l.b16 %v72
  %v209 = vunpack.c.l.b16 %v73
  %v210 = vunpack.c.l.b16 %v74
  %v211 = vunpack.c.l.b16 %v75
  %v212 = vunpack.c.l.b16 %v76
  %v213 = vunpack.c.l.b16 %v77
  %v214 = vunpack.c.l.b16 %v78
  %v215 = vunpack.c.l.b16 %v79
  %v216 = vunpack.c.l.b16 %v80
  %v217 = vunpack.c.l.b16 %v81
  %v218 = vunpack.c.l.b16 %v82
  %v219 = vunpack.c.l.b16 %v83
  %v220 = vunpack.c.l.b16 %v84
  %v221 = vpack.c.b16 %v158, %v157
  %v222 = vpack.c.b16 %v160, %v159
  %v223 = vpack.c.b16 %v162, %v161
  %v224 = vpack.c.b16 %v164, %v163
  %v225 = vpack.c.b16 %v166, %v165
  %v226 = vpack.c.b16 %v168, %v167
  %v227 = vpack.c.b16 %v170, %v169
  %v228 = vpack.c.b16 %v172, %v171
  %v229 = vpack.c.b16 %v174, %v173
  %v230 = vpack.c.b16 %v176, %v175
  %v231 = vpack.c.b16 %v178, %v177
  %v232 = vpack.c.b16 %v180, %v179
  %v233 = vpack.c.b16 %v182, %v181
  %v234 = vpack.c.b16 %v184, %v183
  %v235 = vpack.c.b16 %v186, %v185
  %v236 = vpack.c.b16 %v188, %v187
  %v237 = vpack.c.b16 %v190, %v189
  %v238 = vpack.c.b16 %v192, %v191
  %v239 = vpack.c.b16 %v194, %v193
  %v240 = vpack.c.b16 %v196, %v195
  %v241 = vpack.c.b16 %v198, %v197
  %v242 = vpack.c.b16 %v200, %v199
  %v243 = vpack.c.b16 %v202, %v201
  %v244 = vpack.c.b16 %v204, %v203
  %v245 = vpack.c.b16 %v206, %v205
  %v246 = vpack.c.b16 %v208, %v207
  %v247 = vpack.c.b16 %v210, %v209
  %v248 = vpack.c.b16 %v212, %v211
  %v249 = vpack.c.b16 %v214, %v213
  %v250 = vpack.c.b16 %v216, %v215
  %v251 = vpack.c.b16 %v218, %v217
  %v252 = vpack.c.b16 %v220, %v219
  %vm253 = vcmask 31744
  %v255 = vsel %vm253, %v221, 0
  %v258 = vsel %vm253, %v222, 0
  %v261 = vsel %vm253, %v223, 0
  %v264 = vsel %vm253, %v224, 0
  %v267 = vsel %vm253, %v225, 0
  %v270 = vsel %vm253, %v226, 0
  %v273 = vsel %vm253, %v227, 0
  %v276 = vsel %vm253, %v228, 0
  %v279 = vsel %vm253, %v229, 0
  %v282 = vsel %vm253, %v230, 0
  %v285 = vsel %vm253, %v231, 0
  %v288 = vsel %vm253, %v232, 0
  %v291 = vsel %vm253, %v233, 0
  %v294 = vsel %vm253, %v234, 0
  %v297 = vsel %vm253, %v235, 0
  %v300 = vsel %vm253, %v236, 0
  %v303 = vsel %vm253, %v237, 0
  %v306 = vsel %vm253, %v238, 0
  %v309 = vsel %vm253, %v239, 0
  %v312 = vsel %vm253, %v240, 0
  %v315 = vsel %vm253, %v241, 0
  %v318 = vsel %vm253, %v242, 0
  %v321 = vsel %vm253, %v243, 0
  %v324 = vsel %vm253, %v244, 0
  %v327 = vsel %vm253, %v245, 0
  %v330 = vsel %vm253, %v246, 0
  %v333 = vsel %vm253, %v247, 0
  %v336 = vsel %vm253, %v248, 0
  %v339 = vsel %vm253, %v249, 0
  %v342 = vsel %vm253, %v250, 0
  %v345 = vsel %vm253, %v251, 0
  %v348 = vsel %vm253, %v252, 0
  %vm350 = vcmask 1041408
  %v352 = vsel %vm350, %v85, 0
  %354 = vmatprep.subr.bf16.mxu0 0
  %355 = vmatpush1.bf16.msra.mxu0 %v352
  %356 = vmatprep.subr.bf16.mxu0 0
  %357 = vmatpush1.bf16.msra.mxu0 0
  %358 = vmatprep.subr.bf16.mxu0 0
  %359 = vmatpush1.bf16.msra.mxu0 0
  %360 = vmatprep.subr.bf16.mxu0 0
  %361 = vmatpush1.bf16.msra.mxu0 0
  %362 = vmatprep.subr.bf16.mxu0 0
  %363 = vmatpush1.bf16.msra.mxu0 0
  %364 = vmatprep.subr.bf16.mxu0 0
  %365 = vmatpush1.bf16.msra.mxu0 0
  %366 = vmatprep.subr.bf16.mxu0 0
  %367 = vmatpush1.bf16.msra.mxu0 0
  %368 = vmatprep.subr.bf16.mxu0 0
  %369 = vmatpush1.bf16.msra.mxu0 0
  %370 = vmatprep.subr.bf16.mxu0 0
  %371 = vmatpush1.bf16.msra.mxu0 0
  %372 = vmatprep.subr.bf16.mxu0 0
  %373 = vmatpush1.bf16.msra.mxu0 0
  %374 = vmatprep.subr.bf16.mxu0 0
  %375 = vmatpush1.bf16.msra.mxu0 0
  %376 = vmatprep.subr.bf16.mxu0 0
  %377 = vmatpush1.bf16.msra.mxu0 0
  %378 = vmatprep.subr.bf16.mxu0 0
  %379 = vmatpush1.bf16.msra.mxu0 0
  %380 = vmatprep.subr.bf16.mxu0 0
  %381 = vmatpush1.bf16.msra.mxu0 0
  %382 = vmatprep.subr.bf16.mxu0 0
  %383 = vmatpush1.bf16.msra.mxu0 0
  %384 = vmatprep.subr.bf16.mxu0 0
  %385 = vmatpush1.bf16.msra.mxu0 0
  %386 = vmatprep.mubr.bf16.mxu0 0
  %387 = vmatmul.mubr.bf16.gmra.mrb[0].mxu0 %v255
  %v388 = vpop.f32.mrb[0].mxu0
  %v389 = vadd.f32 %v91, %v388
  %v390 = vpop.f32.mrb[0].mxu0
  %v391 = vpop.f32.mrb[0].mxu0
  %v392 = vadd.f32 %v91, %v391
  %v393 = vpop.f32.mrb[0].mxu0
  %394 = vmatprep.mubr.bf16.mxu0 0
  %395 = vmatmul.mubr.bf16.gmra.mrb[0].mxu0 %v258
  %v396 = vpop.f32.mrb[0].mxu0
  %v397 = vadd.f32 %v91, %v396
  %v398 = vpop.f32.mrb[0].mxu0
  %v399 = vpop.f32.mrb[0].mxu0
  %v400 = vadd.f32 %v91, %v399
  %v401 = vpop.f32.mrb[0].mxu0
  %402 = vmatprep.mubr.bf16.mxu0 0
  %403 = vmatmul.mubr.bf16.gmra.mrb[0].mxu0 %v261
  %v404 = vpop.f32.mrb[0].mxu0
  %v405 = vadd.f32 %v91, %v404
  %v406 = vpop.f32.mrb[0].mxu0
  %v407 = vpop.f32.mrb[0].mxu0
  %v408 = vadd.f32 %v91, %v407
  %v409 = vpop.f32.mrb[0].mxu0
  %410 = vmatprep.mubr.bf16.mxu0 0
  %411 = vmatmul.mubr.bf16.gmra.mrb[0].mxu0 %v264
  %v412 = vpop.f32.mrb[0].mxu0
  %v413 = vadd.f32 %v91, %v412
  %v414 = vpop.f32.mrb[0].mxu0
  %v415 = vpop.f32.mrb[0].mxu0
  %v416 = vadd.f32 %v91, %v415
  %v417 = vpop.f32.mrb[0].mxu0
  %418 = vmatprep.mubr.bf16.mxu0 0
  %419 = vmatmul.mubr.bf16.gmra.mrb[0].mxu0 %v267
  %v420 = vpop.f32.mrb[0].mxu0
  %v421 = vadd.f32 %v91, %v420
  %v422 = vpop.f32.mrb[0].mxu0
  %v423 = vpop.f32.mrb[0].mxu0
  %v424 = vadd.f32 %v91, %v423
  %v425 = vpop.f32.mrb[0].mxu0
  %426 = vmatprep.mubr.bf16.mxu0 0
  %427 = vmatmul.mubr.bf16.gmra.mrb[0].mxu0 %v270
  %v428 = vpop.f32.mrb[0].mxu0
  %v429 = vadd.f32 %v91, %v428
  %v430 = vpop.f32.mrb[0].mxu0
  %v431 = vpop.f32.mrb[0].mxu0
  %v432 = vadd.f32 %v91, %v431
  %v433 = vpop.f32.mrb[0].mxu0
  %434 = vmatprep.mubr.bf16.mxu0 0
  %435 = vmatmul.mubr.bf16.gmra.mrb[0].mxu0 %v273
  %v436 = vpop.f32.mrb[0].mxu0
  %v437 = vadd.f32 %v91, %v436
  %v438 = vpop.f32.mrb[0].mxu0
  %v439 = vpop.f32.mrb[0].mxu0
  %v440 = vadd.f32 %v91, %v439
  %v441 = vpop.f32.mrb[0].mxu0
  %442 = vmatprep.mubr.bf16.mxu0 0
  %443 = vmatmul.mubr.bf16.gmra.mrb[0].mxu0 %v276
  %v444 = vpop.f32.mrb[0].mxu0
  %v445 = vadd.f32 %v91, %v444
  %v446 = vpop.f32.mrb[0].mxu0
  %v447 = vpop.f32.mrb[0].mxu0
  %v448 = vadd.f32 %v91, %v447
  %v449 = vpop.f32.mrb[0].mxu0
  %450 = vmatprep.mubr.bf16.mxu0 0
  %451 = vmatmul.mubr.bf16.gmra.mrb[0].mxu0 %v279
  %v452 = vpop.f32.mrb[0].mxu0
  %v453 = vadd.f32 %v91, %v452
  %v454 = vpop.f32.mrb[0].mxu0
  %v455 = vpop.f32.mrb[0].mxu0
  %v456 = vadd.f32 %v91, %v455
  %v457 = vpop.f32.mrb[0].mxu0
  %458 = vmatprep.mubr.bf16.mxu0 0
  %459 = vmatmul.mubr.bf16.gmra.mrb[0].mxu0 %v282
  %v460 = vpop.f32.mrb[0].mxu0
  %v461 = vadd.f32 %v91, %v460
  %v462 = vpop.f32.mrb[0].mxu0
  %v463 = vpop.f32.mrb[0].mxu0
  %v464 = vadd.f32 %v91, %v463
  %v465 = vpop.f32.mrb[0].mxu0
  %466 = vmatprep.mubr.bf16.mxu0 0
  %467 = vmatmul.mubr.bf16.gmra.mrb[0].mxu0 %v285
  %v468 = vpop.f32.mrb[0].mxu0
  %v469 = vadd.f32 %v91, %v468
  %v470 = vpop.f32.mrb[0].mxu0
  %v471 = vpop.f32.mrb[0].mxu0
  %v472 = vadd.f32 %v91, %v471
  %v473 = vpop.f32.mrb[0].mxu0
  %474 = vmatprep.mubr.bf16.mxu0 0
  %475 = vmatmul.mubr.bf16.gmra.mrb[0].mxu0 %v288
  %v476 = vpop.f32.mrb[0].mxu0
  %v477 = vadd.f32 %v91, %v476
  %v478 = vpop.f32.mrb[0].mxu0
  %v479 = vpop.f32.mrb[0].mxu0
  %v480 = vadd.f32 %v91, %v479
  %v481 = vpop.f32.mrb[0].mxu0
  %482 = vmatprep.mubr.bf16.mxu0 0
  %483 = vmatmul.mubr.bf16.gmra.mrb[0].mxu0 %v291
  %v484 = vpop.f32.mrb[0].mxu0
  %v485 = vadd.f32 %v91, %v484
  %v486 = vpop.f32.mrb[0].mxu0
  %v487 = vpop.f32.mrb[0].mxu0
  %v488 = vadd.f32 %v91, %v487
  %v489 = vpop.f32.mrb[0].mxu0
  %490 = vmatprep.mubr.bf16.mxu0 0
  %491 = vmatmul.mubr.bf16.gmra.mrb[0].mxu0 %v294
  %v492 = vpop.f32.mrb[0].mxu0
  %v493 = vadd.f32 %v91, %v492
  %v494 = vpop.f32.mrb[0].mxu0
  %v495 = vpop.f32.mrb[0].mxu0
  %v496 = vadd.f32 %v91, %v495
  %v497 = vpop.f32.mrb[0].mxu0
  %498 = vmatprep.mubr.bf16.mxu0 0
  %499 = vmatmul.mubr.bf16.gmra.mrb[0].mxu0 %v297
  %v500 = vpop.f32.mrb[0].mxu0
  %v501 = vadd.f32 %v91, %v500
  %v502 = vpop.f32.mrb[0].mxu0
  %v503 = vpop.f32.mrb[0].mxu0
  %v504 = vadd.f32 %v91, %v503
  %v505 = vpop.f32.mrb[0].mxu0
  %506 = vmatprep.mubr.bf16.mxu0 0
  %507 = vmatmul.mubr.bf16.gmra.mrb[0].mxu0 %v300
  %v508 = vpop.f32.mrb[0].mxu0
  %v509 = vadd.f32 %v91, %v508
  %v510 = vpop.f32.mrb[0].mxu0
  %v511 = vpop.f32.mrb[0].mxu0
  %v512 = vadd.f32 %v91, %v511
  %v513 = vpop.f32.mrb[0].mxu0
  %514 = vmatprep.mubr.bf16.mxu0 0
  %515 = vmatmul.mubr.bf16.gmra.mrb[0].mxu0 %v303
  %v516 = vpop.f32.mrb[0].mxu0
  %v517 = vadd.f32 %v91, %v516
  %v518 = vpop.f32.mrb[0].mxu0
  %v519 = vpop.f32.mrb[0].mxu0
  %v520 = vadd.f32 %v91, %v519
  %v521 = vpop.f32.mrb[0].mxu0
  %522 = vmatprep.mubr.bf16.mxu0 0
  %523 = vmatmul.mubr.bf16.gmra.mrb[0].mxu0 %v306
  %v524 = vpop.f32.mrb[0].mxu0
  %v525 = vadd.f32 %v91, %v524
  %v526 = vpop.f32.mrb[0].mxu0
  %v527 = vpop.f32.mrb[0].mxu0
  %v528 = vadd.f32 %v91, %v527
  %v529 = vpop.f32.mrb[0].mxu0
  %530 = vmatprep.mubr.bf16.mxu0 0
  %531 = vmatmul.mubr.bf16.gmra.mrb[0].mxu0 %v309
  %v532 = vpop.f32.mrb[0].mxu0
  %v533 = vadd.f32 %v91, %v532
  %v534 = vpop.f32.mrb[0].mxu0
  %v535 = vpop.f32.mrb[0].mxu0
  %v536 = vadd.f32 %v91, %v535
  %v537 = vpop.f32.mrb[0].mxu0
  %538 = vmatprep.mubr.bf16.mxu0 0
  %539 = vmatmul.mubr.bf16.gmra.mrb[0].mxu0 %v312
  %v540 = vpop.f32.mrb[0].mxu0
  %v541 = vadd.f32 %v91, %v540
  %v542 = vpop.f32.mrb[0].mxu0
  %v543 = vpop.f32.mrb[0].mxu0
  %v544 = vadd.f32 %v91, %v543
  %v545 = vpop.f32.mrb[0].mxu0
  %546 = vmatprep.mubr.bf16.mxu0 0
  %547 = vmatmul.mubr.bf16.gmra.mrb[0].mxu0 %v315
  %v548 = vpop.f32.mrb[0].mxu0
  %v549 = vadd.f32 %v91, %v548
  %v550 = vpop.f32.mrb[0].mxu0
  %v551 = vpop.f32.mrb[0].mxu0
  %v552 = vadd.f32 %v91, %v551
  %v553 = vpop.f32.mrb[0].mxu0
  %554 = vmatprep.mubr.bf16.mxu0 0
  %555 = vmatmul.mubr.bf16.gmra.mrb[0].mxu0 %v318
  %v556 = vpop.f32.mrb[0].mxu0
  %v557 = vadd.f32 %v91, %v556
  %v558 = vpop.f32.mrb[0].mxu0
  %v559 = vpop.f32.mrb[0].mxu0
  %v560 = vadd.f32 %v91, %v559
  %v561 = vpop.f32.mrb[0].mxu0
  %562 = vmatprep.mubr.bf16.mxu0 0
  %563 = vmatmul.mubr.bf16.gmra.mrb[0].mxu0 %v321
  %v564 = vpop.f32.mrb[0].mxu0
  %v565 = vadd.f32 %v91, %v564
  %v566 = vpop.f32.mrb[0].mxu0
  %v567 = vpop.f32.mrb[0].mxu0
  %v568 = vadd.f32 %v91, %v567
  %v569 = vpop.f32.mrb[0].mxu0
  %570 = vmatprep.mubr.bf16.mxu0 0
  %571 = vmatmul.mubr.bf16.gmra.mrb[0].mxu0 %v324
  %v572 = vpop.f32.mrb[0].mxu0
  %v573 = vadd.f32 %v91, %v572
  %v574 = vpop.f32.mrb[0].mxu0
  %v575 = vpop.f32.mrb[0].mxu0
  %v576 = vadd.f32 %v91, %v575
  %v577 = vpop.f32.mrb[0].mxu0
  %578 = vmatprep.mubr.bf16.mxu0 0
  %579 = vmatmul.mubr.bf16.gmra.mrb[0].mxu0 %v327
  %v580 = vpop.f32.mrb[0].mxu0
  %v581 = vadd.f32 %v91, %v580
  %v582 = vpop.f32.mrb[0].mxu0
  %v583 = vpop.f32.mrb[0].mxu0
  %v584 = vadd.f32 %v91, %v583
  %v585 = vpop.f32.mrb[0].mxu0
  %586 = vmatprep.mubr.bf16.mxu0 0
  %587 = vmatmul.mubr.bf16.gmra.mrb[0].mxu0 %v330
  %v588 = vpop.f32.mrb[0].mxu0
  %v589 = vadd.f32 %v91, %v588
  %v590 = vpop.f32.mrb[0].mxu0
  %v591 = vpop.f32.mrb[0].mxu0
  %v592 = vadd.f32 %v91, %v591
  %v593 = vpop.f32.mrb[0].mxu0
  %594 = vmatprep.mubr.bf16.mxu0 0
  %595 = vmatmul.mubr.bf16.gmra.mrb[0].mxu0 %v333
  %v596 = vpop.f32.mrb[0].mxu0
  %v597 = vadd.f32 %v91, %v596
  %v598 = vpop.f32.mrb[0].mxu0
  %v599 = vpop.f32.mrb[0].mxu0
  %v600 = vadd.f32 %v91, %v599
  %v601 = vpop.f32.mrb[0].mxu0
  %602 = vmatprep.mubr.bf16.mxu0 0
  %603 = vmatmul.mubr.bf16.gmra.mrb[0].mxu0 %v336
  %v604 = vpop.f32.mrb[0].mxu0
  %v605 = vadd.f32 %v91, %v604
  %v606 = vpop.f32.mrb[0].mxu0
  %v607 = vpop.f32.mrb[0].mxu0
  %v608 = vadd.f32 %v91, %v607
  %v609 = vpop.f32.mrb[0].mxu0
  %610 = vmatprep.mubr.bf16.mxu0 0
  %611 = vmatmul.mubr.bf16.gmra.mrb[0].mxu0 %v339
  %v612 = vpop.f32.mrb[0].mxu0
  %v613 = vadd.f32 %v91, %v612
  %v614 = vpop.f32.mrb[0].mxu0
  %v615 = vpop.f32.mrb[0].mxu0
  %v616 = vadd.f32 %v91, %v615
  %v617 = vpop.f32.mrb[0].mxu0
  %618 = vmatprep.mubr.bf16.mxu0 0
  %619 = vmatmul.mubr.bf16.gmra.mrb[0].mxu0 %v342
  %v620 = vpop.f32.mrb[0].mxu0
  %v621 = vadd.f32 %v91, %v620
  %v622 = vpop.f32.mrb[0].mxu0
  %v623 = vpop.f32.mrb[0].mxu0
  %v624 = vadd.f32 %v91, %v623
  %v625 = vpop.f32.mrb[0].mxu0
  %626 = vmatprep.mubr.bf16.mxu0 0
  %627 = vmatmul.mubr.bf16.gmra.mrb[0].mxu0 %v345
  %v628 = vpop.f32.mrb[0].mxu0
  %v629 = vadd.f32 %v91, %v628
  %v630 = vpop.f32.mrb[0].mxu0
  %v631 = vpop.f32.mrb[0].mxu0
  %v632 = vadd.f32 %v91, %v631
  %v633 = vpop.f32.mrb[0].mxu0
  %634 = vmatprep.mubr.bf16.mxu0 0
  %635 = vmatmul.mubr.bf16.gmra.mrb[0].mxu0 %v348
  %v636 = vpop.f32.mrb[0].mxu0
  %v637 = vadd.f32 %v91, %v636
  %v638 = vpop.f32.mrb[0].mxu0
  %v639 = vpop.f32.mrb[0].mxu0
  %v640 = vadd.f32 %v91, %v639
  %v641 = vpop.f32.mrb[0].mxu0
  %642 = vdwg.mxu0
  %v643 = vmax.f32 %v389, 0.0
  %v644 = vmax.f32 %v392, 0.0
  %v645 = vmax.f32 %v397, 0.0
  %v646 = vmax.f32 %v400, 0.0
  %v647 = vmax.f32 %v405, 0.0
  %v648 = vmax.f32 %v408, 0.0
  %v649 = vmax.f32 %v413, 0.0
  %v650 = vmax.f32 %v416, 0.0
  %v651 = vmax.f32 %v421, 0.0
  %v652 = vmax.f32 %v424, 0.0
  %v653 = vmax.f32 %v429, 0.0
  %v654 = vmax.f32 %v432, 0.0
  %v655 = vmax.f32 %v437, 0.0
  %v656 = vmax.f32 %v440, 0.0
  %v657 = vmax.f32 %v445, 0.0
  %v658 = vmax.f32 %v448, 0.0
  %v659 = vmax.f32 %v453, 0.0
  %v660 = vmax.f32 %v456, 0.0
  %v661 = vmax.f32 %v461, 0.0
  %v662 = vmax.f32 %v464, 0.0
  %v663 = vmax.f32 %v469, 0.0
  %v664 = vmax.f32 %v472, 0.0
  %v665 = vmax.f32 %v477, 0.0
  %v666 = vmax.f32 %v480, 0.0
  %v667 = vmax.f32 %v485, 0.0
  %v668 = vmax.f32 %v488, 0.0
  %v669 = vmax.f32 %v493, 0.0
  %v670 = vmax.f32 %v496, 0.0
  %v671 = vmax.f32 %v501, 0.0
  %v672 = vmax.f32 %v504, 0.0
  %v673 = vmax.f32 %v509, 0.0
  %v674 = vmax.f32 %v512, 0.0
  %v675 = vmax.f32 %v517, 0.0
  %v676 = vmax.f32 %v520, 0.0
  %v677 = vmax.f32 %v525, 0.0
  %v678 = vmax.f32 %v528, 0.0
  %v679 = vmax.f32 %v533, 0.0
  %v680 = vmax.f32 %v536, 0.0
  %v681 = vmax.f32 %v541, 0.0
  %v682 = vmax.f32 %v544, 0.0
  %v683 = vmax.f32 %v549, 0.0
  %v684 = vmax.f32 %v552, 0.0
  %v685 = vmax.f32 %v557, 0.0
  %v686 = vmax.f32 %v560, 0.0
  %v687 = vmax.f32 %v565, 0.0
  %v688 = vmax.f32 %v568, 0.0
  %v689 = vmax.f32 %v573, 0.0
  %v690 = vmax.f32 %v576, 0.0
  %v691 = vmax.f32 %v581, 0.0
  %v692 = vmax.f32 %v584, 0.0
  %v693 = vmax.f32 %v589, 0.0
  %v694 = vmax.f32 %v592, 0.0
  %v695 = vmax.f32 %v597, 0.0
  %v696 = vmax.f32 %v600, 0.0
  %v697 = vmax.f32 %v605, 0.0
  %v698 = vmax.f32 %v608, 0.0
  %v699 = vmax.f32 %v613, 0.0
  %v700 = vmax.f32 %v616, 0.0
  %v701 = vmax.f32 %v621, 0.0
  %v702 = vmax.f32 %v624, 0.0
  %v703 = vmax.f32 %v629, 0.0
  %v704 = vmax.f32 %v632, 0.0
  %v705 = vmax.f32 %v637, 0.0
  %v706 = vmax.f32 %v640, 0.0
  %v707 = vpack.c.bf16 %v644, %v643
  %v708 = vpack.c.bf16 %v646, %v645
  %v709 = vpack.c.bf16 %v648, %v647
  %v710 = vpack.c.bf16 %v650, %v649
  %v711 = vpack.c.bf16 %v652, %v651
  %v712 = vpack.c.bf16 %v654, %v653
  %v713 = vpack.c.bf16 %v656, %v655
  %v714 = vpack.c.bf16 %v658, %v657
  %v715 = vpack.c.bf16 %v660, %v659
  %v716 = vpack.c.bf16 %v662, %v661
  %v717 = vpack.c.bf16 %v664, %v663
  %v718 = vpack.c.bf16 %v666, %v665
  %v719 = vpack.c.bf16 %v668, %v667
  %v720 = vpack.c.bf16 %v670, %v669
  %v721 = vpack.c.bf16 %v672, %v671
  %v722 = vpack.c.bf16 %v674, %v673
  %v723 = vpack.c.bf16 %v676, %v675
  %v724 = vpack.c.bf16 %v678, %v677
  %v725 = vpack.c.bf16 %v680, %v679
  %v726 = vpack.c.bf16 %v682, %v681
  %v727 = vpack.c.bf16 %v684, %v683
  %v728 = vpack.c.bf16 %v686, %v685
  %v729 = vpack.c.bf16 %v688, %v687
  %v730 = vpack.c.bf16 %v690, %v689
  %v731 = vpack.c.bf16 %v692, %v691
  %v732 = vpack.c.bf16 %v694, %v693
  %v733 = vpack.c.bf16 %v696, %v695
  %v734 = vpack.c.bf16 %v698, %v697
  %v735 = vpack.c.bf16 %v700, %v699
  %v736 = vpack.c.bf16 %v702, %v701
  %v737 = vpack.c.bf16 %v704, %v703
  %v738 = vpack.c.bf16 %v706, %v705
  %v739 = vld [vmem:[%s3] sm:$0xf]
  %v740 = vld [vmem:[%s4] sm:$0x1]
  %v742 = vlaneseq
  %v743 = vshrl.u32 %v742, 7
  %v744 = vsub.s32 0, %v743
  %v745 = vrot.slane %v740, %v744
  %vm747 = vcmask 64512
  %v749 = vsel %vm747, %v707, 0
  %v752 = vsel %vm747, %v708, 0
  %v755 = vsel %vm747, %v709, 0
  %v758 = vsel %vm747, %v710, 0
  %v761 = vsel %vm747, %v711, 0
  %v764 = vsel %vm747, %v712, 0
  %v767 = vsel %vm747, %v713, 0
  %v770 = vsel %vm747, %v714, 0
  %v773 = vsel %vm747, %v715, 0
  %v776 = vsel %vm747, %v716, 0
  %v779 = vsel %vm747, %v717, 0
  %v782 = vsel %vm747, %v718, 0
  %v785 = vsel %vm747, %v719, 0
  %v788 = vsel %vm747, %v720, 0
  %v791 = vsel %vm747, %v721, 0
  %v794 = vsel %vm747, %v722, 0
  %v797 = vsel %vm747, %v723, 0
  %v800 = vsel %vm747, %v724, 0
  %v803 = vsel %vm747, %v725, 0
  %v806 = vsel %vm747, %v726, 0
  %v809 = vsel %vm747, %v727, 0
  %v812 = vsel %vm747, %v728, 0
  %v815 = vsel %vm747, %v729, 0
  %v818 = vsel %vm747, %v730, 0
  %v821 = vsel %vm747, %v731, 0
  %v824 = vsel %vm747, %v732, 0
  %v827 = vsel %vm747, %v733, 0
  %v830 = vsel %vm747, %v734, 0
  %v833 = vsel %vm747, %v735, 0
  %v836 = vsel %vm747, %v736, 0
  %v839 = vsel %vm747, %v737, 0
  %v842 = vsel %vm747, %v738, 0
  %vm844 = vcmask 1043456
  %v846 = vsel %vm844, %v739, 0
  %848 = vmatprep.subr.bf16.mxu0 0
  %849 = vmatpush1.bf16.msra.mxu0 %v846
  %850 = vmatprep.subr.bf16.mxu0 0
  %851 = vmatpush1.bf16.msra.mxu0 0
  %852 = vmatprep.subr.bf16.mxu0 0
  %853 = vmatpush1.bf16.msra.mxu0 0
  %854 = vmatprep.subr.bf16.mxu0 0
  %855 = vmatpush1.bf16.msra.mxu0 0
  %856 = vmatprep.subr.bf16.mxu0 0
  %857 = vmatpush1.bf16.msra.mxu0 0
  %858 = vmatprep.subr.bf16.mxu0 0
  %859 = vmatpush1.bf16.msra.mxu0 0
  %860 = vmatprep.subr.bf16.mxu0 0
  %861 = vmatpush1.bf16.msra.mxu0 0
  %862 = vmatprep.subr.bf16.mxu0 0
  %863 = vmatpush1.bf16.msra.mxu0 0
  %864 = vmatprep.subr.bf16.mxu0 0
  %865 = vmatpush1.bf16.msra.mxu0 0
  %866 = vmatprep.subr.bf16.mxu0 0
  %867 = vmatpush1.bf16.msra.mxu0 0
  %868 = vmatprep.subr.bf16.mxu0 0
  %869 = vmatpush1.bf16.msra.mxu0 0
  %870 = vmatprep.subr.bf16.mxu0 0
  %871 = vmatpush1.bf16.msra.mxu0 0
  %872 = vmatprep.subr.bf16.mxu0 0
  %873 = vmatpush1.bf16.msra.mxu0 0
  %874 = vmatprep.subr.bf16.mxu0 0
  %875 = vmatpush1.bf16.msra.mxu0 0
  %876 = vmatprep.subr.bf16.mxu0 0
  %877 = vmatpush1.bf16.msra.mxu0 0
  %878 = vmatprep.subr.bf16.mxu0 0
  %879 = vmatpush1.bf16.msra.mxu0 0
  %880 = vmatprep.mubr.bf16.mxu0 0
  %881 = vmatmul.mubr.bf16.gmra.mrb[0].mxu0 %v749
  %v882 = vpop.f32.mrb[0].mxu0
  %v883 = vadd.f32 %v745, %v882
  %v884 = vpop.f32.mrb[0].mxu0
  %v885 = vpop.f32.mrb[0].mxu0
  %v886 = vadd.f32 %v745, %v885
  %v887 = vpop.f32.mrb[0].mxu0
  %888 = vmatprep.mubr.bf16.mxu0 0
  %889 = vmatmul.mubr.bf16.gmra.mrb[0].mxu0 %v752
  %v890 = vpop.f32.mrb[0].mxu0
  %v891 = vadd.f32 %v745, %v890
  %v892 = vpop.f32.mrb[0].mxu0
  %v893 = vpop.f32.mrb[0].mxu0
  %v894 = vadd.f32 %v745, %v893
  %v895 = vpop.f32.mrb[0].mxu0
  %896 = vmatprep.mubr.bf16.mxu0 0
  %897 = vmatmul.mubr.bf16.gmra.mrb[0].mxu0 %v755
  %v898 = vpop.f32.mrb[0].mxu0
  %v899 = vadd.f32 %v745, %v898
  %v900 = vpop.f32.mrb[0].mxu0
  %v901 = vpop.f32.mrb[0].mxu0
  %v902 = vadd.f32 %v745, %v901
  %v903 = vpop.f32.mrb[0].mxu0
  %904 = vmatprep.mubr.bf16.mxu0 0
  %905 = vmatmul.mubr.bf16.gmra.mrb[0].mxu0 %v758
  %v906 = vpop.f32.mrb[0].mxu0
  %v907 = vadd.f32 %v745, %v906
  %v908 = vpop.f32.mrb[0].mxu0
  %v909 = vpop.f32.mrb[0].mxu0
  %v910 = vadd.f32 %v745, %v909
  %v911 = vpop.f32.mrb[0].mxu0
  %912 = vmatprep.mubr.bf16.mxu0 0
  %913 = vmatmul.mubr.bf16.gmra.mrb[0].mxu0 %v761
  %v914 = vpop.f32.mrb[0].mxu0
  %v915 = vadd.f32 %v745, %v914
  %v916 = vpop.f32.mrb[0].mxu0
  %v917 = vpop.f32.mrb[0].mxu0
  %v918 = vadd.f32 %v745, %v917
  %v919 = vpop.f32.mrb[0].mxu0
  %920 = vmatprep.mubr.bf16.mxu0 0
  %921 = vmatmul.mubr.bf16.gmra.mrb[0].mxu0 %v764
  %v922 = vpop.f32.mrb[0].mxu0
  %v923 = vadd.f32 %v745, %v922
  %v924 = vpop.f32.mrb[0].mxu0
  %v925 = vpop.f32.mrb[0].mxu0
  %v926 = vadd.f32 %v745, %v925
  %v927 = vpop.f32.mrb[0].mxu0
  %928 = vmatprep.mubr.bf16.mxu0 0
  %929 = vmatmul.mubr.bf16.gmra.mrb[0].mxu0 %v767
  %v930 = vpop.f32.mrb[0].mxu0
  %v931 = vadd.f32 %v745, %v930
  %v932 = vpop.f32.mrb[0].mxu0
  %v933 = vpop.f32.mrb[0].mxu0
  %v934 = vadd.f32 %v745, %v933
  %v935 = vpop.f32.mrb[0].mxu0
  %936 = vmatprep.mubr.bf16.mxu0 0
  %937 = vmatmul.mubr.bf16.gmra.mrb[0].mxu0 %v770
  %v938 = vpop.f32.mrb[0].mxu0
  %v939 = vadd.f32 %v745, %v938
  %v940 = vpop.f32.mrb[0].mxu0
  %v941 = vpop.f32.mrb[0].mxu0
  %v942 = vadd.f32 %v745, %v941
  %v943 = vpop.f32.mrb[0].mxu0
  %944 = vmatprep.mubr.bf16.mxu0 0
  %945 = vmatmul.mubr.bf16.gmra.mrb[0].mxu0 %v773
  %v946 = vpop.f32.mrb[0].mxu0
  %v947 = vadd.f32 %v745, %v946
  %v948 = vpop.f32.mrb[0].mxu0
  %v949 = vpop.f32.mrb[0].mxu0
  %v950 = vadd.f32 %v745, %v949
  %v951 = vpop.f32.mrb[0].mxu0
  %952 = vmatprep.mubr.bf16.mxu0 0
  %953 = vmatmul.mubr.bf16.gmra.mrb[0].mxu0 %v776
  %v954 = vpop.f32.mrb[0].mxu0
  %v955 = vadd.f32 %v745, %v954
  %v956 = vpop.f32.mrb[0].mxu0
  %v957 = vpop.f32.mrb[0].mxu0
  %v958 = vadd.f32 %v745, %v957
  %v959 = vpop.f32.mrb[0].mxu0
  %960 = vmatprep.mubr.bf16.mxu0 0
  %961 = vmatmul.mubr.bf16.gmra.mrb[0].mxu0 %v779
  %v962 = vpop.f32.mrb[0].mxu0
  %v963 = vadd.f32 %v745, %v962
  %v964 = vpop.f32.mrb[0].mxu0
  %v965 = vpop.f32.mrb[0].mxu0
  %v966 = vadd.f32 %v745, %v965
  %v967 = vpop.f32.mrb[0].mxu0
  %968 = vmatprep.mubr.bf16.mxu0 0
  %969 = vmatmul.mubr.bf16.gmra.mrb[0].mxu0 %v782
  %v970 = vpop.f32.mrb[0].mxu0
  %v971 = vadd.f32 %v745, %v970
  %v972 = vpop.f32.mrb[0].mxu0
  %v973 = vpop.f32.mrb[0].mxu0
  %v974 = vadd.f32 %v745, %v973
  %v975 = vpop.f32.mrb[0].mxu0
  %976 = vmatprep.mubr.bf16.mxu0 0
  %977 = vmatmul.mubr.bf16.gmra.mrb[0].mxu0 %v785
  %v978 = vpop.f32.mrb[0].mxu0
  %v979 = vadd.f32 %v745, %v978
  %v980 = vpop.f32.mrb[0].mxu0
  %v981 = vpop.f32.mrb[0].mxu0
  %v982 = vadd.f32 %v745, %v981
  %v983 = vpop.f32.mrb[0].mxu0
  %984 = vmatprep.mubr.bf16.mxu0 0
  %985 = vmatmul.mubr.bf16.gmra.mrb[0].mxu0 %v788
  %v986 = vpop.f32.mrb[0].mxu0
  %v987 = vadd.f32 %v745, %v986
  %v988 = vpop.f32.mrb[0].mxu0
  %v989 = vpop.f32.mrb[0].mxu0
  %v990 = vadd.f32 %v745, %v989
  %v991 = vpop.f32.mrb[0].mxu0
  %992 = vmatprep.mubr.bf16.mxu0 0
  %993 = vmatmul.mubr.bf16.gmra.mrb[0].mxu0 %v791
  %v994 = vpop.f32.mrb[0].mxu0
  %v995 = vadd.f32 %v745, %v994
  %v996 = vpop.f32.mrb[0].mxu0
  %v997 = vpop.f32.mrb[0].mxu0
  %v998 = vadd.f32 %v745, %v997
  %v999 = vpop.f32.mrb[0].mxu0
  %1000 = vmatprep.mubr.bf16.mxu0 0
  %1001 = vmatmul.mubr.bf16.gmra.mrb[0].mxu0 %v794
  %v1002 = vpop.f32.mrb[0].mxu0
  %v1003 = vadd.f32 %v745, %v1002
  %v1004 = vpop.f32.mrb[0].mxu0
  %v1005 = vpop.f32.mrb[0].mxu0
  %v1006 = vadd.f32 %v745, %v1005
  %v1007 = vpop.f32.mrb[0].mxu0
  %1008 = vmatprep.mubr.bf16.mxu0 0
  %1009 = vmatmul.mubr.bf16.gmra.mrb[0].mxu0 %v797
  %v1010 = vpop.f32.mrb[0].mxu0
  %v1011 = vadd.f32 %v745, %v1010
  %v1012 = vpop.f32.mrb[0].mxu0
  %v1013 = vpop.f32.mrb[0].mxu0
  %v1014 = vadd.f32 %v745, %v1013
  %v1015 = vpop.f32.mrb[0].mxu0
  %1016 = vmatprep.mubr.bf16.mxu0 0
  %1017 = vmatmul.mubr.bf16.gmra.mrb[0].mxu0 %v800
  %v1018 = vpop.f32.mrb[0].mxu0
  %v1019 = vadd.f32 %v745, %v1018
  %v1020 = vpop.f32.mrb[0].mxu0
  %v1021 = vpop.f32.mrb[0].mxu0
  %v1022 = vadd.f32 %v745, %v1021
  %v1023 = vpop.f32.mrb[0].mxu0
  %1024 = vmatprep.mubr.bf16.mxu0 0
  %1025 = vmatmul.mubr.bf16.gmra.mrb[0].mxu0 %v803
  %v1026 = vpop.f32.mrb[0].mxu0
  %v1027 = vadd.f32 %v745, %v1026
  %v1028 = vpop.f32.mrb[0].mxu0
  %v1029 = vpop.f32.mrb[0].mxu0
  %v1030 = vadd.f32 %v745, %v1029
  %v1031 = vpop.f32.mrb[0].mxu0
  %1032 = vmatprep.mubr.bf16.mxu0 0
  %1033 = vmatmul.mubr.bf16.gmra.mrb[0].mxu0 %v806
  %v1034 = vpop.f32.mrb[0].mxu0
  %v1035 = vadd.f32 %v745, %v1034
  %v1036 = vpop.f32.mrb[0].mxu0
  %v1037 = vpop.f32.mrb[0].mxu0
  %v1038 = vadd.f32 %v745, %v1037
  %v1039 = vpop.f32.mrb[0].mxu0
  %1040 = vmatprep.mubr.bf16.mxu0 0
  %1041 = vmatmul.mubr.bf16.gmra.mrb[0].mxu0 %v809
  %v1042 = vpop.f32.mrb[0].mxu0
  %v1043 = vadd.f32 %v745, %v1042
  %v1044 = vpop.f32.mrb[0].mxu0
  %v1045 = vpop.f32.mrb[0].mxu0
  %v1046 = vadd.f32 %v745, %v1045
  %v1047 = vpop.f32.mrb[0].mxu0
  %1048 = vmatprep.mubr.bf16.mxu0 0
  %1049 = vmatmul.mubr.bf16.gmra.mrb[0].mxu0 %v812
  %v1050 = vpop.f32.mrb[0].mxu0
  %v1051 = vadd.f32 %v745, %v1050
  %v1052 = vpop.f32.mrb[0].mxu0
  %v1053 = vpop.f32.mrb[0].mxu0
  %v1054 = vadd.f32 %v745, %v1053
  %v1055 = vpop.f32.mrb[0].mxu0
  %1056 = vmatprep.mubr.bf16.mxu0 0
  %1057 = vmatmul.mubr.bf16.gmra.mrb[0].mxu0 %v815
  %v1058 = vpop.f32.mrb[0].mxu0
  %v1059 = vadd.f32 %v745, %v1058
  %v1060 = vpop.f32.mrb[0].mxu0
  %v1061 = vpop.f32.mrb[0].mxu0
  %v1062 = vadd.f32 %v745, %v1061
  %v1063 = vpop.f32.mrb[0].mxu0
  %1064 = vmatprep.mubr.bf16.mxu0 0
  %1065 = vmatmul.mubr.bf16.gmra.mrb[0].mxu0 %v818
  %v1066 = vpop.f32.mrb[0].mxu0
  %v1067 = vadd.f32 %v745, %v1066
  %v1068 = vpop.f32.mrb[0].mxu0
  %v1069 = vpop.f32.mrb[0].mxu0
  %v1070 = vadd.f32 %v745, %v1069
  %v1071 = vpop.f32.mrb[0].mxu0
  %1072 = vmatprep.mubr.bf16.mxu0 0
  %1073 = vmatmul.mubr.bf16.gmra.mrb[0].mxu0 %v821
  %v1074 = vpop.f32.mrb[0].mxu0
  %v1075 = vadd.f32 %v745, %v1074
  %v1076 = vpop.f32.mrb[0].mxu0
  %v1077 = vpop.f32.mrb[0].mxu0
  %v1078 = vadd.f32 %v745, %v1077
  %v1079 = vpop.f32.mrb[0].mxu0
  %1080 = vmatprep.mubr.bf16.mxu0 0
  %1081 = vmatmul.mubr.bf16.gmra.mrb[0].mxu0 %v824
  %v1082 = vpop.f32.mrb[0].mxu0
  %v1083 = vadd.f32 %v745, %v1082
  %v1084 = vpop.f32.mrb[0].mxu0
  %v1085 = vpop.f32.mrb[0].mxu0
  %v1086 = vadd.f32 %v745, %v1085
  %v1087 = vpop.f32.mrb[0].mxu0
  %1088 = vmatprep.mubr.bf16.mxu0 0
  %1089 = vmatmul.mubr.bf16.gmra.mrb[0].mxu0 %v827
  %v1090 = vpop.f32.mrb[0].mxu0
  %v1091 = vadd.f32 %v745, %v1090
  %v1092 = vpop.f32.mrb[0].mxu0
  %v1093 = vpop.f32.mrb[0].mxu0
  %v1094 = vadd.f32 %v745, %v1093
  %v1095 = vpop.f32.mrb[0].mxu0
  %1096 = vmatprep.mubr.bf16.mxu0 0
  %1097 = vmatmul.mubr.bf16.gmra.mrb[0].mxu0 %v830
  %v1098 = vpop.f32.mrb[0].mxu0
  %v1099 = vadd.f32 %v745, %v1098
  %v1100 = vpop.f32.mrb[0].mxu0
  %v1101 = vpop.f32.mrb[0].mxu0
  %v1102 = vadd.f32 %v745, %v1101
  %v1103 = vpop.f32.mrb[0].mxu0
  %1104 = vmatprep.mubr.bf16.mxu0 0
  %1105 = vmatmul.mubr.bf16.gmra.mrb[0].mxu0 %v833
  %v1106 = vpop.f32.mrb[0].mxu0
  %v1107 = vadd.f32 %v745, %v1106
  %v1108 = vpop.f32.mrb[0].mxu0
  %v1109 = vpop.f32.mrb[0].mxu0
  %v1110 = vadd.f32 %v745, %v1109
  %v1111 = vpop.f32.mrb[0].mxu0
  %1112 = vmatprep.mubr.bf16.mxu0 0
  %1113 = vmatmul.mubr.bf16.gmra.mrb[0].mxu0 %v836
  %v1114 = vpop.f32.mrb[0].mxu0
  %v1115 = vadd.f32 %v745, %v1114
  %v1116 = vpop.f32.mrb[0].mxu0
  %v1117 = vpop.f32.mrb[0].mxu0
  %v1118 = vadd.f32 %v745, %v1117
  %v1119 = vpop.f32.mrb[0].mxu0
  %1120 = vmatprep.mubr.bf16.mxu0 0
  %1121 = vmatmul.mubr.bf16.gmra.mrb[0].mxu0 %v839
  %v1122 = vpop.f32.mrb[0].mxu0
  %v1123 = vadd.f32 %v745, %v1122
  %v1124 = vpop.f32.mrb[0].mxu0
  %v1125 = vpop.f32.mrb[0].mxu0
  %v1126 = vadd.f32 %v745, %v1125
  %v1127 = vpop.f32.mrb[0].mxu0
  %1128 = vmatprep.mubr.bf16.mxu0 0
  %1129 = vmatmul.mubr.bf16.gmra.mrb[0].mxu0 %v842
  %v1130 = vpop.f32.mrb[0].mxu0
  %v1131 = vadd.f32 %v745, %v1130
  %v1132 = vpop.f32.mrb[0].mxu0
  %v1133 = vpop.f32.mrb[0].mxu0
  %v1134 = vadd.f32 %v745, %v1133
  %v1135 = vpop.f32.mrb[0].mxu0
  %1136 = vdwg.mxu0
  %v1137 = vmax.f32 %v883, 0.0
  %v1138 = vmax.f32 %v886, 0.0
  %v1139 = vmax.f32 %v891, 0.0
  %v1140 = vmax.f32 %v894, 0.0
  %v1141 = vmax.f32 %v899, 0.0
  %v1142 = vmax.f32 %v902, 0.0
  %v1143 = vmax.f32 %v907, 0.0
  %v1144 = vmax.f32 %v910, 0.0
  %v1145 = vmax.f32 %v915, 0.0
  %v1146 = vmax.f32 %v918, 0.0
  %v1147 = vmax.f32 %v923, 0.0
  %v1148 = vmax.f32 %v926, 0.0
  %v1149 = vmax.f32 %v931, 0.0
  %v1150 = vmax.f32 %v934, 0.0
  %v1151 = vmax.f32 %v939, 0.0
  %v1152 = vmax.f32 %v942, 0.0
  %v1153 = vmax.f32 %v947, 0.0
  %v1154 = vmax.f32 %v950, 0.0
  %v1155 = vmax.f32 %v955, 0.0
  %v1156 = vmax.f32 %v958, 0.0
  %v1157 = vmax.f32 %v963, 0.0
  %v1158 = vmax.f32 %v966, 0.0
  %v1159 = vmax.f32 %v971, 0.0
  %v1160 = vmax.f32 %v974, 0.0
  %v1161 = vmax.f32 %v979, 0.0
  %v1162 = vmax.f32 %v982, 0.0
  %v1163 = vmax.f32 %v987, 0.0
  %v1164 = vmax.f32 %v990, 0.0
  %v1165 = vmax.f32 %v995, 0.0
  %v1166 = vmax.f32 %v998, 0.0
  %v1167 = vmax.f32 %v1003, 0.0
  %v1168 = vmax.f32 %v1006, 0.0
  %v1169 = vmax.f32 %v1011, 0.0
  %v1170 = vmax.f32 %v1014, 0.0
  %v1171 = vmax.f32 %v1019, 0.0
  %v1172 = vmax.f32 %v1022, 0.0
  %v1173 = vmax.f32 %v1027, 0.0
  %v1174 = vmax.f32 %v1030, 0.0
  %v1175 = vmax.f32 %v1035, 0.0
  %v1176 = vmax.f32 %v1038, 0.0
  %v1177 = vmax.f32 %v1043, 0.0
  %v1178 = vmax.f32 %v1046, 0.0
  %v1179 = vmax.f32 %v1051, 0.0
  %v1180 = vmax.f32 %v1054, 0.0
  %v1181 = vmax.f32 %v1059, 0.0
  %v1182 = vmax.f32 %v1062, 0.0
  %v1183 = vmax.f32 %v1067, 0.0
  %v1184 = vmax.f32 %v1070, 0.0
  %v1185 = vmax.f32 %v1075, 0.0
  %v1186 = vmax.f32 %v1078, 0.0
  %v1187 = vmax.f32 %v1083, 0.0
  %v1188 = vmax.f32 %v1086, 0.0
  %v1189 = vmax.f32 %v1091, 0.0
  %v1190 = vmax.f32 %v1094, 0.0
  %v1191 = vmax.f32 %v1099, 0.0
  %v1192 = vmax.f32 %v1102, 0.0
  %v1193 = vmax.f32 %v1107, 0.0
  %v1194 = vmax.f32 %v1110, 0.0
  %v1195 = vmax.f32 %v1115, 0.0
  %v1196 = vmax.f32 %v1118, 0.0
  %v1197 = vmax.f32 %v1123, 0.0
  %v1198 = vmax.f32 %v1126, 0.0
  %v1199 = vmax.f32 %v1131, 0.0
  %v1200 = vmax.f32 %v1134, 0.0
  %vm1201 = vcmask 130048
  %v1202 = vsel %vm1201, %v1137, -inf
  %v1203 = vrot.slane %v1202, 4
  %v1204 = vmax.f32 %v1202, %v1203
  %v1205 = vrot.slane %v1204, 2
  %v1206 = vmax.f32 %v1204, %v1205
  %v1207 = vrot.slane %v1206, 1
  %v1208 = vmax.f32 %v1206, %v1207
  %v1209 = vsel %vm1201, %v1138, -inf
  %v1210 = vrot.slane %v1209, 4
  %v1211 = vmax.f32 %v1209, %v1210
  %v1212 = vrot.slane %v1211, 2
  %v1213 = vmax.f32 %v1211, %v1212
  %v1214 = vrot.slane %v1213, 1
  %v1215 = vmax.f32 %v1213, %v1214
  %v1216 = vsel %vm1201, %v1139, -inf
  %v1217 = vrot.slane %v1216, 4
  %v1218 = vmax.f32 %v1216, %v1217
  %v1219 = vrot.slane %v1218, 2
  %v1220 = vmax.f32 %v1218, %v1219
  %v1221 = vrot.slane %v1220, 1
  %v1222 = vmax.f32 %v1220, %v1221
  %v1223 = vsel %vm1201, %v1140, -inf
  %v1224 = vrot.slane %v1223, 4
  %v1225 = vmax.f32 %v1223, %v1224
  %v1226 = vrot.slane %v1225, 2
  %v1227 = vmax.f32 %v1225, %v1226
  %v1228 = vrot.slane %v1227, 1
  %v1229 = vmax.f32 %v1227, %v1228
  %v1230 = vsel %vm1201, %v1141, -inf
  %v1231 = vrot.slane %v1230, 4
  %v1232 = vmax.f32 %v1230, %v1231
  %v1233 = vrot.slane %v1232, 2
  %v1234 = vmax.f32 %v1232, %v1233
  %v1235 = vrot.slane %v1234, 1
  %v1236 = vmax.f32 %v1234, %v1235
  %v1237 = vsel %vm1201, %v1142, -inf
  %v1238 = vrot.slane %v1237, 4
  %v1239 = vmax.f32 %v1237, %v1238
  %v1240 = vrot.slane %v1239, 2
  %v1241 = vmax.f32 %v1239, %v1240
  %v1242 = vrot.slane %v1241, 1
  %v1243 = vmax.f32 %v1241, %v1242
  %v1244 = vsel %vm1201, %v1143, -inf
  %v1245 = vrot.slane %v1244, 4
  %v1246 = vmax.f32 %v1244, %v1245
  %v1247 = vrot.slane %v1246, 2
  %v1248 = vmax.f32 %v1246, %v1247
  %v1249 = vrot.slane %v1248, 1
  %v1250 = vmax.f32 %v1248, %v1249
  %v1251 = vsel %vm1201, %v1144, -inf
  %v1252 = vrot.slane %v1251, 4
  %v1253 = vmax.f32 %v1251, %v1252
  %v1254 = vrot.slane %v1253, 2
  %v1255 = vmax.f32 %v1253, %v1254
  %v1256 = vrot.slane %v1255, 1
  %v1257 = vmax.f32 %v1255, %v1256
  %v1258 = vsel %vm1201, %v1145, -inf
  %v1259 = vrot.slane %v1258, 4
  %v1260 = vmax.f32 %v1258, %v1259
  %v1261 = vrot.slane %v1260, 2
  %v1262 = vmax.f32 %v1260, %v1261
  %v1263 = vrot.slane %v1262, 1
  %v1264 = vmax.f32 %v1262, %v1263
  %v1265 = vsel %vm1201, %v1146, -inf
  %v1266 = vrot.slane %v1265, 4
  %v1267 = vmax.f32 %v1265, %v1266
  %v1268 = vrot.slane %v1267, 2
  %v1269 = vmax.f32 %v1267, %v1268
  %v1270 = vrot.slane %v1269, 1
  %v1271 = vmax.f32 %v1269, %v1270
  %v1272 = vsel %vm1201, %v1147, -inf
  %v1273 = vrot.slane %v1272, 4
  %v1274 = vmax.f32 %v1272, %v1273
  %v1275 = vrot.slane %v1274, 2
  %v1276 = vmax.f32 %v1274, %v1275
  %v1277 = vrot.slane %v1276, 1
  %v1278 = vmax.f32 %v1276, %v1277
  %v1279 = vsel %vm1201, %v1148, -inf
  %v1280 = vrot.slane %v1279, 4
  %v1281 = vmax.f32 %v1279, %v1280
  %v1282 = vrot.slane %v1281, 2
  %v1283 = vmax.f32 %v1281, %v1282
  %v1284 = vrot.slane %v1283, 1
  %v1285 = vmax.f32 %v1283, %v1284
  %v1286 = vsel %vm1201, %v1149, -inf
  %v1287 = vrot.slane %v1286, 4
  %v1288 = vmax.f32 %v1286, %v1287
  %v1289 = vrot.slane %v1288, 2
  %v1290 = vmax.f32 %v1288, %v1289
  %v1291 = vrot.slane %v1290, 1
  %v1292 = vmax.f32 %v1290, %v1291
  %v1293 = vsel %vm1201, %v1150, -inf
  %v1294 = vrot.slane %v1293, 4
  %v1295 = vmax.f32 %v1293, %v1294
  %v1296 = vrot.slane %v1295, 2
  %v1297 = vmax.f32 %v1295, %v1296
  %v1298 = vrot.slane %v1297, 1
  %v1299 = vmax.f32 %v1297, %v1298
  %v1300 = vsel %vm1201, %v1151, -inf
  %v1301 = vrot.slane %v1300, 4
  %v1302 = vmax.f32 %v1300, %v1301
  %v1303 = vrot.slane %v1302, 2
  %v1304 = vmax.f32 %v1302, %v1303
  %v1305 = vrot.slane %v1304, 1
  %v1306 = vmax.f32 %v1304, %v1305
  %v1307 = vsel %vm1201, %v1152, -inf
  %v1308 = vrot.slane %v1307, 4
  %v1309 = vmax.f32 %v1307, %v1308
  %v1310 = vrot.slane %v1309, 2
  %v1311 = vmax.f32 %v1309, %v1310
  %v1312 = vrot.slane %v1311, 1
  %v1313 = vmax.f32 %v1311, %v1312
  %v1314 = vsel %vm1201, %v1153, -inf
  %v1315 = vrot.slane %v1314, 4
  %v1316 = vmax.f32 %v1314, %v1315
  %v1317 = vrot.slane %v1316, 2
  %v1318 = vmax.f32 %v1316, %v1317
  %v1319 = vrot.slane %v1318, 1
  %v1320 = vmax.f32 %v1318, %v1319
  %v1321 = vsel %vm1201, %v1154, -inf
  %v1322 = vrot.slane %v1321, 4
  %v1323 = vmax.f32 %v1321, %v1322
  %v1324 = vrot.slane %v1323, 2
  %v1325 = vmax.f32 %v1323, %v1324
  %v1326 = vrot.slane %v1325, 1
  %v1327 = vmax.f32 %v1325, %v1326
  %v1328 = vsel %vm1201, %v1155, -inf
  %v1329 = vrot.slane %v1328, 4
  %v1330 = vmax.f32 %v1328, %v1329
  %v1331 = vrot.slane %v1330, 2
  %v1332 = vmax.f32 %v1330, %v1331
  %v1333 = vrot.slane %v1332, 1
  %v1334 = vmax.f32 %v1332, %v1333
  %v1335 = vsel %vm1201, %v1156, -inf
  %v1336 = vrot.slane %v1335, 4
  %v1337 = vmax.f32 %v1335, %v1336
  %v1338 = vrot.slane %v1337, 2
  %v1339 = vmax.f32 %v1337, %v1338
  %v1340 = vrot.slane %v1339, 1
  %v1341 = vmax.f32 %v1339, %v1340
  %v1342 = vsel %vm1201, %v1157, -inf
  %v1343 = vrot.slane %v1342, 4
  %v1344 = vmax.f32 %v1342, %v1343
  %v1345 = vrot.slane %v1344, 2
  %v1346 = vmax.f32 %v1344, %v1345
  %v1347 = vrot.slane %v1346, 1
  %v1348 = vmax.f32 %v1346, %v1347
  %v1349 = vsel %vm1201, %v1158, -inf
  %v1350 = vrot.slane %v1349, 4
  %v1351 = vmax.f32 %v1349, %v1350
  %v1352 = vrot.slane %v1351, 2
  %v1353 = vmax.f32 %v1351, %v1352
  %v1354 = vrot.slane %v1353, 1
  %v1355 = vmax.f32 %v1353, %v1354
  %v1356 = vsel %vm1201, %v1159, -inf
  %v1357 = vrot.slane %v1356, 4
  %v1358 = vmax.f32 %v1356, %v1357
  %v1359 = vrot.slane %v1358, 2
  %v1360 = vmax.f32 %v1358, %v1359
  %v1361 = vrot.slane %v1360, 1
  %v1362 = vmax.f32 %v1360, %v1361
  %v1363 = vsel %vm1201, %v1160, -inf
  %v1364 = vrot.slane %v1363, 4
  %v1365 = vmax.f32 %v1363, %v1364
  %v1366 = vrot.slane %v1365, 2
  %v1367 = vmax.f32 %v1365, %v1366
  %v1368 = vrot.slane %v1367, 1
  %v1369 = vmax.f32 %v1367, %v1368
  %v1370 = vsel %vm1201, %v1161, -inf
  %v1371 = vrot.slane %v1370, 4
  %v1372 = vmax.f32 %v1370, %v1371
  %v1373 = vrot.slane %v1372, 2
  %v1374 = vmax.f32 %v1372, %v1373
  %v1375 = vrot.slane %v1374, 1
  %v1376 = vmax.f32 %v1374, %v1375
  %v1377 = vsel %vm1201, %v1162, -inf
  %v1378 = vrot.slane %v1377, 4
  %v1379 = vmax.f32 %v1377, %v1378
  %v1380 = vrot.slane %v1379, 2
  %v1381 = vmax.f32 %v1379, %v1380
  %v1382 = vrot.slane %v1381, 1
  %v1383 = vmax.f32 %v1381, %v1382
  %v1384 = vsel %vm1201, %v1163, -inf
  %v1385 = vrot.slane %v1384, 4
  %v1386 = vmax.f32 %v1384, %v1385
  %v1387 = vrot.slane %v1386, 2
  %v1388 = vmax.f32 %v1386, %v1387
  %v1389 = vrot.slane %v1388, 1
  %v1390 = vmax.f32 %v1388, %v1389
  %v1391 = vsel %vm1201, %v1164, -inf
  %v1392 = vrot.slane %v1391, 4
  %v1393 = vmax.f32 %v1391, %v1392
  %v1394 = vrot.slane %v1393, 2
  %v1395 = vmax.f32 %v1393, %v1394
  %v1396 = vrot.slane %v1395, 1
  %v1397 = vmax.f32 %v1395, %v1396
  %v1398 = vsel %vm1201, %v1165, -inf
  %v1399 = vrot.slane %v1398, 4
  %v1400 = vmax.f32 %v1398, %v1399
  %v1401 = vrot.slane %v1400, 2
  %v1402 = vmax.f32 %v1400, %v1401
  %v1403 = vrot.slane %v1402, 1
  %v1404 = vmax.f32 %v1402, %v1403
  %v1405 = vsel %vm1201, %v1166, -inf
  %v1406 = vrot.slane %v1405, 4
  %v1407 = vmax.f32 %v1405, %v1406
  %v1408 = vrot.slane %v1407, 2
  %v1409 = vmax.f32 %v1407, %v1408
  %v1410 = vrot.slane %v1409, 1
  %v1411 = vmax.f32 %v1409, %v1410
  %v1412 = vsel %vm1201, %v1167, -inf
  %v1413 = vrot.slane %v1412, 4
  %v1414 = vmax.f32 %v1412, %v1413
  %v1415 = vrot.slane %v1414, 2
  %v1416 = vmax.f32 %v1414, %v1415
  %v1417 = vrot.slane %v1416, 1
  %v1418 = vmax.f32 %v1416, %v1417
  %v1419 = vsel %vm1201, %v1168, -inf
  %v1420 = vrot.slane %v1419, 4
  %v1421 = vmax.f32 %v1419, %v1420
  %v1422 = vrot.slane %v1421, 2
  %v1423 = vmax.f32 %v1421, %v1422
  %v1424 = vrot.slane %v1423, 1
  %v1425 = vmax.f32 %v1423, %v1424
  %v1426 = vsel %vm1201, %v1169, -inf
  %v1427 = vrot.slane %v1426, 4
  %v1428 = vmax.f32 %v1426, %v1427
  %v1429 = vrot.slane %v1428, 2
  %v1430 = vmax.f32 %v1428, %v1429
  %v1431 = vrot.slane %v1430, 1
  %v1432 = vmax.f32 %v1430, %v1431
  %v1433 = vsel %vm1201, %v1170, -inf
  %v1434 = vrot.slane %v1433, 4
  %v1435 = vmax.f32 %v1433, %v1434
  %v1436 = vrot.slane %v1435, 2
  %v1437 = vmax.f32 %v1435, %v1436
  %v1438 = vrot.slane %v1437, 1
  %v1439 = vmax.f32 %v1437, %v1438
  %v1440 = vsel %vm1201, %v1171, -inf
  %v1441 = vrot.slane %v1440, 4
  %v1442 = vmax.f32 %v1440, %v1441
  %v1443 = vrot.slane %v1442, 2
  %v1444 = vmax.f32 %v1442, %v1443
  %v1445 = vrot.slane %v1444, 1
  %v1446 = vmax.f32 %v1444, %v1445
  %v1447 = vsel %vm1201, %v1172, -inf
  %v1448 = vrot.slane %v1447, 4
  %v1449 = vmax.f32 %v1447, %v1448
  %v1450 = vrot.slane %v1449, 2
  %v1451 = vmax.f32 %v1449, %v1450
  %v1452 = vrot.slane %v1451, 1
  %v1453 = vmax.f32 %v1451, %v1452
  %v1454 = vsel %vm1201, %v1173, -inf
  %v1455 = vrot.slane %v1454, 4
  %v1456 = vmax.f32 %v1454, %v1455
  %v1457 = vrot.slane %v1456, 2
  %v1458 = vmax.f32 %v1456, %v1457
  %v1459 = vrot.slane %v1458, 1
  %v1460 = vmax.f32 %v1458, %v1459
  %v1461 = vsel %vm1201, %v1174, -inf
  %v1462 = vrot.slane %v1461, 4
  %v1463 = vmax.f32 %v1461, %v1462
  %v1464 = vrot.slane %v1463, 2
  %v1465 = vmax.f32 %v1463, %v1464
  %v1466 = vrot.slane %v1465, 1
  %v1467 = vmax.f32 %v1465, %v1466
  %v1468 = vsel %vm1201, %v1175, -inf
  %v1469 = vrot.slane %v1468, 4
  %v1470 = vmax.f32 %v1468, %v1469
  %v1471 = vrot.slane %v1470, 2
  %v1472 = vmax.f32 %v1470, %v1471
  %v1473 = vrot.slane %v1472, 1
  %v1474 = vmax.f32 %v1472, %v1473
  %v1475 = vsel %vm1201, %v1176, -inf
  %v1476 = vrot.slane %v1475, 4
  %v1477 = vmax.f32 %v1475, %v1476
  %v1478 = vrot.slane %v1477, 2
  %v1479 = vmax.f32 %v1477, %v1478
  %v1480 = vrot.slane %v1479, 1
  %v1481 = vmax.f32 %v1479, %v1480
  %v1482 = vsel %vm1201, %v1177, -inf
  %v1483 = vrot.slane %v1482, 4
  %v1484 = vmax.f32 %v1482, %v1483
  %v1485 = vrot.slane %v1484, 2
  %v1486 = vmax.f32 %v1484, %v1485
  %v1487 = vrot.slane %v1486, 1
  %v1488 = vmax.f32 %v1486, %v1487
  %v1489 = vsel %vm1201, %v1178, -inf
  %v1490 = vrot.slane %v1489, 4
  %v1491 = vmax.f32 %v1489, %v1490
  %v1492 = vrot.slane %v1491, 2
  %v1493 = vmax.f32 %v1491, %v1492
  %v1494 = vrot.slane %v1493, 1
  %v1495 = vmax.f32 %v1493, %v1494
  %v1496 = vsel %vm1201, %v1179, -inf
  %v1497 = vrot.slane %v1496, 4
  %v1498 = vmax.f32 %v1496, %v1497
  %v1499 = vrot.slane %v1498, 2
  %v1500 = vmax.f32 %v1498, %v1499
  %v1501 = vrot.slane %v1500, 1
  %v1502 = vmax.f32 %v1500, %v1501
  %v1503 = vsel %vm1201, %v1180, -inf
  %v1504 = vrot.slane %v1503, 4
  %v1505 = vmax.f32 %v1503, %v1504
  %v1506 = vrot.slane %v1505, 2
  %v1507 = vmax.f32 %v1505, %v1506
  %v1508 = vrot.slane %v1507, 1
  %v1509 = vmax.f32 %v1507, %v1508
  %v1510 = vsel %vm1201, %v1181, -inf
  %v1511 = vrot.slane %v1510, 4
  %v1512 = vmax.f32 %v1510, %v1511
  %v1513 = vrot.slane %v1512, 2
  %v1514 = vmax.f32 %v1512, %v1513
  %v1515 = vrot.slane %v1514, 1
  %v1516 = vmax.f32 %v1514, %v1515
  %v1517 = vsel %vm1201, %v1182, -inf
  %v1518 = vrot.slane %v1517, 4
  %v1519 = vmax.f32 %v1517, %v1518
  %v1520 = vrot.slane %v1519, 2
  %v1521 = vmax.f32 %v1519, %v1520
  %v1522 = vrot.slane %v1521, 1
  %v1523 = vmax.f32 %v1521, %v1522
  %v1524 = vsel %vm1201, %v1183, -inf
  %v1525 = vrot.slane %v1524, 4
  %v1526 = vmax.f32 %v1524, %v1525
  %v1527 = vrot.slane %v1526, 2
  %v1528 = vmax.f32 %v1526, %v1527
  %v1529 = vrot.slane %v1528, 1
  %v1530 = vmax.f32 %v1528, %v1529
  %v1531 = vsel %vm1201, %v1184, -inf
  %v1532 = vrot.slane %v1531, 4
  %v1533 = vmax.f32 %v1531, %v1532
  %v1534 = vrot.slane %v1533, 2
  %v1535 = vmax.f32 %v1533, %v1534
  %v1536 = vrot.slane %v1535, 1
  %v1537 = vmax.f32 %v1535, %v1536
  %v1538 = vsel %vm1201, %v1185, -inf
  %v1539 = vrot.slane %v1538, 4
  %v1540 = vmax.f32 %v1538, %v1539
  %v1541 = vrot.slane %v1540, 2
  %v1542 = vmax.f32 %v1540, %v1541
  %v1543 = vrot.slane %v1542, 1
  %v1544 = vmax.f32 %v1542, %v1543
  %v1545 = vsel %vm1201, %v1186, -inf
  %v1546 = vrot.slane %v1545, 4
  %v1547 = vmax.f32 %v1545, %v1546
  %v1548 = vrot.slane %v1547, 2
  %v1549 = vmax.f32 %v1547, %v1548
  %v1550 = vrot.slane %v1549, 1
  %v1551 = vmax.f32 %v1549, %v1550
  %v1552 = vsel %vm1201, %v1187, -inf
  %v1553 = vrot.slane %v1552, 4
  %v1554 = vmax.f32 %v1552, %v1553
  %v1555 = vrot.slane %v1554, 2
  %v1556 = vmax.f32 %v1554, %v1555
  %v1557 = vrot.slane %v1556, 1
  %v1558 = vmax.f32 %v1556, %v1557
  %v1559 = vsel %vm1201, %v1188, -inf
  %v1560 = vrot.slane %v1559, 4
  %v1561 = vmax.f32 %v1559, %v1560
  %v1562 = vrot.slane %v1561, 2
  %v1563 = vmax.f32 %v1561, %v1562
  %v1564 = vrot.slane %v1563, 1
  %v1565 = vmax.f32 %v1563, %v1564
  %v1566 = vsel %vm1201, %v1189, -inf
  %v1567 = vrot.slane %v1566, 4
  %v1568 = vmax.f32 %v1566, %v1567
  %v1569 = vrot.slane %v1568, 2
  %v1570 = vmax.f32 %v1568, %v1569
  %v1571 = vrot.slane %v1570, 1
  %v1572 = vmax.f32 %v1570, %v1571
  %v1573 = vsel %vm1201, %v1190, -inf
  %v1574 = vrot.slane %v1573, 4
  %v1575 = vmax.f32 %v1573, %v1574
  %v1576 = vrot.slane %v1575, 2
  %v1577 = vmax.f32 %v1575, %v1576
  %v1578 = vrot.slane %v1577, 1
  %v1579 = vmax.f32 %v1577, %v1578
  %v1580 = vsel %vm1201, %v1191, -inf
  %v1581 = vrot.slane %v1580, 4
  %v1582 = vmax.f32 %v1580, %v1581
  %v1583 = vrot.slane %v1582, 2
  %v1584 = vmax.f32 %v1582, %v1583
  %v1585 = vrot.slane %v1584, 1
  %v1586 = vmax.f32 %v1584, %v1585
  %v1587 = vsel %vm1201, %v1192, -inf
  %v1588 = vrot.slane %v1587, 4
  %v1589 = vmax.f32 %v1587, %v1588
  %v1590 = vrot.slane %v1589, 2
  %v1591 = vmax.f32 %v1589, %v1590
  %v1592 = vrot.slane %v1591, 1
  %v1593 = vmax.f32 %v1591, %v1592
  %v1594 = vsel %vm1201, %v1193, -inf
  %v1595 = vrot.slane %v1594, 4
  %v1596 = vmax.f32 %v1594, %v1595
  %v1597 = vrot.slane %v1596, 2
  %v1598 = vmax.f32 %v1596, %v1597
  %v1599 = vrot.slane %v1598, 1
  %v1600 = vmax.f32 %v1598, %v1599
  %v1601 = vsel %vm1201, %v1194, -inf
  %v1602 = vrot.slane %v1601, 4
  %v1603 = vmax.f32 %v1601, %v1602
  %v1604 = vrot.slane %v1603, 2
  %v1605 = vmax.f32 %v1603, %v1604
  %v1606 = vrot.slane %v1605, 1
  %v1607 = vmax.f32 %v1605, %v1606
  %v1608 = vsel %vm1201, %v1195, -inf
  %v1609 = vrot.slane %v1608, 4
  %v1610 = vmax.f32 %v1608, %v1609
  %v1611 = vrot.slane %v1610, 2
  %v1612 = vmax.f32 %v1610, %v1611
  %v1613 = vrot.slane %v1612, 1
  %v1614 = vmax.f32 %v1612, %v1613
  %v1615 = vsel %vm1201, %v1196, -inf
  %v1616 = vrot.slane %v1615, 4
  %v1617 = vmax.f32 %v1615, %v1616
  %v1618 = vrot.slane %v1617, 2
  %v1619 = vmax.f32 %v1617, %v1618
  %v1620 = vrot.slane %v1619, 1
  %v1621 = vmax.f32 %v1619, %v1620
  %v1622 = vsel %vm1201, %v1197, -inf
  %v1623 = vrot.slane %v1622, 4
  %v1624 = vmax.f32 %v1622, %v1623
  %v1625 = vrot.slane %v1624, 2
  %v1626 = vmax.f32 %v1624, %v1625
  %v1627 = vrot.slane %v1626, 1
  %v1628 = vmax.f32 %v1626, %v1627
  %v1629 = vsel %vm1201, %v1198, -inf
  %v1630 = vrot.slane %v1629, 4
  %v1631 = vmax.f32 %v1629, %v1630
  %v1632 = vrot.slane %v1631, 2
  %v1633 = vmax.f32 %v1631, %v1632
  %v1634 = vrot.slane %v1633, 1
  %v1635 = vmax.f32 %v1633, %v1634
  %v1636 = vsel %vm1201, %v1199, -inf
  %v1637 = vrot.slane %v1636, 4
  %v1638 = vmax.f32 %v1636, %v1637
  %v1639 = vrot.slane %v1638, 2
  %v1640 = vmax.f32 %v1638, %v1639
  %v1641 = vrot.slane %v1640, 1
  %v1642 = vmax.f32 %v1640, %v1641
  %v1643 = vsel %vm1201, %v1200, -inf
  %v1644 = vrot.slane %v1643, 4
  %v1645 = vmax.f32 %v1643, %v1644
  %v1646 = vrot.slane %v1645, 2
  %v1647 = vmax.f32 %v1645, %v1646
  %v1648 = vrot.slane %v1647, 1
  %v1649 = vmax.f32 %v1647, %v1648
  %vm1714 = vcmask 1041409
  %v1715 = vsel %vm1714, %v1215, %v1208
  %vm1716 = vcmask 1042434
  %v1717 = vsel %vm1716, %v1222, %v1715
  %vm1718 = vcmask 1043459
  %v1719 = vsel %vm1718, %v1229, %v1717
  %vm1720 = vcmask 1044484
  %v1721 = vsel %vm1720, %v1236, %v1719
  %vm1722 = vcmask 1045509
  %v1723 = vsel %vm1722, %v1243, %v1721
  %vm1724 = vcmask 1046534
  %v1725 = vsel %vm1724, %v1250, %v1723
  %vm1726 = vcmask 1047559
  %v1727 = vsel %vm1726, %v1257, %v1725
  %v1728 = vsel %vm1714, %v1271, %v1264
  %v1729 = vsel %vm1716, %v1278, %v1728
  %v1730 = vsel %vm1718, %v1285, %v1729
  %v1731 = vsel %vm1720, %v1292, %v1730
  %v1732 = vsel %vm1722, %v1299, %v1731
  %v1733 = vsel %vm1724, %v1306, %v1732
  %v1734 = vsel %vm1726, %v1313, %v1733
  %v1735 = vsel %vm1714, %v1327, %v1320
  %v1736 = vsel %vm1716, %v1334, %v1735
  %v1737 = vsel %vm1718, %v1341, %v1736
  %v1738 = vsel %vm1720, %v1348, %v1737
  %v1739 = vsel %vm1722, %v1355, %v1738
  %v1740 = vsel %vm1724, %v1362, %v1739
  %v1741 = vsel %vm1726, %v1369, %v1740
  %v1742 = vsel %vm1714, %v1383, %v1376
  %v1743 = vsel %vm1716, %v1390, %v1742
  %v1744 = vsel %vm1718, %v1397, %v1743
  %v1745 = vsel %vm1720, %v1404, %v1744
  %v1746 = vsel %vm1722, %v1411, %v1745
  %v1747 = vsel %vm1724, %v1418, %v1746
  %v1748 = vsel %vm1726, %v1425, %v1747
  %v1749 = vsel %vm1714, %v1439, %v1432
  %v1750 = vsel %vm1716, %v1446, %v1749
  %v1751 = vsel %vm1718, %v1453, %v1750
  %v1752 = vsel %vm1720, %v1460, %v1751
  %v1753 = vsel %vm1722, %v1467, %v1752
  %v1754 = vsel %vm1724, %v1474, %v1753
  %v1755 = vsel %vm1726, %v1481, %v1754
  %v1756 = vsel %vm1714, %v1495, %v1488
  %v1757 = vsel %vm1716, %v1502, %v1756
  %v1758 = vsel %vm1718, %v1509, %v1757
  %v1759 = vsel %vm1720, %v1516, %v1758
  %v1760 = vsel %vm1722, %v1523, %v1759
  %v1761 = vsel %vm1724, %v1530, %v1760
  %v1762 = vsel %vm1726, %v1537, %v1761
  %v1763 = vsel %vm1714, %v1551, %v1544
  %v1764 = vsel %vm1716, %v1558, %v1763
  %v1765 = vsel %vm1718, %v1565, %v1764
  %v1766 = vsel %vm1720, %v1572, %v1765
  %v1767 = vsel %vm1722, %v1579, %v1766
  %v1768 = vsel %vm1724, %v1586, %v1767
  %v1769 = vsel %vm1726, %v1593, %v1768
  %v1770 = vsel %vm1714, %v1607, %v1600
  %v1771 = vsel %vm1716, %v1614, %v1770
  %v1772 = vsel %vm1718, %v1621, %v1771
  %v1773 = vsel %vm1720, %v1628, %v1772
  %v1774 = vsel %vm1722, %v1635, %v1773
  %v1775 = vsel %vm1724, %v1642, %v1774
  %v1776 = vsel %vm1726, %v1649, %v1775
  %1785 = vst.msk [vmem:[%s5] sm:$0xff] %vm1201, %v1727
  %1786 = vst.msk [vmem:[%s5 + $0x8] sm:$0xff] %vm1201, %v1734
  %1787 = vst.msk [vmem:[%s5 + $0x10] sm:$0xff] %vm1201, %v1741
  %1788 = vst.msk [vmem:[%s5 + $0x18] sm:$0xff] %vm1201, %v1748
  %1789 = vst.msk [vmem:[%s5 + $0x20] sm:$0xff] %vm1201, %v1755
  %1790 = vst.msk [vmem:[%s5 + $0x28] sm:$0xff] %vm1201, %v1762
  %1791 = vst.msk [vmem:[%s5 + $0x30] sm:$0xff] %vm1201, %v1769
  %1792 = vst.msk [vmem:[%s5 + $0x38] sm:$0xff] %vm1201, %v1776
  // Predicated region
  $region22: #{pointnet2_layer_forward.16} parent=0 // pred_check
    _
  $region23: #{pointnet2_layer_forward.16} parent=0 // pred_check_branch
    %1794 = sbr.rel (0) target = $region25
  $region24: #{pointnet2_layer_forward.16} parent=0 // pred_region
    _
  $region25: #{pointnet2_layer_forward.16} parent=0 // pred_fallthru
    _
  // Predicated region
  $region26: #{pointnet2_layer_forward.16} parent=0 // pred_check
    _
  $region27: #{pointnet2_layer_forward.16} parent=0 // pred_check_branch
    %1796 = sbr.rel (0) target = $region29
  $region28: #{pointnet2_layer_forward.16} parent=0 // pred_region
    _
  $region29: #{pointnet2_layer_forward.16} parent=0 // pred_fallthru
    _

// kernel: neg.14
$region0: #{neg.14}
  #allocation0 [shape = 's32[1]{0}', space=sflag, size = 0x4, scoped, tag = 'scoped memory for neg.14']
  %s0 = inlined_call_operand.vmem [shape: f32[2,16,32], index: 0, kind: input, shape index: {}]
  %s1 = inlined_call_operand.vmem [shape: f32[2,16,32], index: 1, kind: output, shape index: {}]
  %v2 = vld [vmem:[%s0] sm:$0xff]
  %3 = xla_tuple %v2
  %4 = xla_tuple %3
  %v5 = vxor.u32 %v2, 2147483648
  %6 = xla_tuple %v5
  %7 = vst [vmem:[%s1] sm:$0xff] %v5
  %s8 = scalar_lea.vmem %s0, 16
  %v9 = vld [vmem:[%s8] sm:$0xff]
  %10 = xla_tuple %v9
  %11 = xla_tuple %10
  %v12 = vxor.u32 %v9, 2147483648
  %13 = xla_tuple %v12
  %s14 = scalar_lea.vmem %s1, 16
  %15 = vst [vmem:[%s14] sm:$0xff] %v12
  %s16 = scalar_lea.vmem %s0, 8
  %v17 = vld [vmem:[%s16] sm:$0xff]
  %18 = xla_tuple %v17
  %19 = xla_tuple %18
  %v20 = vxor.u32 %v17, 2147483648
  %21 = xla_tuple %v20
  %s22 = scalar_lea.vmem %s1, 8
  %23 = vst [vmem:[%s22] sm:$0xff] %v20
  %s24 = scalar_lea.vmem %s0, 24
  %v25 = vld [vmem:[%s24] sm:$0xff]
  %26 = xla_tuple %v25
  %27 = xla_tuple %26
  %v28 = vxor.u32 %v25, 2147483648
  %29 = xla_tuple %v28
  %s30 = scalar_lea.vmem %s1, 24
  %31 = vst [vmem:[%s30] sm:$0xff] %v28

// kernel: pointnet2_layer_forward.18
$region0: #{pointnet2_layer_forward.18}
  #allocation0 [shape = 'u32[]', space=smem, size = 0x4, offset = 0x4, fixed_abs, tag = 'smem constant byte address 0x4 - core index']
  #allocation1 [shape = 'u32[144,128]{1,0:T(1,128)}', space=vmem, size = 0x12000, scoped, tag = 'internal scratch']
  %s0 = inlined_call_operand.vmem [shape: f32[2,16,8], index: 0, kind: input, shape index: {}]
  %s1 = inlined_call_operand.vmem [shape: f32[2,8,32], index: 1, kind: input, shape index: {}]
  %s2 = inlined_call_operand.vmem [shape: f32[2,16,32], index: 2, kind: output, shape index: {}]
  %s3 = sld [smem:[#allocation0]]
  $region41: #{pointnet2_layer_forward.18} parent=0
    _
  %s5 = ssub.s32 1, %s3
  %s6 = scalar_select 0, %s5, %s3
  loop: start=0, step=1, limit=4
  $region2: #{pointnet2_layer_forward.18} parent=0 // loop_pre_header
    _
  $region3: #{pointnet2_layer_forward.18} parent=0 // loop_header
    %s8 = sphi 0, %s12
    %p9 = scmp.ge.s32.totalorder %s8, 4
    %s15 = sphi 0, %s27
    %s16 = sphi 0, %s23
    %s17 = sphi 0, %s15
    %s18 = sphi 0, %s16
    %s19 = sphi 0, %s17
    %s20 = sphi 0, %s18
    %s32 = sphi 0, %s34
    %s35 = sphi 0, %s32
    %s36 = sphi 0, %s35
    %s52 = sphi 0, %s36
    %s58 = sphi 0, %s60
    %s61 = sphi 0, %s58
    %s62 = sphi 0, %s61
    %s78 = sphi 0, %s62
    %s86 = sphi 0, %s88
    %s89 = sphi 0, %s86
    %s90 = sphi 0, %s89
    %s106 = sphi 0, %s90
  $region4: #{pointnet2_layer_forward.18} parent=0 // loop_header_branch
    %11 = sbr.rel (%p9) target = $region8
  $region5: #{pointnet2_layer_forward.18} parent=0 // loop_body
    %s13 = ssub.s32 %s8, 1
    %s14 = ssub.s32 %s8, 2
    %s21 = sadd.s32 1, %s16
    %p22 = scmp.ge.s32.totalorder %s21, 1
    %s23 = scalar_select %p22, 0, %s21
    %s24 = sadd.s32 1, %s15
    %s25 = scalar_select %p22, %s24, %s15
    %p26 = scmp.ge.s32.totalorder %s25, 2
    %s27 = scalar_select %p26, 0, %s25
    %s28 = ssub.s32 %s15, %s27
    %s29 = ssub.s32 %s16, %s23
    %s30 = sor.u32 %s28, %s29
    %p31 = scmp.eq.s32.totalorder %s30, 0
    %s33 = sadd.s32 %s32, 1
    %s34 = scalar_select %p31, %s32, %s33
    %p37 = pneg %p31
    %p38 = scmp.eq.s32.totalorder %s8, 1
    %p39 = por %p37, %p38
    %p40 = scmp.ne.s32.totalorder %s32, %s35
    %p41 = scmp.eq.s32.totalorder %s8, 0
    %p42 = por %p40, %p41
    %p43 = scmp.ne.s32.totalorder %s32, %s35
    %p44 = scmp.eq.s32.totalorder %s13, 1
    %p45 = por %p43, %p44
    %p46 = scmp.ne.s32.totalorder %s35, %s36
    %p47 = scmp.eq.s32.totalorder %s13, 0
    %p48 = por %p46, %p47
    %p49 = scmp.ne.s32.totalorder %s35, %s36
    %p50 = scmp.eq.s32.totalorder %s14, 1
    %p51 = por %p49, %p50
    %p53 = scmp.ne.s32.totalorder %s36, %s52
    %p54 = scmp.eq.s32.totalorder %s14, 0
    %p55 = por %p53, %p54
    %s56 = ssub.s32 %s15, %s27
    %p57 = scmp.eq.s32.totalorder %s56, 0
    %s59 = sadd.s32 %s58, 1
    %s60 = scalar_select %p57, %s58, %s59
    %p63 = pneg %p57
    %p64 = scmp.eq.s32.totalorder %s8, 1
    %p65 = por %p63, %p64
    %p66 = scmp.ne.s32.totalorder %s58, %s61
    %p67 = scmp.eq.s32.totalorder %s8, 0
    %p68 = por %p66, %p67
    %p69 = scmp.ne.s32.totalorder %s58, %s61
    %p70 = scmp.eq.s32.totalorder %s13, 1
    %p71 = por %p69, %p70
    %p72 = scmp.ne.s32.totalorder %s61, %s62
    %p73 = scmp.eq.s32.totalorder %s13, 0
    %p74 = por %p72, %p73
    %p75 = scmp.ne.s32.totalorder %s61, %s62
    %p76 = scmp.eq.s32.totalorder %s14, 1
    %p77 = por %p75, %p76
    %p79 = scmp.ne.s32.totalorder %s62, %s78
    %p80 = scmp.eq.s32.totalorder %s14, 0
    %p81 = por %p79, %p80
    %s82 = ssub.s32 %s15, %s27
    %s83 = ssub.s32 %s16, %s23
    %s84 = sor.u32 %s82, %s83
    %p85 = scmp.eq.s32.totalorder %s84, 0
    %s87 = sadd.s32 %s86, 1
    %s88 = scalar_select %p85, %s86, %s87
    %p91 = pneg %p85
    %p92 = scmp.eq.s32.totalorder %s8, 1
    %p93 = por %p91, %p92
    %p94 = scmp.ne.s32.totalorder %s86, %s89
    %p95 = scmp.eq.s32.totalorder %s8, 0
    %p96 = por %p94, %p95
    %p97 = scmp.ne.s32.totalorder %s86, %s89
    %p98 = scmp.eq.s32.totalorder %s13, 1
    %p99 = por %p97, %p98
    %p100 = scmp.ne.s32.totalorder %s89, %s90
    %p101 = scmp.eq.s32.totalorder %s13, 0
    %p102 = por %p100, %p101
    %p103 = scmp.ne.s32.totalorder %s89, %s90
    %p104 = scmp.eq.s32.totalorder %s14, 1
    %p105 = por %p103, %p104
    %p107 = scmp.ne.s32.totalorder %s90, %s106
    %p108 = scmp.eq.s32.totalorder %s14, 0
    %p109 = por %p107, %p108
    %p110 = scmp.le.s32.totalorder 1, %s8
    %p111 = scmp.lt.s32.totalorder %s8, 3
    %p112 = pnand %p110, %p111
    %p113 = pneg %p112
    // Predicated region
    $region9: #{pointnet2_layer_forward.18} parent=5 // pred_check
      _
    $region10: #{pointnet2_layer_forward.18} parent=5 // pred_check_branch
      %115 = sbr.rel (%p112) target = $region12
    $region11: #{pointnet2_layer_forward.18} parent=5 // pred_region
      %s116 = ssub.s32 %s8, 1
    $region12: #{pointnet2_layer_forward.18} parent=5 // pred_fallthru
      _
    %p117 = scmp.lt.s32.totalorder %s8, 2
    // Predicated region
    $region13: #{pointnet2_layer_forward.18} parent=5 // pred_check
      %p118 = pneg %p117
    $region14: #{pointnet2_layer_forward.18} parent=5 // pred_check_branch
      %120 = sbr.rel (%p118) target = $region16
    $region15: #{pointnet2_layer_forward.18} parent=5 // pred_region
      // Predicated region
      $region17: #{pointnet2_layer_forward.18} parent=15 // pred_check
        %p121 = pneg %p42
      $region18: #{pointnet2_layer_forward.18} parent=15 // pred_check_branch
        %123 = sbr.rel (%p121) target = $region20
      $region19: #{pointnet2_layer_forward.18} parent=15 // pred_region
        %s124 = smul.u32 2, %s16
        %p125 = scmp.lt.s32.totalorder %s15, 1
        %s126 = scalar_select %p125, %s15, 1
        %p127 = scmp.lt.s32.totalorder %s124, 1
        %s128 = scalar_select %p127, %s124, 1
        %s129 = smul.addr %s126, 2
        %s130 = sadd.s32 %s128, %s129
        %s131 = smul.addr %s130, 8
        %s132 = scalar_lea.vmem %s0, %s131
        %s133 = smul.u32 2, %s16
      $region20: #{pointnet2_layer_forward.18} parent=15 // pred_fallthru
        _
      // Predicated region
      $region21: #{pointnet2_layer_forward.18} parent=15 // pred_check
        %p134 = pneg %p68
      $region22: #{pointnet2_layer_forward.18} parent=15 // pred_check_branch
        %136 = sbr.rel (%p134) target = $region24
      $region23: #{pointnet2_layer_forward.18} parent=15 // pred_region
        %p137 = scmp.lt.s32.totalorder %s15, 1
        %s138 = scalar_select %p137, %s15, 1
        %s139 = smul.addr %s138, 8
        %s140 = scalar_lea.vmem %s1, %s139
      $region24: #{pointnet2_layer_forward.18} parent=15 // pred_fallthru
        _
    $region16: #{pointnet2_layer_forward.18} parent=5 // pred_fallthru
      _
    %p141 = scmp.le.s32.totalorder 1, %s8
    %p142 = scmp.lt.s32.totalorder %s8, 3
    %p143 = pnand %p141, %p142
    %p144 = pneg %p143
    // Predicated region
    $region25: #{pointnet2_layer_forward.18} parent=5 // pred_check
      _
    $region26: #{pointnet2_layer_forward.18} parent=5 // pred_check_branch
      %146 = sbr.rel (%p143) target = $region28
    $region27: #{pointnet2_layer_forward.18} parent=5 // pred_region
      %s147 = ssub.s32 %s8, 1
      %s148 = smul.u32 2, %s18
      %p149 = scmp.lt.s32.totalorder %s17, 1
      %s150 = scalar_select %p149, %s17, 1
      %p151 = scmp.lt.s32.totalorder %s148, 1
      %s152 = scalar_select %p151, %s148, 1
      %s153 = smul.addr %s150, 2
      %s154 = sadd.s32 %s152, %s153
      %s155 = smul.addr %s154, 8
      %s156 = scalar_lea.vmem %s0, %s155
      %p157 = pneg %p48
      %p158 = pneg %p45
      %p159 = scmp.lt.s32.totalorder %s17, 1
      %s160 = scalar_select %p159, %s17, 1
      %s161 = smul.addr %s160, 8
      %s162 = scalar_lea.vmem %s1, %s161
      %p163 = pneg %p74
      %p164 = pneg %p71
      %p165 = pneg %p102
      %p166 = pneg %p99
      %s167 = smul.u32 2, %s18
      %p168 = scmp.lt.s32.totalorder %s17, 1
      %s169 = scalar_select %p168, %s17, 1
      %p170 = scmp.lt.s32.totalorder %s167, 1
      %s171 = scalar_select %p170, %s167, 1
      %s172 = smul.addr %s169, 2
      %s173 = sadd.s32 %s171, %s172
      %s174 = smul.addr %s173, 8
      %s175 = scalar_lea.vmem %s2, %s174
      %s176 = smul.u32 2, %s18
      %p177 = scmp.lt.s32.totalorder %s17, 1
      %s178 = scalar_select %p177, %s17, 1
      %p179 = scmp.lt.s32.totalorder %s176, 1
      %s180 = scalar_select %p179, %s176, 1
      %s181 = smul.addr %s178, 2
      %s182 = sadd.s32 %s180, %s181
      %s183 = smul.addr %s182, 8
      %s184 = scalar_lea.vmem %s0, %s183
      %s185 = smul.u32 2, %s18
      %p186 = scmp.lt.s32.totalorder %s17, 1
      %s187 = scalar_select %p186, %s17, 1
      %s188 = smul.addr %s187, 8
      %s189 = scalar_lea.vmem %s1, %s188
      %s190 = smul.u32 2, %s18
      %p191 = scmp.lt.s32.totalorder %s17, 1
      %s192 = scalar_select %p191, %s17, 1
      %p193 = scmp.lt.s32.totalorder %s190, 1
      %s194 = scalar_select %p193, %s190, 1
      %s195 = smul.addr %s192, 2
      %s196 = sadd.s32 %s194, %s195
      %s197 = smul.addr %s196, 8
      %s198 = scalar_lea.vmem %s2, %s197
      %s199 = smul.u32 2, %s18
      %v200 = vld [vmem:[%s184] sm:$0xff]
      %v201 = vld [vmem:[%s184 + $0x8] sm:$0xff]
      %v202 = vld [vmem:[%s189] sm:$0xff]
      %v203 = vmul.f32 %v200, %v200
      %v204 = vmul.f32 %v201, %v201
      %vm205 = vcmask 64512
      %v206 = vsel %vm205, %v203, 0.0
      %207 = vadd.xlane.f32.xlu0 %v206
      %v208 = vpop.xlane.xlu0 %207
      %v209 = vsel %vm205, %v204, 0.0
      %210 = vadd.xlane.f32.xlu0 %v209
      %v211 = vpop.xlane.xlu0 %210
      %v212 = vmul.f32 %v202, %v202
      %vm213 = vcmask 261120
      %v214 = vsel %vm213, %v212, 0.0
      %v215 = vrot.slane %v214, 4
      %v216 = vadd.f32 %v214, %v215
      %v217 = vrot.slane %v216, 2
      %v218 = vadd.f32 %v216, %v217
      %v219 = vrot.slane %v218, 1
      %v220 = vadd.f32 %v218, %v219
      %v222 = vsel %vm205, %v200, 0
      %v225 = vsel %vm205, %v201, 0
      %227 = vmatprep.subr.mxu0 0.0
      %228 = vmatpush1.msra.mxu0 %v202
      %229 = vmatprep.subr.mxu0 0.0
      %230 = vmatpush1.msra.mxu0 0.0
      %231 = vmatprep.subr.mxu0 0.0
      %232 = vmatpush1.msra.mxu0 0.0
      %233 = vmatprep.subr.mxu0 0.0
      %234 = vmatpush1.msra.mxu0 0.0
      %235 = vmatprep.subr.mxu0 0.0
      %236 = vmatpush1.msra.mxu0 0.0
      %237 = vmatprep.subr.mxu0 0.0
      %238 = vmatpush1.msra.mxu0 0.0
      %239 = vmatprep.subr.mxu0 0.0
      %240 = vmatpush1.msra.mxu0 0.0
      %241 = vmatprep.subr.mxu0 0.0
      %242 = vmatpush1.msra.mxu0 0.0
      %243 = vmatprep.subr.mxu0 0.0
      %244 = vmatpush1.msra.mxu0 0.0
      %245 = vmatprep.subr.mxu0 0.0
      %246 = vmatpush1.msra.mxu0 0.0
      %247 = vmatprep.subr.mxu0 0.0
      %248 = vmatpush1.msra.mxu0 0.0
      %249 = vmatprep.subr.mxu0 0.0
      %250 = vmatpush1.msra.mxu0 0.0
      %251 = vmatprep.subr.mxu0 0.0
      %252 = vmatpush1.msra.mxu0 0.0
      %253 = vmatprep.subr.mxu0 0.0
      %254 = vmatpush1.msra.mxu0 0.0
      %255 = vmatprep.subr.mxu0 0.0
      %256 = vmatpush1.msra.mxu0 0.0
      %257 = vmatprep.subr.mxu0 0.0
      %258 = vmatpush1.msra.mxu0 0.0
      %259 = vmatprep.subr.mxu0 0.0
      %260 = vmatpush1.msra.mxu0 0.0
      %261 = vmatprep.subr.mxu0 0.0
      %262 = vmatpush1.msra.mxu0 0.0
      %263 = vmatprep.subr.mxu0 0.0
      %264 = vmatpush1.msra.mxu0 0.0
      %265 = vmatprep.subr.mxu0 0.0
      %266 = vmatpush1.msra.mxu0 0.0
      %267 = vmatprep.subr.mxu0 0.0
      %268 = vmatpush1.msra.mxu0 0.0
      %269 = vmatprep.subr.mxu0 0.0
      %270 = vmatpush1.msra.mxu0 0.0
      %271 = vmatprep.subr.mxu0 0.0
      %272 = vmatpush1.msra.mxu0 0.0
      %273 = vmatprep.subr.mxu0 0.0
      %274 = vmatpush1.msra.mxu0 0.0
      %275 = vmatprep.subr.mxu0 0.0
      %276 = vmatpush1.msra.mxu0 0.0
      %277 = vmatprep.subr.mxu0 0.0
      %278 = vmatpush1.msra.mxu0 0.0
      %279 = vmatprep.subr.mxu0 0.0
      %280 = vmatpush1.msra.mxu0 0.0
      %281 = vmatprep.subr.mxu0 0.0
      %282 = vmatpush1.msra.mxu0 0.0
      %283 = vmatprep.subr.mxu0 0.0
      %284 = vmatpush1.msra.mxu0 0.0
      %285 = vmatprep.subr.mxu0 0.0
      %286 = vmatpush1.msra.mxu0 0.0
      %287 = vmatprep.subr.mxu0 0.0
      %288 = vmatpush1.msra.mxu0 0.0
      %289 = vmatprep.subr.mxu0 0.0
      %290 = vmatpush1.msra.mxu0 0.0
      %291 = vmatprep.mubr.f32.mxu0 0.0
      %292 = vmatmul.mubr.f32.gmra.mrb[0].mxu0 %v222
      %v293 = vpop.f32.mrb[0].mxu0
      %v294 = vadd.f32 0.0, %v293
      %v295 = vpop.f32.mrb[0].mxu0
      %296 = vmatprep.mubr.f32.mxu0 0.0
      %297 = vmatmul.mubr.f32.gmra.mrb[0].mxu0 %v225
      %v298 = vpop.f32.mrb[0].mxu0
      %v299 = vadd.f32 0.0, %v298
      %v300 = vpop.f32.mrb[0].mxu0
      %301 = vdwg.mxu0
      %v302 = vadd.f32 %v208, %v220
      %v303 = vadd.f32 %v211, %v220
      %v304 = vmul.f32 %v294, 2.0
      %v305 = vmul.f32 %v299, 2.0
      %v306 = vsub.f32 %v302, %v304
      %v307 = vsub.f32 %v303, %v305
      %v308 = vmax.f32 %v306, 0.0
      %v309 = vmax.f32 %v307, 0.0
      %310 = vst.msk [vmem:[%s198] sm:$0xff] %vm213, %v308
      %311 = vst.msk [vmem:[%s198 + $0x8] sm:$0xff] %vm213, %v309
      %s312 = smul.u32 2, %s18
      %p313 = scmp.lt.s32.totalorder %s17, 1
      %s314 = scalar_select %p313, %s17, 1
      %p315 = scmp.lt.s32.totalorder %s312, 1
      %s316 = scalar_select %p315, %s312, 1
      %s317 = smul.addr %s314, 2
      %s318 = sadd.s32 %s316, %s317
      %s319 = smul.addr %s318, 8
      %s320 = scalar_lea.vmem %s2, %s319
      // Predicated region
      $region29: #{pointnet2_layer_forward.18} parent=27 // pred_check
        %p321 = pneg %p99
      $region30: #{pointnet2_layer_forward.18} parent=27 // pred_check_branch
        %323 = sbr.rel (%p321) target = $region32
      $region31: #{pointnet2_layer_forward.18} parent=27 // pred_region
        %s324 = smul.u32 2, %s18
      $region32: #{pointnet2_layer_forward.18} parent=27 // pred_fallthru
        _
    $region28: #{pointnet2_layer_forward.18} parent=5 // pred_fallthru
      _
    %p325 = scmp.le.s32.totalorder 2, %s8
    // Predicated region
    $region33: #{pointnet2_layer_forward.18} parent=5 // pred_check
      %p326 = pneg %p325
    $region34: #{pointnet2_layer_forward.18} parent=5 // pred_check_branch
      %328 = sbr.rel (%p326) target = $region36
    $region35: #{pointnet2_layer_forward.18} parent=5 // pred_region
      %s329 = ssub.s32 %s8, 2
      // Predicated region
      $region37: #{pointnet2_layer_forward.18} parent=35 // pred_check
        %p330 = pneg %p105
      $region38: #{pointnet2_layer_forward.18} parent=35 // pred_check_branch
        %332 = sbr.rel (%p330) target = $region40
      $region39: #{pointnet2_layer_forward.18} parent=35 // pred_region
        %s333 = smul.u32 2, %s20
        %p334 = scmp.lt.s32.totalorder %s19, 1
        %s335 = scalar_select %p334, %s19, 1
        %p336 = scmp.lt.s32.totalorder %s333, 1
        %s337 = scalar_select %p336, %s333, 1
        %s338 = smul.addr %s335, 2
        %s339 = sadd.s32 %s337, %s338
        %s340 = smul.addr %s339, 8
        %s341 = scalar_lea.vmem %s2, %s340
      $region40: #{pointnet2_layer_forward.18} parent=35 // pred_fallthru
        _
    $region36: #{pointnet2_layer_forward.18} parent=5 // pred_fallthru
      _
  $region6: #{pointnet2_layer_forward.18} parent=0 // loop_footer
    %s12 = sadd.s32 1, %s8
  $region7: #{pointnet2_layer_forward.18} parent=0 // loop_footer_branch
    %7 = sbr.rel target = $region3
  $region8: #{pointnet2_layer_forward.18} parent=0 // loop_exit
    _

// kernel: pointnet2_layer_forward.17
$region0: #{pointnet2_layer_forward.17}
  #allocation0 [shape = 'u32[]', space=smem, size = 0x4, offset = 0x4, fixed_abs, tag = 'smem constant byte address 0x4 - core index']
  #allocation1 [shape = 'u32[144,128]{1,0:T(1,128)}', space=vmem, size = 0x12000, scoped, tag = 'internal scratch']
  %s0 = inlined_call_operand.vmem [shape: bf16[1024,4], index: 0, kind: input, shape index: {}]
  %s1 = inlined_call_operand.vmem [shape: bf16[4,8], index: 1, kind: input, shape index: {}]
  %s2 = inlined_call_operand.vmem [shape: f32[1,8], index: 2, kind: input, shape index: {}]
  %s3 = inlined_call_operand.vmem [shape: bf16[8,16], index: 3, kind: input, shape index: {}]
  %s4 = inlined_call_operand.vmem [shape: f32[1,16], index: 4, kind: input, shape index: {}]
  %s5 = inlined_call_operand.vmem [shape: f32[64,16], index: 5, kind: output, shape index: {}]
  %s6 = sld [smem:[#allocation0]]
  $region30: #{pointnet2_layer_forward.17} parent=0
    _
  %s8 = ssub.s32 1, %s6
  %s9 = scalar_select 0, %s8, %s6
  // Predicated region
  $region2: #{pointnet2_layer_forward.17} parent=0 // pred_check
    _
  $region3: #{pointnet2_layer_forward.17} parent=0 // pred_check_branch
    %11 = sbr.rel (0) target = $region5
  $region4: #{pointnet2_layer_forward.17} parent=0 // pred_region
    _
  $region5: #{pointnet2_layer_forward.17} parent=0 // pred_fallthru
    _
  // Predicated region
  $region6: #{pointnet2_layer_forward.17} parent=0 // pred_check
    _
  $region7: #{pointnet2_layer_forward.17} parent=0 // pred_check_branch
    %13 = sbr.rel (0) target = $region9
  $region8: #{pointnet2_layer_forward.17} parent=0 // pred_region
    _
  $region9: #{pointnet2_layer_forward.17} parent=0 // pred_fallthru
    _
  // Predicated region
  $region10: #{pointnet2_layer_forward.17} parent=0 // pred_check
    _
  $region11: #{pointnet2_layer_forward.17} parent=0 // pred_check_branch
    %15 = sbr.rel (0) target = $region13
  $region12: #{pointnet2_layer_forward.17} parent=0 // pred_region
    _
  $region13: #{pointnet2_layer_forward.17} parent=0 // pred_fallthru
    _
  // Predicated region
  $region14: #{pointnet2_layer_forward.17} parent=0 // pred_check
    _
  $region15: #{pointnet2_layer_forward.17} parent=0 // pred_check_branch
    %17 = sbr.rel (0) target = $region17
  $region16: #{pointnet2_layer_forward.17} parent=0 // pred_region
    _
  $region17: #{pointnet2_layer_forward.17} parent=0 // pred_fallthru
    _
  // Predicated region
  $region18: #{pointnet2_layer_forward.17} parent=0 // pred_check
    _
  $region19: #{pointnet2_layer_forward.17} parent=0 // pred_check_branch
    %19 = sbr.rel (0) target = $region21
  $region20: #{pointnet2_layer_forward.17} parent=0 // pred_region
    _
  $region21: #{pointnet2_layer_forward.17} parent=0 // pred_fallthru
    _
  %v21 = vld [vmem:[%s0] sm:$0xf]
  %v22 = vld [vmem:[%s0 + $0x4] sm:$0xf]
  %v23 = vld [vmem:[%s0 + $0x8] sm:$0xf]
  %v24 = vld [vmem:[%s0 + $0xc] sm:$0xf]
  %v25 = vld [vmem:[%s0 + $0x10] sm:$0xf]
  %v26 = vld [vmem:[%s0 + $0x14] sm:$0xf]
  %v27 = vld [vmem:[%s0 + $0x18] sm:$0xf]
  %v28 = vld [vmem:[%s0 + $0x1c] sm:$0xf]
  %v29 = vld [vmem:[%s0 + $0x20] sm:$0xf]
  %v30 = vld [vmem:[%s0 + $0x24] sm:$0xf]
  %v31 = vld [vmem:[%s0 + $0x28] sm:$0xf]
  %v32 = vld [vmem:[%s0 + $0x2c] sm:$0xf]
  %v33 = vld [vmem:[%s0 + $0x30] sm:$0xf]
  %v34 = vld [vmem:[%s0 + $0x34] sm:$0xf]
  %v35 = vld [vmem:[%s0 + $0x38] sm:$0xf]
  %v36 = vld [vmem:[%s0 + $0x3c] sm:$0xf]
  %v37 = vld [vmem:[%s0 + $0x40] sm:$0xf]
  %v38 = vld [vmem:[%s0 + $0x44] sm:$0xf]
  %v39 = vld [vmem:[%s0 + $0x48] sm:$0xf]
  %v40 = vld [vmem:[%s0 + $0x4c] sm:$0xf]
  %v41 = vld [vmem:[%s0 + $0x50] sm:$0xf]
  %v42 = vld [vmem:[%s0 + $0x54] sm:$0xf]
  %v43 = vld [vmem:[%s0 + $0x58] sm:$0xf]
  %v44 = vld [vmem:[%s0 + $0x5c] sm:$0xf]
  %v45 = vld [vmem:[%s0 + $0x60] sm:$0xf]
  %v46 = vld [vmem:[%s0 + $0x64] sm:$0xf]
  %v47 = vld [vmem:[%s0 + $0x68] sm:$0xf]
  %v48 = vld [vmem:[%s0 + $0x6c] sm:$0xf]
  %v49 = vld [vmem:[%s0 + $0x70] sm:$0xf]
  %v50 = vld [vmem:[%s0 + $0x74] sm:$0xf]
  %v51 = vld [vmem:[%s0 + $0x78] sm:$0xf]
  %v52 = vld [vmem:[%s0 + $0x7c] sm:$0xf]
  %v53 = vld [vmem:[%s0 + $0x80] sm:$0xf]
  %v54 = vld [vmem:[%s0 + $0x84] sm:$0xf]
  %v55 = vld [vmem:[%s0 + $0x88] sm:$0xf]
  %v56 = vld [vmem:[%s0 + $0x8c] sm:$0xf]
  %v57 = vld [vmem:[%s0 + $0x90] sm:$0xf]
  %v58 = vld [vmem:[%s0 + $0x94] sm:$0xf]
  %v59 = vld [vmem:[%s0 + $0x98] sm:$0xf]
  %v60 = vld [vmem:[%s0 + $0x9c] sm:$0xf]
  %v61 = vld [vmem:[%s0 + $0xa0] sm:$0xf]
  %v62 = vld [vmem:[%s0 + $0xa4] sm:$0xf]
  %v63 = vld [vmem:[%s0 + $0xa8] sm:$0xf]
  %v64 = vld [vmem:[%s0 + $0xac] sm:$0xf]
  %v65 = vld [vmem:[%s0 + $0xb0] sm:$0xf]
  %v66 = vld [vmem:[%s0 + $0xb4] sm:$0xf]
  %v67 = vld [vmem:[%s0 + $0xb8] sm:$0xf]
  %v68 = vld [vmem:[%s0 + $0xbc] sm:$0xf]
  %v69 = vld [vmem:[%s0 + $0xc0] sm:$0xf]
  %v70 = vld [vmem:[%s0 + $0xc4] sm:$0xf]
  %v71 = vld [vmem:[%s0 + $0xc8] sm:$0xf]
  %v72 = vld [vmem:[%s0 + $0xcc] sm:$0xf]
  %v73 = vld [vmem:[%s0 + $0xd0] sm:$0xf]
  %v74 = vld [vmem:[%s0 + $0xd4] sm:$0xf]
  %v75 = vld [vmem:[%s0 + $0xd8] sm:$0xf]
  %v76 = vld [vmem:[%s0 + $0xdc] sm:$0xf]
  %v77 = vld [vmem:[%s0 + $0xe0] sm:$0xf]
  %v78 = vld [vmem:[%s0 + $0xe4] sm:$0xf]
  %v79 = vld [vmem:[%s0 + $0xe8] sm:$0xf]
  %v80 = vld [vmem:[%s0 + $0xec] sm:$0xf]
  %v81 = vld [vmem:[%s0 + $0xf0] sm:$0xf]
  %v82 = vld [vmem:[%s0 + $0xf4] sm:$0xf]
  %v83 = vld [vmem:[%s0 + $0xf8] sm:$0xf]
  %v84 = vld [vmem:[%s0 + $0xfc] sm:$0xf]
  %v85 = vld [vmem:[%s0 + $0x100] sm:$0xf]
  %v86 = vld [vmem:[%s0 + $0x104] sm:$0xf]
  %v87 = vld [vmem:[%s0 + $0x108] sm:$0xf]
  %v88 = vld [vmem:[%s0 + $0x10c] sm:$0xf]
  %v89 = vld [vmem:[%s0 + $0x110] sm:$0xf]
  %v90 = vld [vmem:[%s0 + $0x114] sm:$0xf]
  %v91 = vld [vmem:[%s0 + $0x118] sm:$0xf]
  %v92 = vld [vmem:[%s0 + $0x11c] sm:$0xf]
  %v93 = vld [vmem:[%s0 + $0x120] sm:$0xf]
  %v94 = vld [vmem:[%s0 + $0x124] sm:$0xf]
  %v95 = vld [vmem:[%s0 + $0x128] sm:$0xf]
  %v96 = vld [vmem:[%s0 + $0x12c] sm:$0xf]
  %v97 = vld [vmem:[%s0 + $0x130] sm:$0xf]
  %v98 = vld [vmem:[%s0 + $0x134] sm:$0xf]
  %v99 = vld [vmem:[%s0 + $0x138] sm:$0xf]
  %v100 = vld [vmem:[%s0 + $0x13c] sm:$0xf]
  %v101 = vld [vmem:[%s0 + $0x140] sm:$0xf]
  %v102 = vld [vmem:[%s0 + $0x144] sm:$0xf]
  %v103 = vld [vmem:[%s0 + $0x148] sm:$0xf]
  %v104 = vld [vmem:[%s0 + $0x14c] sm:$0xf]
  %v105 = vld [vmem:[%s0 + $0x150] sm:$0xf]
  %v106 = vld [vmem:[%s0 + $0x154] sm:$0xf]
  %v107 = vld [vmem:[%s0 + $0x158] sm:$0xf]
  %v108 = vld [vmem:[%s0 + $0x15c] sm:$0xf]
  %v109 = vld [vmem:[%s0 + $0x160] sm:$0xf]
  %v110 = vld [vmem:[%s0 + $0x164] sm:$0xf]
  %v111 = vld [vmem:[%s0 + $0x168] sm:$0xf]
  %v112 = vld [vmem:[%s0 + $0x16c] sm:$0xf]
  %v113 = vld [vmem:[%s0 + $0x170] sm:$0xf]
  %v114 = vld [vmem:[%s0 + $0x174] sm:$0xf]
  %v115 = vld [vmem:[%s0 + $0x178] sm:$0xf]
  %v116 = vld [vmem:[%s0 + $0x17c] sm:$0xf]
  %v117 = vld [vmem:[%s0 + $0x180] sm:$0xf]
  %v118 = vld [vmem:[%s0 + $0x184] sm:$0xf]
  %v119 = vld [vmem:[%s0 + $0x188] sm:$0xf]
  %v120 = vld [vmem:[%s0 + $0x18c] sm:$0xf]
  %v121 = vld [vmem:[%s0 + $0x190] sm:$0xf]
  %v122 = vld [vmem:[%s0 + $0x194] sm:$0xf]
  %v123 = vld [vmem:[%s0 + $0x198] sm:$0xf]
  %v124 = vld [vmem:[%s0 + $0x19c] sm:$0xf]
  %v125 = vld [vmem:[%s0 + $0x1a0] sm:$0xf]
  %v126 = vld [vmem:[%s0 + $0x1a4] sm:$0xf]
  %v127 = vld [vmem:[%s0 + $0x1a8] sm:$0xf]
  %v128 = vld [vmem:[%s0 + $0x1ac] sm:$0xf]
  %v129 = vld [vmem:[%s0 + $0x1b0] sm:$0xf]
  %v130 = vld [vmem:[%s0 + $0x1b4] sm:$0xf]
  %v131 = vld [vmem:[%s0 + $0x1b8] sm:$0xf]
  %v132 = vld [vmem:[%s0 + $0x1bc] sm:$0xf]
  %v133 = vld [vmem:[%s0 + $0x1c0] sm:$0xf]
  %v134 = vld [vmem:[%s0 + $0x1c4] sm:$0xf]
  %v135 = vld [vmem:[%s0 + $0x1c8] sm:$0xf]
  %v136 = vld [vmem:[%s0 + $0x1cc] sm:$0xf]
  %v137 = vld [vmem:[%s0 + $0x1d0] sm:$0xf]
  %v138 = vld [vmem:[%s0 + $0x1d4] sm:$0xf]
  %v139 = vld [vmem:[%s0 + $0x1d8] sm:$0xf]
  %v140 = vld [vmem:[%s0 + $0x1dc] sm:$0xf]
  %v141 = vld [vmem:[%s0 + $0x1e0] sm:$0xf]
  %v142 = vld [vmem:[%s0 + $0x1e4] sm:$0xf]
  %v143 = vld [vmem:[%s0 + $0x1e8] sm:$0xf]
  %v144 = vld [vmem:[%s0 + $0x1ec] sm:$0xf]
  %v145 = vld [vmem:[%s0 + $0x1f0] sm:$0xf]
  %v146 = vld [vmem:[%s0 + $0x1f4] sm:$0xf]
  %v147 = vld [vmem:[%s0 + $0x1f8] sm:$0xf]
  %v148 = vld [vmem:[%s0 + $0x1fc] sm:$0xf]
  %v149 = vld [vmem:[%s1] sm:$0x3]
  %v150 = vld [vmem:[%s2] sm:$0x1]
  %v152 = vlaneseq
  %v153 = vshrl.u32 %v152, 7
  %v154 = vsub.s32 0, %v153
  %v155 = vrot.slane %v150, %v154
  %v285 = vunpack.c.l.b16 %v21
  %v286 = vunpack.c.l.b16 %v22
  %v287 = vunpack.c.l.b16 %v23
  %v288 = vunpack.c.l.b16 %v24
  %v289 = vunpack.c.l.b16 %v25
  %v290 = vunpack.c.l.b16 %v26
  %v291 = vunpack.c.l.b16 %v27
  %v292 = vunpack.c.l.b16 %v28
  %v293 = vunpack.c.l.b16 %v29
  %v294 = vunpack.c.l.b16 %v30
  %v295 = vunpack.c.l.b16 %v31
  %v296 = vunpack.c.l.b16 %v32
  %v297 = vunpack.c.l.b16 %v33
  %v298 = vunpack.c.l.b16 %v34
  %v299 = vunpack.c.l.b16 %v35
  %v300 = vunpack.c.l.b16 %v36
  %v301 = vunpack.c.l.b16 %v37
  %v302 = vunpack.c.l.b16 %v38
  %v303 = vunpack.c.l.b16 %v39
  %v304 = vunpack.c.l.b16 %v40
  %v305 = vunpack.c.l.b16 %v41
  %v306 = vunpack.c.l.b16 %v42
  %v307 = vunpack.c.l.b16 %v43
  %v308 = vunpack.c.l.b16 %v44
  %v309 = vunpack.c.l.b16 %v45
  %v310 = vunpack.c.l.b16 %v46
  %v311 = vunpack.c.l.b16 %v47
  %v312 = vunpack.c.l.b16 %v48
  %v313 = vunpack.c.l.b16 %v49
  %v314 = vunpack.c.l.b16 %v50
  %v315 = vunpack.c.l.b16 %v51
  %v316 = vunpack.c.l.b16 %v52
  %v317 = vunpack.c.l.b16 %v53
  %v318 = vunpack.c.l.b16 %v54
  %v319 = vunpack.c.l.b16 %v55
  %v320 = vunpack.c.l.b16 %v56
  %v321 = vunpack.c.l.b16 %v57
  %v322 = vunpack.c.l.b16 %v58
  %v323 = vunpack.c.l.b16 %v59
  %v324 = vunpack.c.l.b16 %v60
  %v325 = vunpack.c.l.b16 %v61
  %v326 = vunpack.c.l.b16 %v62
  %v327 = vunpack.c.l.b16 %v63
  %v328 = vunpack.c.l.b16 %v64
  %v329 = vunpack.c.l.b16 %v65
  %v330 = vunpack.c.l.b16 %v66
  %v331 = vunpack.c.l.b16 %v67
  %v332 = vunpack.c.l.b16 %v68
  %v333 = vunpack.c.l.b16 %v69
  %v334 = vunpack.c.l.b16 %v70
  %v335 = vunpack.c.l.b16 %v71
  %v336 = vunpack.c.l.b16 %v72
  %v337 = vunpack.c.l.b16 %v73
  %v338 = vunpack.c.l.b16 %v74
  %v339 = vunpack.c.l.b16 %v75
  %v340 = vunpack.c.l.b16 %v76
  %v341 = vunpack.c.l.b16 %v77
  %v342 = vunpack.c.l.b16 %v78
  %v343 = vunpack.c.l.b16 %v79
  %v344 = vunpack.c.l.b16 %v80
  %v345 = vunpack.c.l.b16 %v81
  %v346 = vunpack.c.l.b16 %v82
  %v347 = vunpack.c.l.b16 %v83
  %v348 = vunpack.c.l.b16 %v84
  %v349 = vunpack.c.l.b16 %v85
  %v350 = vunpack.c.l.b16 %v86
  %v351 = vunpack.c.l.b16 %v87
  %v352 = vunpack.c.l.b16 %v88
  %v353 = vunpack.c.l.b16 %v89
  %v354 = vunpack.c.l.b16 %v90
  %v355 = vunpack.c.l.b16 %v91
  %v356 = vunpack.c.l.b16 %v92
  %v357 = vunpack.c.l.b16 %v93
  %v358 = vunpack.c.l.b16 %v94
  %v359 = vunpack.c.l.b16 %v95
  %v360 = vunpack.c.l.b16 %v96
  %v361 = vunpack.c.l.b16 %v97
  %v362 = vunpack.c.l.b16 %v98
  %v363 = vunpack.c.l.b16 %v99
  %v364 = vunpack.c.l.b16 %v100
  %v365 = vunpack.c.l.b16 %v101
  %v366 = vunpack.c.l.b16 %v102
  %v367 = vunpack.c.l.b16 %v103
  %v368 = vunpack.c.l.b16 %v104
  %v369 = vunpack.c.l.b16 %v105
  %v370 = vunpack.c.l.b16 %v106
  %v371 = vunpack.c.l.b16 %v107
  %v372 = vunpack.c.l.b16 %v108
  %v373 = vunpack.c.l.b16 %v109
  %v374 = vunpack.c.l.b16 %v110
  %v375 = vunpack.c.l.b16 %v111
  %v376 = vunpack.c.l.b16 %v112
  %v377 = vunpack.c.l.b16 %v113
  %v378 = vunpack.c.l.b16 %v114
  %v379 = vunpack.c.l.b16 %v115
  %v380 = vunpack.c.l.b16 %v116
  %v381 = vunpack.c.l.b16 %v117
  %v382 = vunpack.c.l.b16 %v118
  %v383 = vunpack.c.l.b16 %v119
  %v384 = vunpack.c.l.b16 %v120
  %v385 = vunpack.c.l.b16 %v121
  %v386 = vunpack.c.l.b16 %v122
  %v387 = vunpack.c.l.b16 %v123
  %v388 = vunpack.c.l.b16 %v124
  %v389 = vunpack.c.l.b16 %v125
  %v390 = vunpack.c.l.b16 %v126
  %v391 = vunpack.c.l.b16 %v127
  %v392 = vunpack.c.l.b16 %v128
  %v393 = vunpack.c.l.b16 %v129
  %v394 = vunpack.c.l.b16 %v130
  %v395 = vunpack.c.l.b16 %v131
  %v396 = vunpack.c.l.b16 %v132
  %v397 = vunpack.c.l.b16 %v133
  %v398 = vunpack.c.l.b16 %v134
  %v399 = vunpack.c.l.b16 %v135
  %v400 = vunpack.c.l.b16 %v136
  %v401 = vunpack.c.l.b16 %v137
  %v402 = vunpack.c.l.b16 %v138
  %v403 = vunpack.c.l.b16 %v139
  %v404 = vunpack.c.l.b16 %v140
  %v405 = vunpack.c.l.b16 %v141
  %v406 = vunpack.c.l.b16 %v142
  %v407 = vunpack.c.l.b16 %v143
  %v408 = vunpack.c.l.b16 %v144
  %v409 = vunpack.c.l.b16 %v145
  %v410 = vunpack.c.l.b16 %v146
  %v411 = vunpack.c.l.b16 %v147
  %v412 = vunpack.c.l.b16 %v148
  %v413 = vpack.c.b16 %v286, %v285
  %v414 = vpack.c.b16 %v288, %v287
  %v415 = vpack.c.b16 %v290, %v289
  %v416 = vpack.c.b16 %v292, %v291
  %v417 = vpack.c.b16 %v294, %v293
  %v418 = vpack.c.b16 %v296, %v295
  %v419 = vpack.c.b16 %v298, %v297
  %v420 = vpack.c.b16 %v300, %v299
  %v421 = vpack.c.b16 %v302, %v301
  %v422 = vpack.c.b16 %v304, %v303
  %v423 = vpack.c.b16 %v306, %v305
  %v424 = vpack.c.b16 %v308, %v307
  %v425 = vpack.c.b16 %v310, %v309
  %v426 = vpack.c.b16 %v312, %v311
  %v427 = vpack.c.b16 %v314, %v313
  %v428 = vpack.c.b16 %v316, %v315
  %v429 = vpack.c.b16 %v318, %v317
  %v430 = vpack.c.b16 %v320, %v319
  %v431 = vpack.c.b16 %v322, %v321
  %v432 = vpack.c.b16 %v324, %v323
  %v433 = vpack.c.b16 %v326, %v325
  %v434 = vpack.c.b16 %v328, %v327
  %v435 = vpack.c.b16 %v330, %v329
  %v436 = vpack.c.b16 %v332, %v331
  %v437 = vpack.c.b16 %v334, %v333
  %v438 = vpack.c.b16 %v336, %v335
  %v439 = vpack.c.b16 %v338, %v337
  %v440 = vpack.c.b16 %v340, %v339
  %v441 = vpack.c.b16 %v342, %v341
  %v442 = vpack.c.b16 %v344, %v343
  %v443 = vpack.c.b16 %v346, %v345
  %v444 = vpack.c.b16 %v348, %v347
  %v445 = vpack.c.b16 %v350, %v349
  %v446 = vpack.c.b16 %v352, %v351
  %v447 = vpack.c.b16 %v354, %v353
  %v448 = vpack.c.b16 %v356, %v355
  %v449 = vpack.c.b16 %v358, %v357
  %v450 = vpack.c.b16 %v360, %v359
  %v451 = vpack.c.b16 %v362, %v361
  %v452 = vpack.c.b16 %v364, %v363
  %v453 = vpack.c.b16 %v366, %v365
  %v454 = vpack.c.b16 %v368, %v367
  %v455 = vpack.c.b16 %v370, %v369
  %v456 = vpack.c.b16 %v372, %v371
  %v457 = vpack.c.b16 %v374, %v373
  %v458 = vpack.c.b16 %v376, %v375
  %v459 = vpack.c.b16 %v378, %v377
  %v460 = vpack.c.b16 %v380, %v379
  %v461 = vpack.c.b16 %v382, %v381
  %v462 = vpack.c.b16 %v384, %v383
  %v463 = vpack.c.b16 %v386, %v385
  %v464 = vpack.c.b16 %v388, %v387
  %v465 = vpack.c.b16 %v390, %v389
  %v466 = vpack.c.b16 %v392, %v391
  %v467 = vpack.c.b16 %v394, %v393
  %v468 = vpack.c.b16 %v396, %v395
  %v469 = vpack.c.b16 %v398, %v397
  %v470 = vpack.c.b16 %v400, %v399
  %v471 = vpack.c.b16 %v402, %v401
  %v472 = vpack.c.b16 %v404, %v403
  %v473 = vpack.c.b16 %v406, %v405
  %v474 = vpack.c.b16 %v408, %v407
  %v475 = vpack.c.b16 %v410, %v409
  %v476 = vpack.c.b16 %v412, %v411
  %vm477 = vcmask 31744
  %v479 = vsel %vm477, %v413, 0
  %v482 = vsel %vm477, %v414, 0
  %v485 = vsel %vm477, %v415, 0
  %v488 = vsel %vm477, %v416, 0
  %v491 = vsel %vm477, %v417, 0
  %v494 = vsel %vm477, %v418, 0
  %v497 = vsel %vm477, %v419, 0
  %v500 = vsel %vm477, %v420, 0
  %v503 = vsel %vm477, %v421, 0
  %v506 = vsel %vm477, %v422, 0
  %v509 = vsel %vm477, %v423, 0
  %v512 = vsel %vm477, %v424, 0
  %v515 = vsel %vm477, %v425, 0
  %v518 = vsel %vm477, %v426, 0
  %v521 = vsel %vm477, %v427, 0
  %v524 = vsel %vm477, %v428, 0
  %v527 = vsel %vm477, %v429, 0
  %v530 = vsel %vm477, %v430, 0
  %v533 = vsel %vm477, %v431, 0
  %v536 = vsel %vm477, %v432, 0
  %v539 = vsel %vm477, %v433, 0
  %v542 = vsel %vm477, %v434, 0
  %v545 = vsel %vm477, %v435, 0
  %v548 = vsel %vm477, %v436, 0
  %v551 = vsel %vm477, %v437, 0
  %v554 = vsel %vm477, %v438, 0
  %v557 = vsel %vm477, %v439, 0
  %v560 = vsel %vm477, %v440, 0
  %v563 = vsel %vm477, %v441, 0
  %v566 = vsel %vm477, %v442, 0
  %v569 = vsel %vm477, %v443, 0
  %v572 = vsel %vm477, %v444, 0
  %v575 = vsel %vm477, %v445, 0
  %v578 = vsel %vm477, %v446, 0
  %v581 = vsel %vm477, %v447, 0
  %v584 = vsel %vm477, %v448, 0
  %v587 = vsel %vm477, %v449, 0
  %v590 = vsel %vm477, %v450, 0
  %v593 = vsel %vm477, %v451, 0
  %v596 = vsel %vm477, %v452, 0
  %v599 = vsel %vm477, %v453, 0
  %v602 = vsel %vm477, %v454, 0
  %v605 = vsel %vm477, %v455, 0
  %v608 = vsel %vm477, %v456, 0
  %v611 = vsel %vm477, %v457, 0
  %v614 = vsel %vm477, %v458, 0
  %v617 = vsel %vm477, %v459, 0
  %v620 = vsel %vm477, %v460, 0
  %v623 = vsel %vm477, %v461, 0
  %v626 = vsel %vm477, %v462, 0
  %v629 = vsel %vm477, %v463, 0
  %v632 = vsel %vm477, %v464, 0
  %v635 = vsel %vm477, %v465, 0
  %v638 = vsel %vm477, %v466, 0
  %v641 = vsel %vm477, %v467, 0
  %v644 = vsel %vm477, %v468, 0
  %v647 = vsel %vm477, %v469, 0
  %v650 = vsel %vm477, %v470, 0
  %v653 = vsel %vm477, %v471, 0
  %v656 = vsel %vm477, %v472, 0
  %v659 = vsel %vm477, %v473, 0
  %v662 = vsel %vm477, %v474, 0
  %v665 = vsel %vm477, %v475, 0
  %v668 = vsel %vm477, %v476, 0
  %vm670 = vcmask 1041408
  %v672 = vsel %vm670, %v149, 0
  %674 = vmatprep.subr.bf16.mxu0 0
  %675 = vmatpush1.bf16.msra.mxu0 %v672
  %676 = vmatprep.subr.bf16.mxu0 0
  %677 = vmatpush1.bf16.msra.mxu0 0
  %678 = vmatprep.subr.bf16.mxu0 0
  %679 = vmatpush1.bf16.msra.mxu0 0
  %680 = vmatprep.subr.bf16.mxu0 0
  %681 = vmatpush1.bf16.msra.mxu0 0
  %682 = vmatprep.subr.bf16.mxu0 0
  %683 = vmatpush1.bf16.msra.mxu0 0
  %684 = vmatprep.subr.bf16.mxu0 0
  %685 = vmatpush1.bf16.msra.mxu0 0
  %686 = vmatprep.subr.bf16.mxu0 0
  %687 = vmatpush1.bf16.msra.mxu0 0
  %688 = vmatprep.subr.bf16.mxu0 0
  %689 = vmatpush1.bf16.msra.mxu0 0
  %690 = vmatprep.subr.bf16.mxu0 0
  %691 = vmatpush1.bf16.msra.mxu0 0
  %692 = vmatprep.subr.bf16.mxu0 0
  %693 = vmatpush1.bf16.msra.mxu0 0
  %694 = vmatprep.subr.bf16.mxu0 0
  %695 = vmatpush1.bf16.msra.mxu0 0
  %696 = vmatprep.subr.bf16.mxu0 0
  %697 = vmatpush1.bf16.msra.mxu0 0
  %698 = vmatprep.subr.bf16.mxu0 0
  %699 = vmatpush1.bf16.msra.mxu0 0
  %700 = vmatprep.subr.bf16.mxu0 0
  %701 = vmatpush1.bf16.msra.mxu0 0
  %702 = vmatprep.subr.bf16.mxu0 0
  %703 = vmatpush1.bf16.msra.mxu0 0
  %704 = vmatprep.subr.bf16.mxu0 0
  %705 = vmatpush1.bf16.msra.mxu0 0
  %706 = vmatprep.mubr.bf16.mxu0 0
  %707 = vmatmul.mubr.bf16.gmra.mrb[0].mxu0 %v479
  %v708 = vpop.f32.mrb[0].mxu0
  %v709 = vadd.f32 %v155, %v708
  %v710 = vpop.f32.mrb[0].mxu0
  %v711 = vpop.f32.mrb[0].mxu0
  %v712 = vadd.f32 %v155, %v711
  %v713 = vpop.f32.mrb[0].mxu0
  %714 = vmatprep.mubr.bf16.mxu0 0
  %715 = vmatmul.mubr.bf16.gmra.mrb[0].mxu0 %v482
  %v716 = vpop.f32.mrb[0].mxu0
  %v717 = vadd.f32 %v155, %v716
  %v718 = vpop.f32.mrb[0].mxu0
  %v719 = vpop.f32.mrb[0].mxu0
  %v720 = vadd.f32 %v155, %v719
  %v721 = vpop.f32.mrb[0].mxu0
  %722 = vmatprep.mubr.bf16.mxu0 0
  %723 = vmatmul.mubr.bf16.gmra.mrb[0].mxu0 %v485
  %v724 = vpop.f32.mrb[0].mxu0
  %v725 = vadd.f32 %v155, %v724
  %v726 = vpop.f32.mrb[0].mxu0
  %v727 = vpop.f32.mrb[0].mxu0
  %v728 = vadd.f32 %v155, %v727
  %v729 = vpop.f32.mrb[0].mxu0
  %730 = vmatprep.mubr.bf16.mxu0 0
  %731 = vmatmul.mubr.bf16.gmra.mrb[0].mxu0 %v488
  %v732 = vpop.f32.mrb[0].mxu0
  %v733 = vadd.f32 %v155, %v732
  %v734 = vpop.f32.mrb[0].mxu0
  %v735 = vpop.f32.mrb[0].mxu0
  %v736 = vadd.f32 %v155, %v735
  %v737 = vpop.f32.mrb[0].mxu0
  %738 = vmatprep.mubr.bf16.mxu0 0
  %739 = vmatmul.mubr.bf16.gmra.mrb[0].mxu0 %v491
  %v740 = vpop.f32.mrb[0].mxu0
  %v741 = vadd.f32 %v155, %v740
  %v742 = vpop.f32.mrb[0].mxu0
  %v743 = vpop.f32.mrb[0].mxu0
  %v744 = vadd.f32 %v155, %v743
  %v745 = vpop.f32.mrb[0].mxu0
  %746 = vmatprep.mubr.bf16.mxu0 0
  %747 = vmatmul.mubr.bf16.gmra.mrb[0].mxu0 %v494
  %v748 = vpop.f32.mrb[0].mxu0
  %v749 = vadd.f32 %v155, %v748
  %v750 = vpop.f32.mrb[0].mxu0
  %v751 = vpop.f32.mrb[0].mxu0
  %v752 = vadd.f32 %v155, %v751
  %v753 = vpop.f32.mrb[0].mxu0
  %754 = vmatprep.mubr.bf16.mxu0 0
  %755 = vmatmul.mubr.bf16.gmra.mrb[0].mxu0 %v497
  %v756 = vpop.f32.mrb[0].mxu0
  %v757 = vadd.f32 %v155, %v756
  %v758 = vpop.f32.mrb[0].mxu0
  %v759 = vpop.f32.mrb[0].mxu0
  %v760 = vadd.f32 %v155, %v759
  %v761 = vpop.f32.mrb[0].mxu0
  %762 = vmatprep.mubr.bf16.mxu0 0
  %763 = vmatmul.mubr.bf16.gmra.mrb[0].mxu0 %v500
  %v764 = vpop.f32.mrb[0].mxu0
  %v765 = vadd.f32 %v155, %v764
  %v766 = vpop.f32.mrb[0].mxu0
  %v767 = vpop.f32.mrb[0].mxu0
  %v768 = vadd.f32 %v155, %v767
  %v769 = vpop.f32.mrb[0].mxu0
  %770 = vmatprep.mubr.bf16.mxu0 0
  %771 = vmatmul.mubr.bf16.gmra.mrb[0].mxu0 %v503
  %v772 = vpop.f32.mrb[0].mxu0
  %v773 = vadd.f32 %v155, %v772
  %v774 = vpop.f32.mrb[0].mxu0
  %v775 = vpop.f32.mrb[0].mxu0
  %v776 = vadd.f32 %v155, %v775
  %v777 = vpop.f32.mrb[0].mxu0
  %778 = vmatprep.mubr.bf16.mxu0 0
  %779 = vmatmul.mubr.bf16.gmra.mrb[0].mxu0 %v506
  %v780 = vpop.f32.mrb[0].mxu0
  %v781 = vadd.f32 %v155, %v780
  %v782 = vpop.f32.mrb[0].mxu0
  %v783 = vpop.f32.mrb[0].mxu0
  %v784 = vadd.f32 %v155, %v783
  %v785 = vpop.f32.mrb[0].mxu0
  %786 = vmatprep.mubr.bf16.mxu0 0
  %787 = vmatmul.mubr.bf16.gmra.mrb[0].mxu0 %v509
  %v788 = vpop.f32.mrb[0].mxu0
  %v789 = vadd.f32 %v155, %v788
  %v790 = vpop.f32.mrb[0].mxu0
  %v791 = vpop.f32.mrb[0].mxu0
  %v792 = vadd.f32 %v155, %v791
  %v793 = vpop.f32.mrb[0].mxu0
  %794 = vmatprep.mubr.bf16.mxu0 0
  %795 = vmatmul.mubr.bf16.gmra.mrb[0].mxu0 %v512
  %v796 = vpop.f32.mrb[0].mxu0
  %v797 = vadd.f32 %v155, %v796
  %v798 = vpop.f32.mrb[0].mxu0
  %v799 = vpop.f32.mrb[0].mxu0
  %v800 = vadd.f32 %v155, %v799
  %v801 = vpop.f32.mrb[0].mxu0
  %802 = vmatprep.mubr.bf16.mxu0 0
  %803 = vmatmul.mubr.bf16.gmra.mrb[0].mxu0 %v515
  %v804 = vpop.f32.mrb[0].mxu0
  %v805 = vadd.f32 %v155, %v804
  %v806 = vpop.f32.mrb[0].mxu0
  %v807 = vpop.f32.mrb[0].mxu0
  %v808 = vadd.f32 %v155, %v807
  %v809 = vpop.f32.mrb[0].mxu0
  %810 = vmatprep.mubr.bf16.mxu0 0
  %811 = vmatmul.mubr.bf16.gmra.mrb[0].mxu0 %v518
  %v812 = vpop.f32.mrb[0].mxu0
  %v813 = vadd.f32 %v155, %v812
  %v814 = vpop.f32.mrb[0].mxu0
  %v815 = vpop.f32.mrb[0].mxu0
  %v816 = vadd.f32 %v155, %v815
  %v817 = vpop.f32.mrb[0].mxu0
  %818 = vmatprep.mubr.bf16.mxu0 0
  %819 = vmatmul.mubr.bf16.gmra.mrb[0].mxu0 %v521
  %v820 = vpop.f32.mrb[0].mxu0
  %v821 = vadd.f32 %v155, %v820
  %v822 = vpop.f32.mrb[0].mxu0
  %v823 = vpop.f32.mrb[0].mxu0
  %v824 = vadd.f32 %v155, %v823
  %v825 = vpop.f32.mrb[0].mxu0
  %826 = vmatprep.mubr.bf16.mxu0 0
  %827 = vmatmul.mubr.bf16.gmra.mrb[0].mxu0 %v524
  %v828 = vpop.f32.mrb[0].mxu0
  %v829 = vadd.f32 %v155, %v828
  %v830 = vpop.f32.mrb[0].mxu0
  %v831 = vpop.f32.mrb[0].mxu0
  %v832 = vadd.f32 %v155, %v831
  %v833 = vpop.f32.mrb[0].mxu0
  %834 = vmatprep.mubr.bf16.mxu0 0
  %835 = vmatmul.mubr.bf16.gmra.mrb[0].mxu0 %v527
  %v836 = vpop.f32.mrb[0].mxu0
  %v837 = vadd.f32 %v155, %v836
  %v838 = vpop.f32.mrb[0].mxu0
  %v839 = vpop.f32.mrb[0].mxu0
  %v840 = vadd.f32 %v155, %v839
  %v841 = vpop.f32.mrb[0].mxu0
  %842 = vmatprep.mubr.bf16.mxu0 0
  %843 = vmatmul.mubr.bf16.gmra.mrb[0].mxu0 %v530
  %v844 = vpop.f32.mrb[0].mxu0
  %v845 = vadd.f32 %v155, %v844
  %v846 = vpop.f32.mrb[0].mxu0
  %v847 = vpop.f32.mrb[0].mxu0
  %v848 = vadd.f32 %v155, %v847
  %v849 = vpop.f32.mrb[0].mxu0
  %850 = vmatprep.mubr.bf16.mxu0 0
  %851 = vmatmul.mubr.bf16.gmra.mrb[0].mxu0 %v533
  %v852 = vpop.f32.mrb[0].mxu0
  %v853 = vadd.f32 %v155, %v852
  %v854 = vpop.f32.mrb[0].mxu0
  %v855 = vpop.f32.mrb[0].mxu0
  %v856 = vadd.f32 %v155, %v855
  %v857 = vpop.f32.mrb[0].mxu0
  %858 = vmatprep.mubr.bf16.mxu0 0
  %859 = vmatmul.mubr.bf16.gmra.mrb[0].mxu0 %v536
  %v860 = vpop.f32.mrb[0].mxu0
  %v861 = vadd.f32 %v155, %v860
  %v862 = vpop.f32.mrb[0].mxu0
  %v863 = vpop.f32.mrb[0].mxu0
  %v864 = vadd.f32 %v155, %v863
  %v865 = vpop.f32.mrb[0].mxu0
  %866 = vmatprep.mubr.bf16.mxu0 0
  %867 = vmatmul.mubr.bf16.gmra.mrb[0].mxu0 %v539
  %v868 = vpop.f32.mrb[0].mxu0
  %v869 = vadd.f32 %v155, %v868
  %v870 = vpop.f32.mrb[0].mxu0
  %v871 = vpop.f32.mrb[0].mxu0
  %v872 = vadd.f32 %v155, %v871
  %v873 = vpop.f32.mrb[0].mxu0
  %874 = vmatprep.mubr.bf16.mxu0 0
  %875 = vmatmul.mubr.bf16.gmra.mrb[0].mxu0 %v542
  %v876 = vpop.f32.mrb[0].mxu0
  %v877 = vadd.f32 %v155, %v876
  %v878 = vpop.f32.mrb[0].mxu0
  %v879 = vpop.f32.mrb[0].mxu0
  %v880 = vadd.f32 %v155, %v879
  %v881 = vpop.f32.mrb[0].mxu0
  %882 = vmatprep.mubr.bf16.mxu0 0
  %883 = vmatmul.mubr.bf16.gmra.mrb[0].mxu0 %v545
  %v884 = vpop.f32.mrb[0].mxu0
  %v885 = vadd.f32 %v155, %v884
  %v886 = vpop.f32.mrb[0].mxu0
  %v887 = vpop.f32.mrb[0].mxu0
  %v888 = vadd.f32 %v155, %v887
  %v889 = vpop.f32.mrb[0].mxu0
  %890 = vmatprep.mubr.bf16.mxu0 0
  %891 = vmatmul.mubr.bf16.gmra.mrb[0].mxu0 %v548
  %v892 = vpop.f32.mrb[0].mxu0
  %v893 = vadd.f32 %v155, %v892
  %v894 = vpop.f32.mrb[0].mxu0
  %v895 = vpop.f32.mrb[0].mxu0
  %v896 = vadd.f32 %v155, %v895
  %v897 = vpop.f32.mrb[0].mxu0
  %898 = vmatprep.mubr.bf16.mxu0 0
  %899 = vmatmul.mubr.bf16.gmra.mrb[0].mxu0 %v551
  %v900 = vpop.f32.mrb[0].mxu0
  %v901 = vadd.f32 %v155, %v900
  %v902 = vpop.f32.mrb[0].mxu0
  %v903 = vpop.f32.mrb[0].mxu0
  %v904 = vadd.f32 %v155, %v903
  %v905 = vpop.f32.mrb[0].mxu0
  %906 = vmatprep.mubr.bf16.mxu0 0
  %907 = vmatmul.mubr.bf16.gmra.mrb[0].mxu0 %v554
  %v908 = vpop.f32.mrb[0].mxu0
  %v909 = vadd.f32 %v155, %v908
  %v910 = vpop.f32.mrb[0].mxu0
  %v911 = vpop.f32.mrb[0].mxu0
  %v912 = vadd.f32 %v155, %v911
  %v913 = vpop.f32.mrb[0].mxu0
  %914 = vmatprep.mubr.bf16.mxu0 0
  %915 = vmatmul.mubr.bf16.gmra.mrb[0].mxu0 %v557
  %v916 = vpop.f32.mrb[0].mxu0
  %v917 = vadd.f32 %v155, %v916
  %v918 = vpop.f32.mrb[0].mxu0
  %v919 = vpop.f32.mrb[0].mxu0
  %v920 = vadd.f32 %v155, %v919
  %v921 = vpop.f32.mrb[0].mxu0
  %922 = vmatprep.mubr.bf16.mxu0 0
  %923 = vmatmul.mubr.bf16.gmra.mrb[0].mxu0 %v560
  %v924 = vpop.f32.mrb[0].mxu0
  %v925 = vadd.f32 %v155, %v924
  %v926 = vpop.f32.mrb[0].mxu0
  %v927 = vpop.f32.mrb[0].mxu0
  %v928 = vadd.f32 %v155, %v927
  %v929 = vpop.f32.mrb[0].mxu0
  %930 = vmatprep.mubr.bf16.mxu0 0
  %931 = vmatmul.mubr.bf16.gmra.mrb[0].mxu0 %v563
  %v932 = vpop.f32.mrb[0].mxu0
  %v933 = vadd.f32 %v155, %v932
  %v934 = vpop.f32.mrb[0].mxu0
  %v935 = vpop.f32.mrb[0].mxu0
  %v936 = vadd.f32 %v155, %v935
  %v937 = vpop.f32.mrb[0].mxu0
  %938 = vmatprep.mubr.bf16.mxu0 0
  %939 = vmatmul.mubr.bf16.gmra.mrb[0].mxu0 %v566
  %v940 = vpop.f32.mrb[0].mxu0
  %v941 = vadd.f32 %v155, %v940
  %v942 = vpop.f32.mrb[0].mxu0
  %v943 = vpop.f32.mrb[0].mxu0
  %v944 = vadd.f32 %v155, %v943
  %v945 = vpop.f32.mrb[0].mxu0
  %946 = vmatprep.mubr.bf16.mxu0 0
  %947 = vmatmul.mubr.bf16.gmra.mrb[0].mxu0 %v569
  %v948 = vpop.f32.mrb[0].mxu0
  %v949 = vadd.f32 %v155, %v948
  %v950 = vpop.f32.mrb[0].mxu0
  %v951 = vpop.f32.mrb[0].mxu0
  %v952 = vadd.f32 %v155, %v951
  %v953 = vpop.f32.mrb[0].mxu0
  %954 = vmatprep.mubr.bf16.mxu0 0
  %955 = vmatmul.mubr.bf16.gmra.mrb[0].mxu0 %v572
  %v956 = vpop.f32.mrb[0].mxu0
  %v957 = vadd.f32 %v155, %v956
  %v958 = vpop.f32.mrb[0].mxu0
  %v959 = vpop.f32.mrb[0].mxu0
  %v960 = vadd.f32 %v155, %v959
  %v961 = vpop.f32.mrb[0].mxu0
  %962 = vmatprep.mubr.bf16.mxu0 0
  %963 = vmatmul.mubr.bf16.gmra.mrb[0].mxu0 %v575
  %v964 = vpop.f32.mrb[0].mxu0
  %v965 = vadd.f32 %v155, %v964
  %v966 = vpop.f32.mrb[0].mxu0
  %v967 = vpop.f32.mrb[0].mxu0
  %v968 = vadd.f32 %v155, %v967
  %v969 = vpop.f32.mrb[0].mxu0
  %970 = vmatprep.mubr.bf16.mxu0 0
  %971 = vmatmul.mubr.bf16.gmra.mrb[0].mxu0 %v578
  %v972 = vpop.f32.mrb[0].mxu0
  %v973 = vadd.f32 %v155, %v972
  %v974 = vpop.f32.mrb[0].mxu0
  %v975 = vpop.f32.mrb[0].mxu0
  %v976 = vadd.f32 %v155, %v975
  %v977 = vpop.f32.mrb[0].mxu0
  %978 = vmatprep.mubr.bf16.mxu0 0
  %979 = vmatmul.mubr.bf16.gmra.mrb[0].mxu0 %v581
  %v980 = vpop.f32.mrb[0].mxu0
  %v981 = vadd.f32 %v155, %v980
  %v982 = vpop.f32.mrb[0].mxu0
  %v983 = vpop.f32.mrb[0].mxu0
  %v984 = vadd.f32 %v155, %v983
  %v985 = vpop.f32.mrb[0].mxu0
  %986 = vmatprep.mubr.bf16.mxu0 0
  %987 = vmatmul.mubr.bf16.gmra.mrb[0].mxu0 %v584
  %v988 = vpop.f32.mrb[0].mxu0
  %v989 = vadd.f32 %v155, %v988
  %v990 = vpop.f32.mrb[0].mxu0
  %v991 = vpop.f32.mrb[0].mxu0
  %v992 = vadd.f32 %v155, %v991
  %v993 = vpop.f32.mrb[0].mxu0
  %994 = vmatprep.mubr.bf16.mxu0 0
  %995 = vmatmul.mubr.bf16.gmra.mrb[0].mxu0 %v587
  %v996 = vpop.f32.mrb[0].mxu0
  %v997 = vadd.f32 %v155, %v996
  %v998 = vpop.f32.mrb[0].mxu0
  %v999 = vpop.f32.mrb[0].mxu0
  %v1000 = vadd.f32 %v155, %v999
  %v1001 = vpop.f32.mrb[0].mxu0
  %1002 = vmatprep.mubr.bf16.mxu0 0
  %1003 = vmatmul.mubr.bf16.gmra.mrb[0].mxu0 %v590
  %v1004 = vpop.f32.mrb[0].mxu0
  %v1005 = vadd.f32 %v155, %v1004
  %v1006 = vpop.f32.mrb[0].mxu0
  %v1007 = vpop.f32.mrb[0].mxu0
  %v1008 = vadd.f32 %v155, %v1007
  %v1009 = vpop.f32.mrb[0].mxu0
  %1010 = vmatprep.mubr.bf16.mxu0 0
  %1011 = vmatmul.mubr.bf16.gmra.mrb[0].mxu0 %v593
  %v1012 = vpop.f32.mrb[0].mxu0
  %v1013 = vadd.f32 %v155, %v1012
  %v1014 = vpop.f32.mrb[0].mxu0
  %v1015 = vpop.f32.mrb[0].mxu0
  %v1016 = vadd.f32 %v155, %v1015
  %v1017 = vpop.f32.mrb[0].mxu0
  %1018 = vmatprep.mubr.bf16.mxu0 0
  %1019 = vmatmul.mubr.bf16.gmra.mrb[0].mxu0 %v596
  %v1020 = vpop.f32.mrb[0].mxu0
  %v1021 = vadd.f32 %v155, %v1020
  %v1022 = vpop.f32.mrb[0].mxu0
  %v1023 = vpop.f32.mrb[0].mxu0
  %v1024 = vadd.f32 %v155, %v1023
  %v1025 = vpop.f32.mrb[0].mxu0
  %1026 = vmatprep.mubr.bf16.mxu0 0
  %1027 = vmatmul.mubr.bf16.gmra.mrb[0].mxu0 %v599
  %v1028 = vpop.f32.mrb[0].mxu0
  %v1029 = vadd.f32 %v155, %v1028
  %v1030 = vpop.f32.mrb[0].mxu0
  %v1031 = vpop.f32.mrb[0].mxu0
  %v1032 = vadd.f32 %v155, %v1031
  %v1033 = vpop.f32.mrb[0].mxu0
  %1034 = vmatprep.mubr.bf16.mxu0 0
  %1035 = vmatmul.mubr.bf16.gmra.mrb[0].mxu0 %v602
  %v1036 = vpop.f32.mrb[0].mxu0
  %v1037 = vadd.f32 %v155, %v1036
  %v1038 = vpop.f32.mrb[0].mxu0
  %v1039 = vpop.f32.mrb[0].mxu0
  %v1040 = vadd.f32 %v155, %v1039
  %v1041 = vpop.f32.mrb[0].mxu0
  %1042 = vmatprep.mubr.bf16.mxu0 0
  %1043 = vmatmul.mubr.bf16.gmra.mrb[0].mxu0 %v605
  %v1044 = vpop.f32.mrb[0].mxu0
  %v1045 = vadd.f32 %v155, %v1044
  %v1046 = vpop.f32.mrb[0].mxu0
  %v1047 = vpop.f32.mrb[0].mxu0
  %v1048 = vadd.f32 %v155, %v1047
  %v1049 = vpop.f32.mrb[0].mxu0
  %1050 = vmatprep.mubr.bf16.mxu0 0
  %1051 = vmatmul.mubr.bf16.gmra.mrb[0].mxu0 %v608
  %v1052 = vpop.f32.mrb[0].mxu0
  %v1053 = vadd.f32 %v155, %v1052
  %v1054 = vpop.f32.mrb[0].mxu0
  %v1055 = vpop.f32.mrb[0].mxu0
  %v1056 = vadd.f32 %v155, %v1055
  %v1057 = vpop.f32.mrb[0].mxu0
  %1058 = vmatprep.mubr.bf16.mxu0 0
  %1059 = vmatmul.mubr.bf16.gmra.mrb[0].mxu0 %v611
  %v1060 = vpop.f32.mrb[0].mxu0
  %v1061 = vadd.f32 %v155, %v1060
  %v1062 = vpop.f32.mrb[0].mxu0
  %v1063 = vpop.f32.mrb[0].mxu0
  %v1064 = vadd.f32 %v155, %v1063
  %v1065 = vpop.f32.mrb[0].mxu0
  %1066 = vmatprep.mubr.bf16.mxu0 0
  %1067 = vmatmul.mubr.bf16.gmra.mrb[0].mxu0 %v614
  %v1068 = vpop.f32.mrb[0].mxu0
  %v1069 = vadd.f32 %v155, %v1068
  %v1070 = vpop.f32.mrb[0].mxu0
  %v1071 = vpop.f32.mrb[0].mxu0
  %v1072 = vadd.f32 %v155, %v1071
  %v1073 = vpop.f32.mrb[0].mxu0
  %1074 = vmatprep.mubr.bf16.mxu0 0
  %1075 = vmatmul.mubr.bf16.gmra.mrb[0].mxu0 %v617
  %v1076 = vpop.f32.mrb[0].mxu0
  %v1077 = vadd.f32 %v155, %v1076
  %v1078 = vpop.f32.mrb[0].mxu0
  %v1079 = vpop.f32.mrb[0].mxu0
  %v1080 = vadd.f32 %v155, %v1079
  %v1081 = vpop.f32.mrb[0].mxu0
  %1082 = vmatprep.mubr.bf16.mxu0 0
  %1083 = vmatmul.mubr.bf16.gmra.mrb[0].mxu0 %v620
  %v1084 = vpop.f32.mrb[0].mxu0
  %v1085 = vadd.f32 %v155, %v1084
  %v1086 = vpop.f32.mrb[0].mxu0
  %v1087 = vpop.f32.mrb[0].mxu0
  %v1088 = vadd.f32 %v155, %v1087
  %v1089 = vpop.f32.mrb[0].mxu0
  %1090 = vmatprep.mubr.bf16.mxu0 0
  %1091 = vmatmul.mubr.bf16.gmra.mrb[0].mxu0 %v623
  %v1092 = vpop.f32.mrb[0].mxu0
  %v1093 = vadd.f32 %v155, %v1092
  %v1094 = vpop.f32.mrb[0].mxu0
  %v1095 = vpop.f32.mrb[0].mxu0
  %v1096 = vadd.f32 %v155, %v1095
  %v1097 = vpop.f32.mrb[0].mxu0
  %1098 = vmatprep.mubr.bf16.mxu0 0
  %1099 = vmatmul.mubr.bf16.gmra.mrb[0].mxu0 %v626
  %v1100 = vpop.f32.mrb[0].mxu0
  %v1101 = vadd.f32 %v155, %v1100
  %v1102 = vpop.f32.mrb[0].mxu0
  %v1103 = vpop.f32.mrb[0].mxu0
  %v1104 = vadd.f32 %v155, %v1103
  %v1105 = vpop.f32.mrb[0].mxu0
  %1106 = vmatprep.mubr.bf16.mxu0 0
  %1107 = vmatmul.mubr.bf16.gmra.mrb[0].mxu0 %v629
  %v1108 = vpop.f32.mrb[0].mxu0
  %v1109 = vadd.f32 %v155, %v1108
  %v1110 = vpop.f32.mrb[0].mxu0
  %v1111 = vpop.f32.mrb[0].mxu0
  %v1112 = vadd.f32 %v155, %v1111
  %v1113 = vpop.f32.mrb[0].mxu0
  %1114 = vmatprep.mubr.bf16.mxu0 0
  %1115 = vmatmul.mubr.bf16.gmra.mrb[0].mxu0 %v632
  %v1116 = vpop.f32.mrb[0].mxu0
  %v1117 = vadd.f32 %v155, %v1116
  %v1118 = vpop.f32.mrb[0].mxu0
  %v1119 = vpop.f32.mrb[0].mxu0
  %v1120 = vadd.f32 %v155, %v1119
  %v1121 = vpop.f32.mrb[0].mxu0
  %1122 = vmatprep.mubr.bf16.mxu0 0
  %1123 = vmatmul.mubr.bf16.gmra.mrb[0].mxu0 %v635
  %v1124 = vpop.f32.mrb[0].mxu0
  %v1125 = vadd.f32 %v155, %v1124
  %v1126 = vpop.f32.mrb[0].mxu0
  %v1127 = vpop.f32.mrb[0].mxu0
  %v1128 = vadd.f32 %v155, %v1127
  %v1129 = vpop.f32.mrb[0].mxu0
  %1130 = vmatprep.mubr.bf16.mxu0 0
  %1131 = vmatmul.mubr.bf16.gmra.mrb[0].mxu0 %v638
  %v1132 = vpop.f32.mrb[0].mxu0
  %v1133 = vadd.f32 %v155, %v1132
  %v1134 = vpop.f32.mrb[0].mxu0
  %v1135 = vpop.f32.mrb[0].mxu0
  %v1136 = vadd.f32 %v155, %v1135
  %v1137 = vpop.f32.mrb[0].mxu0
  %1138 = vmatprep.mubr.bf16.mxu0 0
  %1139 = vmatmul.mubr.bf16.gmra.mrb[0].mxu0 %v641
  %v1140 = vpop.f32.mrb[0].mxu0
  %v1141 = vadd.f32 %v155, %v1140
  %v1142 = vpop.f32.mrb[0].mxu0
  %v1143 = vpop.f32.mrb[0].mxu0
  %v1144 = vadd.f32 %v155, %v1143
  %v1145 = vpop.f32.mrb[0].mxu0
  %1146 = vmatprep.mubr.bf16.mxu0 0
  %1147 = vmatmul.mubr.bf16.gmra.mrb[0].mxu0 %v644
  %v1148 = vpop.f32.mrb[0].mxu0
  %v1149 = vadd.f32 %v155, %v1148
  %v1150 = vpop.f32.mrb[0].mxu0
  %v1151 = vpop.f32.mrb[0].mxu0
  %v1152 = vadd.f32 %v155, %v1151
  %v1153 = vpop.f32.mrb[0].mxu0
  %1154 = vmatprep.mubr.bf16.mxu0 0
  %1155 = vmatmul.mubr.bf16.gmra.mrb[0].mxu0 %v647
  %v1156 = vpop.f32.mrb[0].mxu0
  %v1157 = vadd.f32 %v155, %v1156
  %v1158 = vpop.f32.mrb[0].mxu0
  %v1159 = vpop.f32.mrb[0].mxu0
  %v1160 = vadd.f32 %v155, %v1159
  %v1161 = vpop.f32.mrb[0].mxu0
  %1162 = vmatprep.mubr.bf16.mxu0 0
  %1163 = vmatmul.mubr.bf16.gmra.mrb[0].mxu0 %v650
  %v1164 = vpop.f32.mrb[0].mxu0
  %v1165 = vadd.f32 %v155, %v1164
  %v1166 = vpop.f32.mrb[0].mxu0
  %v1167 = vpop.f32.mrb[0].mxu0
  %v1168 = vadd.f32 %v155, %v1167
  %v1169 = vpop.f32.mrb[0].mxu0
  %1170 = vmatprep.mubr.bf16.mxu0 0
  %1171 = vmatmul.mubr.bf16.gmra.mrb[0].mxu0 %v653
  %v1172 = vpop.f32.mrb[0].mxu0
  %v1173 = vadd.f32 %v155, %v1172
  %v1174 = vpop.f32.mrb[0].mxu0
  %v1175 = vpop.f32.mrb[0].mxu0
  %v1176 = vadd.f32 %v155, %v1175
  %v1177 = vpop.f32.mrb[0].mxu0
  %1178 = vmatprep.mubr.bf16.mxu0 0
  %1179 = vmatmul.mubr.bf16.gmra.mrb[0].mxu0 %v656
  %v1180 = vpop.f32.mrb[0].mxu0
  %v1181 = vadd.f32 %v155, %v1180
  %v1182 = vpop.f32.mrb[0].mxu0
  %v1183 = vpop.f32.mrb[0].mxu0
  %v1184 = vadd.f32 %v155, %v1183
  %v1185 = vpop.f32.mrb[0].mxu0
  %1186 = vmatprep.mubr.bf16.mxu0 0
  %1187 = vmatmul.mubr.bf16.gmra.mrb[0].mxu0 %v659
  %v1188 = vpop.f32.mrb[0].mxu0
  %v1189 = vadd.f32 %v155, %v1188
  %v1190 = vpop.f32.mrb[0].mxu0
  %v1191 = vpop.f32.mrb[0].mxu0
  %v1192 = vadd.f32 %v155, %v1191
  %v1193 = vpop.f32.mrb[0].mxu0
  %1194 = vmatprep.mubr.bf16.mxu0 0
  %1195 = vmatmul.mubr.bf16.gmra.mrb[0].mxu0 %v662
  %v1196 = vpop.f32.mrb[0].mxu0
  %v1197 = vadd.f32 %v155, %v1196
  %v1198 = vpop.f32.mrb[0].mxu0
  %v1199 = vpop.f32.mrb[0].mxu0
  %v1200 = vadd.f32 %v155, %v1199
  %v1201 = vpop.f32.mrb[0].mxu0
  %1202 = vmatprep.mubr.bf16.mxu0 0
  %1203 = vmatmul.mubr.bf16.gmra.mrb[0].mxu0 %v665
  %v1204 = vpop.f32.mrb[0].mxu0
  %v1205 = vadd.f32 %v155, %v1204
  %v1206 = vpop.f32.mrb[0].mxu0
  %v1207 = vpop.f32.mrb[0].mxu0
  %v1208 = vadd.f32 %v155, %v1207
  %v1209 = vpop.f32.mrb[0].mxu0
  %1210 = vmatprep.mubr.bf16.mxu0 0
  %1211 = vmatmul.mubr.bf16.gmra.mrb[0].mxu0 %v668
  %v1212 = vpop.f32.mrb[0].mxu0
  %v1213 = vadd.f32 %v155, %v1212
  %v1214 = vpop.f32.mrb[0].mxu0
  %v1215 = vpop.f32.mrb[0].mxu0
  %v1216 = vadd.f32 %v155, %v1215
  %v1217 = vpop.f32.mrb[0].mxu0
  %1218 = vdwg.mxu0
  %v1219 = vmax.f32 %v709, 0.0
  %v1220 = vmax.f32 %v712, 0.0
  %v1221 = vmax.f32 %v717, 0.0
  %v1222 = vmax.f32 %v720, 0.0
  %v1223 = vmax.f32 %v725, 0.0
  %v1224 = vmax.f32 %v728, 0.0
  %v1225 = vmax.f32 %v733, 0.0
  %v1226 = vmax.f32 %v736, 0.0
  %v1227 = vmax.f32 %v741, 0.0
  %v1228 = vmax.f32 %v744, 0.0
  %v1229 = vmax.f32 %v749, 0.0
  %v1230 = vmax.f32 %v752, 0.0
  %v1231 = vmax.f32 %v757, 0.0
  %v1232 = vmax.f32 %v760, 0.0
  %v1233 = vmax.f32 %v765, 0.0
  %v1234 = vmax.f32 %v768, 0.0
  %v1235 = vmax.f32 %v773, 0.0
  %v1236 = vmax.f32 %v776, 0.0
  %v1237 = vmax.f32 %v781, 0.0
  %v1238 = vmax.f32 %v784, 0.0
  %v1239 = vmax.f32 %v789, 0.0
  %v1240 = vmax.f32 %v792, 0.0
  %v1241 = vmax.f32 %v797, 0.0
  %v1242 = vmax.f32 %v800, 0.0
  %v1243 = vmax.f32 %v805, 0.0
  %v1244 = vmax.f32 %v808, 0.0
  %v1245 = vmax.f32 %v813, 0.0
  %v1246 = vmax.f32 %v816, 0.0
  %v1247 = vmax.f32 %v821, 0.0
  %v1248 = vmax.f32 %v824, 0.0
  %v1249 = vmax.f32 %v829, 0.0
  %v1250 = vmax.f32 %v832, 0.0
  %v1251 = vmax.f32 %v837, 0.0
  %v1252 = vmax.f32 %v840, 0.0
  %v1253 = vmax.f32 %v845, 0.0
  %v1254 = vmax.f32 %v848, 0.0
  %v1255 = vmax.f32 %v853, 0.0
  %v1256 = vmax.f32 %v856, 0.0
  %v1257 = vmax.f32 %v861, 0.0
  %v1258 = vmax.f32 %v864, 0.0
  %v1259 = vmax.f32 %v869, 0.0
  %v1260 = vmax.f32 %v872, 0.0
  %v1261 = vmax.f32 %v877, 0.0
  %v1262 = vmax.f32 %v880, 0.0
  %v1263 = vmax.f32 %v885, 0.0
  %v1264 = vmax.f32 %v888, 0.0
  %v1265 = vmax.f32 %v893, 0.0
  %v1266 = vmax.f32 %v896, 0.0
  %v1267 = vmax.f32 %v901, 0.0
  %v1268 = vmax.f32 %v904, 0.0
  %v1269 = vmax.f32 %v909, 0.0
  %v1270 = vmax.f32 %v912, 0.0
  %v1271 = vmax.f32 %v917, 0.0
  %v1272 = vmax.f32 %v920, 0.0
  %v1273 = vmax.f32 %v925, 0.0
  %v1274 = vmax.f32 %v928, 0.0
  %v1275 = vmax.f32 %v933, 0.0
  %v1276 = vmax.f32 %v936, 0.0
  %v1277 = vmax.f32 %v941, 0.0
  %v1278 = vmax.f32 %v944, 0.0
  %v1279 = vmax.f32 %v949, 0.0
  %v1280 = vmax.f32 %v952, 0.0
  %v1281 = vmax.f32 %v957, 0.0
  %v1282 = vmax.f32 %v960, 0.0
  %v1283 = vmax.f32 %v965, 0.0
  %v1284 = vmax.f32 %v968, 0.0
  %v1285 = vmax.f32 %v973, 0.0
  %v1286 = vmax.f32 %v976, 0.0
  %v1287 = vmax.f32 %v981, 0.0
  %v1288 = vmax.f32 %v984, 0.0
  %v1289 = vmax.f32 %v989, 0.0
  %v1290 = vmax.f32 %v992, 0.0
  %v1291 = vmax.f32 %v997, 0.0
  %v1292 = vmax.f32 %v1000, 0.0
  %v1293 = vmax.f32 %v1005, 0.0
  %v1294 = vmax.f32 %v1008, 0.0
  %v1295 = vmax.f32 %v1013, 0.0
  %v1296 = vmax.f32 %v1016, 0.0
  %v1297 = vmax.f32 %v1021, 0.0
  %v1298 = vmax.f32 %v1024, 0.0
  %v1299 = vmax.f32 %v1029, 0.0
  %v1300 = vmax.f32 %v1032, 0.0
  %v1301 = vmax.f32 %v1037, 0.0
  %v1302 = vmax.f32 %v1040, 0.0
  %v1303 = vmax.f32 %v1045, 0.0
  %v1304 = vmax.f32 %v1048, 0.0
  %v1305 = vmax.f32 %v1053, 0.0
  %v1306 = vmax.f32 %v1056, 0.0
  %v1307 = vmax.f32 %v1061, 0.0
  %v1308 = vmax.f32 %v1064, 0.0
  %v1309 = vmax.f32 %v1069, 0.0
  %v1310 = vmax.f32 %v1072, 0.0
  %v1311 = vmax.f32 %v1077, 0.0
  %v1312 = vmax.f32 %v1080, 0.0
  %v1313 = vmax.f32 %v1085, 0.0
  %v1314 = vmax.f32 %v1088, 0.0
  %v1315 = vmax.f32 %v1093, 0.0
  %v1316 = vmax.f32 %v1096, 0.0
  %v1317 = vmax.f32 %v1101, 0.0
  %v1318 = vmax.f32 %v1104, 0.0
  %v1319 = vmax.f32 %v1109, 0.0
  %v1320 = vmax.f32 %v1112, 0.0
  %v1321 = vmax.f32 %v1117, 0.0
  %v1322 = vmax.f32 %v1120, 0.0
  %v1323 = vmax.f32 %v1125, 0.0
  %v1324 = vmax.f32 %v1128, 0.0
  %v1325 = vmax.f32 %v1133, 0.0
  %v1326 = vmax.f32 %v1136, 0.0
  %v1327 = vmax.f32 %v1141, 0.0
  %v1328 = vmax.f32 %v1144, 0.0
  %v1329 = vmax.f32 %v1149, 0.0
  %v1330 = vmax.f32 %v1152, 0.0
  %v1331 = vmax.f32 %v1157, 0.0
  %v1332 = vmax.f32 %v1160, 0.0
  %v1333 = vmax.f32 %v1165, 0.0
  %v1334 = vmax.f32 %v1168, 0.0
  %v1335 = vmax.f32 %v1173, 0.0
  %v1336 = vmax.f32 %v1176, 0.0
  %v1337 = vmax.f32 %v1181, 0.0
  %v1338 = vmax.f32 %v1184, 0.0
  %v1339 = vmax.f32 %v1189, 0.0
  %v1340 = vmax.f32 %v1192, 0.0
  %v1341 = vmax.f32 %v1197, 0.0
  %v1342 = vmax.f32 %v1200, 0.0
  %v1343 = vmax.f32 %v1205, 0.0
  %v1344 = vmax.f32 %v1208, 0.0
  %v1345 = vmax.f32 %v1213, 0.0
  %v1346 = vmax.f32 %v1216, 0.0
  %v1347 = vpack.c.bf16 %v1220, %v1219
  %v1348 = vpack.c.bf16 %v1222, %v1221
  %v1349 = vpack.c.bf16 %v1224, %v1223
  %v1350 = vpack.c.bf16 %v1226, %v1225
  %v1351 = vpack.c.bf16 %v1228, %v1227
  %v1352 = vpack.c.bf16 %v1230, %v1229
  %v1353 = vpack.c.bf16 %v1232, %v1231
  %v1354 = vpack.c.bf16 %v1234, %v1233
  %v1355 = vpack.c.bf16 %v1236, %v1235
  %v1356 = vpack.c.bf16 %v1238, %v1237
  %v1357 = vpack.c.bf16 %v1240, %v1239
  %v1358 = vpack.c.bf16 %v1242, %v1241
  %v1359 = vpack.c.bf16 %v1244, %v1243
  %v1360 = vpack.c.bf16 %v1246, %v1245
  %v1361 = vpack.c.bf16 %v1248, %v1247
  %v1362 = vpack.c.bf16 %v1250, %v1249
  %v1363 = vpack.c.bf16 %v1252, %v1251
  %v1364 = vpack.c.bf16 %v1254, %v1253
  %v1365 = vpack.c.bf16 %v1256, %v1255
  %v1366 = vpack.c.bf16 %v1258, %v1257
  %v1367 = vpack.c.bf16 %v1260, %v1259
  %v1368 = vpack.c.bf16 %v1262, %v1261
  %v1369 = vpack.c.bf16 %v1264, %v1263
  %v1370 = vpack.c.bf16 %v1266, %v1265
  %v1371 = vpack.c.bf16 %v1268, %v1267
  %v1372 = vpack.c.bf16 %v1270, %v1269
  %v1373 = vpack.c.bf16 %v1272, %v1271
  %v1374 = vpack.c.bf16 %v1274, %v1273
  %v1375 = vpack.c.bf16 %v1276, %v1275
  %v1376 = vpack.c.bf16 %v1278, %v1277
  %v1377 = vpack.c.bf16 %v1280, %v1279
  %v1378 = vpack.c.bf16 %v1282, %v1281
  %v1379 = vpack.c.bf16 %v1284, %v1283
  %v1380 = vpack.c.bf16 %v1286, %v1285
  %v1381 = vpack.c.bf16 %v1288, %v1287
  %v1382 = vpack.c.bf16 %v1290, %v1289
  %v1383 = vpack.c.bf16 %v1292, %v1291
  %v1384 = vpack.c.bf16 %v1294, %v1293
  %v1385 = vpack.c.bf16 %v1296, %v1295
  %v1386 = vpack.c.bf16 %v1298, %v1297
  %v1387 = vpack.c.bf16 %v1300, %v1299
  %v1388 = vpack.c.bf16 %v1302, %v1301
  %v1389 = vpack.c.bf16 %v1304, %v1303
  %v1390 = vpack.c.bf16 %v1306, %v1305
  %v1391 = vpack.c.bf16 %v1308, %v1307
  %v1392 = vpack.c.bf16 %v1310, %v1309
  %v1393 = vpack.c.bf16 %v1312, %v1311
  %v1394 = vpack.c.bf16 %v1314, %v1313
  %v1395 = vpack.c.bf16 %v1316, %v1315
  %v1396 = vpack.c.bf16 %v1318, %v1317
  %v1397 = vpack.c.bf16 %v1320, %v1319
  %v1398 = vpack.c.bf16 %v1322, %v1321
  %v1399 = vpack.c.bf16 %v1324, %v1323
  %v1400 = vpack.c.bf16 %v1326, %v1325
  %v1401 = vpack.c.bf16 %v1328, %v1327
  %v1402 = vpack.c.bf16 %v1330, %v1329
  %v1403 = vpack.c.bf16 %v1332, %v1331
  %v1404 = vpack.c.bf16 %v1334, %v1333
  %v1405 = vpack.c.bf16 %v1336, %v1335
  %v1406 = vpack.c.bf16 %v1338, %v1337
  %v1407 = vpack.c.bf16 %v1340, %v1339
  %v1408 = vpack.c.bf16 %v1342, %v1341
  %v1409 = vpack.c.bf16 %v1344, %v1343
  %v1410 = vpack.c.bf16 %v1346, %v1345
  %v1411 = vld [vmem:[%s3] sm:$0xf]
  %v1412 = vld [vmem:[%s4] sm:$0x1]
  %v1414 = vlaneseq
  %v1415 = vshrl.u32 %v1414, 7
  %v1416 = vsub.s32 0, %v1415
  %v1417 = vrot.slane %v1412, %v1416
  %vm1419 = vcmask 64512
  %v1421 = vsel %vm1419, %v1347, 0
  %v1424 = vsel %vm1419, %v1348, 0
  %v1427 = vsel %vm1419, %v1349, 0
  %v1430 = vsel %vm1419, %v1350, 0
  %v1433 = vsel %vm1419, %v1351, 0
  %v1436 = vsel %vm1419, %v1352, 0
  %v1439 = vsel %vm1419, %v1353, 0
  %v1442 = vsel %vm1419, %v1354, 0
  %v1445 = vsel %vm1419, %v1355, 0
  %v1448 = vsel %vm1419, %v1356, 0
  %v1451 = vsel %vm1419, %v1357, 0
  %v1454 = vsel %vm1419, %v1358, 0
  %v1457 = vsel %vm1419, %v1359, 0
  %v1460 = vsel %vm1419, %v1360, 0
  %v1463 = vsel %vm1419, %v1361, 0
  %v1466 = vsel %vm1419, %v1362, 0
  %v1469 = vsel %vm1419, %v1363, 0
  %v1472 = vsel %vm1419, %v1364, 0
  %v1475 = vsel %vm1419, %v1365, 0
  %v1478 = vsel %vm1419, %v1366, 0
  %v1481 = vsel %vm1419, %v1367, 0
  %v1484 = vsel %vm1419, %v1368, 0
  %v1487 = vsel %vm1419, %v1369, 0
  %v1490 = vsel %vm1419, %v1370, 0
  %v1493 = vsel %vm1419, %v1371, 0
  %v1496 = vsel %vm1419, %v1372, 0
  %v1499 = vsel %vm1419, %v1373, 0
  %v1502 = vsel %vm1419, %v1374, 0
  %v1505 = vsel %vm1419, %v1375, 0
  %v1508 = vsel %vm1419, %v1376, 0
  %v1511 = vsel %vm1419, %v1377, 0
  %v1514 = vsel %vm1419, %v1378, 0
  %v1517 = vsel %vm1419, %v1379, 0
  %v1520 = vsel %vm1419, %v1380, 0
  %v1523 = vsel %vm1419, %v1381, 0
  %v1526 = vsel %vm1419, %v1382, 0
  %v1529 = vsel %vm1419, %v1383, 0
  %v1532 = vsel %vm1419, %v1384, 0
  %v1535 = vsel %vm1419, %v1385, 0
  %v1538 = vsel %vm1419, %v1386, 0
  %v1541 = vsel %vm1419, %v1387, 0
  %v1544 = vsel %vm1419, %v1388, 0
  %v1547 = vsel %vm1419, %v1389, 0
  %v1550 = vsel %vm1419, %v1390, 0
  %v1553 = vsel %vm1419, %v1391, 0
  %v1556 = vsel %vm1419, %v1392, 0
  %v1559 = vsel %vm1419, %v1393, 0
  %v1562 = vsel %vm1419, %v1394, 0
  %v1565 = vsel %vm1419, %v1395, 0
  %v1568 = vsel %vm1419, %v1396, 0
  %v1571 = vsel %vm1419, %v1397, 0
  %v1574 = vsel %vm1419, %v1398, 0
  %v1577 = vsel %vm1419, %v1399, 0
  %v1580 = vsel %vm1419, %v1400, 0
  %v1583 = vsel %vm1419, %v1401, 0
  %v1586 = vsel %vm1419, %v1402, 0
  %v1589 = vsel %vm1419, %v1403, 0
  %v1592 = vsel %vm1419, %v1404, 0
  %v1595 = vsel %vm1419, %v1405, 0
  %v1598 = vsel %vm1419, %v1406, 0
  %v1601 = vsel %vm1419, %v1407, 0
  %v1604 = vsel %vm1419, %v1408, 0
  %v1607 = vsel %vm1419, %v1409, 0
  %v1610 = vsel %vm1419, %v1410, 0
  %vm1612 = vcmask 1043456
  %v1614 = vsel %vm1612, %v1411, 0
  %1616 = vmatprep.subr.bf16.mxu0 0
  %1617 = vmatpush1.bf16.msra.mxu0 %v1614
  %1618 = vmatprep.subr.bf16.mxu0 0
  %1619 = vmatpush1.bf16.msra.mxu0 0
  %1620 = vmatprep.subr.bf16.mxu0 0
  %1621 = vmatpush1.bf16.msra.mxu0 0
  %1622 = vmatprep.subr.bf16.mxu0 0
  %1623 = vmatpush1.bf16.msra.mxu0 0
  %1624 = vmatprep.subr.bf16.mxu0 0
  %1625 = vmatpush1.bf16.msra.mxu0 0
  %1626 = vmatprep.subr.bf16.mxu0 0
  %1627 = vmatpush1.bf16.msra.mxu0 0
  %1628 = vmatprep.subr.bf16.mxu0 0
  %1629 = vmatpush1.bf16.msra.mxu0 0
  %1630 = vmatprep.subr.bf16.mxu0 0
  %1631 = vmatpush1.bf16.msra.mxu0 0
  %1632 = vmatprep.subr.bf16.mxu0 0
  %1633 = vmatpush1.bf16.msra.mxu0 0
  %1634 = vmatprep.subr.bf16.mxu0 0
  %1635 = vmatpush1.bf16.msra.mxu0 0
  %1636 = vmatprep.subr.bf16.mxu0 0
  %1637 = vmatpush1.bf16.msra.mxu0 0
  %1638 = vmatprep.subr.bf16.mxu0 0
  %1639 = vmatpush1.bf16.msra.mxu0 0
  %1640 = vmatprep.subr.bf16.mxu0 0
  %1641 = vmatpush1.bf16.msra.mxu0 0
  %1642 = vmatprep.subr.bf16.mxu0 0
  %1643 = vmatpush1.bf16.msra.mxu0 0
  %1644 = vmatprep.subr.bf16.mxu0 0
  %1645 = vmatpush1.bf16.msra.mxu0 0
  %1646 = vmatprep.subr.bf16.mxu0 0
  %1647 = vmatpush1.bf16.msra.mxu0 0
  %1648 = vmatprep.mubr.bf16.mxu0 0
  %1649 = vmatmul.mubr.bf16.gmra.mrb[0].mxu0 %v1421
  %v1650 = vpop.f32.mrb[0].mxu0
  %v1651 = vadd.f32 %v1417, %v1650
  %v1652 = vpop.f32.mrb[0].mxu0
  %v1653 = vpop.f32.mrb[0].mxu0
  %v1654 = vadd.f32 %v1417, %v1653
  %v1655 = vpop.f32.mrb[0].mxu0
  %1656 = vmatprep.mubr.bf16.mxu0 0
  %1657 = vmatmul.mubr.bf16.gmra.mrb[0].mxu0 %v1424
  %v1658 = vpop.f32.mrb[0].mxu0
  %v1659 = vadd.f32 %v1417, %v1658
  %v1660 = vpop.f32.mrb[0].mxu0
  %v1661 = vpop.f32.mrb[0].mxu0
  %v1662 = vadd.f32 %v1417, %v1661
  %v1663 = vpop.f32.mrb[0].mxu0
  %1664 = vmatprep.mubr.bf16.mxu0 0
  %1665 = vmatmul.mubr.bf16.gmra.mrb[0].mxu0 %v1427
  %v1666 = vpop.f32.mrb[0].mxu0
  %v1667 = vadd.f32 %v1417, %v1666
  %v1668 = vpop.f32.mrb[0].mxu0
  %v1669 = vpop.f32.mrb[0].mxu0
  %v1670 = vadd.f32 %v1417, %v1669
  %v1671 = vpop.f32.mrb[0].mxu0
  %1672 = vmatprep.mubr.bf16.mxu0 0
  %1673 = vmatmul.mubr.bf16.gmra.mrb[0].mxu0 %v1430
  %v1674 = vpop.f32.mrb[0].mxu0
  %v1675 = vadd.f32 %v1417, %v1674
  %v1676 = vpop.f32.mrb[0].mxu0
  %v1677 = vpop.f32.mrb[0].mxu0
  %v1678 = vadd.f32 %v1417, %v1677
  %v1679 = vpop.f32.mrb[0].mxu0
  %1680 = vmatprep.mubr.bf16.mxu0 0
  %1681 = vmatmul.mubr.bf16.gmra.mrb[0].mxu0 %v1433
  %v1682 = vpop.f32.mrb[0].mxu0
  %v1683 = vadd.f32 %v1417, %v1682
  %v1684 = vpop.f32.mrb[0].mxu0
  %v1685 = vpop.f32.mrb[0].mxu0
  %v1686 = vadd.f32 %v1417, %v1685
  %v1687 = vpop.f32.mrb[0].mxu0
  %1688 = vmatprep.mubr.bf16.mxu0 0
  %1689 = vmatmul.mubr.bf16.gmra.mrb[0].mxu0 %v1436
  %v1690 = vpop.f32.mrb[0].mxu0
  %v1691 = vadd.f32 %v1417, %v1690
  %v1692 = vpop.f32.mrb[0].mxu0
  %v1693 = vpop.f32.mrb[0].mxu0
  %v1694 = vadd.f32 %v1417, %v1693
  %v1695 = vpop.f32.mrb[0].mxu0
  %1696 = vmatprep.mubr.bf16.mxu0 0
  %1697 = vmatmul.mubr.bf16.gmra.mrb[0].mxu0 %v1439
  %v1698 = vpop.f32.mrb[0].mxu0
  %v1699 = vadd.f32 %v1417, %v1698
  %v1700 = vpop.f32.mrb[0].mxu0
  %v1701 = vpop.f32.mrb[0].mxu0
  %v1702 = vadd.f32 %v1417, %v1701
  %v1703 = vpop.f32.mrb[0].mxu0
  %1704 = vmatprep.mubr.bf16.mxu0 0
  %1705 = vmatmul.mubr.bf16.gmra.mrb[0].mxu0 %v1442
  %v1706 = vpop.f32.mrb[0].mxu0
  %v1707 = vadd.f32 %v1417, %v1706
  %v1708 = vpop.f32.mrb[0].mxu0
  %v1709 = vpop.f32.mrb[0].mxu0
  %v1710 = vadd.f32 %v1417, %v1709
  %v1711 = vpop.f32.mrb[0].mxu0
  %1712 = vmatprep.mubr.bf16.mxu0 0
  %1713 = vmatmul.mubr.bf16.gmra.mrb[0].mxu0 %v1445
  %v1714 = vpop.f32.mrb[0].mxu0
  %v1715 = vadd.f32 %v1417, %v1714
  %v1716 = vpop.f32.mrb[0].mxu0
  %v1717 = vpop.f32.mrb[0].mxu0
  %v1718 = vadd.f32 %v1417, %v1717
  %v1719 = vpop.f32.mrb[0].mxu0
  %1720 = vmatprep.mubr.bf16.mxu0 0
  %1721 = vmatmul.mubr.bf16.gmra.mrb[0].mxu0 %v1448
  %v1722 = vpop.f32.mrb[0].mxu0
  %v1723 = vadd.f32 %v1417, %v1722
  %v1724 = vpop.f32.mrb[0].mxu0
  %v1725 = vpop.f32.mrb[0].mxu0
  %v1726 = vadd.f32 %v1417, %v1725
  %v1727 = vpop.f32.mrb[0].mxu0
  %1728 = vmatprep.mubr.bf16.mxu0 0
  %1729 = vmatmul.mubr.bf16.gmra.mrb[0].mxu0 %v1451
  %v1730 = vpop.f32.mrb[0].mxu0
  %v1731 = vadd.f32 %v1417, %v1730
  %v1732 = vpop.f32.mrb[0].mxu0
  %v1733 = vpop.f32.mrb[0].mxu0
  %v1734 = vadd.f32 %v1417, %v1733
  %v1735 = vpop.f32.mrb[0].mxu0
  %1736 = vmatprep.mubr.bf16.mxu0 0
  %1737 = vmatmul.mubr.bf16.gmra.mrb[0].mxu0 %v1454
  %v1738 = vpop.f32.mrb[0].mxu0
  %v1739 = vadd.f32 %v1417, %v1738
  %v1740 = vpop.f32.mrb[0].mxu0
  %v1741 = vpop.f32.mrb[0].mxu0
  %v1742 = vadd.f32 %v1417, %v1741
  %v1743 = vpop.f32.mrb[0].mxu0
  %1744 = vmatprep.mubr.bf16.mxu0 0
  %1745 = vmatmul.mubr.bf16.gmra.mrb[0].mxu0 %v1457
  %v1746 = vpop.f32.mrb[0].mxu0
  %v1747 = vadd.f32 %v1417, %v1746
  %v1748 = vpop.f32.mrb[0].mxu0
  %v1749 = vpop.f32.mrb[0].mxu0
  %v1750 = vadd.f32 %v1417, %v1749
  %v1751 = vpop.f32.mrb[0].mxu0
  %1752 = vmatprep.mubr.bf16.mxu0 0
  %1753 = vmatmul.mubr.bf16.gmra.mrb[0].mxu0 %v1460
  %v1754 = vpop.f32.mrb[0].mxu0
  %v1755 = vadd.f32 %v1417, %v1754
  %v1756 = vpop.f32.mrb[0].mxu0
  %v1757 = vpop.f32.mrb[0].mxu0
  %v1758 = vadd.f32 %v1417, %v1757
  %v1759 = vpop.f32.mrb[0].mxu0
  %1760 = vmatprep.mubr.bf16.mxu0 0
  %1761 = vmatmul.mubr.bf16.gmra.mrb[0].mxu0 %v1463
  %v1762 = vpop.f32.mrb[0].mxu0
  %v1763 = vadd.f32 %v1417, %v1762
  %v1764 = vpop.f32.mrb[0].mxu0
  %v1765 = vpop.f32.mrb[0].mxu0
  %v1766 = vadd.f32 %v1417, %v1765
  %v1767 = vpop.f32.mrb[0].mxu0
  %1768 = vmatprep.mubr.bf16.mxu0 0
  %1769 = vmatmul.mubr.bf16.gmra.mrb[0].mxu0 %v1466
  %v1770 = vpop.f32.mrb[0].mxu0
  %v1771 = vadd.f32 %v1417, %v1770
  %v1772 = vpop.f32.mrb[0].mxu0
  %v1773 = vpop.f32.mrb[0].mxu0
  %v1774 = vadd.f32 %v1417, %v1773
  %v1775 = vpop.f32.mrb[0].mxu0
  %1776 = vmatprep.mubr.bf16.mxu0 0
  %1777 = vmatmul.mubr.bf16.gmra.mrb[0].mxu0 %v1469
  %v1778 = vpop.f32.mrb[0].mxu0
  %v1779 = vadd.f32 %v1417, %v1778
  %v1780 = vpop.f32.mrb[0].mxu0
  %v1781 = vpop.f32.mrb[0].mxu0
  %v1782 = vadd.f32 %v1417, %v1781
  %v1783 = vpop.f32.mrb[0].mxu0
  %1784 = vmatprep.mubr.bf16.mxu0 0
  %1785 = vmatmul.mubr.bf16.gmra.mrb[0].mxu0 %v1472
  %v1786 = vpop.f32.mrb[0].mxu0
  %v1787 = vadd.f32 %v1417, %v1786
  %v1788 = vpop.f32.mrb[0].mxu0
  %v1789 = vpop.f32.mrb[0].mxu0
  %v1790 = vadd.f32 %v1417, %v1789
  %v1791 = vpop.f32.mrb[0].mxu0
  %1792 = vmatprep.mubr.bf16.mxu0 0
  %1793 = vmatmul.mubr.bf16.gmra.mrb[0].mxu0 %v1475
  %v1794 = vpop.f32.mrb[0].mxu0
  %v1795 = vadd.f32 %v1417, %v1794
  %v1796 = vpop.f32.mrb[0].mxu0
  %v1797 = vpop.f32.mrb[0].mxu0
  %v1798 = vadd.f32 %v1417, %v1797
  %v1799 = vpop.f32.mrb[0].mxu0
  %1800 = vmatprep.mubr.bf16.mxu0 0
  %1801 = vmatmul.mubr.bf16.gmra.mrb[0].mxu0 %v1478
  %v1802 = vpop.f32.mrb[0].mxu0
  %v1803 = vadd.f32 %v1417, %v1802
  %v1804 = vpop.f32.mrb[0].mxu0
  %v1805 = vpop.f32.mrb[0].mxu0
  %v1806 = vadd.f32 %v1417, %v1805
  %v1807 = vpop.f32.mrb[0].mxu0
  %1808 = vmatprep.mubr.bf16.mxu0 0
  %1809 = vmatmul.mubr.bf16.gmra.mrb[0].mxu0 %v1481
  %v1810 = vpop.f32.mrb[0].mxu0
  %v1811 = vadd.f32 %v1417, %v1810
  %v1812 = vpop.f32.mrb[0].mxu0
  %v1813 = vpop.f32.mrb[0].mxu0
  %v1814 = vadd.f32 %v1417, %v1813
  %v1815 = vpop.f32.mrb[0].mxu0
  %1816 = vmatprep.mubr.bf16.mxu0 0
  %1817 = vmatmul.mubr.bf16.gmra.mrb[0].mxu0 %v1484
  %v1818 = vpop.f32.mrb[0].mxu0
  %v1819 = vadd.f32 %v1417, %v1818
  %v1820 = vpop.f32.mrb[0].mxu0
  %v1821 = vpop.f32.mrb[0].mxu0
  %v1822 = vadd.f32 %v1417, %v1821
  %v1823 = vpop.f32.mrb[0].mxu0
  %1824 = vmatprep.mubr.bf16.mxu0 0
  %1825 = vmatmul.mubr.bf16.gmra.mrb[0].mxu0 %v1487
  %v1826 = vpop.f32.mrb[0].mxu0
  %v1827 = vadd.f32 %v1417, %v1826
  %v1828 = vpop.f32.mrb[0].mxu0
  %v1829 = vpop.f32.mrb[0].mxu0
  %v1830 = vadd.f32 %v1417, %v1829
  %v1831 = vpop.f32.mrb[0].mxu0
  %1832 = vmatprep.mubr.bf16.mxu0 0
  %1833 = vmatmul.mubr.bf16.gmra.mrb[0].mxu0 %v1490
  %v1834 = vpop.f32.mrb[0].mxu0
  %v1835 = vadd.f32 %v1417, %v1834
  %v1836 = vpop.f32.mrb[0].mxu0
  %v1837 = vpop.f32.mrb[0].mxu0
  %v1838 = vadd.f32 %v1417, %v1837
  %v1839 = vpop.f32.mrb[0].mxu0
  %1840 = vmatprep.mubr.bf16.mxu0 0
  %1841 = vmatmul.mubr.bf16.gmra.mrb[0].mxu0 %v1493
  %v1842 = vpop.f32.mrb[0].mxu0
  %v1843 = vadd.f32 %v1417, %v1842
  %v1844 = vpop.f32.mrb[0].mxu0
  %v1845 = vpop.f32.mrb[0].mxu0
  %v1846 = vadd.f32 %v1417, %v1845
  %v1847 = vpop.f32.mrb[0].mxu0
  %1848 = vmatprep.mubr.bf16.mxu0 0
  %1849 = vmatmul.mubr.bf16.gmra.mrb[0].mxu0 %v1496
  %v1850 = vpop.f32.mrb[0].mxu0
  %v1851 = vadd.f32 %v1417, %v1850
  %v1852 = vpop.f32.mrb[0].mxu0
  %v1853 = vpop.f32.mrb[0].mxu0
  %v1854 = vadd.f32 %v1417, %v1853
  %v1855 = vpop.f32.mrb[0].mxu0
  %1856 = vmatprep.mubr.bf16.mxu0 0
  %1857 = vmatmul.mubr.bf16.gmra.mrb[0].mxu0 %v1499
  %v1858 = vpop.f32.mrb[0].mxu0
  %v1859 = vadd.f32 %v1417, %v1858
  %v1860 = vpop.f32.mrb[0].mxu0
  %v1861 = vpop.f32.mrb[0].mxu0
  %v1862 = vadd.f32 %v1417, %v1861
  %v1863 = vpop.f32.mrb[0].mxu0
  %1864 = vmatprep.mubr.bf16.mxu0 0
  %1865 = vmatmul.mubr.bf16.gmra.mrb[0].mxu0 %v1502
  %v1866 = vpop.f32.mrb[0].mxu0
  %v1867 = vadd.f32 %v1417, %v1866
  %v1868 = vpop.f32.mrb[0].mxu0
  %v1869 = vpop.f32.mrb[0].mxu0
  %v1870 = vadd.f32 %v1417, %v1869
  %v1871 = vpop.f32.mrb[0].mxu0
  %1872 = vmatprep.mubr.bf16.mxu0 0
  %1873 = vmatmul.mubr.bf16.gmra.mrb[0].mxu0 %v1505
  %v1874 = vpop.f32.mrb[0].mxu0
  %v1875 = vadd.f32 %v1417, %v1874
  %v1876 = vpop.f32.mrb[0].mxu0
  %v1877 = vpop.f32.mrb[0].mxu0
  %v1878 = vadd.f32 %v1417, %v1877
  %v1879 = vpop.f32.mrb[0].mxu0
  %1880 = vmatprep.mubr.bf16.mxu0 0
  %1881 = vmatmul.mubr.bf16.gmra.mrb[0].mxu0 %v1508
  %v1882 = vpop.f32.mrb[0].mxu0
  %v1883 = vadd.f32 %v1417, %v1882
  %v1884 = vpop.f32.mrb[0].mxu0
  %v1885 = vpop.f32.mrb[0].mxu0
  %v1886 = vadd.f32 %v1417, %v1885
  %v1887 = vpop.f32.mrb[0].mxu0
  %1888 = vmatprep.mubr.bf16.mxu0 0
  %1889 = vmatmul.mubr.bf16.gmra.mrb[0].mxu0 %v1511
  %v1890 = vpop.f32.mrb[0].mxu0
  %v1891 = vadd.f32 %v1417, %v1890
  %v1892 = vpop.f32.mrb[0].mxu0
  %v1893 = vpop.f32.mrb[0].mxu0
  %v1894 = vadd.f32 %v1417, %v1893
  %v1895 = vpop.f32.mrb[0].mxu0
  %1896 = vmatprep.mubr.bf16.mxu0 0
  %1897 = vmatmul.mubr.bf16.gmra.mrb[0].mxu0 %v1514
  %v1898 = vpop.f32.mrb[0].mxu0
  %v1899 = vadd.f32 %v1417, %v1898
  %v1900 = vpop.f32.mrb[0].mxu0
  %v1901 = vpop.f32.mrb[0].mxu0
  %v1902 = vadd.f32 %v1417, %v1901
  %v1903 = vpop.f32.mrb[0].mxu0
  %1904 = vmatprep.mubr.bf16.mxu0 0
  %1905 = vmatmul.mubr.bf16.gmra.mrb[0].mxu0 %v1517
  %v1906 = vpop.f32.mrb[0].mxu0
  %v1907 = vadd.f32 %v1417, %v1906
  %v1908 = vpop.f32.mrb[0].mxu0
  %v1909 = vpop.f32.mrb[0].mxu0
  %v1910 = vadd.f32 %v1417, %v1909
  %v1911 = vpop.f32.mrb[0].mxu0
  %1912 = vmatprep.mubr.bf16.mxu0 0
  %1913 = vmatmul.mubr.bf16.gmra.mrb[0].mxu0 %v1520
  %v1914 = vpop.f32.mrb[0].mxu0
  %v1915 = vadd.f32 %v1417, %v1914
  %v1916 = vpop.f32.mrb[0].mxu0
  %v1917 = vpop.f32.mrb[0].mxu0
  %v1918 = vadd.f32 %v1417, %v1917
  %v1919 = vpop.f32.mrb[0].mxu0
  %1920 = vmatprep.mubr.bf16.mxu0 0
  %1921 = vmatmul.mubr.bf16.gmra.mrb[0].mxu0 %v1523
  %v1922 = vpop.f32.mrb[0].mxu0
  %v1923 = vadd.f32 %v1417, %v1922
  %v1924 = vpop.f32.mrb[0].mxu0
  %v1925 = vpop.f32.mrb[0].mxu0
  %v1926 = vadd.f32 %v1417, %v1925
  %v1927 = vpop.f32.mrb[0].mxu0
  %1928 = vmatprep.mubr.bf16.mxu0 0
  %1929 = vmatmul.mubr.bf16.gmra.mrb[0].mxu0 %v1526
  %v1930 = vpop.f32.mrb[0].mxu0
  %v1931 = vadd.f32 %v1417, %v1930
  %v1932 = vpop.f32.mrb[0].mxu0
  %v1933 = vpop.f32.mrb[0].mxu0
  %v1934 = vadd.f32 %v1417, %v1933
  %v1935 = vpop.f32.mrb[0].mxu0
  %1936 = vmatprep.mubr.bf16.mxu0 0
  %1937 = vmatmul.mubr.bf16.gmra.mrb[0].mxu0 %v1529
  %v1938 = vpop.f32.mrb[0].mxu0
  %v1939 = vadd.f32 %v1417, %v1938
  %v1940 = vpop.f32.mrb[0].mxu0
  %v1941 = vpop.f32.mrb[0].mxu0
  %v1942 = vadd.f32 %v1417, %v1941
  %v1943 = vpop.f32.mrb[0].mxu0
  %1944 = vmatprep.mubr.bf16.mxu0 0
  %1945 = vmatmul.mubr.bf16.gmra.mrb[0].mxu0 %v1532
  %v1946 = vpop.f32.mrb[0].mxu0
  %v1947 = vadd.f32 %v1417, %v1946
  %v1948 = vpop.f32.mrb[0].mxu0
  %v1949 = vpop.f32.mrb[0].mxu0
  %v1950 = vadd.f32 %v1417, %v1949
  %v1951 = vpop.f32.mrb[0].mxu0
  %1952 = vmatprep.mubr.bf16.mxu0 0
  %1953 = vmatmul.mubr.bf16.gmra.mrb[0].mxu0 %v1535
  %v1954 = vpop.f32.mrb[0].mxu0
  %v1955 = vadd.f32 %v1417, %v1954
  %v1956 = vpop.f32.mrb[0].mxu0
  %v1957 = vpop.f32.mrb[0].mxu0
  %v1958 = vadd.f32 %v1417, %v1957
  %v1959 = vpop.f32.mrb[0].mxu0
  %1960 = vmatprep.mubr.bf16.mxu0 0
  %1961 = vmatmul.mubr.bf16.gmra.mrb[0].mxu0 %v1538
  %v1962 = vpop.f32.mrb[0].mxu0
  %v1963 = vadd.f32 %v1417, %v1962
  %v1964 = vpop.f32.mrb[0].mxu0
  %v1965 = vpop.f32.mrb[0].mxu0
  %v1966 = vadd.f32 %v1417, %v1965
  %v1967 = vpop.f32.mrb[0].mxu0
  %1968 = vmatprep.mubr.bf16.mxu0 0
  %1969 = vmatmul.mubr.bf16.gmra.mrb[0].mxu0 %v1541
  %v1970 = vpop.f32.mrb[0].mxu0
  %v1971 = vadd.f32 %v1417, %v1970
  %v1972 = vpop.f32.mrb[0].mxu0
  %v1973 = vpop.f32.mrb[0].mxu0
  %v1974 = vadd.f32 %v1417, %v1973
  %v1975 = vpop.f32.mrb[0].mxu0
  %1976 = vmatprep.mubr.bf16.mxu0 0
  %1977 = vmatmul.mubr.bf16.gmra.mrb[0].mxu0 %v1544
  %v1978 = vpop.f32.mrb[0].mxu0
  %v1979 = vadd.f32 %v1417, %v1978
  %v1980 = vpop.f32.mrb[0].mxu0
  %v1981 = vpop.f32.mrb[0].mxu0
  %v1982 = vadd.f32 %v1417, %v1981
  %v1983 = vpop.f32.mrb[0].mxu0
  %1984 = vmatprep.mubr.bf16.mxu0 0
  %1985 = vmatmul.mubr.bf16.gmra.mrb[0].mxu0 %v1547
  %v1986 = vpop.f32.mrb[0].mxu0
  %v1987 = vadd.f32 %v1417, %v1986
  %v1988 = vpop.f32.mrb[0].mxu0
  %v1989 = vpop.f32.mrb[0].mxu0
  %v1990 = vadd.f32 %v1417, %v1989
  %v1991 = vpop.f32.mrb[0].mxu0
  %1992 = vmatprep.mubr.bf16.mxu0 0
  %1993 = vmatmul.mubr.bf16.gmra.mrb[0].mxu0 %v1550
  %v1994 = vpop.f32.mrb[0].mxu0
  %v1995 = vadd.f32 %v1417, %v1994
  %v1996 = vpop.f32.mrb[0].mxu0
  %v1997 = vpop.f32.mrb[0].mxu0
  %v1998 = vadd.f32 %v1417, %v1997
  %v1999 = vpop.f32.mrb[0].mxu0
  %2000 = vmatprep.mubr.bf16.mxu0 0
  %2001 = vmatmul.mubr.bf16.gmra.mrb[0].mxu0 %v1553
  %v2002 = vpop.f32.mrb[0].mxu0
  %v2003 = vadd.f32 %v1417, %v2002
  %v2004 = vpop.f32.mrb[0].mxu0
  %v2005 = vpop.f32.mrb[0].mxu0
  %v2006 = vadd.f32 %v1417, %v2005
  %v2007 = vpop.f32.mrb[0].mxu0
  %2008 = vmatprep.mubr.bf16.mxu0 0
  %2009 = vmatmul.mubr.bf16.gmra.mrb[0].mxu0 %v1556
  %v2010 = vpop.f32.mrb[0].mxu0
  %v2011 = vadd.f32 %v1417, %v2010
  %v2012 = vpop.f32.mrb[0].mxu0
  %v2013 = vpop.f32.mrb[0].mxu0
  %v2014 = vadd.f32 %v1417, %v2013
  %v2015 = vpop.f32.mrb[0].mxu0
  %2016 = vmatprep.mubr.bf16.mxu0 0
  %2017 = vmatmul.mubr.bf16.gmra.mrb[0].mxu0 %v1559
  %v2018 = vpop.f32.mrb[0].mxu0
  %v2019 = vadd.f32 %v1417, %v2018
  %v2020 = vpop.f32.mrb[0].mxu0
  %v2021 = vpop.f32.mrb[0].mxu0
  %v2022 = vadd.f32 %v1417, %v2021
  %v2023 = vpop.f32.mrb[0].mxu0
  %2024 = vmatprep.mubr.bf16.mxu0 0
  %2025 = vmatmul.mubr.bf16.gmra.mrb[0].mxu0 %v1562
  %v2026 = vpop.f32.mrb[0].mxu0
  %v2027 = vadd.f32 %v1417, %v2026
  %v2028 = vpop.f32.mrb[0].mxu0
  %v2029 = vpop.f32.mrb[0].mxu0
  %v2030 = vadd.f32 %v1417, %v2029
  %v2031 = vpop.f32.mrb[0].mxu0
  %2032 = vmatprep.mubr.bf16.mxu0 0
  %2033 = vmatmul.mubr.bf16.gmra.mrb[0].mxu0 %v1565
  %v2034 = vpop.f32.mrb[0].mxu0
  %v2035 = vadd.f32 %v1417, %v2034
  %v2036 = vpop.f32.mrb[0].mxu0
  %v2037 = vpop.f32.mrb[0].mxu0
  %v2038 = vadd.f32 %v1417, %v2037
  %v2039 = vpop.f32.mrb[0].mxu0
  %2040 = vmatprep.mubr.bf16.mxu0 0
  %2041 = vmatmul.mubr.bf16.gmra.mrb[0].mxu0 %v1568
  %v2042 = vpop.f32.mrb[0].mxu0
  %v2043 = vadd.f32 %v1417, %v2042
  %v2044 = vpop.f32.mrb[0].mxu0
  %v2045 = vpop.f32.mrb[0].mxu0
  %v2046 = vadd.f32 %v1417, %v2045
  %v2047 = vpop.f32.mrb[0].mxu0
  %2048 = vmatprep.mubr.bf16.mxu0 0
  %2049 = vmatmul.mubr.bf16.gmra.mrb[0].mxu0 %v1571
  %v2050 = vpop.f32.mrb[0].mxu0
  %v2051 = vadd.f32 %v1417, %v2050
  %v2052 = vpop.f32.mrb[0].mxu0
  %v2053 = vpop.f32.mrb[0].mxu0
  %v2054 = vadd.f32 %v1417, %v2053
  %v2055 = vpop.f32.mrb[0].mxu0
  %2056 = vmatprep.mubr.bf16.mxu0 0
  %2057 = vmatmul.mubr.bf16.gmra.mrb[0].mxu0 %v1574
  %v2058 = vpop.f32.mrb[0].mxu0
  %v2059 = vadd.f32 %v1417, %v2058
  %v2060 = vpop.f32.mrb[0].mxu0
  %v2061 = vpop.f32.mrb[0].mxu0
  %v2062 = vadd.f32 %v1417, %v2061
  %v2063 = vpop.f32.mrb[0].mxu0
  %2064 = vmatprep.mubr.bf16.mxu0 0
  %2065 = vmatmul.mubr.bf16.gmra.mrb[0].mxu0 %v1577
  %v2066 = vpop.f32.mrb[0].mxu0
  %v2067 = vadd.f32 %v1417, %v2066
  %v2068 = vpop.f32.mrb[0].mxu0
  %v2069 = vpop.f32.mrb[0].mxu0
  %v2070 = vadd.f32 %v1417, %v2069
  %v2071 = vpop.f32.mrb[0].mxu0
  %2072 = vmatprep.mubr.bf16.mxu0 0
  %2073 = vmatmul.mubr.bf16.gmra.mrb[0].mxu0 %v1580
  %v2074 = vpop.f32.mrb[0].mxu0
  %v2075 = vadd.f32 %v1417, %v2074
  %v2076 = vpop.f32.mrb[0].mxu0
  %v2077 = vpop.f32.mrb[0].mxu0
  %v2078 = vadd.f32 %v1417, %v2077
  %v2079 = vpop.f32.mrb[0].mxu0
  %2080 = vmatprep.mubr.bf16.mxu0 0
  %2081 = vmatmul.mubr.bf16.gmra.mrb[0].mxu0 %v1583
  %v2082 = vpop.f32.mrb[0].mxu0
  %v2083 = vadd.f32 %v1417, %v2082
  %v2084 = vpop.f32.mrb[0].mxu0
  %v2085 = vpop.f32.mrb[0].mxu0
  %v2086 = vadd.f32 %v1417, %v2085
  %v2087 = vpop.f32.mrb[0].mxu0
  %2088 = vmatprep.mubr.bf16.mxu0 0
  %2089 = vmatmul.mubr.bf16.gmra.mrb[0].mxu0 %v1586
  %v2090 = vpop.f32.mrb[0].mxu0
  %v2091 = vadd.f32 %v1417, %v2090
  %v2092 = vpop.f32.mrb[0].mxu0
  %v2093 = vpop.f32.mrb[0].mxu0
  %v2094 = vadd.f32 %v1417, %v2093
  %v2095 = vpop.f32.mrb[0].mxu0
  %2096 = vmatprep.mubr.bf16.mxu0 0
  %2097 = vmatmul.mubr.bf16.gmra.mrb[0].mxu0 %v1589
  %v2098 = vpop.f32.mrb[0].mxu0
  %v2099 = vadd.f32 %v1417, %v2098
  %v2100 = vpop.f32.mrb[0].mxu0
  %v2101 = vpop.f32.mrb[0].mxu0
  %v2102 = vadd.f32 %v1417, %v2101
  %v2103 = vpop.f32.mrb[0].mxu0
  %2104 = vmatprep.mubr.bf16.mxu0 0
  %2105 = vmatmul.mubr.bf16.gmra.mrb[0].mxu0 %v1592
  %v2106 = vpop.f32.mrb[0].mxu0
  %v2107 = vadd.f32 %v1417, %v2106
  %v2108 = vpop.f32.mrb[0].mxu0
  %v2109 = vpop.f32.mrb[0].mxu0
  %v2110 = vadd.f32 %v1417, %v2109
  %v2111 = vpop.f32.mrb[0].mxu0
  %2112 = vmatprep.mubr.bf16.mxu0 0
  %2113 = vmatmul.mubr.bf16.gmra.mrb[0].mxu0 %v1595
  %v2114 = vpop.f32.mrb[0].mxu0
  %v2115 = vadd.f32 %v1417, %v2114
  %v2116 = vpop.f32.mrb[0].mxu0
  %v2117 = vpop.f32.mrb[0].mxu0
  %v2118 = vadd.f32 %v1417, %v2117
  %v2119 = vpop.f32.mrb[0].mxu0
  %2120 = vmatprep.mubr.bf16.mxu0 0
  %2121 = vmatmul.mubr.bf16.gmra.mrb[0].mxu0 %v1598
  %v2122 = vpop.f32.mrb[0].mxu0
  %v2123 = vadd.f32 %v1417, %v2122
  %v2124 = vpop.f32.mrb[0].mxu0
  %v2125 = vpop.f32.mrb[0].mxu0
  %v2126 = vadd.f32 %v1417, %v2125
  %v2127 = vpop.f32.mrb[0].mxu0
  %2128 = vmatprep.mubr.bf16.mxu0 0
  %2129 = vmatmul.mubr.bf16.gmra.mrb[0].mxu0 %v1601
  %v2130 = vpop.f32.mrb[0].mxu0
  %v2131 = vadd.f32 %v1417, %v2130
  %v2132 = vpop.f32.mrb[0].mxu0
  %v2133 = vpop.f32.mrb[0].mxu0
  %v2134 = vadd.f32 %v1417, %v2133
  %v2135 = vpop.f32.mrb[0].mxu0
  %2136 = vmatprep.mubr.bf16.mxu0 0
  %2137 = vmatmul.mubr.bf16.gmra.mrb[0].mxu0 %v1604
  %v2138 = vpop.f32.mrb[0].mxu0
  %v2139 = vadd.f32 %v1417, %v2138
  %v2140 = vpop.f32.mrb[0].mxu0
  %v2141 = vpop.f32.mrb[0].mxu0
  %v2142 = vadd.f32 %v1417, %v2141
  %v2143 = vpop.f32.mrb[0].mxu0
  %2144 = vmatprep.mubr.bf16.mxu0 0
  %2145 = vmatmul.mubr.bf16.gmra.mrb[0].mxu0 %v1607
  %v2146 = vpop.f32.mrb[0].mxu0
  %v2147 = vadd.f32 %v1417, %v2146
  %v2148 = vpop.f32.mrb[0].mxu0
  %v2149 = vpop.f32.mrb[0].mxu0
  %v2150 = vadd.f32 %v1417, %v2149
  %v2151 = vpop.f32.mrb[0].mxu0
  %2152 = vmatprep.mubr.bf16.mxu0 0
  %2153 = vmatmul.mubr.bf16.gmra.mrb[0].mxu0 %v1610
  %v2154 = vpop.f32.mrb[0].mxu0
  %v2155 = vadd.f32 %v1417, %v2154
  %v2156 = vpop.f32.mrb[0].mxu0
  %v2157 = vpop.f32.mrb[0].mxu0
  %v2158 = vadd.f32 %v1417, %v2157
  %v2159 = vpop.f32.mrb[0].mxu0
  %2160 = vdwg.mxu0
  %v2161 = vmax.f32 %v1651, 0.0
  %v2162 = vmax.f32 %v1654, 0.0
  %v2163 = vmax.f32 %v1659, 0.0
  %v2164 = vmax.f32 %v1662, 0.0
  %v2165 = vmax.f32 %v1667, 0.0
  %v2166 = vmax.f32 %v1670, 0.0
  %v2167 = vmax.f32 %v1675, 0.0
  %v2168 = vmax.f32 %v1678, 0.0
  %v2169 = vmax.f32 %v1683, 0.0
  %v2170 = vmax.f32 %v1686, 0.0
  %v2171 = vmax.f32 %v1691, 0.0
  %v2172 = vmax.f32 %v1694, 0.0
  %v2173 = vmax.f32 %v1699, 0.0
  %v2174 = vmax.f32 %v1702, 0.0
  %v2175 = vmax.f32 %v1707, 0.0
  %v2176 = vmax.f32 %v1710, 0.0
  %v2177 = vmax.f32 %v1715, 0.0
  %v2178 = vmax.f32 %v1718, 0.0
  %v2179 = vmax.f32 %v1723, 0.0
  %v2180 = vmax.f32 %v1726, 0.0
  %v2181 = vmax.f32 %v1731, 0.0
  %v2182 = vmax.f32 %v1734, 0.0
  %v2183 = vmax.f32 %v1739, 0.0
  %v2184 = vmax.f32 %v1742, 0.0
  %v2185 = vmax.f32 %v1747, 0.0
  %v2186 = vmax.f32 %v1750, 0.0
  %v2187 = vmax.f32 %v1755, 0.0
  %v2188 = vmax.f32 %v1758, 0.0
  %v2189 = vmax.f32 %v1763, 0.0
  %v2190 = vmax.f32 %v1766, 0.0
  %v2191 = vmax.f32 %v1771, 0.0
  %v2192 = vmax.f32 %v1774, 0.0
  %v2193 = vmax.f32 %v1779, 0.0
  %v2194 = vmax.f32 %v1782, 0.0
  %v2195 = vmax.f32 %v1787, 0.0
  %v2196 = vmax.f32 %v1790, 0.0
  %v2197 = vmax.f32 %v1795, 0.0
  %v2198 = vmax.f32 %v1798, 0.0
  %v2199 = vmax.f32 %v1803, 0.0
  %v2200 = vmax.f32 %v1806, 0.0
  %v2201 = vmax.f32 %v1811, 0.0
  %v2202 = vmax.f32 %v1814, 0.0
  %v2203 = vmax.f32 %v1819, 0.0
  %v2204 = vmax.f32 %v1822, 0.0
  %v2205 = vmax.f32 %v1827, 0.0
  %v2206 = vmax.f32 %v1830, 0.0
  %v2207 = vmax.f32 %v1835, 0.0
  %v2208 = vmax.f32 %v1838, 0.0
  %v2209 = vmax.f32 %v1843, 0.0
  %v2210 = vmax.f32 %v1846, 0.0
  %v2211 = vmax.f32 %v1851, 0.0
  %v2212 = vmax.f32 %v1854, 0.0
  %v2213 = vmax.f32 %v1859, 0.0
  %v2214 = vmax.f32 %v1862, 0.0
  %v2215 = vmax.f32 %v1867, 0.0
  %v2216 = vmax.f32 %v1870, 0.0
  %v2217 = vmax.f32 %v1875, 0.0
  %v2218 = vmax.f32 %v1878, 0.0
  %v2219 = vmax.f32 %v1883, 0.0
  %v2220 = vmax.f32 %v1886, 0.0
  %v2221 = vmax.f32 %v1891, 0.0
  %v2222 = vmax.f32 %v1894, 0.0
  %v2223 = vmax.f32 %v1899, 0.0
  %v2224 = vmax.f32 %v1902, 0.0
  %v2225 = vmax.f32 %v1907, 0.0
  %v2226 = vmax.f32 %v1910, 0.0
  %v2227 = vmax.f32 %v1915, 0.0
  %v2228 = vmax.f32 %v1918, 0.0
  %v2229 = vmax.f32 %v1923, 0.0
  %v2230 = vmax.f32 %v1926, 0.0
  %v2231 = vmax.f32 %v1931, 0.0
  %v2232 = vmax.f32 %v1934, 0.0
  %v2233 = vmax.f32 %v1939, 0.0
  %v2234 = vmax.f32 %v1942, 0.0
  %v2235 = vmax.f32 %v1947, 0.0
  %v2236 = vmax.f32 %v1950, 0.0
  %v2237 = vmax.f32 %v1955, 0.0
  %v2238 = vmax.f32 %v1958, 0.0
  %v2239 = vmax.f32 %v1963, 0.0
  %v2240 = vmax.f32 %v1966, 0.0
  %v2241 = vmax.f32 %v1971, 0.0
  %v2242 = vmax.f32 %v1974, 0.0
  %v2243 = vmax.f32 %v1979, 0.0
  %v2244 = vmax.f32 %v1982, 0.0
  %v2245 = vmax.f32 %v1987, 0.0
  %v2246 = vmax.f32 %v1990, 0.0
  %v2247 = vmax.f32 %v1995, 0.0
  %v2248 = vmax.f32 %v1998, 0.0
  %v2249 = vmax.f32 %v2003, 0.0
  %v2250 = vmax.f32 %v2006, 0.0
  %v2251 = vmax.f32 %v2011, 0.0
  %v2252 = vmax.f32 %v2014, 0.0
  %v2253 = vmax.f32 %v2019, 0.0
  %v2254 = vmax.f32 %v2022, 0.0
  %v2255 = vmax.f32 %v2027, 0.0
  %v2256 = vmax.f32 %v2030, 0.0
  %v2257 = vmax.f32 %v2035, 0.0
  %v2258 = vmax.f32 %v2038, 0.0
  %v2259 = vmax.f32 %v2043, 0.0
  %v2260 = vmax.f32 %v2046, 0.0
  %v2261 = vmax.f32 %v2051, 0.0
  %v2262 = vmax.f32 %v2054, 0.0
  %v2263 = vmax.f32 %v2059, 0.0
  %v2264 = vmax.f32 %v2062, 0.0
  %v2265 = vmax.f32 %v2067, 0.0
  %v2266 = vmax.f32 %v2070, 0.0
  %v2267 = vmax.f32 %v2075, 0.0
  %v2268 = vmax.f32 %v2078, 0.0
  %v2269 = vmax.f32 %v2083, 0.0
  %v2270 = vmax.f32 %v2086, 0.0
  %v2271 = vmax.f32 %v2091, 0.0
  %v2272 = vmax.f32 %v2094, 0.0
  %v2273 = vmax.f32 %v2099, 0.0
  %v2274 = vmax.f32 %v2102, 0.0
  %v2275 = vmax.f32 %v2107, 0.0
  %v2276 = vmax.f32 %v2110, 0.0
  %v2277 = vmax.f32 %v2115, 0.0
  %v2278 = vmax.f32 %v2118, 0.0
  %v2279 = vmax.f32 %v2123, 0.0
  %v2280 = vmax.f32 %v2126, 0.0
  %v2281 = vmax.f32 %v2131, 0.0
  %v2282 = vmax.f32 %v2134, 0.0
  %v2283 = vmax.f32 %v2139, 0.0
  %v2284 = vmax.f32 %v2142, 0.0
  %v2285 = vmax.f32 %v2147, 0.0
  %v2286 = vmax.f32 %v2150, 0.0
  %v2287 = vmax.f32 %v2155, 0.0
  %v2288 = vmax.f32 %v2158, 0.0
  %vm2289 = vcmask 130048
  %v2290 = vsel %vm2289, %v2161, -inf
  %v2291 = vsel %vm2289, %v2162, -inf
  %v2292 = vmax.f32 %v2290, %v2291
  %v2293 = vrot.slane %v2292, 4
  %v2294 = vmax.f32 %v2292, %v2293
  %v2295 = vrot.slane %v2294, 2
  %v2296 = vmax.f32 %v2294, %v2295
  %v2297 = vrot.slane %v2296, 1
  %v2298 = vmax.f32 %v2296, %v2297
  %v2299 = vsel %vm2289, %v2163, -inf
  %v2300 = vsel %vm2289, %v2164, -inf
  %v2301 = vmax.f32 %v2299, %v2300
  %v2302 = vrot.slane %v2301, 4
  %v2303 = vmax.f32 %v2301, %v2302
  %v2304 = vrot.slane %v2303, 2
  %v2305 = vmax.f32 %v2303, %v2304
  %v2306 = vrot.slane %v2305, 1
  %v2307 = vmax.f32 %v2305, %v2306
  %v2308 = vsel %vm2289, %v2165, -inf
  %v2309 = vsel %vm2289, %v2166, -inf
  %v2310 = vmax.f32 %v2308, %v2309
  %v2311 = vrot.slane %v2310, 4
  %v2312 = vmax.f32 %v2310, %v2311
  %v2313 = vrot.slane %v2312, 2
  %v2314 = vmax.f32 %v2312, %v2313
  %v2315 = vrot.slane %v2314, 1
  %v2316 = vmax.f32 %v2314, %v2315
  %v2317 = vsel %vm2289, %v2167, -inf
  %v2318 = vsel %vm2289, %v2168, -inf
  %v2319 = vmax.f32 %v2317, %v2318
  %v2320 = vrot.slane %v2319, 4
  %v2321 = vmax.f32 %v2319, %v2320
  %v2322 = vrot.slane %v2321, 2
  %v2323 = vmax.f32 %v2321, %v2322
  %v2324 = vrot.slane %v2323, 1
  %v2325 = vmax.f32 %v2323, %v2324
  %v2326 = vsel %vm2289, %v2169, -inf
  %v2327 = vsel %vm2289, %v2170, -inf
  %v2328 = vmax.f32 %v2326, %v2327
  %v2329 = vrot.slane %v2328, 4
  %v2330 = vmax.f32 %v2328, %v2329
  %v2331 = vrot.slane %v2330, 2
  %v2332 = vmax.f32 %v2330, %v2331
  %v2333 = vrot.slane %v2332, 1
  %v2334 = vmax.f32 %v2332, %v2333
  %v2335 = vsel %vm2289, %v2171, -inf
  %v2336 = vsel %vm2289, %v2172, -inf
  %v2337 = vmax.f32 %v2335, %v2336
  %v2338 = vrot.slane %v2337, 4
  %v2339 = vmax.f32 %v2337, %v2338
  %v2340 = vrot.slane %v2339, 2
  %v2341 = vmax.f32 %v2339, %v2340
  %v2342 = vrot.slane %v2341, 1
  %v2343 = vmax.f32 %v2341, %v2342
  %v2344 = vsel %vm2289, %v2173, -inf
  %v2345 = vsel %vm2289, %v2174, -inf
  %v2346 = vmax.f32 %v2344, %v2345
  %v2347 = vrot.slane %v2346, 4
  %v2348 = vmax.f32 %v2346, %v2347
  %v2349 = vrot.slane %v2348, 2
  %v2350 = vmax.f32 %v2348, %v2349
  %v2351 = vrot.slane %v2350, 1
  %v2352 = vmax.f32 %v2350, %v2351
  %v2353 = vsel %vm2289, %v2175, -inf
  %v2354 = vsel %vm2289, %v2176, -inf
  %v2355 = vmax.f32 %v2353, %v2354
  %v2356 = vrot.slane %v2355, 4
  %v2357 = vmax.f32 %v2355, %v2356
  %v2358 = vrot.slane %v2357, 2
  %v2359 = vmax.f32 %v2357, %v2358
  %v2360 = vrot.slane %v2359, 1
  %v2361 = vmax.f32 %v2359, %v2360
  %v2362 = vsel %vm2289, %v2177, -inf
  %v2363 = vsel %vm2289, %v2178, -inf
  %v2364 = vmax.f32 %v2362, %v2363
  %v2365 = vrot.slane %v2364, 4
  %v2366 = vmax.f32 %v2364, %v2365
  %v2367 = vrot.slane %v2366, 2
  %v2368 = vmax.f32 %v2366, %v2367
  %v2369 = vrot.slane %v2368, 1
  %v2370 = vmax.f32 %v2368, %v2369
  %v2371 = vsel %vm2289, %v2179, -inf
  %v2372 = vsel %vm2289, %v2180, -inf
  %v2373 = vmax.f32 %v2371, %v2372
  %v2374 = vrot.slane %v2373, 4
  %v2375 = vmax.f32 %v2373, %v2374
  %v2376 = vrot.slane %v2375, 2
  %v2377 = vmax.f32 %v2375, %v2376
  %v2378 = vrot.slane %v2377, 1
  %v2379 = vmax.f32 %v2377, %v2378
  %v2380 = vsel %vm2289, %v2181, -inf
  %v2381 = vsel %vm2289, %v2182, -inf
  %v2382 = vmax.f32 %v2380, %v2381
  %v2383 = vrot.slane %v2382, 4
  %v2384 = vmax.f32 %v2382, %v2383
  %v2385 = vrot.slane %v2384, 2
  %v2386 = vmax.f32 %v2384, %v2385
  %v2387 = vrot.slane %v2386, 1
  %v2388 = vmax.f32 %v2386, %v2387
  %v2389 = vsel %vm2289, %v2183, -inf
  %v2390 = vsel %vm2289, %v2184, -inf
  %v2391 = vmax.f32 %v2389, %v2390
  %v2392 = vrot.slane %v2391, 4
  %v2393 = vmax.f32 %v2391, %v2392
  %v2394 = vrot.slane %v2393, 2
  %v2395 = vmax.f32 %v2393, %v2394
  %v2396 = vrot.slane %v2395, 1
  %v2397 = vmax.f32 %v2395, %v2396
  %v2398 = vsel %vm2289, %v2185, -inf
  %v2399 = vsel %vm2289, %v2186, -inf
  %v2400 = vmax.f32 %v2398, %v2399
  %v2401 = vrot.slane %v2400, 4
  %v2402 = vmax.f32 %v2400, %v2401
  %v2403 = vrot.slane %v2402, 2
  %v2404 = vmax.f32 %v2402, %v2403
  %v2405 = vrot.slane %v2404, 1
  %v2406 = vmax.f32 %v2404, %v2405
  %v2407 = vsel %vm2289, %v2187, -inf
  %v2408 = vsel %vm2289, %v2188, -inf
  %v2409 = vmax.f32 %v2407, %v2408
  %v2410 = vrot.slane %v2409, 4
  %v2411 = vmax.f32 %v2409, %v2410
  %v2412 = vrot.slane %v2411, 2
  %v2413 = vmax.f32 %v2411, %v2412
  %v2414 = vrot.slane %v2413, 1
  %v2415 = vmax.f32 %v2413, %v2414
  %v2416 = vsel %vm2289, %v2189, -inf
  %v2417 = vsel %vm2289, %v2190, -inf
  %v2418 = vmax.f32 %v2416, %v2417
  %v2419 = vrot.slane %v2418, 4
  %v2420 = vmax.f32 %v2418, %v2419
  %v2421 = vrot.slane %v2420, 2
  %v2422 = vmax.f32 %v2420, %v2421
  %v2423 = vrot.slane %v2422, 1
  %v2424 = vmax.f32 %v2422, %v2423
  %v2425 = vsel %vm2289, %v2191, -inf
  %v2426 = vsel %vm2289, %v2192, -inf
  %v2427 = vmax.f32 %v2425, %v2426
  %v2428 = vrot.slane %v2427, 4
  %v2429 = vmax.f32 %v2427, %v2428
  %v2430 = vrot.slane %v2429, 2
  %v2431 = vmax.f32 %v2429, %v2430
  %v2432 = vrot.slane %v2431, 1
  %v2433 = vmax.f32 %v2431, %v2432
  %v2434 = vsel %vm2289, %v2193, -inf
  %v2435 = vsel %vm2289, %v2194, -inf
  %v2436 = vmax.f32 %v2434, %v2435
  %v2437 = vrot.slane %v2436, 4
  %v2438 = vmax.f32 %v2436, %v2437
  %v2439 = vrot.slane %v2438, 2
  %v2440 = vmax.f32 %v2438, %v2439
  %v2441 = vrot.slane %v2440, 1
  %v2442 = vmax.f32 %v2440, %v2441
  %v2443 = vsel %vm2289, %v2195, -inf
  %v2444 = vsel %vm2289, %v2196, -inf
  %v2445 = vmax.f32 %v2443, %v2444
  %v2446 = vrot.slane %v2445, 4
  %v2447 = vmax.f32 %v2445, %v2446
  %v2448 = vrot.slane %v2447, 2
  %v2449 = vmax.f32 %v2447, %v2448
  %v2450 = vrot.slane %v2449, 1
  %v2451 = vmax.f32 %v2449, %v2450
  %v2452 = vsel %vm2289, %v2197, -inf
  %v2453 = vsel %vm2289, %v2198, -inf
  %v2454 = vmax.f32 %v2452, %v2453
  %v2455 = vrot.slane %v2454, 4
  %v2456 = vmax.f32 %v2454, %v2455
  %v2457 = vrot.slane %v2456, 2
  %v2458 = vmax.f32 %v2456, %v2457
  %v2459 = vrot.slane %v2458, 1
  %v2460 = vmax.f32 %v2458, %v2459
  %v2461 = vsel %vm2289, %v2199, -inf
  %v2462 = vsel %vm2289, %v2200, -inf
  %v2463 = vmax.f32 %v2461, %v2462
  %v2464 = vrot.slane %v2463, 4
  %v2465 = vmax.f32 %v2463, %v2464
  %v2466 = vrot.slane %v2465, 2
  %v2467 = vmax.f32 %v2465, %v2466
  %v2468 = vrot.slane %v2467, 1
  %v2469 = vmax.f32 %v2467, %v2468
  %v2470 = vsel %vm2289, %v2201, -inf
  %v2471 = vsel %vm2289, %v2202, -inf
  %v2472 = vmax.f32 %v2470, %v2471
  %v2473 = vrot.slane %v2472, 4
  %v2474 = vmax.f32 %v2472, %v2473
  %v2475 = vrot.slane %v2474, 2
  %v2476 = vmax.f32 %v2474, %v2475
  %v2477 = vrot.slane %v2476, 1
  %v2478 = vmax.f32 %v2476, %v2477
  %v2479 = vsel %vm2289, %v2203, -inf
  %v2480 = vsel %vm2289, %v2204, -inf
  %v2481 = vmax.f32 %v2479, %v2480
  %v2482 = vrot.slane %v2481, 4
  %v2483 = vmax.f32 %v2481, %v2482
  %v2484 = vrot.slane %v2483, 2
  %v2485 = vmax.f32 %v2483, %v2484
  %v2486 = vrot.slane %v2485, 1
  %v2487 = vmax.f32 %v2485, %v2486
  %v2488 = vsel %vm2289, %v2205, -inf
  %v2489 = vsel %vm2289, %v2206, -inf
  %v2490 = vmax.f32 %v2488, %v2489
  %v2491 = vrot.slane %v2490, 4
  %v2492 = vmax.f32 %v2490, %v2491
  %v2493 = vrot.slane %v2492, 2
  %v2494 = vmax.f32 %v2492, %v2493
  %v2495 = vrot.slane %v2494, 1
  %v2496 = vmax.f32 %v2494, %v2495
  %v2497 = vsel %vm2289, %v2207, -inf
  %v2498 = vsel %vm2289, %v2208, -inf
  %v2499 = vmax.f32 %v2497, %v2498
  %v2500 = vrot.slane %v2499, 4
  %v2501 = vmax.f32 %v2499, %v2500
  %v2502 = vrot.slane %v2501, 2
  %v2503 = vmax.f32 %v2501, %v2502
  %v2504 = vrot.slane %v2503, 1
  %v2505 = vmax.f32 %v2503, %v2504
  %v2506 = vsel %vm2289, %v2209, -inf
  %v2507 = vsel %vm2289, %v2210, -inf
  %v2508 = vmax.f32 %v2506, %v2507
  %v2509 = vrot.slane %v2508, 4
  %v2510 = vmax.f32 %v2508, %v2509
  %v2511 = vrot.slane %v2510, 2
  %v2512 = vmax.f32 %v2510, %v2511
  %v2513 = vrot.slane %v2512, 1
  %v2514 = vmax.f32 %v2512, %v2513
  %v2515 = vsel %vm2289, %v2211, -inf
  %v2516 = vsel %vm2289, %v2212, -inf
  %v2517 = vmax.f32 %v2515, %v2516
  %v2518 = vrot.slane %v2517, 4
  %v2519 = vmax.f32 %v2517, %v2518
  %v2520 = vrot.slane %v2519, 2
  %v2521 = vmax.f32 %v2519, %v2520
  %v2522 = vrot.slane %v2521, 1
  %v2523 = vmax.f32 %v2521, %v2522
  %v2524 = vsel %vm2289, %v2213, -inf
  %v2525 = vsel %vm2289, %v2214, -inf
  %v2526 = vmax.f32 %v2524, %v2525
  %v2527 = vrot.slane %v2526, 4
  %v2528 = vmax.f32 %v2526, %v2527
  %v2529 = vrot.slane %v2528, 2
  %v2530 = vmax.f32 %v2528, %v2529
  %v2531 = vrot.slane %v2530, 1
  %v2532 = vmax.f32 %v2530, %v2531
  %v2533 = vsel %vm2289, %v2215, -inf
  %v2534 = vsel %vm2289, %v2216, -inf
  %v2535 = vmax.f32 %v2533, %v2534
  %v2536 = vrot.slane %v2535, 4
  %v2537 = vmax.f32 %v2535, %v2536
  %v2538 = vrot.slane %v2537, 2
  %v2539 = vmax.f32 %v2537, %v2538
  %v2540 = vrot.slane %v2539, 1
  %v2541 = vmax.f32 %v2539, %v2540
  %v2542 = vsel %vm2289, %v2217, -inf
  %v2543 = vsel %vm2289, %v2218, -inf
  %v2544 = vmax.f32 %v2542, %v2543
  %v2545 = vrot.slane %v2544, 4
  %v2546 = vmax.f32 %v2544, %v2545
  %v2547 = vrot.slane %v2546, 2
  %v2548 = vmax.f32 %v2546, %v2547
  %v2549 = vrot.slane %v2548, 1
  %v2550 = vmax.f32 %v2548, %v2549
  %v2551 = vsel %vm2289, %v2219, -inf
  %v2552 = vsel %vm2289, %v2220, -inf
  %v2553 = vmax.f32 %v2551, %v2552
  %v2554 = vrot.slane %v2553, 4
  %v2555 = vmax.f32 %v2553, %v2554
  %v2556 = vrot.slane %v2555, 2
  %v2557 = vmax.f32 %v2555, %v2556
  %v2558 = vrot.slane %v2557, 1
  %v2559 = vmax.f32 %v2557, %v2558
  %v2560 = vsel %vm2289, %v2221, -inf
  %v2561 = vsel %vm2289, %v2222, -inf
  %v2562 = vmax.f32 %v2560, %v2561
  %v2563 = vrot.slane %v2562, 4
  %v2564 = vmax.f32 %v2562, %v2563
  %v2565 = vrot.slane %v2564, 2
  %v2566 = vmax.f32 %v2564, %v2565
  %v2567 = vrot.slane %v2566, 1
  %v2568 = vmax.f32 %v2566, %v2567
  %v2569 = vsel %vm2289, %v2223, -inf
  %v2570 = vsel %vm2289, %v2224, -inf
  %v2571 = vmax.f32 %v2569, %v2570
  %v2572 = vrot.slane %v2571, 4
  %v2573 = vmax.f32 %v2571, %v2572
  %v2574 = vrot.slane %v2573, 2
  %v2575 = vmax.f32 %v2573, %v2574
  %v2576 = vrot.slane %v2575, 1
  %v2577 = vmax.f32 %v2575, %v2576
  %v2578 = vsel %vm2289, %v2225, -inf
  %v2579 = vsel %vm2289, %v2226, -inf
  %v2580 = vmax.f32 %v2578, %v2579
  %v2581 = vrot.slane %v2580, 4
  %v2582 = vmax.f32 %v2580, %v2581
  %v2583 = vrot.slane %v2582, 2
  %v2584 = vmax.f32 %v2582, %v2583
  %v2585 = vrot.slane %v2584, 1
  %v2586 = vmax.f32 %v2584, %v2585
  %v2587 = vsel %vm2289, %v2227, -inf
  %v2588 = vsel %vm2289, %v2228, -inf
  %v2589 = vmax.f32 %v2587, %v2588
  %v2590 = vrot.slane %v2589, 4
  %v2591 = vmax.f32 %v2589, %v2590
  %v2592 = vrot.slane %v2591, 2
  %v2593 = vmax.f32 %v2591, %v2592
  %v2594 = vrot.slane %v2593, 1
  %v2595 = vmax.f32 %v2593, %v2594
  %v2596 = vsel %vm2289, %v2229, -inf
  %v2597 = vsel %vm2289, %v2230, -inf
  %v2598 = vmax.f32 %v2596, %v2597
  %v2599 = vrot.slane %v2598, 4
  %v2600 = vmax.f32 %v2598, %v2599
  %v2601 = vrot.slane %v2600, 2
  %v2602 = vmax.f32 %v2600, %v2601
  %v2603 = vrot.slane %v2602, 1
  %v2604 = vmax.f32 %v2602, %v2603
  %v2605 = vsel %vm2289, %v2231, -inf
  %v2606 = vsel %vm2289, %v2232, -inf
  %v2607 = vmax.f32 %v2605, %v2606
  %v2608 = vrot.slane %v2607, 4
  %v2609 = vmax.f32 %v2607, %v2608
  %v2610 = vrot.slane %v2609, 2
  %v2611 = vmax.f32 %v2609, %v2610
  %v2612 = vrot.slane %v2611, 1
  %v2613 = vmax.f32 %v2611, %v2612
  %v2614 = vsel %vm2289, %v2233, -inf
  %v2615 = vsel %vm2289, %v2234, -inf
  %v2616 = vmax.f32 %v2614, %v2615
  %v2617 = vrot.slane %v2616, 4
  %v2618 = vmax.f32 %v2616, %v2617
  %v2619 = vrot.slane %v2618, 2
  %v2620 = vmax.f32 %v2618, %v2619
  %v2621 = vrot.slane %v2620, 1
  %v2622 = vmax.f32 %v2620, %v2621
  %v2623 = vsel %vm2289, %v2235, -inf
  %v2624 = vsel %vm2289, %v2236, -inf
  %v2625 = vmax.f32 %v2623, %v2624
  %v2626 = vrot.slane %v2625, 4
  %v2627 = vmax.f32 %v2625, %v2626
  %v2628 = vrot.slane %v2627, 2
  %v2629 = vmax.f32 %v2627, %v2628
  %v2630 = vrot.slane %v2629, 1
  %v2631 = vmax.f32 %v2629, %v2630
  %v2632 = vsel %vm2289, %v2237, -inf
  %v2633 = vsel %vm2289, %v2238, -inf
  %v2634 = vmax.f32 %v2632, %v2633
  %v2635 = vrot.slane %v2634, 4
  %v2636 = vmax.f32 %v2634, %v2635
  %v2637 = vrot.slane %v2636, 2
  %v2638 = vmax.f32 %v2636, %v2637
  %v2639 = vrot.slane %v2638, 1
  %v2640 = vmax.f32 %v2638, %v2639
  %v2641 = vsel %vm2289, %v2239, -inf
  %v2642 = vsel %vm2289, %v2240, -inf
  %v2643 = vmax.f32 %v2641, %v2642
  %v2644 = vrot.slane %v2643, 4
  %v2645 = vmax.f32 %v2643, %v2644
  %v2646 = vrot.slane %v2645, 2
  %v2647 = vmax.f32 %v2645, %v2646
  %v2648 = vrot.slane %v2647, 1
  %v2649 = vmax.f32 %v2647, %v2648
  %v2650 = vsel %vm2289, %v2241, -inf
  %v2651 = vsel %vm2289, %v2242, -inf
  %v2652 = vmax.f32 %v2650, %v2651
  %v2653 = vrot.slane %v2652, 4
  %v2654 = vmax.f32 %v2652, %v2653
  %v2655 = vrot.slane %v2654, 2
  %v2656 = vmax.f32 %v2654, %v2655
  %v2657 = vrot.slane %v2656, 1
  %v2658 = vmax.f32 %v2656, %v2657
  %v2659 = vsel %vm2289, %v2243, -inf
  %v2660 = vsel %vm2289, %v2244, -inf
  %v2661 = vmax.f32 %v2659, %v2660
  %v2662 = vrot.slane %v2661, 4
  %v2663 = vmax.f32 %v2661, %v2662
  %v2664 = vrot.slane %v2663, 2
  %v2665 = vmax.f32 %v2663, %v2664
  %v2666 = vrot.slane %v2665, 1
  %v2667 = vmax.f32 %v2665, %v2666
  %v2668 = vsel %vm2289, %v2245, -inf
  %v2669 = vsel %vm2289, %v2246, -inf
  %v2670 = vmax.f32 %v2668, %v2669
  %v2671 = vrot.slane %v2670, 4
  %v2672 = vmax.f32 %v2670, %v2671
  %v2673 = vrot.slane %v2672, 2
  %v2674 = vmax.f32 %v2672, %v2673
  %v2675 = vrot.slane %v2674, 1
  %v2676 = vmax.f32 %v2674, %v2675
  %v2677 = vsel %vm2289, %v2247, -inf
  %v2678 = vsel %vm2289, %v2248, -inf
  %v2679 = vmax.f32 %v2677, %v2678
  %v2680 = vrot.slane %v2679, 4
  %v2681 = vmax.f32 %v2679, %v2680
  %v2682 = vrot.slane %v2681, 2
  %v2683 = vmax.f32 %v2681, %v2682
  %v2684 = vrot.slane %v2683, 1
  %v2685 = vmax.f32 %v2683, %v2684
  %v2686 = vsel %vm2289, %v2249, -inf
  %v2687 = vsel %vm2289, %v2250, -inf
  %v2688 = vmax.f32 %v2686, %v2687
  %v2689 = vrot.slane %v2688, 4
  %v2690 = vmax.f32 %v2688, %v2689
  %v2691 = vrot.slane %v2690, 2
  %v2692 = vmax.f32 %v2690, %v2691
  %v2693 = vrot.slane %v2692, 1
  %v2694 = vmax.f32 %v2692, %v2693
  %v2695 = vsel %vm2289, %v2251, -inf
  %v2696 = vsel %vm2289, %v2252, -inf
  %v2697 = vmax.f32 %v2695, %v2696
  %v2698 = vrot.slane %v2697, 4
  %v2699 = vmax.f32 %v2697, %v2698
  %v2700 = vrot.slane %v2699, 2
  %v2701 = vmax.f32 %v2699, %v2700
  %v2702 = vrot.slane %v2701, 1
  %v2703 = vmax.f32 %v2701, %v2702
  %v2704 = vsel %vm2289, %v2253, -inf
  %v2705 = vsel %vm2289, %v2254, -inf
  %v2706 = vmax.f32 %v2704, %v2705
  %v2707 = vrot.slane %v2706, 4
  %v2708 = vmax.f32 %v2706, %v2707
  %v2709 = vrot.slane %v2708, 2
  %v2710 = vmax.f32 %v2708, %v2709
  %v2711 = vrot.slane %v2710, 1
  %v2712 = vmax.f32 %v2710, %v2711
  %v2713 = vsel %vm2289, %v2255, -inf
  %v2714 = vsel %vm2289, %v2256, -inf
  %v2715 = vmax.f32 %v2713, %v2714
  %v2716 = vrot.slane %v2715, 4
  %v2717 = vmax.f32 %v2715, %v2716
  %v2718 = vrot.slane %v2717, 2
  %v2719 = vmax.f32 %v2717, %v2718
  %v2720 = vrot.slane %v2719, 1
  %v2721 = vmax.f32 %v2719, %v2720
  %v2722 = vsel %vm2289, %v2257, -inf
  %v2723 = vsel %vm2289, %v2258, -inf
  %v2724 = vmax.f32 %v2722, %v2723
  %v2725 = vrot.slane %v2724, 4
  %v2726 = vmax.f32 %v2724, %v2725
  %v2727 = vrot.slane %v2726, 2
  %v2728 = vmax.f32 %v2726, %v2727
  %v2729 = vrot.slane %v2728, 1
  %v2730 = vmax.f32 %v2728, %v2729
  %v2731 = vsel %vm2289, %v2259, -inf
  %v2732 = vsel %vm2289, %v2260, -inf
  %v2733 = vmax.f32 %v2731, %v2732
  %v2734 = vrot.slane %v2733, 4
  %v2735 = vmax.f32 %v2733, %v2734
  %v2736 = vrot.slane %v2735, 2
  %v2737 = vmax.f32 %v2735, %v2736
  %v2738 = vrot.slane %v2737, 1
  %v2739 = vmax.f32 %v2737, %v2738
  %v2740 = vsel %vm2289, %v2261, -inf
  %v2741 = vsel %vm2289, %v2262, -inf
  %v2742 = vmax.f32 %v2740, %v2741
  %v2743 = vrot.slane %v2742, 4
  %v2744 = vmax.f32 %v2742, %v2743
  %v2745 = vrot.slane %v2744, 2
  %v2746 = vmax.f32 %v2744, %v2745
  %v2747 = vrot.slane %v2746, 1
  %v2748 = vmax.f32 %v2746, %v2747
  %v2749 = vsel %vm2289, %v2263, -inf
  %v2750 = vsel %vm2289, %v2264, -inf
  %v2751 = vmax.f32 %v2749, %v2750
  %v2752 = vrot.slane %v2751, 4
  %v2753 = vmax.f32 %v2751, %v2752
  %v2754 = vrot.slane %v2753, 2
  %v2755 = vmax.f32 %v2753, %v2754
  %v2756 = vrot.slane %v2755, 1
  %v2757 = vmax.f32 %v2755, %v2756
  %v2758 = vsel %vm2289, %v2265, -inf
  %v2759 = vsel %vm2289, %v2266, -inf
  %v2760 = vmax.f32 %v2758, %v2759
  %v2761 = vrot.slane %v2760, 4
  %v2762 = vmax.f32 %v2760, %v2761
  %v2763 = vrot.slane %v2762, 2
  %v2764 = vmax.f32 %v2762, %v2763
  %v2765 = vrot.slane %v2764, 1
  %v2766 = vmax.f32 %v2764, %v2765
  %v2767 = vsel %vm2289, %v2267, -inf
  %v2768 = vsel %vm2289, %v2268, -inf
  %v2769 = vmax.f32 %v2767, %v2768
  %v2770 = vrot.slane %v2769, 4
  %v2771 = vmax.f32 %v2769, %v2770
  %v2772 = vrot.slane %v2771, 2
  %v2773 = vmax.f32 %v2771, %v2772
  %v2774 = vrot.slane %v2773, 1
  %v2775 = vmax.f32 %v2773, %v2774
  %v2776 = vsel %vm2289, %v2269, -inf
  %v2777 = vsel %vm2289, %v2270, -inf
  %v2778 = vmax.f32 %v2776, %v2777
  %v2779 = vrot.slane %v2778, 4
  %v2780 = vmax.f32 %v2778, %v2779
  %v2781 = vrot.slane %v2780, 2
  %v2782 = vmax.f32 %v2780, %v2781
  %v2783 = vrot.slane %v2782, 1
  %v2784 = vmax.f32 %v2782, %v2783
  %v2785 = vsel %vm2289, %v2271, -inf
  %v2786 = vsel %vm2289, %v2272, -inf
  %v2787 = vmax.f32 %v2785, %v2786
  %v2788 = vrot.slane %v2787, 4
  %v2789 = vmax.f32 %v2787, %v2788
  %v2790 = vrot.slane %v2789, 2
  %v2791 = vmax.f32 %v2789, %v2790
  %v2792 = vrot.slane %v2791, 1
  %v2793 = vmax.f32 %v2791, %v2792
  %v2794 = vsel %vm2289, %v2273, -inf
  %v2795 = vsel %vm2289, %v2274, -inf
  %v2796 = vmax.f32 %v2794, %v2795
  %v2797 = vrot.slane %v2796, 4
  %v2798 = vmax.f32 %v2796, %v2797
  %v2799 = vrot.slane %v2798, 2
  %v2800 = vmax.f32 %v2798, %v2799
  %v2801 = vrot.slane %v2800, 1
  %v2802 = vmax.f32 %v2800, %v2801
  %v2803 = vsel %vm2289, %v2275, -inf
  %v2804 = vsel %vm2289, %v2276, -inf
  %v2805 = vmax.f32 %v2803, %v2804
  %v2806 = vrot.slane %v2805, 4
  %v2807 = vmax.f32 %v2805, %v2806
  %v2808 = vrot.slane %v2807, 2
  %v2809 = vmax.f32 %v2807, %v2808
  %v2810 = vrot.slane %v2809, 1
  %v2811 = vmax.f32 %v2809, %v2810
  %v2812 = vsel %vm2289, %v2277, -inf
  %v2813 = vsel %vm2289, %v2278, -inf
  %v2814 = vmax.f32 %v2812, %v2813
  %v2815 = vrot.slane %v2814, 4
  %v2816 = vmax.f32 %v2814, %v2815
  %v2817 = vrot.slane %v2816, 2
  %v2818 = vmax.f32 %v2816, %v2817
  %v2819 = vrot.slane %v2818, 1
  %v2820 = vmax.f32 %v2818, %v2819
  %v2821 = vsel %vm2289, %v2279, -inf
  %v2822 = vsel %vm2289, %v2280, -inf
  %v2823 = vmax.f32 %v2821, %v2822
  %v2824 = vrot.slane %v2823, 4
  %v2825 = vmax.f32 %v2823, %v2824
  %v2826 = vrot.slane %v2825, 2
  %v2827 = vmax.f32 %v2825, %v2826
  %v2828 = vrot.slane %v2827, 1
  %v2829 = vmax.f32 %v2827, %v2828
  %v2830 = vsel %vm2289, %v2281, -inf
  %v2831 = vsel %vm2289, %v2282, -inf
  %v2832 = vmax.f32 %v2830, %v2831
  %v2833 = vrot.slane %v2832, 4
  %v2834 = vmax.f32 %v2832, %v2833
  %v2835 = vrot.slane %v2834, 2
  %v2836 = vmax.f32 %v2834, %v2835
  %v2837 = vrot.slane %v2836, 1
  %v2838 = vmax.f32 %v2836, %v2837
  %v2839 = vsel %vm2289, %v2283, -inf
  %v2840 = vsel %vm2289, %v2284, -inf
  %v2841 = vmax.f32 %v2839, %v2840
  %v2842 = vrot.slane %v2841, 4
  %v2843 = vmax.f32 %v2841, %v2842
  %v2844 = vrot.slane %v2843, 2
  %v2845 = vmax.f32 %v2843, %v2844
  %v2846 = vrot.slane %v2845, 1
  %v2847 = vmax.f32 %v2845, %v2846
  %v2848 = vsel %vm2289, %v2285, -inf
  %v2849 = vsel %vm2289, %v2286, -inf
  %v2850 = vmax.f32 %v2848, %v2849
  %v2851 = vrot.slane %v2850, 4
  %v2852 = vmax.f32 %v2850, %v2851
  %v2853 = vrot.slane %v2852, 2
  %v2854 = vmax.f32 %v2852, %v2853
  %v2855 = vrot.slane %v2854, 1
  %v2856 = vmax.f32 %v2854, %v2855
  %v2857 = vsel %vm2289, %v2287, -inf
  %v2858 = vsel %vm2289, %v2288, -inf
  %v2859 = vmax.f32 %v2857, %v2858
  %v2860 = vrot.slane %v2859, 4
  %v2861 = vmax.f32 %v2859, %v2860
  %v2862 = vrot.slane %v2861, 2
  %v2863 = vmax.f32 %v2861, %v2862
  %v2864 = vrot.slane %v2863, 1
  %v2865 = vmax.f32 %v2863, %v2864
  %vm2930 = vcmask 1041409
  %v2931 = vsel %vm2930, %v2307, %v2298
  %vm2932 = vcmask 1042434
  %v2933 = vsel %vm2932, %v2316, %v2931
  %vm2934 = vcmask 1043459
  %v2935 = vsel %vm2934, %v2325, %v2933
  %vm2936 = vcmask 1044484
  %v2937 = vsel %vm2936, %v2334, %v2935
  %vm2938 = vcmask 1045509
  %v2939 = vsel %vm2938, %v2343, %v2937
  %vm2940 = vcmask 1046534
  %v2941 = vsel %vm2940, %v2352, %v2939
  %vm2942 = vcmask 1047559
  %v2943 = vsel %vm2942, %v2361, %v2941
  %v2944 = vsel %vm2930, %v2379, %v2370
  %v2945 = vsel %vm2932, %v2388, %v2944
  %v2946 = vsel %vm2934, %v2397, %v2945
  %v2947 = vsel %vm2936, %v2406, %v2946
  %v2948 = vsel %vm2938, %v2415, %v2947
  %v2949 = vsel %vm2940, %v2424, %v2948
  %v2950 = vsel %vm2942, %v2433, %v2949
  %v2951 = vsel %vm2930, %v2451, %v2442
  %v2952 = vsel %vm2932, %v2460, %v2951
  %v2953 = vsel %vm2934, %v2469, %v2952
  %v2954 = vsel %vm2936, %v2478, %v2953
  %v2955 = vsel %vm2938, %v2487, %v2954
  %v2956 = vsel %vm2940, %v2496, %v2955
  %v2957 = vsel %vm2942, %v2505, %v2956
  %v2958 = vsel %vm2930, %v2523, %v2514
  %v2959 = vsel %vm2932, %v2532, %v2958
  %v2960 = vsel %vm2934, %v2541, %v2959
  %v2961 = vsel %vm2936, %v2550, %v2960
  %v2962 = vsel %vm2938, %v2559, %v2961
  %v2963 = vsel %vm2940, %v2568, %v2962
  %v2964 = vsel %vm2942, %v2577, %v2963
  %v2965 = vsel %vm2930, %v2595, %v2586
  %v2966 = vsel %vm2932, %v2604, %v2965
  %v2967 = vsel %vm2934, %v2613, %v2966
  %v2968 = vsel %vm2936, %v2622, %v2967
  %v2969 = vsel %vm2938, %v2631, %v2968
  %v2970 = vsel %vm2940, %v2640, %v2969
  %v2971 = vsel %vm2942, %v2649, %v2970
  %v2972 = vsel %vm2930, %v2667, %v2658
  %v2973 = vsel %vm2932, %v2676, %v2972
  %v2974 = vsel %vm2934, %v2685, %v2973
  %v2975 = vsel %vm2936, %v2694, %v2974
  %v2976 = vsel %vm2938, %v2703, %v2975
  %v2977 = vsel %vm2940, %v2712, %v2976
  %v2978 = vsel %vm2942, %v2721, %v2977
  %v2979 = vsel %vm2930, %v2739, %v2730
  %v2980 = vsel %vm2932, %v2748, %v2979
  %v2981 = vsel %vm2934, %v2757, %v2980
  %v2982 = vsel %vm2936, %v2766, %v2981
  %v2983 = vsel %vm2938, %v2775, %v2982
  %v2984 = vsel %vm2940, %v2784, %v2983
  %v2985 = vsel %vm2942, %v2793, %v2984
  %v2986 = vsel %vm2930, %v2811, %v2802
  %v2987 = vsel %vm2932, %v2820, %v2986
  %v2988 = vsel %vm2934, %v2829, %v2987
  %v2989 = vsel %vm2936, %v2838, %v2988
  %v2990 = vsel %vm2938, %v2847, %v2989
  %v2991 = vsel %vm2940, %v2856, %v2990
  %v2992 = vsel %vm2942, %v2865, %v2991
  %3001 = vst.msk [vmem:[%s5] sm:$0xff] %vm2289, %v2943
  %3002 = vst.msk [vmem:[%s5 + $0x8] sm:$0xff] %vm2289, %v2950
  %3003 = vst.msk [vmem:[%s5 + $0x10] sm:$0xff] %vm2289, %v2957
  %3004 = vst.msk [vmem:[%s5 + $0x18] sm:$0xff] %vm2289, %v2964
  %3005 = vst.msk [vmem:[%s5 + $0x20] sm:$0xff] %vm2289, %v2971
  %3006 = vst.msk [vmem:[%s5 + $0x28] sm:$0xff] %vm2289, %v2978
  %3007 = vst.msk [vmem:[%s5 + $0x30] sm:$0xff] %vm2289, %v2985
  %3008 = vst.msk [vmem:[%s5 + $0x38] sm:$0xff] %vm2289, %v2992
  // Predicated region
  $region22: #{pointnet2_layer_forward.17} parent=0 // pred_check
    _
  $region23: #{pointnet2_layer_forward.17} parent=0 // pred_check_branch
    %3010 = sbr.rel (0) target = $region25
  $region24: #{pointnet2_layer_forward.17} parent=0 // pred_region
    _
  $region25: #{pointnet2_layer_forward.17} parent=0 // pred_fallthru
    _
  // Predicated region
  $region26: #{pointnet2_layer_forward.17} parent=0 // pred_check
    _
  $region27: #{pointnet2_layer_forward.17} parent=0 // pred_check_branch
    %3012 = sbr.rel (0) target = $region29
  $region28: #{pointnet2_layer_forward.17} parent=0 // pred_region
    _
  $region29: #{pointnet2_layer_forward.17} parent=0 // pred_fallthru
    _

// kernel: pointnet2_layer_forward.20
$region0: #{pointnet2_layer_forward.20}
  #allocation0 [shape = 'u32[]', space=smem, size = 0x4, offset = 0x4, fixed_abs, tag = 'smem constant byte address 0x4 - core index']
  #allocation1 [shape = 'u32[144,128]{1,0:T(1,128)}', space=vmem, size = 0x12000, scoped, tag = 'internal scratch']
  %s0 = inlined_call_operand.vmem [shape: bf16[512,35], index: 0, kind: input, shape index: {}]
  %s1 = inlined_call_operand.vmem [shape: bf16[35,16], index: 1, kind: input, shape index: {}]
  %s2 = inlined_call_operand.vmem [shape: f32[1,16], index: 2, kind: input, shape index: {}]
  %s3 = inlined_call_operand.vmem [shape: bf16[16,32], index: 3, kind: input, shape index: {}]
  %s4 = inlined_call_operand.vmem [shape: f32[1,32], index: 4, kind: input, shape index: {}]
  %s5 = inlined_call_operand.vmem [shape: f32[32,32], index: 5, kind: output, shape index: {}]
  %s6 = sld [smem:[#allocation0]]
  $region30: #{pointnet2_layer_forward.20} parent=0
    _
  %s8 = ssub.s32 1, %s6
  %s9 = scalar_select 0, %s8, %s6
  // Predicated region
  $region2: #{pointnet2_layer_forward.20} parent=0 // pred_check
    _
  $region3: #{pointnet2_layer_forward.20} parent=0 // pred_check_branch
    %11 = sbr.rel (0) target = $region5
  $region4: #{pointnet2_layer_forward.20} parent=0 // pred_region
    _
  $region5: #{pointnet2_layer_forward.20} parent=0 // pred_fallthru
    _
  // Predicated region
  $region6: #{pointnet2_layer_forward.20} parent=0 // pred_check
    _
  $region7: #{pointnet2_layer_forward.20} parent=0 // pred_check_branch
    %13 = sbr.rel (0) target = $region9
  $region8: #{pointnet2_layer_forward.20} parent=0 // pred_region
    _
  $region9: #{pointnet2_layer_forward.20} parent=0 // pred_fallthru
    _
  // Predicated region
  $region10: #{pointnet2_layer_forward.20} parent=0 // pred_check
    _
  $region11: #{pointnet2_layer_forward.20} parent=0 // pred_check_branch
    %15 = sbr.rel (0) target = $region13
  $region12: #{pointnet2_layer_forward.20} parent=0 // pred_region
    _
  $region13: #{pointnet2_layer_forward.20} parent=0 // pred_fallthru
    _
  // Predicated region
  $region14: #{pointnet2_layer_forward.20} parent=0 // pred_check
    _
  $region15: #{pointnet2_layer_forward.20} parent=0 // pred_check_branch
    %17 = sbr.rel (0) target = $region17
  $region16: #{pointnet2_layer_forward.20} parent=0 // pred_region
    _
  $region17: #{pointnet2_layer_forward.20} parent=0 // pred_fallthru
    _
  // Predicated region
  $region18: #{pointnet2_layer_forward.20} parent=0 // pred_check
    _
  $region19: #{pointnet2_layer_forward.20} parent=0 // pred_check_branch
    %19 = sbr.rel (0) target = $region21
  $region20: #{pointnet2_layer_forward.20} parent=0 // pred_region
    _
  $region21: #{pointnet2_layer_forward.20} parent=0 // pred_fallthru
    _
  %v21 = vld [vmem:[%s0] sm:$0xf]
  %v22 = vld [vmem:[%s0 + $0x4] sm:$0xf]
  %v23 = vld [vmem:[%s0 + $0x8] sm:$0xf]
  %v24 = vld [vmem:[%s0 + $0xc] sm:$0xf]
  %v25 = vld [vmem:[%s0 + $0x10] sm:$0xf]
  %v26 = vld [vmem:[%s0 + $0x14] sm:$0xf]
  %v27 = vld [vmem:[%s0 + $0x18] sm:$0xf]
  %v28 = vld [vmem:[%s0 + $0x1c] sm:$0xf]
  %v29 = vld [vmem:[%s0 + $0x20] sm:$0xf]
  %v30 = vld [vmem:[%s0 + $0x24] sm:$0xf]
  %v31 = vld [vmem:[%s0 + $0x28] sm:$0xf]
  %v32 = vld [vmem:[%s0 + $0x2c] sm:$0xf]
  %v33 = vld [vmem:[%s0 + $0x30] sm:$0xf]
  %v34 = vld [vmem:[%s0 + $0x34] sm:$0xf]
  %v35 = vld [vmem:[%s0 + $0x38] sm:$0xf]
  %v36 = vld [vmem:[%s0 + $0x3c] sm:$0xf]
  %v37 = vld [vmem:[%s0 + $0x40] sm:$0xf]
  %v38 = vld [vmem:[%s0 + $0x44] sm:$0xf]
  %v39 = vld [vmem:[%s0 + $0x48] sm:$0xf]
  %v40 = vld [vmem:[%s0 + $0x4c] sm:$0xf]
  %v41 = vld [vmem:[%s0 + $0x50] sm:$0xf]
  %v42 = vld [vmem:[%s0 + $0x54] sm:$0xf]
  %v43 = vld [vmem:[%s0 + $0x58] sm:$0xf]
  %v44 = vld [vmem:[%s0 + $0x5c] sm:$0xf]
  %v45 = vld [vmem:[%s0 + $0x60] sm:$0xf]
  %v46 = vld [vmem:[%s0 + $0x64] sm:$0xf]
  %v47 = vld [vmem:[%s0 + $0x68] sm:$0xf]
  %v48 = vld [vmem:[%s0 + $0x6c] sm:$0xf]
  %v49 = vld [vmem:[%s0 + $0x70] sm:$0xf]
  %v50 = vld [vmem:[%s0 + $0x74] sm:$0xf]
  %v51 = vld [vmem:[%s0 + $0x78] sm:$0xf]
  %v52 = vld [vmem:[%s0 + $0x7c] sm:$0xf]
  %v53 = vld [vmem:[%s0 + $0x80] sm:$0xf]
  %v54 = vld [vmem:[%s0 + $0x84] sm:$0xf]
  %v55 = vld [vmem:[%s0 + $0x88] sm:$0xf]
  %v56 = vld [vmem:[%s0 + $0x8c] sm:$0xf]
  %v57 = vld [vmem:[%s0 + $0x90] sm:$0xf]
  %v58 = vld [vmem:[%s0 + $0x94] sm:$0xf]
  %v59 = vld [vmem:[%s0 + $0x98] sm:$0xf]
  %v60 = vld [vmem:[%s0 + $0x9c] sm:$0xf]
  %v61 = vld [vmem:[%s0 + $0xa0] sm:$0xf]
  %v62 = vld [vmem:[%s0 + $0xa4] sm:$0xf]
  %v63 = vld [vmem:[%s0 + $0xa8] sm:$0xf]
  %v64 = vld [vmem:[%s0 + $0xac] sm:$0xf]
  %v65 = vld [vmem:[%s0 + $0xb0] sm:$0xf]
  %v66 = vld [vmem:[%s0 + $0xb4] sm:$0xf]
  %v67 = vld [vmem:[%s0 + $0xb8] sm:$0xf]
  %v68 = vld [vmem:[%s0 + $0xbc] sm:$0xf]
  %v69 = vld [vmem:[%s0 + $0xc0] sm:$0xf]
  %v70 = vld [vmem:[%s0 + $0xc4] sm:$0xf]
  %v71 = vld [vmem:[%s0 + $0xc8] sm:$0xf]
  %v72 = vld [vmem:[%s0 + $0xcc] sm:$0xf]
  %v73 = vld [vmem:[%s0 + $0xd0] sm:$0xf]
  %v74 = vld [vmem:[%s0 + $0xd4] sm:$0xf]
  %v75 = vld [vmem:[%s0 + $0xd8] sm:$0xf]
  %v76 = vld [vmem:[%s0 + $0xdc] sm:$0xf]
  %v77 = vld [vmem:[%s0 + $0xe0] sm:$0xf]
  %v78 = vld [vmem:[%s0 + $0xe4] sm:$0xf]
  %v79 = vld [vmem:[%s0 + $0xe8] sm:$0xf]
  %v80 = vld [vmem:[%s0 + $0xec] sm:$0xf]
  %v81 = vld [vmem:[%s0 + $0xf0] sm:$0xf]
  %v82 = vld [vmem:[%s0 + $0xf4] sm:$0xf]
  %v83 = vld [vmem:[%s0 + $0xf8] sm:$0xf]
  %v84 = vld [vmem:[%s0 + $0xfc] sm:$0xf]
  %v85 = vld [vmem:[%s1] sm:$0xf]
  %v86 = vld [vmem:[%s1 + $0x4] sm:$0xf]
  %v87 = vld [vmem:[%s1 + $0x8] sm:$0xf]
  %v88 = vld [vmem:[%s1 + $0xc] sm:$0xf]
  %v89 = vld [vmem:[%s1 + $0x10] sm:$0x3]
  %v90 = vld [vmem:[%s2] sm:$0x1]
  %v92 = vlaneseq
  %v93 = vshrl.u32 %v92, 7
  %v94 = vsub.s32 0, %v93
  %v95 = vrot.slane %v90, %v94
  %v161 = vunpack.c.l.b16 %v21
  %v162 = vunpack.c.l.b16 %v22
  %v163 = vunpack.c.l.b16 %v23
  %v164 = vunpack.c.l.b16 %v24
  %v165 = vunpack.c.l.b16 %v25
  %v166 = vunpack.c.l.b16 %v26
  %v167 = vunpack.c.l.b16 %v27
  %v168 = vunpack.c.l.b16 %v28
  %v169 = vunpack.c.l.b16 %v29
  %v170 = vunpack.c.l.b16 %v30
  %v171 = vunpack.c.l.b16 %v31
  %v172 = vunpack.c.l.b16 %v32
  %v173 = vunpack.c.l.b16 %v33
  %v174 = vunpack.c.l.b16 %v34
  %v175 = vunpack.c.l.b16 %v35
  %v176 = vunpack.c.l.b16 %v36
  %v177 = vunpack.c.l.b16 %v37
  %v178 = vunpack.c.l.b16 %v38
  %v179 = vunpack.c.l.b16 %v39
  %v180 = vunpack.c.l.b16 %v40
  %v181 = vunpack.c.l.b16 %v41
  %v182 = vunpack.c.l.b16 %v42
  %v183 = vunpack.c.l.b16 %v43
  %v184 = vunpack.c.l.b16 %v44
  %v185 = vunpack.c.l.b16 %v45
  %v186 = vunpack.c.l.b16 %v46
  %v187 = vunpack.c.l.b16 %v47
  %v188 = vunpack.c.l.b16 %v48
  %v189 = vunpack.c.l.b16 %v49
  %v190 = vunpack.c.l.b16 %v50
  %v191 = vunpack.c.l.b16 %v51
  %v192 = vunpack.c.l.b16 %v52
  %v193 = vunpack.c.l.b16 %v53
  %v194 = vunpack.c.l.b16 %v54
  %v195 = vunpack.c.l.b16 %v55
  %v196 = vunpack.c.l.b16 %v56
  %v197 = vunpack.c.l.b16 %v57
  %v198 = vunpack.c.l.b16 %v58
  %v199 = vunpack.c.l.b16 %v59
  %v200 = vunpack.c.l.b16 %v60
  %v201 = vunpack.c.l.b16 %v61
  %v202 = vunpack.c.l.b16 %v62
  %v203 = vunpack.c.l.b16 %v63
  %v204 = vunpack.c.l.b16 %v64
  %v205 = vunpack.c.l.b16 %v65
  %v206 = vunpack.c.l.b16 %v66
  %v207 = vunpack.c.l.b16 %v67
  %v208 = vunpack.c.l.b16 %v68
  %v209 = vunpack.c.l.b16 %v69
  %v210 = vunpack.c.l.b16 %v70
  %v211 = vunpack.c.l.b16 %v71
  %v212 = vunpack.c.l.b16 %v72
  %v213 = vunpack.c.l.b16 %v73
  %v214 = vunpack.c.l.b16 %v74
  %v215 = vunpack.c.l.b16 %v75
  %v216 = vunpack.c.l.b16 %v76
  %v217 = vunpack.c.l.b16 %v77
  %v218 = vunpack.c.l.b16 %v78
  %v219 = vunpack.c.l.b16 %v79
  %v220 = vunpack.c.l.b16 %v80
  %v221 = vunpack.c.l.b16 %v81
  %v222 = vunpack.c.l.b16 %v82
  %v223 = vunpack.c.l.b16 %v83
  %v224 = vunpack.c.l.b16 %v84
  %v225 = vpack.c.b16 %v162, %v161
  %v226 = vpack.c.b16 %v164, %v163
  %v227 = vpack.c.b16 %v166, %v165
  %v228 = vpack.c.b16 %v168, %v167
  %v229 = vpack.c.b16 %v170, %v169
  %v230 = vpack.c.b16 %v172, %v171
  %v231 = vpack.c.b16 %v174, %v173
  %v232 = vpack.c.b16 %v176, %v175
  %v233 = vpack.c.b16 %v178, %v177
  %v234 = vpack.c.b16 %v180, %v179
  %v235 = vpack.c.b16 %v182, %v181
  %v236 = vpack.c.b16 %v184, %v183
  %v237 = vpack.c.b16 %v186, %v185
  %v238 = vpack.c.b16 %v188, %v187
  %v239 = vpack.c.b16 %v190, %v189
  %v240 = vpack.c.b16 %v192, %v191
  %v241 = vpack.c.b16 %v194, %v193
  %v242 = vpack.c.b16 %v196, %v195
  %v243 = vpack.c.b16 %v198, %v197
  %v244 = vpack.c.b16 %v200, %v199
  %v245 = vpack.c.b16 %v202, %v201
  %v246 = vpack.c.b16 %v204, %v203
  %v247 = vpack.c.b16 %v206, %v205
  %v248 = vpack.c.b16 %v208, %v207
  %v249 = vpack.c.b16 %v210, %v209
  %v250 = vpack.c.b16 %v212, %v211
  %v251 = vpack.c.b16 %v214, %v213
  %v252 = vpack.c.b16 %v216, %v215
  %v253 = vpack.c.b16 %v218, %v217
  %v254 = vpack.c.b16 %v220, %v219
  %v255 = vpack.c.b16 %v222, %v221
  %v256 = vpack.c.b16 %v224, %v223
  %v262 = vunpack.c.l.b16 %v85
  %v263 = vunpack.c.l.b16 %v86
  %v264 = vunpack.c.l.b16 %v87
  %v265 = vunpack.c.l.b16 %v88
  %v266 = vunpack.c.l.b16 %v89
  %v267 = vpack.c.b16 %v263, %v262
  %v268 = vpack.c.b16 %v265, %v264
  %v269 = vpack.c.b16 %v266, %v266
  %vm272 = vcmask 285696
  %v274 = vsel %vm272, %v225, 0
  %v277 = vsel %vm272, %v226, 0
  %v280 = vsel %vm272, %v227, 0
  %v283 = vsel %vm272, %v228, 0
  %v286 = vsel %vm272, %v229, 0
  %v289 = vsel %vm272, %v230, 0
  %v292 = vsel %vm272, %v231, 0
  %v295 = vsel %vm272, %v232, 0
  %v298 = vsel %vm272, %v233, 0
  %v301 = vsel %vm272, %v234, 0
  %v304 = vsel %vm272, %v235, 0
  %v307 = vsel %vm272, %v236, 0
  %v310 = vsel %vm272, %v237, 0
  %v313 = vsel %vm272, %v238, 0
  %v316 = vsel %vm272, %v239, 0
  %v319 = vsel %vm272, %v240, 0
  %v322 = vsel %vm272, %v241, 0
  %v325 = vsel %vm272, %v242, 0
  %v328 = vsel %vm272, %v243, 0
  %v331 = vsel %vm272, %v244, 0
  %v334 = vsel %vm272, %v245, 0
  %v337 = vsel %vm272, %v246, 0
  %v340 = vsel %vm272, %v247, 0
  %v343 = vsel %vm272, %v248, 0
  %v346 = vsel %vm272, %v249, 0
  %v349 = vsel %vm272, %v250, 0
  %v352 = vsel %vm272, %v251, 0
  %v355 = vsel %vm272, %v252, 0
  %v358 = vsel %vm272, %v253, 0
  %v361 = vsel %vm272, %v254, 0
  %v364 = vsel %vm272, %v255, 0
  %v367 = vsel %vm272, %v256, 0
  %vm369 = vcmask 1040384
  %vm370 = vcmask 1041408
  %v371 = vsel %vm369, 4294967295, 65535
  %v372 = vsel %vm370, %v371, 0
  %v374 = vand.u32 %v269, %v372
  %376 = vmatprep.subr.bf16.mxu0 0
  %377 = vmatpush1.bf16.msra.mxu0 %v267
  %378 = vmatprep.subr.bf16.mxu0 0
  %379 = vmatpush1.bf16.msra.mxu0 %v268
  %380 = vmatprep.subr.bf16.mxu0 0
  %381 = vmatpush1.bf16.msra.mxu0 %v374
  %382 = vmatprep.subr.bf16.mxu0 0
  %383 = vmatpush1.bf16.msra.mxu0 0
  %384 = vmatprep.subr.bf16.mxu0 0
  %385 = vmatpush1.bf16.msra.mxu0 0
  %386 = vmatprep.subr.bf16.mxu0 0
  %387 = vmatpush1.bf16.msra.mxu0 0
  %388 = vmatprep.subr.bf16.mxu0 0
  %389 = vmatpush1.bf16.msra.mxu0 0
  %390 = vmatprep.subr.bf16.mxu0 0
  %391 = vmatpush1.bf16.msra.mxu0 0
  %392 = vmatprep.subr.bf16.mxu0 0
  %393 = vmatpush1.bf16.msra.mxu0 0
  %394 = vmatprep.subr.bf16.mxu0 0
  %395 = vmatpush1.bf16.msra.mxu0 0
  %396 = vmatprep.subr.bf16.mxu0 0
  %397 = vmatpush1.bf16.msra.mxu0 0
  %398 = vmatprep.subr.bf16.mxu0 0
  %399 = vmatpush1.bf16.msra.mxu0 0
  %400 = vmatprep.subr.bf16.mxu0 0
  %401 = vmatpush1.bf16.msra.mxu0 0
  %402 = vmatprep.subr.bf16.mxu0 0
  %403 = vmatpush1.bf16.msra.mxu0 0
  %404 = vmatprep.subr.bf16.mxu0 0
  %405 = vmatpush1.bf16.msra.mxu0 0
  %406 = vmatprep.subr.bf16.mxu0 0
  %407 = vmatpush1.bf16.msra.mxu0 0
  %408 = vmatprep.mubr.bf16.mxu0 0
  %409 = vmatmul.mubr.bf16.gmra.mrb[0].mxu0 %v274
  %v410 = vpop.f32.mrb[0].mxu0
  %v411 = vadd.f32 %v95, %v410
  %v412 = vpop.f32.mrb[0].mxu0
  %v413 = vpop.f32.mrb[0].mxu0
  %v414 = vadd.f32 %v95, %v413
  %v415 = vpop.f32.mrb[0].mxu0
  %416 = vmatprep.mubr.bf16.mxu0 0
  %417 = vmatmul.mubr.bf16.gmra.mrb[0].mxu0 %v277
  %v418 = vpop.f32.mrb[0].mxu0
  %v419 = vadd.f32 %v95, %v418
  %v420 = vpop.f32.mrb[0].mxu0
  %v421 = vpop.f32.mrb[0].mxu0
  %v422 = vadd.f32 %v95, %v421
  %v423 = vpop.f32.mrb[0].mxu0
  %424 = vmatprep.mubr.bf16.mxu0 0
  %425 = vmatmul.mubr.bf16.gmra.mrb[0].mxu0 %v280
  %v426 = vpop.f32.mrb[0].mxu0
  %v427 = vadd.f32 %v95, %v426
  %v428 = vpop.f32.mrb[0].mxu0
  %v429 = vpop.f32.mrb[0].mxu0
  %v430 = vadd.f32 %v95, %v429
  %v431 = vpop.f32.mrb[0].mxu0
  %432 = vmatprep.mubr.bf16.mxu0 0
  %433 = vmatmul.mubr.bf16.gmra.mrb[0].mxu0 %v283
  %v434 = vpop.f32.mrb[0].mxu0
  %v435 = vadd.f32 %v95, %v434
  %v436 = vpop.f32.mrb[0].mxu0
  %v437 = vpop.f32.mrb[0].mxu0
  %v438 = vadd.f32 %v95, %v437
  %v439 = vpop.f32.mrb[0].mxu0
  %440 = vmatprep.mubr.bf16.mxu0 0
  %441 = vmatmul.mubr.bf16.gmra.mrb[0].mxu0 %v286
  %v442 = vpop.f32.mrb[0].mxu0
  %v443 = vadd.f32 %v95, %v442
  %v444 = vpop.f32.mrb[0].mxu0
  %v445 = vpop.f32.mrb[0].mxu0
  %v446 = vadd.f32 %v95, %v445
  %v447 = vpop.f32.mrb[0].mxu0
  %448 = vmatprep.mubr.bf16.mxu0 0
  %449 = vmatmul.mubr.bf16.gmra.mrb[0].mxu0 %v289
  %v450 = vpop.f32.mrb[0].mxu0
  %v451 = vadd.f32 %v95, %v450
  %v452 = vpop.f32.mrb[0].mxu0
  %v453 = vpop.f32.mrb[0].mxu0
  %v454 = vadd.f32 %v95, %v453
  %v455 = vpop.f32.mrb[0].mxu0
  %456 = vmatprep.mubr.bf16.mxu0 0
  %457 = vmatmul.mubr.bf16.gmra.mrb[0].mxu0 %v292
  %v458 = vpop.f32.mrb[0].mxu0
  %v459 = vadd.f32 %v95, %v458
  %v460 = vpop.f32.mrb[0].mxu0
  %v461 = vpop.f32.mrb[0].mxu0
  %v462 = vadd.f32 %v95, %v461
  %v463 = vpop.f32.mrb[0].mxu0
  %464 = vmatprep.mubr.bf16.mxu0 0
  %465 = vmatmul.mubr.bf16.gmra.mrb[0].mxu0 %v295
  %v466 = vpop.f32.mrb[0].mxu0
  %v467 = vadd.f32 %v95, %v466
  %v468 = vpop.f32.mrb[0].mxu0
  %v469 = vpop.f32.mrb[0].mxu0
  %v470 = vadd.f32 %v95, %v469
  %v471 = vpop.f32.mrb[0].mxu0
  %472 = vmatprep.mubr.bf16.mxu0 0
  %473 = vmatmul.mubr.bf16.gmra.mrb[0].mxu0 %v298
  %v474 = vpop.f32.mrb[0].mxu0
  %v475 = vadd.f32 %v95, %v474
  %v476 = vpop.f32.mrb[0].mxu0
  %v477 = vpop.f32.mrb[0].mxu0
  %v478 = vadd.f32 %v95, %v477
  %v479 = vpop.f32.mrb[0].mxu0
  %480 = vmatprep.mubr.bf16.mxu0 0
  %481 = vmatmul.mubr.bf16.gmra.mrb[0].mxu0 %v301
  %v482 = vpop.f32.mrb[0].mxu0
  %v483 = vadd.f32 %v95, %v482
  %v484 = vpop.f32.mrb[0].mxu0
  %v485 = vpop.f32.mrb[0].mxu0
  %v486 = vadd.f32 %v95, %v485
  %v487 = vpop.f32.mrb[0].mxu0
  %488 = vmatprep.mubr.bf16.mxu0 0
  %489 = vmatmul.mubr.bf16.gmra.mrb[0].mxu0 %v304
  %v490 = vpop.f32.mrb[0].mxu0
  %v491 = vadd.f32 %v95, %v490
  %v492 = vpop.f32.mrb[0].mxu0
  %v493 = vpop.f32.mrb[0].mxu0
  %v494 = vadd.f32 %v95, %v493
  %v495 = vpop.f32.mrb[0].mxu0
  %496 = vmatprep.mubr.bf16.mxu0 0
  %497 = vmatmul.mubr.bf16.gmra.mrb[0].mxu0 %v307
  %v498 = vpop.f32.mrb[0].mxu0
  %v499 = vadd.f32 %v95, %v498
  %v500 = vpop.f32.mrb[0].mxu0
  %v501 = vpop.f32.mrb[0].mxu0
  %v502 = vadd.f32 %v95, %v501
  %v503 = vpop.f32.mrb[0].mxu0
  %504 = vmatprep.mubr.bf16.mxu0 0
  %505 = vmatmul.mubr.bf16.gmra.mrb[0].mxu0 %v310
  %v506 = vpop.f32.mrb[0].mxu0
  %v507 = vadd.f32 %v95, %v506
  %v508 = vpop.f32.mrb[0].mxu0
  %v509 = vpop.f32.mrb[0].mxu0
  %v510 = vadd.f32 %v95, %v509
  %v511 = vpop.f32.mrb[0].mxu0
  %512 = vmatprep.mubr.bf16.mxu0 0
  %513 = vmatmul.mubr.bf16.gmra.mrb[0].mxu0 %v313
  %v514 = vpop.f32.mrb[0].mxu0
  %v515 = vadd.f32 %v95, %v514
  %v516 = vpop.f32.mrb[0].mxu0
  %v517 = vpop.f32.mrb[0].mxu0
  %v518 = vadd.f32 %v95, %v517
  %v519 = vpop.f32.mrb[0].mxu0
  %520 = vmatprep.mubr.bf16.mxu0 0
  %521 = vmatmul.mubr.bf16.gmra.mrb[0].mxu0 %v316
  %v522 = vpop.f32.mrb[0].mxu0
  %v523 = vadd.f32 %v95, %v522
  %v524 = vpop.f32.mrb[0].mxu0
  %v525 = vpop.f32.mrb[0].mxu0
  %v526 = vadd.f32 %v95, %v525
  %v527 = vpop.f32.mrb[0].mxu0
  %528 = vmatprep.mubr.bf16.mxu0 0
  %529 = vmatmul.mubr.bf16.gmra.mrb[0].mxu0 %v319
  %v530 = vpop.f32.mrb[0].mxu0
  %v531 = vadd.f32 %v95, %v530
  %v532 = vpop.f32.mrb[0].mxu0
  %v533 = vpop.f32.mrb[0].mxu0
  %v534 = vadd.f32 %v95, %v533
  %v535 = vpop.f32.mrb[0].mxu0
  %536 = vmatprep.mubr.bf16.mxu0 0
  %537 = vmatmul.mubr.bf16.gmra.mrb[0].mxu0 %v322
  %v538 = vpop.f32.mrb[0].mxu0
  %v539 = vadd.f32 %v95, %v538
  %v540 = vpop.f32.mrb[0].mxu0
  %v541 = vpop.f32.mrb[0].mxu0
  %v542 = vadd.f32 %v95, %v541
  %v543 = vpop.f32.mrb[0].mxu0
  %544 = vmatprep.mubr.bf16.mxu0 0
  %545 = vmatmul.mubr.bf16.gmra.mrb[0].mxu0 %v325
  %v546 = vpop.f32.mrb[0].mxu0
  %v547 = vadd.f32 %v95, %v546
  %v548 = vpop.f32.mrb[0].mxu0
  %v549 = vpop.f32.mrb[0].mxu0
  %v550 = vadd.f32 %v95, %v549
  %v551 = vpop.f32.mrb[0].mxu0
  %552 = vmatprep.mubr.bf16.mxu0 0
  %553 = vmatmul.mubr.bf16.gmra.mrb[0].mxu0 %v328
  %v554 = vpop.f32.mrb[0].mxu0
  %v555 = vadd.f32 %v95, %v554
  %v556 = vpop.f32.mrb[0].mxu0
  %v557 = vpop.f32.mrb[0].mxu0
  %v558 = vadd.f32 %v95, %v557
  %v559 = vpop.f32.mrb[0].mxu0
  %560 = vmatprep.mubr.bf16.mxu0 0
  %561 = vmatmul.mubr.bf16.gmra.mrb[0].mxu0 %v331
  %v562 = vpop.f32.mrb[0].mxu0
  %v563 = vadd.f32 %v95, %v562
  %v564 = vpop.f32.mrb[0].mxu0
  %v565 = vpop.f32.mrb[0].mxu0
  %v566 = vadd.f32 %v95, %v565
  %v567 = vpop.f32.mrb[0].mxu0
  %568 = vmatprep.mubr.bf16.mxu0 0
  %569 = vmatmul.mubr.bf16.gmra.mrb[0].mxu0 %v334
  %v570 = vpop.f32.mrb[0].mxu0
  %v571 = vadd.f32 %v95, %v570
  %v572 = vpop.f32.mrb[0].mxu0
  %v573 = vpop.f32.mrb[0].mxu0
  %v574 = vadd.f32 %v95, %v573
  %v575 = vpop.f32.mrb[0].mxu0
  %576 = vmatprep.mubr.bf16.mxu0 0
  %577 = vmatmul.mubr.bf16.gmra.mrb[0].mxu0 %v337
  %v578 = vpop.f32.mrb[0].mxu0
  %v579 = vadd.f32 %v95, %v578
  %v580 = vpop.f32.mrb[0].mxu0
  %v581 = vpop.f32.mrb[0].mxu0
  %v582 = vadd.f32 %v95, %v581
  %v583 = vpop.f32.mrb[0].mxu0
  %584 = vmatprep.mubr.bf16.mxu0 0
  %585 = vmatmul.mubr.bf16.gmra.mrb[0].mxu0 %v340
  %v586 = vpop.f32.mrb[0].mxu0
  %v587 = vadd.f32 %v95, %v586
  %v588 = vpop.f32.mrb[0].mxu0
  %v589 = vpop.f32.mrb[0].mxu0
  %v590 = vadd.f32 %v95, %v589
  %v591 = vpop.f32.mrb[0].mxu0
  %592 = vmatprep.mubr.bf16.mxu0 0
  %593 = vmatmul.mubr.bf16.gmra.mrb[0].mxu0 %v343
  %v594 = vpop.f32.mrb[0].mxu0
  %v595 = vadd.f32 %v95, %v594
  %v596 = vpop.f32.mrb[0].mxu0
  %v597 = vpop.f32.mrb[0].mxu0
  %v598 = vadd.f32 %v95, %v597
  %v599 = vpop.f32.mrb[0].mxu0
  %600 = vmatprep.mubr.bf16.mxu0 0
  %601 = vmatmul.mubr.bf16.gmra.mrb[0].mxu0 %v346
  %v602 = vpop.f32.mrb[0].mxu0
  %v603 = vadd.f32 %v95, %v602
  %v604 = vpop.f32.mrb[0].mxu0
  %v605 = vpop.f32.mrb[0].mxu0
  %v606 = vadd.f32 %v95, %v605
  %v607 = vpop.f32.mrb[0].mxu0
  %608 = vmatprep.mubr.bf16.mxu0 0
  %609 = vmatmul.mubr.bf16.gmra.mrb[0].mxu0 %v349
  %v610 = vpop.f32.mrb[0].mxu0
  %v611 = vadd.f32 %v95, %v610
  %v612 = vpop.f32.mrb[0].mxu0
  %v613 = vpop.f32.mrb[0].mxu0
  %v614 = vadd.f32 %v95, %v613
  %v615 = vpop.f32.mrb[0].mxu0
  %616 = vmatprep.mubr.bf16.mxu0 0
  %617 = vmatmul.mubr.bf16.gmra.mrb[0].mxu0 %v352
  %v618 = vpop.f32.mrb[0].mxu0
  %v619 = vadd.f32 %v95, %v618
  %v620 = vpop.f32.mrb[0].mxu0
  %v621 = vpop.f32.mrb[0].mxu0
  %v622 = vadd.f32 %v95, %v621
  %v623 = vpop.f32.mrb[0].mxu0
  %624 = vmatprep.mubr.bf16.mxu0 0
  %625 = vmatmul.mubr.bf16.gmra.mrb[0].mxu0 %v355
  %v626 = vpop.f32.mrb[0].mxu0
  %v627 = vadd.f32 %v95, %v626
  %v628 = vpop.f32.mrb[0].mxu0
  %v629 = vpop.f32.mrb[0].mxu0
  %v630 = vadd.f32 %v95, %v629
  %v631 = vpop.f32.mrb[0].mxu0
  %632 = vmatprep.mubr.bf16.mxu0 0
  %633 = vmatmul.mubr.bf16.gmra.mrb[0].mxu0 %v358
  %v634 = vpop.f32.mrb[0].mxu0
  %v635 = vadd.f32 %v95, %v634
  %v636 = vpop.f32.mrb[0].mxu0
  %v637 = vpop.f32.mrb[0].mxu0
  %v638 = vadd.f32 %v95, %v637
  %v639 = vpop.f32.mrb[0].mxu0
  %640 = vmatprep.mubr.bf16.mxu0 0
  %641 = vmatmul.mubr.bf16.gmra.mrb[0].mxu0 %v361
  %v642 = vpop.f32.mrb[0].mxu0
  %v643 = vadd.f32 %v95, %v642
  %v644 = vpop.f32.mrb[0].mxu0
  %v645 = vpop.f32.mrb[0].mxu0
  %v646 = vadd.f32 %v95, %v645
  %v647 = vpop.f32.mrb[0].mxu0
  %648 = vmatprep.mubr.bf16.mxu0 0
  %649 = vmatmul.mubr.bf16.gmra.mrb[0].mxu0 %v364
  %v650 = vpop.f32.mrb[0].mxu0
  %v651 = vadd.f32 %v95, %v650
  %v652 = vpop.f32.mrb[0].mxu0
  %v653 = vpop.f32.mrb[0].mxu0
  %v654 = vadd.f32 %v95, %v653
  %v655 = vpop.f32.mrb[0].mxu0
  %656 = vmatprep.mubr.bf16.mxu0 0
  %657 = vmatmul.mubr.bf16.gmra.mrb[0].mxu0 %v367
  %v658 = vpop.f32.mrb[0].mxu0
  %v659 = vadd.f32 %v95, %v658
  %v660 = vpop.f32.mrb[0].mxu0
  %v661 = vpop.f32.mrb[0].mxu0
  %v662 = vadd.f32 %v95, %v661
  %v663 = vpop.f32.mrb[0].mxu0
  %664 = vdwg.mxu0
  %v665 = vmax.f32 %v411, 0.0
  %v666 = vmax.f32 %v414, 0.0
  %v667 = vmax.f32 %v419, 0.0
  %v668 = vmax.f32 %v422, 0.0
  %v669 = vmax.f32 %v427, 0.0
  %v670 = vmax.f32 %v430, 0.0
  %v671 = vmax.f32 %v435, 0.0
  %v672 = vmax.f32 %v438, 0.0
  %v673 = vmax.f32 %v443, 0.0
  %v674 = vmax.f32 %v446, 0.0
  %v675 = vmax.f32 %v451, 0.0
  %v676 = vmax.f32 %v454, 0.0
  %v677 = vmax.f32 %v459, 0.0
  %v678 = vmax.f32 %v462, 0.0
  %v679 = vmax.f32 %v467, 0.0
  %v680 = vmax.f32 %v470, 0.0
  %v681 = vmax.f32 %v475, 0.0
  %v682 = vmax.f32 %v478, 0.0
  %v683 = vmax.f32 %v483, 0.0
  %v684 = vmax.f32 %v486, 0.0
  %v685 = vmax.f32 %v491, 0.0
  %v686 = vmax.f32 %v494, 0.0
  %v687 = vmax.f32 %v499, 0.0
  %v688 = vmax.f32 %v502, 0.0
  %v689 = vmax.f32 %v507, 0.0
  %v690 = vmax.f32 %v510, 0.0
  %v691 = vmax.f32 %v515, 0.0
  %v692 = vmax.f32 %v518, 0.0
  %v693 = vmax.f32 %v523, 0.0
  %v694 = vmax.f32 %v526, 0.0
  %v695 = vmax.f32 %v531, 0.0
  %v696 = vmax.f32 %v534, 0.0
  %v697 = vmax.f32 %v539, 0.0
  %v698 = vmax.f32 %v542, 0.0
  %v699 = vmax.f32 %v547, 0.0
  %v700 = vmax.f32 %v550, 0.0
  %v701 = vmax.f32 %v555, 0.0
  %v702 = vmax.f32 %v558, 0.0
  %v703 = vmax.f32 %v563, 0.0
  %v704 = vmax.f32 %v566, 0.0
  %v705 = vmax.f32 %v571, 0.0
  %v706 = vmax.f32 %v574, 0.0
  %v707 = vmax.f32 %v579, 0.0
  %v708 = vmax.f32 %v582, 0.0
  %v709 = vmax.f32 %v587, 0.0
  %v710 = vmax.f32 %v590, 0.0
  %v711 = vmax.f32 %v595, 0.0
  %v712 = vmax.f32 %v598, 0.0
  %v713 = vmax.f32 %v603, 0.0
  %v714 = vmax.f32 %v606, 0.0
  %v715 = vmax.f32 %v611, 0.0
  %v716 = vmax.f32 %v614, 0.0
  %v717 = vmax.f32 %v619, 0.0
  %v718 = vmax.f32 %v622, 0.0
  %v719 = vmax.f32 %v627, 0.0
  %v720 = vmax.f32 %v630, 0.0
  %v721 = vmax.f32 %v635, 0.0
  %v722 = vmax.f32 %v638, 0.0
  %v723 = vmax.f32 %v643, 0.0
  %v724 = vmax.f32 %v646, 0.0
  %v725 = vmax.f32 %v651, 0.0
  %v726 = vmax.f32 %v654, 0.0
  %v727 = vmax.f32 %v659, 0.0
  %v728 = vmax.f32 %v662, 0.0
  %v729 = vpack.c.bf16 %v666, %v665
  %v730 = vpack.c.bf16 %v668, %v667
  %v731 = vpack.c.bf16 %v670, %v669
  %v732 = vpack.c.bf16 %v672, %v671
  %v733 = vpack.c.bf16 %v674, %v673
  %v734 = vpack.c.bf16 %v676, %v675
  %v735 = vpack.c.bf16 %v678, %v677
  %v736 = vpack.c.bf16 %v680, %v679
  %v737 = vpack.c.bf16 %v682, %v681
  %v738 = vpack.c.bf16 %v684, %v683
  %v739 = vpack.c.bf16 %v686, %v685
  %v740 = vpack.c.bf16 %v688, %v687
  %v741 = vpack.c.bf16 %v690, %v689
  %v742 = vpack.c.bf16 %v692, %v691
  %v743 = vpack.c.bf16 %v694, %v693
  %v744 = vpack.c.bf16 %v696, %v695
  %v745 = vpack.c.bf16 %v698, %v697
  %v746 = vpack.c.bf16 %v700, %v699
  %v747 = vpack.c.bf16 %v702, %v701
  %v748 = vpack.c.bf16 %v704, %v703
  %v749 = vpack.c.bf16 %v706, %v705
  %v750 = vpack.c.bf16 %v708, %v707
  %v751 = vpack.c.bf16 %v710, %v709
  %v752 = vpack.c.bf16 %v712, %v711
  %v753 = vpack.c.bf16 %v714, %v713
  %v754 = vpack.c.bf16 %v716, %v715
  %v755 = vpack.c.bf16 %v718, %v717
  %v756 = vpack.c.bf16 %v720, %v719
  %v757 = vpack.c.bf16 %v722, %v721
  %v758 = vpack.c.bf16 %v724, %v723
  %v759 = vpack.c.bf16 %v726, %v725
  %v760 = vpack.c.bf16 %v728, %v727
  %v761 = vld [vmem:[%s3] sm:$0xf]
  %v762 = vld [vmem:[%s3 + $0x4] sm:$0xf]
  %v763 = vld [vmem:[%s4] sm:$0x1]
  %v765 = vlaneseq
  %v766 = vshrl.u32 %v765, 7
  %v767 = vsub.s32 0, %v766
  %v768 = vrot.slane %v763, %v767
  %v772 = vunpack.c.l.b16 %v761
  %v773 = vunpack.c.l.b16 %v762
  %v774 = vpack.c.b16 %v773, %v772
  %vm776 = vcmask 130048
  %v778 = vsel %vm776, %v729, 0
  %v781 = vsel %vm776, %v730, 0
  %v784 = vsel %vm776, %v731, 0
  %v787 = vsel %vm776, %v732, 0
  %v790 = vsel %vm776, %v733, 0
  %v793 = vsel %vm776, %v734, 0
  %v796 = vsel %vm776, %v735, 0
  %v799 = vsel %vm776, %v736, 0
  %v802 = vsel %vm776, %v737, 0
  %v805 = vsel %vm776, %v738, 0
  %v808 = vsel %vm776, %v739, 0
  %v811 = vsel %vm776, %v740, 0
  %v814 = vsel %vm776, %v741, 0
  %v817 = vsel %vm776, %v742, 0
  %v820 = vsel %vm776, %v743, 0
  %v823 = vsel %vm776, %v744, 0
  %v826 = vsel %vm776, %v745, 0
  %v829 = vsel %vm776, %v746, 0
  %v832 = vsel %vm776, %v747, 0
  %v835 = vsel %vm776, %v748, 0
  %v838 = vsel %vm776, %v749, 0
  %v841 = vsel %vm776, %v750, 0
  %v844 = vsel %vm776, %v751, 0
  %v847 = vsel %vm776, %v752, 0
  %v850 = vsel %vm776, %v753, 0
  %v853 = vsel %vm776, %v754, 0
  %v856 = vsel %vm776, %v755, 0
  %v859 = vsel %vm776, %v756, 0
  %v862 = vsel %vm776, %v757, 0
  %v865 = vsel %vm776, %v758, 0
  %v868 = vsel %vm776, %v759, 0
  %v871 = vsel %vm776, %v760, 0
  %873 = vmatprep.subr.bf16.mxu0 0
  %874 = vmatpush1.bf16.msra.mxu0 %v774
  %875 = vmatprep.subr.bf16.mxu0 0
  %876 = vmatpush1.bf16.msra.mxu0 0
  %877 = vmatprep.subr.bf16.mxu0 0
  %878 = vmatpush1.bf16.msra.mxu0 0
  %879 = vmatprep.subr.bf16.mxu0 0
  %880 = vmatpush1.bf16.msra.mxu0 0
  %881 = vmatprep.subr.bf16.mxu0 0
  %882 = vmatpush1.bf16.msra.mxu0 0
  %883 = vmatprep.subr.bf16.mxu0 0
  %884 = vmatpush1.bf16.msra.mxu0 0
  %885 = vmatprep.subr.bf16.mxu0 0
  %886 = vmatpush1.bf16.msra.mxu0 0
  %887 = vmatprep.subr.bf16.mxu0 0
  %888 = vmatpush1.bf16.msra.mxu0 0
  %889 = vmatprep.subr.bf16.mxu0 0
  %890 = vmatpush1.bf16.msra.mxu0 0
  %891 = vmatprep.subr.bf16.mxu0 0
  %892 = vmatpush1.bf16.msra.mxu0 0
  %893 = vmatprep.subr.bf16.mxu0 0
  %894 = vmatpush1.bf16.msra.mxu0 0
  %895 = vmatprep.subr.bf16.mxu0 0
  %896 = vmatpush1.bf16.msra.mxu0 0
  %897 = vmatprep.subr.bf16.mxu0 0
  %898 = vmatpush1.bf16.msra.mxu0 0
  %899 = vmatprep.subr.bf16.mxu0 0
  %900 = vmatpush1.bf16.msra.mxu0 0
  %901 = vmatprep.subr.bf16.mxu0 0
  %902 = vmatpush1.bf16.msra.mxu0 0
  %903 = vmatprep.subr.bf16.mxu0 0
  %904 = vmatpush1.bf16.msra.mxu0 0
  %905 = vmatprep.mubr.bf16.mxu0 0
  %906 = vmatmul.mubr.bf16.gmra.mrb[0].mxu0 %v778
  %v907 = vpop.f32.mrb[0].mxu0
  %v908 = vadd.f32 %v768, %v907
  %v909 = vpop.f32.mrb[0].mxu0
  %v910 = vpop.f32.mrb[0].mxu0
  %v911 = vadd.f32 %v768, %v910
  %v912 = vpop.f32.mrb[0].mxu0
  %913 = vmatprep.mubr.bf16.mxu0 0
  %914 = vmatmul.mubr.bf16.gmra.mrb[0].mxu0 %v781
  %v915 = vpop.f32.mrb[0].mxu0
  %v916 = vadd.f32 %v768, %v915
  %v917 = vpop.f32.mrb[0].mxu0
  %v918 = vpop.f32.mrb[0].mxu0
  %v919 = vadd.f32 %v768, %v918
  %v920 = vpop.f32.mrb[0].mxu0
  %921 = vmatprep.mubr.bf16.mxu0 0
  %922 = vmatmul.mubr.bf16.gmra.mrb[0].mxu0 %v784
  %v923 = vpop.f32.mrb[0].mxu0
  %v924 = vadd.f32 %v768, %v923
  %v925 = vpop.f32.mrb[0].mxu0
  %v926 = vpop.f32.mrb[0].mxu0
  %v927 = vadd.f32 %v768, %v926
  %v928 = vpop.f32.mrb[0].mxu0
  %929 = vmatprep.mubr.bf16.mxu0 0
  %930 = vmatmul.mubr.bf16.gmra.mrb[0].mxu0 %v787
  %v931 = vpop.f32.mrb[0].mxu0
  %v932 = vadd.f32 %v768, %v931
  %v933 = vpop.f32.mrb[0].mxu0
  %v934 = vpop.f32.mrb[0].mxu0
  %v935 = vadd.f32 %v768, %v934
  %v936 = vpop.f32.mrb[0].mxu0
  %937 = vmatprep.mubr.bf16.mxu0 0
  %938 = vmatmul.mubr.bf16.gmra.mrb[0].mxu0 %v790
  %v939 = vpop.f32.mrb[0].mxu0
  %v940 = vadd.f32 %v768, %v939
  %v941 = vpop.f32.mrb[0].mxu0
  %v942 = vpop.f32.mrb[0].mxu0
  %v943 = vadd.f32 %v768, %v942
  %v944 = vpop.f32.mrb[0].mxu0
  %945 = vmatprep.mubr.bf16.mxu0 0
  %946 = vmatmul.mubr.bf16.gmra.mrb[0].mxu0 %v793
  %v947 = vpop.f32.mrb[0].mxu0
  %v948 = vadd.f32 %v768, %v947
  %v949 = vpop.f32.mrb[0].mxu0
  %v950 = vpop.f32.mrb[0].mxu0
  %v951 = vadd.f32 %v768, %v950
  %v952 = vpop.f32.mrb[0].mxu0
  %953 = vmatprep.mubr.bf16.mxu0 0
  %954 = vmatmul.mubr.bf16.gmra.mrb[0].mxu0 %v796
  %v955 = vpop.f32.mrb[0].mxu0
  %v956 = vadd.f32 %v768, %v955
  %v957 = vpop.f32.mrb[0].mxu0
  %v958 = vpop.f32.mrb[0].mxu0
  %v959 = vadd.f32 %v768, %v958
  %v960 = vpop.f32.mrb[0].mxu0
  %961 = vmatprep.mubr.bf16.mxu0 0
  %962 = vmatmul.mubr.bf16.gmra.mrb[0].mxu0 %v799
  %v963 = vpop.f32.mrb[0].mxu0
  %v964 = vadd.f32 %v768, %v963
  %v965 = vpop.f32.mrb[0].mxu0
  %v966 = vpop.f32.mrb[0].mxu0
  %v967 = vadd.f32 %v768, %v966
  %v968 = vpop.f32.mrb[0].mxu0
  %969 = vmatprep.mubr.bf16.mxu0 0
  %970 = vmatmul.mubr.bf16.gmra.mrb[0].mxu0 %v802
  %v971 = vpop.f32.mrb[0].mxu0
  %v972 = vadd.f32 %v768, %v971
  %v973 = vpop.f32.mrb[0].mxu0
  %v974 = vpop.f32.mrb[0].mxu0
  %v975 = vadd.f32 %v768, %v974
  %v976 = vpop.f32.mrb[0].mxu0
  %977 = vmatprep.mubr.bf16.mxu0 0
  %978 = vmatmul.mubr.bf16.gmra.mrb[0].mxu0 %v805
  %v979 = vpop.f32.mrb[0].mxu0
  %v980 = vadd.f32 %v768, %v979
  %v981 = vpop.f32.mrb[0].mxu0
  %v982 = vpop.f32.mrb[0].mxu0
  %v983 = vadd.f32 %v768, %v982
  %v984 = vpop.f32.mrb[0].mxu0
  %985 = vmatprep.mubr.bf16.mxu0 0
  %986 = vmatmul.mubr.bf16.gmra.mrb[0].mxu0 %v808
  %v987 = vpop.f32.mrb[0].mxu0
  %v988 = vadd.f32 %v768, %v987
  %v989 = vpop.f32.mrb[0].mxu0
  %v990 = vpop.f32.mrb[0].mxu0
  %v991 = vadd.f32 %v768, %v990
  %v992 = vpop.f32.mrb[0].mxu0
  %993 = vmatprep.mubr.bf16.mxu0 0
  %994 = vmatmul.mubr.bf16.gmra.mrb[0].mxu0 %v811
  %v995 = vpop.f32.mrb[0].mxu0
  %v996 = vadd.f32 %v768, %v995
  %v997 = vpop.f32.mrb[0].mxu0
  %v998 = vpop.f32.mrb[0].mxu0
  %v999 = vadd.f32 %v768, %v998
  %v1000 = vpop.f32.mrb[0].mxu0
  %1001 = vmatprep.mubr.bf16.mxu0 0
  %1002 = vmatmul.mubr.bf16.gmra.mrb[0].mxu0 %v814
  %v1003 = vpop.f32.mrb[0].mxu0
  %v1004 = vadd.f32 %v768, %v1003
  %v1005 = vpop.f32.mrb[0].mxu0
  %v1006 = vpop.f32.mrb[0].mxu0
  %v1007 = vadd.f32 %v768, %v1006
  %v1008 = vpop.f32.mrb[0].mxu0
  %1009 = vmatprep.mubr.bf16.mxu0 0
  %1010 = vmatmul.mubr.bf16.gmra.mrb[0].mxu0 %v817
  %v1011 = vpop.f32.mrb[0].mxu0
  %v1012 = vadd.f32 %v768, %v1011
  %v1013 = vpop.f32.mrb[0].mxu0
  %v1014 = vpop.f32.mrb[0].mxu0
  %v1015 = vadd.f32 %v768, %v1014
  %v1016 = vpop.f32.mrb[0].mxu0
  %1017 = vmatprep.mubr.bf16.mxu0 0
  %1018 = vmatmul.mubr.bf16.gmra.mrb[0].mxu0 %v820
  %v1019 = vpop.f32.mrb[0].mxu0
  %v1020 = vadd.f32 %v768, %v1019
  %v1021 = vpop.f32.mrb[0].mxu0
  %v1022 = vpop.f32.mrb[0].mxu0
  %v1023 = vadd.f32 %v768, %v1022
  %v1024 = vpop.f32.mrb[0].mxu0
  %1025 = vmatprep.mubr.bf16.mxu0 0
  %1026 = vmatmul.mubr.bf16.gmra.mrb[0].mxu0 %v823
  %v1027 = vpop.f32.mrb[0].mxu0
  %v1028 = vadd.f32 %v768, %v1027
  %v1029 = vpop.f32.mrb[0].mxu0
  %v1030 = vpop.f32.mrb[0].mxu0
  %v1031 = vadd.f32 %v768, %v1030
  %v1032 = vpop.f32.mrb[0].mxu0
  %1033 = vmatprep.mubr.bf16.mxu0 0
  %1034 = vmatmul.mubr.bf16.gmra.mrb[0].mxu0 %v826
  %v1035 = vpop.f32.mrb[0].mxu0
  %v1036 = vadd.f32 %v768, %v1035
  %v1037 = vpop.f32.mrb[0].mxu0
  %v1038 = vpop.f32.mrb[0].mxu0
  %v1039 = vadd.f32 %v768, %v1038
  %v1040 = vpop.f32.mrb[0].mxu0
  %1041 = vmatprep.mubr.bf16.mxu0 0
  %1042 = vmatmul.mubr.bf16.gmra.mrb[0].mxu0 %v829
  %v1043 = vpop.f32.mrb[0].mxu0
  %v1044 = vadd.f32 %v768, %v1043
  %v1045 = vpop.f32.mrb[0].mxu0
  %v1046 = vpop.f32.mrb[0].mxu0
  %v1047 = vadd.f32 %v768, %v1046
  %v1048 = vpop.f32.mrb[0].mxu0
  %1049 = vmatprep.mubr.bf16.mxu0 0
  %1050 = vmatmul.mubr.bf16.gmra.mrb[0].mxu0 %v832
  %v1051 = vpop.f32.mrb[0].mxu0
  %v1052 = vadd.f32 %v768, %v1051
  %v1053 = vpop.f32.mrb[0].mxu0
  %v1054 = vpop.f32.mrb[0].mxu0
  %v1055 = vadd.f32 %v768, %v1054
  %v1056 = vpop.f32.mrb[0].mxu0
  %1057 = vmatprep.mubr.bf16.mxu0 0
  %1058 = vmatmul.mubr.bf16.gmra.mrb[0].mxu0 %v835
  %v1059 = vpop.f32.mrb[0].mxu0
  %v1060 = vadd.f32 %v768, %v1059
  %v1061 = vpop.f32.mrb[0].mxu0
  %v1062 = vpop.f32.mrb[0].mxu0
  %v1063 = vadd.f32 %v768, %v1062
  %v1064 = vpop.f32.mrb[0].mxu0
  %1065 = vmatprep.mubr.bf16.mxu0 0
  %1066 = vmatmul.mubr.bf16.gmra.mrb[0].mxu0 %v838
  %v1067 = vpop.f32.mrb[0].mxu0
  %v1068 = vadd.f32 %v768, %v1067
  %v1069 = vpop.f32.mrb[0].mxu0
  %v1070 = vpop.f32.mrb[0].mxu0
  %v1071 = vadd.f32 %v768, %v1070
  %v1072 = vpop.f32.mrb[0].mxu0
  %1073 = vmatprep.mubr.bf16.mxu0 0
  %1074 = vmatmul.mubr.bf16.gmra.mrb[0].mxu0 %v841
  %v1075 = vpop.f32.mrb[0].mxu0
  %v1076 = vadd.f32 %v768, %v1075
  %v1077 = vpop.f32.mrb[0].mxu0
  %v1078 = vpop.f32.mrb[0].mxu0
  %v1079 = vadd.f32 %v768, %v1078
  %v1080 = vpop.f32.mrb[0].mxu0
  %1081 = vmatprep.mubr.bf16.mxu0 0
  %1082 = vmatmul.mubr.bf16.gmra.mrb[0].mxu0 %v844
  %v1083 = vpop.f32.mrb[0].mxu0
  %v1084 = vadd.f32 %v768, %v1083
  %v1085 = vpop.f32.mrb[0].mxu0
  %v1086 = vpop.f32.mrb[0].mxu0
  %v1087 = vadd.f32 %v768, %v1086
  %v1088 = vpop.f32.mrb[0].mxu0
  %1089 = vmatprep.mubr.bf16.mxu0 0
  %1090 = vmatmul.mubr.bf16.gmra.mrb[0].mxu0 %v847
  %v1091 = vpop.f32.mrb[0].mxu0
  %v1092 = vadd.f32 %v768, %v1091
  %v1093 = vpop.f32.mrb[0].mxu0
  %v1094 = vpop.f32.mrb[0].mxu0
  %v1095 = vadd.f32 %v768, %v1094
  %v1096 = vpop.f32.mrb[0].mxu0
  %1097 = vmatprep.mubr.bf16.mxu0 0
  %1098 = vmatmul.mubr.bf16.gmra.mrb[0].mxu0 %v850
  %v1099 = vpop.f32.mrb[0].mxu0
  %v1100 = vadd.f32 %v768, %v1099
  %v1101 = vpop.f32.mrb[0].mxu0
  %v1102 = vpop.f32.mrb[0].mxu0
  %v1103 = vadd.f32 %v768, %v1102
  %v1104 = vpop.f32.mrb[0].mxu0
  %1105 = vmatprep.mubr.bf16.mxu0 0
  %1106 = vmatmul.mubr.bf16.gmra.mrb[0].mxu0 %v853
  %v1107 = vpop.f32.mrb[0].mxu0
  %v1108 = vadd.f32 %v768, %v1107
  %v1109 = vpop.f32.mrb[0].mxu0
  %v1110 = vpop.f32.mrb[0].mxu0
  %v1111 = vadd.f32 %v768, %v1110
  %v1112 = vpop.f32.mrb[0].mxu0
  %1113 = vmatprep.mubr.bf16.mxu0 0
  %1114 = vmatmul.mubr.bf16.gmra.mrb[0].mxu0 %v856
  %v1115 = vpop.f32.mrb[0].mxu0
  %v1116 = vadd.f32 %v768, %v1115
  %v1117 = vpop.f32.mrb[0].mxu0
  %v1118 = vpop.f32.mrb[0].mxu0
  %v1119 = vadd.f32 %v768, %v1118
  %v1120 = vpop.f32.mrb[0].mxu0
  %1121 = vmatprep.mubr.bf16.mxu0 0
  %1122 = vmatmul.mubr.bf16.gmra.mrb[0].mxu0 %v859
  %v1123 = vpop.f32.mrb[0].mxu0
  %v1124 = vadd.f32 %v768, %v1123
  %v1125 = vpop.f32.mrb[0].mxu0
  %v1126 = vpop.f32.mrb[0].mxu0
  %v1127 = vadd.f32 %v768, %v1126
  %v1128 = vpop.f32.mrb[0].mxu0
  %1129 = vmatprep.mubr.bf16.mxu0 0
  %1130 = vmatmul.mubr.bf16.gmra.mrb[0].mxu0 %v862
  %v1131 = vpop.f32.mrb[0].mxu0
  %v1132 = vadd.f32 %v768, %v1131
  %v1133 = vpop.f32.mrb[0].mxu0
  %v1134 = vpop.f32.mrb[0].mxu0
  %v1135 = vadd.f32 %v768, %v1134
  %v1136 = vpop.f32.mrb[0].mxu0
  %1137 = vmatprep.mubr.bf16.mxu0 0
  %1138 = vmatmul.mubr.bf16.gmra.mrb[0].mxu0 %v865
  %v1139 = vpop.f32.mrb[0].mxu0
  %v1140 = vadd.f32 %v768, %v1139
  %v1141 = vpop.f32.mrb[0].mxu0
  %v1142 = vpop.f32.mrb[0].mxu0
  %v1143 = vadd.f32 %v768, %v1142
  %v1144 = vpop.f32.mrb[0].mxu0
  %1145 = vmatprep.mubr.bf16.mxu0 0
  %1146 = vmatmul.mubr.bf16.gmra.mrb[0].mxu0 %v868
  %v1147 = vpop.f32.mrb[0].mxu0
  %v1148 = vadd.f32 %v768, %v1147
  %v1149 = vpop.f32.mrb[0].mxu0
  %v1150 = vpop.f32.mrb[0].mxu0
  %v1151 = vadd.f32 %v768, %v1150
  %v1152 = vpop.f32.mrb[0].mxu0
  %1153 = vmatprep.mubr.bf16.mxu0 0
  %1154 = vmatmul.mubr.bf16.gmra.mrb[0].mxu0 %v871
  %v1155 = vpop.f32.mrb[0].mxu0
  %v1156 = vadd.f32 %v768, %v1155
  %v1157 = vpop.f32.mrb[0].mxu0
  %v1158 = vpop.f32.mrb[0].mxu0
  %v1159 = vadd.f32 %v768, %v1158
  %v1160 = vpop.f32.mrb[0].mxu0
  %1161 = vdwg.mxu0
  %v1162 = vmax.f32 %v908, 0.0
  %v1163 = vmax.f32 %v911, 0.0
  %v1164 = vmax.f32 %v916, 0.0
  %v1165 = vmax.f32 %v919, 0.0
  %v1166 = vmax.f32 %v924, 0.0
  %v1167 = vmax.f32 %v927, 0.0
  %v1168 = vmax.f32 %v932, 0.0
  %v1169 = vmax.f32 %v935, 0.0
  %v1170 = vmax.f32 %v940, 0.0
  %v1171 = vmax.f32 %v943, 0.0
  %v1172 = vmax.f32 %v948, 0.0
  %v1173 = vmax.f32 %v951, 0.0
  %v1174 = vmax.f32 %v956, 0.0
  %v1175 = vmax.f32 %v959, 0.0
  %v1176 = vmax.f32 %v964, 0.0
  %v1177 = vmax.f32 %v967, 0.0
  %v1178 = vmax.f32 %v972, 0.0
  %v1179 = vmax.f32 %v975, 0.0
  %v1180 = vmax.f32 %v980, 0.0
  %v1181 = vmax.f32 %v983, 0.0
  %v1182 = vmax.f32 %v988, 0.0
  %v1183 = vmax.f32 %v991, 0.0
  %v1184 = vmax.f32 %v996, 0.0
  %v1185 = vmax.f32 %v999, 0.0
  %v1186 = vmax.f32 %v1004, 0.0
  %v1187 = vmax.f32 %v1007, 0.0
  %v1188 = vmax.f32 %v1012, 0.0
  %v1189 = vmax.f32 %v1015, 0.0
  %v1190 = vmax.f32 %v1020, 0.0
  %v1191 = vmax.f32 %v1023, 0.0
  %v1192 = vmax.f32 %v1028, 0.0
  %v1193 = vmax.f32 %v1031, 0.0
  %v1194 = vmax.f32 %v1036, 0.0
  %v1195 = vmax.f32 %v1039, 0.0
  %v1196 = vmax.f32 %v1044, 0.0
  %v1197 = vmax.f32 %v1047, 0.0
  %v1198 = vmax.f32 %v1052, 0.0
  %v1199 = vmax.f32 %v1055, 0.0
  %v1200 = vmax.f32 %v1060, 0.0
  %v1201 = vmax.f32 %v1063, 0.0
  %v1202 = vmax.f32 %v1068, 0.0
  %v1203 = vmax.f32 %v1071, 0.0
  %v1204 = vmax.f32 %v1076, 0.0
  %v1205 = vmax.f32 %v1079, 0.0
  %v1206 = vmax.f32 %v1084, 0.0
  %v1207 = vmax.f32 %v1087, 0.0
  %v1208 = vmax.f32 %v1092, 0.0
  %v1209 = vmax.f32 %v1095, 0.0
  %v1210 = vmax.f32 %v1100, 0.0
  %v1211 = vmax.f32 %v1103, 0.0
  %v1212 = vmax.f32 %v1108, 0.0
  %v1213 = vmax.f32 %v1111, 0.0
  %v1214 = vmax.f32 %v1116, 0.0
  %v1215 = vmax.f32 %v1119, 0.0
  %v1216 = vmax.f32 %v1124, 0.0
  %v1217 = vmax.f32 %v1127, 0.0
  %v1218 = vmax.f32 %v1132, 0.0
  %v1219 = vmax.f32 %v1135, 0.0
  %v1220 = vmax.f32 %v1140, 0.0
  %v1221 = vmax.f32 %v1143, 0.0
  %v1222 = vmax.f32 %v1148, 0.0
  %v1223 = vmax.f32 %v1151, 0.0
  %v1224 = vmax.f32 %v1156, 0.0
  %v1225 = vmax.f32 %v1159, 0.0
  %vm1226 = vcmask 261120
  %v1227 = vsel %vm1226, %v1162, -inf
  %v1228 = vsel %vm1226, %v1163, -inf
  %v1229 = vmax.f32 %v1227, %v1228
  %v1230 = vrot.slane %v1229, 4
  %v1231 = vmax.f32 %v1229, %v1230
  %v1232 = vrot.slane %v1231, 2
  %v1233 = vmax.f32 %v1231, %v1232
  %v1234 = vrot.slane %v1233, 1
  %v1235 = vmax.f32 %v1233, %v1234
  %v1236 = vsel %vm1226, %v1164, -inf
  %v1237 = vsel %vm1226, %v1165, -inf
  %v1238 = vmax.f32 %v1236, %v1237
  %v1239 = vrot.slane %v1238, 4
  %v1240 = vmax.f32 %v1238, %v1239
  %v1241 = vrot.slane %v1240, 2
  %v1242 = vmax.f32 %v1240, %v1241
  %v1243 = vrot.slane %v1242, 1
  %v1244 = vmax.f32 %v1242, %v1243
  %v1245 = vsel %vm1226, %v1166, -inf
  %v1246 = vsel %vm1226, %v1167, -inf
  %v1247 = vmax.f32 %v1245, %v1246
  %v1248 = vrot.slane %v1247, 4
  %v1249 = vmax.f32 %v1247, %v1248
  %v1250 = vrot.slane %v1249, 2
  %v1251 = vmax.f32 %v1249, %v1250
  %v1252 = vrot.slane %v1251, 1
  %v1253 = vmax.f32 %v1251, %v1252
  %v1254 = vsel %vm1226, %v1168, -inf
  %v1255 = vsel %vm1226, %v1169, -inf
  %v1256 = vmax.f32 %v1254, %v1255
  %v1257 = vrot.slane %v1256, 4
  %v1258 = vmax.f32 %v1256, %v1257
  %v1259 = vrot.slane %v1258, 2
  %v1260 = vmax.f32 %v1258, %v1259
  %v1261 = vrot.slane %v1260, 1
  %v1262 = vmax.f32 %v1260, %v1261
  %v1263 = vsel %vm1226, %v1170, -inf
  %v1264 = vsel %vm1226, %v1171, -inf
  %v1265 = vmax.f32 %v1263, %v1264
  %v1266 = vrot.slane %v1265, 4
  %v1267 = vmax.f32 %v1265, %v1266
  %v1268 = vrot.slane %v1267, 2
  %v1269 = vmax.f32 %v1267, %v1268
  %v1270 = vrot.slane %v1269, 1
  %v1271 = vmax.f32 %v1269, %v1270
  %v1272 = vsel %vm1226, %v1172, -inf
  %v1273 = vsel %vm1226, %v1173, -inf
  %v1274 = vmax.f32 %v1272, %v1273
  %v1275 = vrot.slane %v1274, 4
  %v1276 = vmax.f32 %v1274, %v1275
  %v1277 = vrot.slane %v1276, 2
  %v1278 = vmax.f32 %v1276, %v1277
  %v1279 = vrot.slane %v1278, 1
  %v1280 = vmax.f32 %v1278, %v1279
  %v1281 = vsel %vm1226, %v1174, -inf
  %v1282 = vsel %vm1226, %v1175, -inf
  %v1283 = vmax.f32 %v1281, %v1282
  %v1284 = vrot.slane %v1283, 4
  %v1285 = vmax.f32 %v1283, %v1284
  %v1286 = vrot.slane %v1285, 2
  %v1287 = vmax.f32 %v1285, %v1286
  %v1288 = vrot.slane %v1287, 1
  %v1289 = vmax.f32 %v1287, %v1288
  %v1290 = vsel %vm1226, %v1176, -inf
  %v1291 = vsel %vm1226, %v1177, -inf
  %v1292 = vmax.f32 %v1290, %v1291
  %v1293 = vrot.slane %v1292, 4
  %v1294 = vmax.f32 %v1292, %v1293
  %v1295 = vrot.slane %v1294, 2
  %v1296 = vmax.f32 %v1294, %v1295
  %v1297 = vrot.slane %v1296, 1
  %v1298 = vmax.f32 %v1296, %v1297
  %v1299 = vsel %vm1226, %v1178, -inf
  %v1300 = vsel %vm1226, %v1179, -inf
  %v1301 = vmax.f32 %v1299, %v1300
  %v1302 = vrot.slane %v1301, 4
  %v1303 = vmax.f32 %v1301, %v1302
  %v1304 = vrot.slane %v1303, 2
  %v1305 = vmax.f32 %v1303, %v1304
  %v1306 = vrot.slane %v1305, 1
  %v1307 = vmax.f32 %v1305, %v1306
  %v1308 = vsel %vm1226, %v1180, -inf
  %v1309 = vsel %vm1226, %v1181, -inf
  %v1310 = vmax.f32 %v1308, %v1309
  %v1311 = vrot.slane %v1310, 4
  %v1312 = vmax.f32 %v1310, %v1311
  %v1313 = vrot.slane %v1312, 2
  %v1314 = vmax.f32 %v1312, %v1313
  %v1315 = vrot.slane %v1314, 1
  %v1316 = vmax.f32 %v1314, %v1315
  %v1317 = vsel %vm1226, %v1182, -inf
  %v1318 = vsel %vm1226, %v1183, -inf
  %v1319 = vmax.f32 %v1317, %v1318
  %v1320 = vrot.slane %v1319, 4
  %v1321 = vmax.f32 %v1319, %v1320
  %v1322 = vrot.slane %v1321, 2
  %v1323 = vmax.f32 %v1321, %v1322
  %v1324 = vrot.slane %v1323, 1
  %v1325 = vmax.f32 %v1323, %v1324
  %v1326 = vsel %vm1226, %v1184, -inf
  %v1327 = vsel %vm1226, %v1185, -inf
  %v1328 = vmax.f32 %v1326, %v1327
  %v1329 = vrot.slane %v1328, 4
  %v1330 = vmax.f32 %v1328, %v1329
  %v1331 = vrot.slane %v1330, 2
  %v1332 = vmax.f32 %v1330, %v1331
  %v1333 = vrot.slane %v1332, 1
  %v1334 = vmax.f32 %v1332, %v1333
  %v1335 = vsel %vm1226, %v1186, -inf
  %v1336 = vsel %vm1226, %v1187, -inf
  %v1337 = vmax.f32 %v1335, %v1336
  %v1338 = vrot.slane %v1337, 4
  %v1339 = vmax.f32 %v1337, %v1338
  %v1340 = vrot.slane %v1339, 2
  %v1341 = vmax.f32 %v1339, %v1340
  %v1342 = vrot.slane %v1341, 1
  %v1343 = vmax.f32 %v1341, %v1342
  %v1344 = vsel %vm1226, %v1188, -inf
  %v1345 = vsel %vm1226, %v1189, -inf
  %v1346 = vmax.f32 %v1344, %v1345
  %v1347 = vrot.slane %v1346, 4
  %v1348 = vmax.f32 %v1346, %v1347
  %v1349 = vrot.slane %v1348, 2
  %v1350 = vmax.f32 %v1348, %v1349
  %v1351 = vrot.slane %v1350, 1
  %v1352 = vmax.f32 %v1350, %v1351
  %v1353 = vsel %vm1226, %v1190, -inf
  %v1354 = vsel %vm1226, %v1191, -inf
  %v1355 = vmax.f32 %v1353, %v1354
  %v1356 = vrot.slane %v1355, 4
  %v1357 = vmax.f32 %v1355, %v1356
  %v1358 = vrot.slane %v1357, 2
  %v1359 = vmax.f32 %v1357, %v1358
  %v1360 = vrot.slane %v1359, 1
  %v1361 = vmax.f32 %v1359, %v1360
  %v1362 = vsel %vm1226, %v1192, -inf
  %v1363 = vsel %vm1226, %v1193, -inf
  %v1364 = vmax.f32 %v1362, %v1363
  %v1365 = vrot.slane %v1364, 4
  %v1366 = vmax.f32 %v1364, %v1365
  %v1367 = vrot.slane %v1366, 2
  %v1368 = vmax.f32 %v1366, %v1367
  %v1369 = vrot.slane %v1368, 1
  %v1370 = vmax.f32 %v1368, %v1369
  %v1371 = vsel %vm1226, %v1194, -inf
  %v1372 = vsel %vm1226, %v1195, -inf
  %v1373 = vmax.f32 %v1371, %v1372
  %v1374 = vrot.slane %v1373, 4
  %v1375 = vmax.f32 %v1373, %v1374
  %v1376 = vrot.slane %v1375, 2
  %v1377 = vmax.f32 %v1375, %v1376
  %v1378 = vrot.slane %v1377, 1
  %v1379 = vmax.f32 %v1377, %v1378
  %v1380 = vsel %vm1226, %v1196, -inf
  %v1381 = vsel %vm1226, %v1197, -inf
  %v1382 = vmax.f32 %v1380, %v1381
  %v1383 = vrot.slane %v1382, 4
  %v1384 = vmax.f32 %v1382, %v1383
  %v1385 = vrot.slane %v1384, 2
  %v1386 = vmax.f32 %v1384, %v1385
  %v1387 = vrot.slane %v1386, 1
  %v1388 = vmax.f32 %v1386, %v1387
  %v1389 = vsel %vm1226, %v1198, -inf
  %v1390 = vsel %vm1226, %v1199, -inf
  %v1391 = vmax.f32 %v1389, %v1390
  %v1392 = vrot.slane %v1391, 4
  %v1393 = vmax.f32 %v1391, %v1392
  %v1394 = vrot.slane %v1393, 2
  %v1395 = vmax.f32 %v1393, %v1394
  %v1396 = vrot.slane %v1395, 1
  %v1397 = vmax.f32 %v1395, %v1396
  %v1398 = vsel %vm1226, %v1200, -inf
  %v1399 = vsel %vm1226, %v1201, -inf
  %v1400 = vmax.f32 %v1398, %v1399
  %v1401 = vrot.slane %v1400, 4
  %v1402 = vmax.f32 %v1400, %v1401
  %v1403 = vrot.slane %v1402, 2
  %v1404 = vmax.f32 %v1402, %v1403
  %v1405 = vrot.slane %v1404, 1
  %v1406 = vmax.f32 %v1404, %v1405
  %v1407 = vsel %vm1226, %v1202, -inf
  %v1408 = vsel %vm1226, %v1203, -inf
  %v1409 = vmax.f32 %v1407, %v1408
  %v1410 = vrot.slane %v1409, 4
  %v1411 = vmax.f32 %v1409, %v1410
  %v1412 = vrot.slane %v1411, 2
  %v1413 = vmax.f32 %v1411, %v1412
  %v1414 = vrot.slane %v1413, 1
  %v1415 = vmax.f32 %v1413, %v1414
  %v1416 = vsel %vm1226, %v1204, -inf
  %v1417 = vsel %vm1226, %v1205, -inf
  %v1418 = vmax.f32 %v1416, %v1417
  %v1419 = vrot.slane %v1418, 4
  %v1420 = vmax.f32 %v1418, %v1419
  %v1421 = vrot.slane %v1420, 2
  %v1422 = vmax.f32 %v1420, %v1421
  %v1423 = vrot.slane %v1422, 1
  %v1424 = vmax.f32 %v1422, %v1423
  %v1425 = vsel %vm1226, %v1206, -inf
  %v1426 = vsel %vm1226, %v1207, -inf
  %v1427 = vmax.f32 %v1425, %v1426
  %v1428 = vrot.slane %v1427, 4
  %v1429 = vmax.f32 %v1427, %v1428
  %v1430 = vrot.slane %v1429, 2
  %v1431 = vmax.f32 %v1429, %v1430
  %v1432 = vrot.slane %v1431, 1
  %v1433 = vmax.f32 %v1431, %v1432
  %v1434 = vsel %vm1226, %v1208, -inf
  %v1435 = vsel %vm1226, %v1209, -inf
  %v1436 = vmax.f32 %v1434, %v1435
  %v1437 = vrot.slane %v1436, 4
  %v1438 = vmax.f32 %v1436, %v1437
  %v1439 = vrot.slane %v1438, 2
  %v1440 = vmax.f32 %v1438, %v1439
  %v1441 = vrot.slane %v1440, 1
  %v1442 = vmax.f32 %v1440, %v1441
  %v1443 = vsel %vm1226, %v1210, -inf
  %v1444 = vsel %vm1226, %v1211, -inf
  %v1445 = vmax.f32 %v1443, %v1444
  %v1446 = vrot.slane %v1445, 4
  %v1447 = vmax.f32 %v1445, %v1446
  %v1448 = vrot.slane %v1447, 2
  %v1449 = vmax.f32 %v1447, %v1448
  %v1450 = vrot.slane %v1449, 1
  %v1451 = vmax.f32 %v1449, %v1450
  %v1452 = vsel %vm1226, %v1212, -inf
  %v1453 = vsel %vm1226, %v1213, -inf
  %v1454 = vmax.f32 %v1452, %v1453
  %v1455 = vrot.slane %v1454, 4
  %v1456 = vmax.f32 %v1454, %v1455
  %v1457 = vrot.slane %v1456, 2
  %v1458 = vmax.f32 %v1456, %v1457
  %v1459 = vrot.slane %v1458, 1
  %v1460 = vmax.f32 %v1458, %v1459
  %v1461 = vsel %vm1226, %v1214, -inf
  %v1462 = vsel %vm1226, %v1215, -inf
  %v1463 = vmax.f32 %v1461, %v1462
  %v1464 = vrot.slane %v1463, 4
  %v1465 = vmax.f32 %v1463, %v1464
  %v1466 = vrot.slane %v1465, 2
  %v1467 = vmax.f32 %v1465, %v1466
  %v1468 = vrot.slane %v1467, 1
  %v1469 = vmax.f32 %v1467, %v1468
  %v1470 = vsel %vm1226, %v1216, -inf
  %v1471 = vsel %vm1226, %v1217, -inf
  %v1472 = vmax.f32 %v1470, %v1471
  %v1473 = vrot.slane %v1472, 4
  %v1474 = vmax.f32 %v1472, %v1473
  %v1475 = vrot.slane %v1474, 2
  %v1476 = vmax.f32 %v1474, %v1475
  %v1477 = vrot.slane %v1476, 1
  %v1478 = vmax.f32 %v1476, %v1477
  %v1479 = vsel %vm1226, %v1218, -inf
  %v1480 = vsel %vm1226, %v1219, -inf
  %v1481 = vmax.f32 %v1479, %v1480
  %v1482 = vrot.slane %v1481, 4
  %v1483 = vmax.f32 %v1481, %v1482
  %v1484 = vrot.slane %v1483, 2
  %v1485 = vmax.f32 %v1483, %v1484
  %v1486 = vrot.slane %v1485, 1
  %v1487 = vmax.f32 %v1485, %v1486
  %v1488 = vsel %vm1226, %v1220, -inf
  %v1489 = vsel %vm1226, %v1221, -inf
  %v1490 = vmax.f32 %v1488, %v1489
  %v1491 = vrot.slane %v1490, 4
  %v1492 = vmax.f32 %v1490, %v1491
  %v1493 = vrot.slane %v1492, 2
  %v1494 = vmax.f32 %v1492, %v1493
  %v1495 = vrot.slane %v1494, 1
  %v1496 = vmax.f32 %v1494, %v1495
  %v1497 = vsel %vm1226, %v1222, -inf
  %v1498 = vsel %vm1226, %v1223, -inf
  %v1499 = vmax.f32 %v1497, %v1498
  %v1500 = vrot.slane %v1499, 4
  %v1501 = vmax.f32 %v1499, %v1500
  %v1502 = vrot.slane %v1501, 2
  %v1503 = vmax.f32 %v1501, %v1502
  %v1504 = vrot.slane %v1503, 1
  %v1505 = vmax.f32 %v1503, %v1504
  %v1506 = vsel %vm1226, %v1224, -inf
  %v1507 = vsel %vm1226, %v1225, -inf
  %v1508 = vmax.f32 %v1506, %v1507
  %v1509 = vrot.slane %v1508, 4
  %v1510 = vmax.f32 %v1508, %v1509
  %v1511 = vrot.slane %v1510, 2
  %v1512 = vmax.f32 %v1510, %v1511
  %v1513 = vrot.slane %v1512, 1
  %v1514 = vmax.f32 %v1512, %v1513
  %vm1547 = vcmask 1041409
  %v1548 = vsel %vm1547, %v1244, %v1235
  %vm1549 = vcmask 1042434
  %v1550 = vsel %vm1549, %v1253, %v1548
  %vm1551 = vcmask 1043459
  %v1552 = vsel %vm1551, %v1262, %v1550
  %vm1553 = vcmask 1044484
  %v1554 = vsel %vm1553, %v1271, %v1552
  %vm1555 = vcmask 1045509
  %v1556 = vsel %vm1555, %v1280, %v1554
  %vm1557 = vcmask 1046534
  %v1558 = vsel %vm1557, %v1289, %v1556
  %vm1559 = vcmask 1047559
  %v1560 = vsel %vm1559, %v1298, %v1558
  %v1561 = vsel %vm1547, %v1316, %v1307
  %v1562 = vsel %vm1549, %v1325, %v1561
  %v1563 = vsel %vm1551, %v1334, %v1562
  %v1564 = vsel %vm1553, %v1343, %v1563
  %v1565 = vsel %vm1555, %v1352, %v1564
  %v1566 = vsel %vm1557, %v1361, %v1565
  %v1567 = vsel %vm1559, %v1370, %v1566
  %v1568 = vsel %vm1547, %v1388, %v1379
  %v1569 = vsel %vm1549, %v1397, %v1568
  %v1570 = vsel %vm1551, %v1406, %v1569
  %v1571 = vsel %vm1553, %v1415, %v1570
  %v1572 = vsel %vm1555, %v1424, %v1571
  %v1573 = vsel %vm1557, %v1433, %v1572
  %v1574 = vsel %vm1559, %v1442, %v1573
  %v1575 = vsel %vm1547, %v1460, %v1451
  %v1576 = vsel %vm1549, %v1469, %v1575
  %v1577 = vsel %vm1551, %v1478, %v1576
  %v1578 = vsel %vm1553, %v1487, %v1577
  %v1579 = vsel %vm1555, %v1496, %v1578
  %v1580 = vsel %vm1557, %v1505, %v1579
  %v1581 = vsel %vm1559, %v1514, %v1580
  %1586 = vst.msk [vmem:[%s5] sm:$0xff] %vm1226, %v1560
  %1587 = vst.msk [vmem:[%s5 + $0x8] sm:$0xff] %vm1226, %v1567
  %1588 = vst.msk [vmem:[%s5 + $0x10] sm:$0xff] %vm1226, %v1574
  %1589 = vst.msk [vmem:[%s5 + $0x18] sm:$0xff] %vm1226, %v1581
  // Predicated region
  $region22: #{pointnet2_layer_forward.20} parent=0 // pred_check
    _
  $region23: #{pointnet2_layer_forward.20} parent=0 // pred_check_branch
    %1591 = sbr.rel (0) target = $region25
  $region24: #{pointnet2_layer_forward.20} parent=0 // pred_region
    _
  $region25: #{pointnet2_layer_forward.20} parent=0 // pred_fallthru
    _
  // Predicated region
  $region26: #{pointnet2_layer_forward.20} parent=0 // pred_check
    _
  $region27: #{pointnet2_layer_forward.20} parent=0 // pred_check_branch
    %1593 = sbr.rel (0) target = $region29
  $region28: #{pointnet2_layer_forward.20} parent=0 // pred_region
    _
  $region29: #{pointnet2_layer_forward.20} parent=0 // pred_fallthru
    _

// kernel: pointnet2_layer_forward.19
$region0: #{pointnet2_layer_forward.19}
  #allocation0 [shape = 'u32[]', space=smem, size = 0x4, offset = 0x4, fixed_abs, tag = 'smem constant byte address 0x4 - core index']
  #allocation1 [shape = 'u32[144,128]{1,0:T(1,128)}', space=vmem, size = 0x12000, scoped, tag = 'internal scratch']
  %s0 = inlined_call_operand.vmem [shape: bf16[256,35], index: 0, kind: input, shape index: {}]
  %s1 = inlined_call_operand.vmem [shape: bf16[35,16], index: 1, kind: input, shape index: {}]
  %s2 = inlined_call_operand.vmem [shape: f32[1,16], index: 2, kind: input, shape index: {}]
  %s3 = inlined_call_operand.vmem [shape: bf16[16,32], index: 3, kind: input, shape index: {}]
  %s4 = inlined_call_operand.vmem [shape: f32[1,32], index: 4, kind: input, shape index: {}]
  %s5 = inlined_call_operand.vmem [shape: f32[32,32], index: 5, kind: output, shape index: {}]
  %s6 = sld [smem:[#allocation0]]
  $region30: #{pointnet2_layer_forward.19} parent=0
    _
  %s8 = ssub.s32 1, %s6
  %s9 = scalar_select 0, %s8, %s6
  // Predicated region
  $region2: #{pointnet2_layer_forward.19} parent=0 // pred_check
    _
  $region3: #{pointnet2_layer_forward.19} parent=0 // pred_check_branch
    %11 = sbr.rel (0) target = $region5
  $region4: #{pointnet2_layer_forward.19} parent=0 // pred_region
    _
  $region5: #{pointnet2_layer_forward.19} parent=0 // pred_fallthru
    _
  // Predicated region
  $region6: #{pointnet2_layer_forward.19} parent=0 // pred_check
    _
  $region7: #{pointnet2_layer_forward.19} parent=0 // pred_check_branch
    %13 = sbr.rel (0) target = $region9
  $region8: #{pointnet2_layer_forward.19} parent=0 // pred_region
    _
  $region9: #{pointnet2_layer_forward.19} parent=0 // pred_fallthru
    _
  // Predicated region
  $region10: #{pointnet2_layer_forward.19} parent=0 // pred_check
    _
  $region11: #{pointnet2_layer_forward.19} parent=0 // pred_check_branch
    %15 = sbr.rel (0) target = $region13
  $region12: #{pointnet2_layer_forward.19} parent=0 // pred_region
    _
  $region13: #{pointnet2_layer_forward.19} parent=0 // pred_fallthru
    _
  // Predicated region
  $region14: #{pointnet2_layer_forward.19} parent=0 // pred_check
    _
  $region15: #{pointnet2_layer_forward.19} parent=0 // pred_check_branch
    %17 = sbr.rel (0) target = $region17
  $region16: #{pointnet2_layer_forward.19} parent=0 // pred_region
    _
  $region17: #{pointnet2_layer_forward.19} parent=0 // pred_fallthru
    _
  // Predicated region
  $region18: #{pointnet2_layer_forward.19} parent=0 // pred_check
    _
  $region19: #{pointnet2_layer_forward.19} parent=0 // pred_check_branch
    %19 = sbr.rel (0) target = $region21
  $region20: #{pointnet2_layer_forward.19} parent=0 // pred_region
    _
  $region21: #{pointnet2_layer_forward.19} parent=0 // pred_fallthru
    _
  %v21 = vld [vmem:[%s0] sm:$0xf]
  %v22 = vld [vmem:[%s0 + $0x4] sm:$0xf]
  %v23 = vld [vmem:[%s0 + $0x8] sm:$0xf]
  %v24 = vld [vmem:[%s0 + $0xc] sm:$0xf]
  %v25 = vld [vmem:[%s0 + $0x10] sm:$0xf]
  %v26 = vld [vmem:[%s0 + $0x14] sm:$0xf]
  %v27 = vld [vmem:[%s0 + $0x18] sm:$0xf]
  %v28 = vld [vmem:[%s0 + $0x1c] sm:$0xf]
  %v29 = vld [vmem:[%s0 + $0x20] sm:$0xf]
  %v30 = vld [vmem:[%s0 + $0x24] sm:$0xf]
  %v31 = vld [vmem:[%s0 + $0x28] sm:$0xf]
  %v32 = vld [vmem:[%s0 + $0x2c] sm:$0xf]
  %v33 = vld [vmem:[%s0 + $0x30] sm:$0xf]
  %v34 = vld [vmem:[%s0 + $0x34] sm:$0xf]
  %v35 = vld [vmem:[%s0 + $0x38] sm:$0xf]
  %v36 = vld [vmem:[%s0 + $0x3c] sm:$0xf]
  %v37 = vld [vmem:[%s0 + $0x40] sm:$0xf]
  %v38 = vld [vmem:[%s0 + $0x44] sm:$0xf]
  %v39 = vld [vmem:[%s0 + $0x48] sm:$0xf]
  %v40 = vld [vmem:[%s0 + $0x4c] sm:$0xf]
  %v41 = vld [vmem:[%s0 + $0x50] sm:$0xf]
  %v42 = vld [vmem:[%s0 + $0x54] sm:$0xf]
  %v43 = vld [vmem:[%s0 + $0x58] sm:$0xf]
  %v44 = vld [vmem:[%s0 + $0x5c] sm:$0xf]
  %v45 = vld [vmem:[%s0 + $0x60] sm:$0xf]
  %v46 = vld [vmem:[%s0 + $0x64] sm:$0xf]
  %v47 = vld [vmem:[%s0 + $0x68] sm:$0xf]
  %v48 = vld [vmem:[%s0 + $0x6c] sm:$0xf]
  %v49 = vld [vmem:[%s0 + $0x70] sm:$0xf]
  %v50 = vld [vmem:[%s0 + $0x74] sm:$0xf]
  %v51 = vld [vmem:[%s0 + $0x78] sm:$0xf]
  %v52 = vld [vmem:[%s0 + $0x7c] sm:$0xf]
  %v53 = vld [vmem:[%s1] sm:$0xf]
  %v54 = vld [vmem:[%s1 + $0x4] sm:$0xf]
  %v55 = vld [vmem:[%s1 + $0x8] sm:$0xf]
  %v56 = vld [vmem:[%s1 + $0xc] sm:$0xf]
  %v57 = vld [vmem:[%s1 + $0x10] sm:$0x3]
  %v58 = vld [vmem:[%s2] sm:$0x1]
  %v60 = vlaneseq
  %v61 = vshrl.u32 %v60, 7
  %v62 = vsub.s32 0, %v61
  %v63 = vrot.slane %v58, %v62
  %v97 = vunpack.c.l.b16 %v21
  %v98 = vunpack.c.l.b16 %v22
  %v99 = vunpack.c.l.b16 %v23
  %v100 = vunpack.c.l.b16 %v24
  %v101 = vunpack.c.l.b16 %v25
  %v102 = vunpack.c.l.b16 %v26
  %v103 = vunpack.c.l.b16 %v27
  %v104 = vunpack.c.l.b16 %v28
  %v105 = vunpack.c.l.b16 %v29
  %v106 = vunpack.c.l.b16 %v30
  %v107 = vunpack.c.l.b16 %v31
  %v108 = vunpack.c.l.b16 %v32
  %v109 = vunpack.c.l.b16 %v33
  %v110 = vunpack.c.l.b16 %v34
  %v111 = vunpack.c.l.b16 %v35
  %v112 = vunpack.c.l.b16 %v36
  %v113 = vunpack.c.l.b16 %v37
  %v114 = vunpack.c.l.b16 %v38
  %v115 = vunpack.c.l.b16 %v39
  %v116 = vunpack.c.l.b16 %v40
  %v117 = vunpack.c.l.b16 %v41
  %v118 = vunpack.c.l.b16 %v42
  %v119 = vunpack.c.l.b16 %v43
  %v120 = vunpack.c.l.b16 %v44
  %v121 = vunpack.c.l.b16 %v45
  %v122 = vunpack.c.l.b16 %v46
  %v123 = vunpack.c.l.b16 %v47
  %v124 = vunpack.c.l.b16 %v48
  %v125 = vunpack.c.l.b16 %v49
  %v126 = vunpack.c.l.b16 %v50
  %v127 = vunpack.c.l.b16 %v51
  %v128 = vunpack.c.l.b16 %v52
  %v129 = vpack.c.b16 %v98, %v97
  %v130 = vpack.c.b16 %v100, %v99
  %v131 = vpack.c.b16 %v102, %v101
  %v132 = vpack.c.b16 %v104, %v103
  %v133 = vpack.c.b16 %v106, %v105
  %v134 = vpack.c.b16 %v108, %v107
  %v135 = vpack.c.b16 %v110, %v109
  %v136 = vpack.c.b16 %v112, %v111
  %v137 = vpack.c.b16 %v114, %v113
  %v138 = vpack.c.b16 %v116, %v115
  %v139 = vpack.c.b16 %v118, %v117
  %v140 = vpack.c.b16 %v120, %v119
  %v141 = vpack.c.b16 %v122, %v121
  %v142 = vpack.c.b16 %v124, %v123
  %v143 = vpack.c.b16 %v126, %v125
  %v144 = vpack.c.b16 %v128, %v127
  %v150 = vunpack.c.l.b16 %v53
  %v151 = vunpack.c.l.b16 %v54
  %v152 = vunpack.c.l.b16 %v55
  %v153 = vunpack.c.l.b16 %v56
  %v154 = vunpack.c.l.b16 %v57
  %v155 = vpack.c.b16 %v151, %v150
  %v156 = vpack.c.b16 %v153, %v152
  %v157 = vpack.c.b16 %v154, %v154
  %vm160 = vcmask 285696
  %v162 = vsel %vm160, %v129, 0
  %v165 = vsel %vm160, %v130, 0
  %v168 = vsel %vm160, %v131, 0
  %v171 = vsel %vm160, %v132, 0
  %v174 = vsel %vm160, %v133, 0
  %v177 = vsel %vm160, %v134, 0
  %v180 = vsel %vm160, %v135, 0
  %v183 = vsel %vm160, %v136, 0
  %v186 = vsel %vm160, %v137, 0
  %v189 = vsel %vm160, %v138, 0
  %v192 = vsel %vm160, %v139, 0
  %v195 = vsel %vm160, %v140, 0
  %v198 = vsel %vm160, %v141, 0
  %v201 = vsel %vm160, %v142, 0
  %v204 = vsel %vm160, %v143, 0
  %v207 = vsel %vm160, %v144, 0
  %vm209 = vcmask 1040384
  %vm210 = vcmask 1041408
  %v211 = vsel %vm209, 4294967295, 65535
  %v212 = vsel %vm210, %v211, 0
  %v214 = vand.u32 %v157, %v212
  %216 = vmatprep.subr.bf16.mxu0 0
  %217 = vmatpush1.bf16.msra.mxu0 %v155
  %218 = vmatprep.subr.bf16.mxu0 0
  %219 = vmatpush1.bf16.msra.mxu0 %v156
  %220 = vmatprep.subr.bf16.mxu0 0
  %221 = vmatpush1.bf16.msra.mxu0 %v214
  %222 = vmatprep.subr.bf16.mxu0 0
  %223 = vmatpush1.bf16.msra.mxu0 0
  %224 = vmatprep.subr.bf16.mxu0 0
  %225 = vmatpush1.bf16.msra.mxu0 0
  %226 = vmatprep.subr.bf16.mxu0 0
  %227 = vmatpush1.bf16.msra.mxu0 0
  %228 = vmatprep.subr.bf16.mxu0 0
  %229 = vmatpush1.bf16.msra.mxu0 0
  %230 = vmatprep.subr.bf16.mxu0 0
  %231 = vmatpush1.bf16.msra.mxu0 0
  %232 = vmatprep.subr.bf16.mxu0 0
  %233 = vmatpush1.bf16.msra.mxu0 0
  %234 = vmatprep.subr.bf16.mxu0 0
  %235 = vmatpush1.bf16.msra.mxu0 0
  %236 = vmatprep.subr.bf16.mxu0 0
  %237 = vmatpush1.bf16.msra.mxu0 0
  %238 = vmatprep.subr.bf16.mxu0 0
  %239 = vmatpush1.bf16.msra.mxu0 0
  %240 = vmatprep.subr.bf16.mxu0 0
  %241 = vmatpush1.bf16.msra.mxu0 0
  %242 = vmatprep.subr.bf16.mxu0 0
  %243 = vmatpush1.bf16.msra.mxu0 0
  %244 = vmatprep.subr.bf16.mxu0 0
  %245 = vmatpush1.bf16.msra.mxu0 0
  %246 = vmatprep.subr.bf16.mxu0 0
  %247 = vmatpush1.bf16.msra.mxu0 0
  %248 = vmatprep.mubr.bf16.mxu0 0
  %249 = vmatmul.mubr.bf16.gmra.mrb[0].mxu0 %v162
  %v250 = vpop.f32.mrb[0].mxu0
  %v251 = vadd.f32 %v63, %v250
  %v252 = vpop.f32.mrb[0].mxu0
  %v253 = vpop.f32.mrb[0].mxu0
  %v254 = vadd.f32 %v63, %v253
  %v255 = vpop.f32.mrb[0].mxu0
  %256 = vmatprep.mubr.bf16.mxu0 0
  %257 = vmatmul.mubr.bf16.gmra.mrb[0].mxu0 %v165
  %v258 = vpop.f32.mrb[0].mxu0
  %v259 = vadd.f32 %v63, %v258
  %v260 = vpop.f32.mrb[0].mxu0
  %v261 = vpop.f32.mrb[0].mxu0
  %v262 = vadd.f32 %v63, %v261
  %v263 = vpop.f32.mrb[0].mxu0
  %264 = vmatprep.mubr.bf16.mxu0 0
  %265 = vmatmul.mubr.bf16.gmra.mrb[0].mxu0 %v168
  %v266 = vpop.f32.mrb[0].mxu0
  %v267 = vadd.f32 %v63, %v266
  %v268 = vpop.f32.mrb[0].mxu0
  %v269 = vpop.f32.mrb[0].mxu0
  %v270 = vadd.f32 %v63, %v269
  %v271 = vpop.f32.mrb[0].mxu0
  %272 = vmatprep.mubr.bf16.mxu0 0
  %273 = vmatmul.mubr.bf16.gmra.mrb[0].mxu0 %v171
  %v274 = vpop.f32.mrb[0].mxu0
  %v275 = vadd.f32 %v63, %v274
  %v276 = vpop.f32.mrb[0].mxu0
  %v277 = vpop.f32.mrb[0].mxu0
  %v278 = vadd.f32 %v63, %v277
  %v279 = vpop.f32.mrb[0].mxu0
  %280 = vmatprep.mubr.bf16.mxu0 0
  %281 = vmatmul.mubr.bf16.gmra.mrb[0].mxu0 %v174
  %v282 = vpop.f32.mrb[0].mxu0
  %v283 = vadd.f32 %v63, %v282
  %v284 = vpop.f32.mrb[0].mxu0
  %v285 = vpop.f32.mrb[0].mxu0
  %v286 = vadd.f32 %v63, %v285
  %v287 = vpop.f32.mrb[0].mxu0
  %288 = vmatprep.mubr.bf16.mxu0 0
  %289 = vmatmul.mubr.bf16.gmra.mrb[0].mxu0 %v177
  %v290 = vpop.f32.mrb[0].mxu0
  %v291 = vadd.f32 %v63, %v290
  %v292 = vpop.f32.mrb[0].mxu0
  %v293 = vpop.f32.mrb[0].mxu0
  %v294 = vadd.f32 %v63, %v293
  %v295 = vpop.f32.mrb[0].mxu0
  %296 = vmatprep.mubr.bf16.mxu0 0
  %297 = vmatmul.mubr.bf16.gmra.mrb[0].mxu0 %v180
  %v298 = vpop.f32.mrb[0].mxu0
  %v299 = vadd.f32 %v63, %v298
  %v300 = vpop.f32.mrb[0].mxu0
  %v301 = vpop.f32.mrb[0].mxu0
  %v302 = vadd.f32 %v63, %v301
  %v303 = vpop.f32.mrb[0].mxu0
  %304 = vmatprep.mubr.bf16.mxu0 0
  %305 = vmatmul.mubr.bf16.gmra.mrb[0].mxu0 %v183
  %v306 = vpop.f32.mrb[0].mxu0
  %v307 = vadd.f32 %v63, %v306
  %v308 = vpop.f32.mrb[0].mxu0
  %v309 = vpop.f32.mrb[0].mxu0
  %v310 = vadd.f32 %v63, %v309
  %v311 = vpop.f32.mrb[0].mxu0
  %312 = vmatprep.mubr.bf16.mxu0 0
  %313 = vmatmul.mubr.bf16.gmra.mrb[0].mxu0 %v186
  %v314 = vpop.f32.mrb[0].mxu0
  %v315 = vadd.f32 %v63, %v314
  %v316 = vpop.f32.mrb[0].mxu0
  %v317 = vpop.f32.mrb[0].mxu0
  %v318 = vadd.f32 %v63, %v317
  %v319 = vpop.f32.mrb[0].mxu0
  %320 = vmatprep.mubr.bf16.mxu0 0
  %321 = vmatmul.mubr.bf16.gmra.mrb[0].mxu0 %v189
  %v322 = vpop.f32.mrb[0].mxu0
  %v323 = vadd.f32 %v63, %v322
  %v324 = vpop.f32.mrb[0].mxu0
  %v325 = vpop.f32.mrb[0].mxu0
  %v326 = vadd.f32 %v63, %v325
  %v327 = vpop.f32.mrb[0].mxu0
  %328 = vmatprep.mubr.bf16.mxu0 0
  %329 = vmatmul.mubr.bf16.gmra.mrb[0].mxu0 %v192
  %v330 = vpop.f32.mrb[0].mxu0
  %v331 = vadd.f32 %v63, %v330
  %v332 = vpop.f32.mrb[0].mxu0
  %v333 = vpop.f32.mrb[0].mxu0
  %v334 = vadd.f32 %v63, %v333
  %v335 = vpop.f32.mrb[0].mxu0
  %336 = vmatprep.mubr.bf16.mxu0 0
  %337 = vmatmul.mubr.bf16.gmra.mrb[0].mxu0 %v195
  %v338 = vpop.f32.mrb[0].mxu0
  %v339 = vadd.f32 %v63, %v338
  %v340 = vpop.f32.mrb[0].mxu0
  %v341 = vpop.f32.mrb[0].mxu0
  %v342 = vadd.f32 %v63, %v341
  %v343 = vpop.f32.mrb[0].mxu0
  %344 = vmatprep.mubr.bf16.mxu0 0
  %345 = vmatmul.mubr.bf16.gmra.mrb[0].mxu0 %v198
  %v346 = vpop.f32.mrb[0].mxu0
  %v347 = vadd.f32 %v63, %v346
  %v348 = vpop.f32.mrb[0].mxu0
  %v349 = vpop.f32.mrb[0].mxu0
  %v350 = vadd.f32 %v63, %v349
  %v351 = vpop.f32.mrb[0].mxu0
  %352 = vmatprep.mubr.bf16.mxu0 0
  %353 = vmatmul.mubr.bf16.gmra.mrb[0].mxu0 %v201
  %v354 = vpop.f32.mrb[0].mxu0
  %v355 = vadd.f32 %v63, %v354
  %v356 = vpop.f32.mrb[0].mxu0
  %v357 = vpop.f32.mrb[0].mxu0
  %v358 = vadd.f32 %v63, %v357
  %v359 = vpop.f32.mrb[0].mxu0
  %360 = vmatprep.mubr.bf16.mxu0 0
  %361 = vmatmul.mubr.bf16.gmra.mrb[0].mxu0 %v204
  %v362 = vpop.f32.mrb[0].mxu0
  %v363 = vadd.f32 %v63, %v362
  %v364 = vpop.f32.mrb[0].mxu0
  %v365 = vpop.f32.mrb[0].mxu0
  %v366 = vadd.f32 %v63, %v365
  %v367 = vpop.f32.mrb[0].mxu0
  %368 = vmatprep.mubr.bf16.mxu0 0
  %369 = vmatmul.mubr.bf16.gmra.mrb[0].mxu0 %v207
  %v370 = vpop.f32.mrb[0].mxu0
  %v371 = vadd.f32 %v63, %v370
  %v372 = vpop.f32.mrb[0].mxu0
  %v373 = vpop.f32.mrb[0].mxu0
  %v374 = vadd.f32 %v63, %v373
  %v375 = vpop.f32.mrb[0].mxu0
  %376 = vdwg.mxu0
  %v377 = vmax.f32 %v251, 0.0
  %v378 = vmax.f32 %v254, 0.0
  %v379 = vmax.f32 %v259, 0.0
  %v380 = vmax.f32 %v262, 0.0
  %v381 = vmax.f32 %v267, 0.0
  %v382 = vmax.f32 %v270, 0.0
  %v383 = vmax.f32 %v275, 0.0
  %v384 = vmax.f32 %v278, 0.0
  %v385 = vmax.f32 %v283, 0.0
  %v386 = vmax.f32 %v286, 0.0
  %v387 = vmax.f32 %v291, 0.0
  %v388 = vmax.f32 %v294, 0.0
  %v389 = vmax.f32 %v299, 0.0
  %v390 = vmax.f32 %v302, 0.0
  %v391 = vmax.f32 %v307, 0.0
  %v392 = vmax.f32 %v310, 0.0
  %v393 = vmax.f32 %v315, 0.0
  %v394 = vmax.f32 %v318, 0.0
  %v395 = vmax.f32 %v323, 0.0
  %v396 = vmax.f32 %v326, 0.0
  %v397 = vmax.f32 %v331, 0.0
  %v398 = vmax.f32 %v334, 0.0
  %v399 = vmax.f32 %v339, 0.0
  %v400 = vmax.f32 %v342, 0.0
  %v401 = vmax.f32 %v347, 0.0
  %v402 = vmax.f32 %v350, 0.0
  %v403 = vmax.f32 %v355, 0.0
  %v404 = vmax.f32 %v358, 0.0
  %v405 = vmax.f32 %v363, 0.0
  %v406 = vmax.f32 %v366, 0.0
  %v407 = vmax.f32 %v371, 0.0
  %v408 = vmax.f32 %v374, 0.0
  %v409 = vpack.c.bf16 %v378, %v377
  %v410 = vpack.c.bf16 %v380, %v379
  %v411 = vpack.c.bf16 %v382, %v381
  %v412 = vpack.c.bf16 %v384, %v383
  %v413 = vpack.c.bf16 %v386, %v385
  %v414 = vpack.c.bf16 %v388, %v387
  %v415 = vpack.c.bf16 %v390, %v389
  %v416 = vpack.c.bf16 %v392, %v391
  %v417 = vpack.c.bf16 %v394, %v393
  %v418 = vpack.c.bf16 %v396, %v395
  %v419 = vpack.c.bf16 %v398, %v397
  %v420 = vpack.c.bf16 %v400, %v399
  %v421 = vpack.c.bf16 %v402, %v401
  %v422 = vpack.c.bf16 %v404, %v403
  %v423 = vpack.c.bf16 %v406, %v405
  %v424 = vpack.c.bf16 %v408, %v407
  %v425 = vld [vmem:[%s3] sm:$0xf]
  %v426 = vld [vmem:[%s3 + $0x4] sm:$0xf]
  %v427 = vld [vmem:[%s4] sm:$0x1]
  %v429 = vlaneseq
  %v430 = vshrl.u32 %v429, 7
  %v431 = vsub.s32 0, %v430
  %v432 = vrot.slane %v427, %v431
  %v436 = vunpack.c.l.b16 %v425
  %v437 = vunpack.c.l.b16 %v426
  %v438 = vpack.c.b16 %v437, %v436
  %vm440 = vcmask 130048
  %v442 = vsel %vm440, %v409, 0
  %v445 = vsel %vm440, %v410, 0
  %v448 = vsel %vm440, %v411, 0
  %v451 = vsel %vm440, %v412, 0
  %v454 = vsel %vm440, %v413, 0
  %v457 = vsel %vm440, %v414, 0
  %v460 = vsel %vm440, %v415, 0
  %v463 = vsel %vm440, %v416, 0
  %v466 = vsel %vm440, %v417, 0
  %v469 = vsel %vm440, %v418, 0
  %v472 = vsel %vm440, %v419, 0
  %v475 = vsel %vm440, %v420, 0
  %v478 = vsel %vm440, %v421, 0
  %v481 = vsel %vm440, %v422, 0
  %v484 = vsel %vm440, %v423, 0
  %v487 = vsel %vm440, %v424, 0
  %489 = vmatprep.subr.bf16.mxu0 0
  %490 = vmatpush1.bf16.msra.mxu0 %v438
  %491 = vmatprep.subr.bf16.mxu0 0
  %492 = vmatpush1.bf16.msra.mxu0 0
  %493 = vmatprep.subr.bf16.mxu0 0
  %494 = vmatpush1.bf16.msra.mxu0 0
  %495 = vmatprep.subr.bf16.mxu0 0
  %496 = vmatpush1.bf16.msra.mxu0 0
  %497 = vmatprep.subr.bf16.mxu0 0
  %498 = vmatpush1.bf16.msra.mxu0 0
  %499 = vmatprep.subr.bf16.mxu0 0
  %500 = vmatpush1.bf16.msra.mxu0 0
  %501 = vmatprep.subr.bf16.mxu0 0
  %502 = vmatpush1.bf16.msra.mxu0 0
  %503 = vmatprep.subr.bf16.mxu0 0
  %504 = vmatpush1.bf16.msra.mxu0 0
  %505 = vmatprep.subr.bf16.mxu0 0
  %506 = vmatpush1.bf16.msra.mxu0 0
  %507 = vmatprep.subr.bf16.mxu0 0
  %508 = vmatpush1.bf16.msra.mxu0 0
  %509 = vmatprep.subr.bf16.mxu0 0
  %510 = vmatpush1.bf16.msra.mxu0 0
  %511 = vmatprep.subr.bf16.mxu0 0
  %512 = vmatpush1.bf16.msra.mxu0 0
  %513 = vmatprep.subr.bf16.mxu0 0
  %514 = vmatpush1.bf16.msra.mxu0 0
  %515 = vmatprep.subr.bf16.mxu0 0
  %516 = vmatpush1.bf16.msra.mxu0 0
  %517 = vmatprep.subr.bf16.mxu0 0
  %518 = vmatpush1.bf16.msra.mxu0 0
  %519 = vmatprep.subr.bf16.mxu0 0
  %520 = vmatpush1.bf16.msra.mxu0 0
  %521 = vmatprep.mubr.bf16.mxu0 0
  %522 = vmatmul.mubr.bf16.gmra.mrb[0].mxu0 %v442
  %v523 = vpop.f32.mrb[0].mxu0
  %v524 = vadd.f32 %v432, %v523
  %v525 = vpop.f32.mrb[0].mxu0
  %v526 = vpop.f32.mrb[0].mxu0
  %v527 = vadd.f32 %v432, %v526
  %v528 = vpop.f32.mrb[0].mxu0
  %529 = vmatprep.mubr.bf16.mxu0 0
  %530 = vmatmul.mubr.bf16.gmra.mrb[0].mxu0 %v445
  %v531 = vpop.f32.mrb[0].mxu0
  %v532 = vadd.f32 %v432, %v531
  %v533 = vpop.f32.mrb[0].mxu0
  %v534 = vpop.f32.mrb[0].mxu0
  %v535 = vadd.f32 %v432, %v534
  %v536 = vpop.f32.mrb[0].mxu0
  %537 = vmatprep.mubr.bf16.mxu0 0
  %538 = vmatmul.mubr.bf16.gmra.mrb[0].mxu0 %v448
  %v539 = vpop.f32.mrb[0].mxu0
  %v540 = vadd.f32 %v432, %v539
  %v541 = vpop.f32.mrb[0].mxu0
  %v542 = vpop.f32.mrb[0].mxu0
  %v543 = vadd.f32 %v432, %v542
  %v544 = vpop.f32.mrb[0].mxu0
  %545 = vmatprep.mubr.bf16.mxu0 0
  %546 = vmatmul.mubr.bf16.gmra.mrb[0].mxu0 %v451
  %v547 = vpop.f32.mrb[0].mxu0
  %v548 = vadd.f32 %v432, %v547
  %v549 = vpop.f32.mrb[0].mxu0
  %v550 = vpop.f32.mrb[0].mxu0
  %v551 = vadd.f32 %v432, %v550
  %v552 = vpop.f32.mrb[0].mxu0
  %553 = vmatprep.mubr.bf16.mxu0 0
  %554 = vmatmul.mubr.bf16.gmra.mrb[0].mxu0 %v454
  %v555 = vpop.f32.mrb[0].mxu0
  %v556 = vadd.f32 %v432, %v555
  %v557 = vpop.f32.mrb[0].mxu0
  %v558 = vpop.f32.mrb[0].mxu0
  %v559 = vadd.f32 %v432, %v558
  %v560 = vpop.f32.mrb[0].mxu0
  %561 = vmatprep.mubr.bf16.mxu0 0
  %562 = vmatmul.mubr.bf16.gmra.mrb[0].mxu0 %v457
  %v563 = vpop.f32.mrb[0].mxu0
  %v564 = vadd.f32 %v432, %v563
  %v565 = vpop.f32.mrb[0].mxu0
  %v566 = vpop.f32.mrb[0].mxu0
  %v567 = vadd.f32 %v432, %v566
  %v568 = vpop.f32.mrb[0].mxu0
  %569 = vmatprep.mubr.bf16.mxu0 0
  %570 = vmatmul.mubr.bf16.gmra.mrb[0].mxu0 %v460
  %v571 = vpop.f32.mrb[0].mxu0
  %v572 = vadd.f32 %v432, %v571
  %v573 = vpop.f32.mrb[0].mxu0
  %v574 = vpop.f32.mrb[0].mxu0
  %v575 = vadd.f32 %v432, %v574
  %v576 = vpop.f32.mrb[0].mxu0
  %577 = vmatprep.mubr.bf16.mxu0 0
  %578 = vmatmul.mubr.bf16.gmra.mrb[0].mxu0 %v463
  %v579 = vpop.f32.mrb[0].mxu0
  %v580 = vadd.f32 %v432, %v579
  %v581 = vpop.f32.mrb[0].mxu0
  %v582 = vpop.f32.mrb[0].mxu0
  %v583 = vadd.f32 %v432, %v582
  %v584 = vpop.f32.mrb[0].mxu0
  %585 = vmatprep.mubr.bf16.mxu0 0
  %586 = vmatmul.mubr.bf16.gmra.mrb[0].mxu0 %v466
  %v587 = vpop.f32.mrb[0].mxu0
  %v588 = vadd.f32 %v432, %v587
  %v589 = vpop.f32.mrb[0].mxu0
  %v590 = vpop.f32.mrb[0].mxu0
  %v591 = vadd.f32 %v432, %v590
  %v592 = vpop.f32.mrb[0].mxu0
  %593 = vmatprep.mubr.bf16.mxu0 0
  %594 = vmatmul.mubr.bf16.gmra.mrb[0].mxu0 %v469
  %v595 = vpop.f32.mrb[0].mxu0
  %v596 = vadd.f32 %v432, %v595
  %v597 = vpop.f32.mrb[0].mxu0
  %v598 = vpop.f32.mrb[0].mxu0
  %v599 = vadd.f32 %v432, %v598
  %v600 = vpop.f32.mrb[0].mxu0
  %601 = vmatprep.mubr.bf16.mxu0 0
  %602 = vmatmul.mubr.bf16.gmra.mrb[0].mxu0 %v472
  %v603 = vpop.f32.mrb[0].mxu0
  %v604 = vadd.f32 %v432, %v603
  %v605 = vpop.f32.mrb[0].mxu0
  %v606 = vpop.f32.mrb[0].mxu0
  %v607 = vadd.f32 %v432, %v606
  %v608 = vpop.f32.mrb[0].mxu0
  %609 = vmatprep.mubr.bf16.mxu0 0
  %610 = vmatmul.mubr.bf16.gmra.mrb[0].mxu0 %v475
  %v611 = vpop.f32.mrb[0].mxu0
  %v612 = vadd.f32 %v432, %v611
  %v613 = vpop.f32.mrb[0].mxu0
  %v614 = vpop.f32.mrb[0].mxu0
  %v615 = vadd.f32 %v432, %v614
  %v616 = vpop.f32.mrb[0].mxu0
  %617 = vmatprep.mubr.bf16.mxu0 0
  %618 = vmatmul.mubr.bf16.gmra.mrb[0].mxu0 %v478
  %v619 = vpop.f32.mrb[0].mxu0
  %v620 = vadd.f32 %v432, %v619
  %v621 = vpop.f32.mrb[0].mxu0
  %v622 = vpop.f32.mrb[0].mxu0
  %v623 = vadd.f32 %v432, %v622
  %v624 = vpop.f32.mrb[0].mxu0
  %625 = vmatprep.mubr.bf16.mxu0 0
  %626 = vmatmul.mubr.bf16.gmra.mrb[0].mxu0 %v481
  %v627 = vpop.f32.mrb[0].mxu0
  %v628 = vadd.f32 %v432, %v627
  %v629 = vpop.f32.mrb[0].mxu0
  %v630 = vpop.f32.mrb[0].mxu0
  %v631 = vadd.f32 %v432, %v630
  %v632 = vpop.f32.mrb[0].mxu0
  %633 = vmatprep.mubr.bf16.mxu0 0
  %634 = vmatmul.mubr.bf16.gmra.mrb[0].mxu0 %v484
  %v635 = vpop.f32.mrb[0].mxu0
  %v636 = vadd.f32 %v432, %v635
  %v637 = vpop.f32.mrb[0].mxu0
  %v638 = vpop.f32.mrb[0].mxu0
  %v639 = vadd.f32 %v432, %v638
  %v640 = vpop.f32.mrb[0].mxu0
  %641 = vmatprep.mubr.bf16.mxu0 0
  %642 = vmatmul.mubr.bf16.gmra.mrb[0].mxu0 %v487
  %v643 = vpop.f32.mrb[0].mxu0
  %v644 = vadd.f32 %v432, %v643
  %v645 = vpop.f32.mrb[0].mxu0
  %v646 = vpop.f32.mrb[0].mxu0
  %v647 = vadd.f32 %v432, %v646
  %v648 = vpop.f32.mrb[0].mxu0
  %649 = vdwg.mxu0
  %v650 = vmax.f32 %v524, 0.0
  %v651 = vmax.f32 %v527, 0.0
  %v652 = vmax.f32 %v532, 0.0
  %v653 = vmax.f32 %v535, 0.0
  %v654 = vmax.f32 %v540, 0.0
  %v655 = vmax.f32 %v543, 0.0
  %v656 = vmax.f32 %v548, 0.0
  %v657 = vmax.f32 %v551, 0.0
  %v658 = vmax.f32 %v556, 0.0
  %v659 = vmax.f32 %v559, 0.0
  %v660 = vmax.f32 %v564, 0.0
  %v661 = vmax.f32 %v567, 0.0
  %v662 = vmax.f32 %v572, 0.0
  %v663 = vmax.f32 %v575, 0.0
  %v664 = vmax.f32 %v580, 0.0
  %v665 = vmax.f32 %v583, 0.0
  %v666 = vmax.f32 %v588, 0.0
  %v667 = vmax.f32 %v591, 0.0
  %v668 = vmax.f32 %v596, 0.0
  %v669 = vmax.f32 %v599, 0.0
  %v670 = vmax.f32 %v604, 0.0
  %v671 = vmax.f32 %v607, 0.0
  %v672 = vmax.f32 %v612, 0.0
  %v673 = vmax.f32 %v615, 0.0
  %v674 = vmax.f32 %v620, 0.0
  %v675 = vmax.f32 %v623, 0.0
  %v676 = vmax.f32 %v628, 0.0
  %v677 = vmax.f32 %v631, 0.0
  %v678 = vmax.f32 %v636, 0.0
  %v679 = vmax.f32 %v639, 0.0
  %v680 = vmax.f32 %v644, 0.0
  %v681 = vmax.f32 %v647, 0.0
  %vm682 = vcmask 261120
  %v683 = vsel %vm682, %v650, -inf
  %v684 = vrot.slane %v683, 4
  %v685 = vmax.f32 %v683, %v684
  %v686 = vrot.slane %v685, 2
  %v687 = vmax.f32 %v685, %v686
  %v688 = vrot.slane %v687, 1
  %v689 = vmax.f32 %v687, %v688
  %v690 = vsel %vm682, %v651, -inf
  %v691 = vrot.slane %v690, 4
  %v692 = vmax.f32 %v690, %v691
  %v693 = vrot.slane %v692, 2
  %v694 = vmax.f32 %v692, %v693
  %v695 = vrot.slane %v694, 1
  %v696 = vmax.f32 %v694, %v695
  %v697 = vsel %vm682, %v652, -inf
  %v698 = vrot.slane %v697, 4
  %v699 = vmax.f32 %v697, %v698
  %v700 = vrot.slane %v699, 2
  %v701 = vmax.f32 %v699, %v700
  %v702 = vrot.slane %v701, 1
  %v703 = vmax.f32 %v701, %v702
  %v704 = vsel %vm682, %v653, -inf
  %v705 = vrot.slane %v704, 4
  %v706 = vmax.f32 %v704, %v705
  %v707 = vrot.slane %v706, 2
  %v708 = vmax.f32 %v706, %v707
  %v709 = vrot.slane %v708, 1
  %v710 = vmax.f32 %v708, %v709
  %v711 = vsel %vm682, %v654, -inf
  %v712 = vrot.slane %v711, 4
  %v713 = vmax.f32 %v711, %v712
  %v714 = vrot.slane %v713, 2
  %v715 = vmax.f32 %v713, %v714
  %v716 = vrot.slane %v715, 1
  %v717 = vmax.f32 %v715, %v716
  %v718 = vsel %vm682, %v655, -inf
  %v719 = vrot.slane %v718, 4
  %v720 = vmax.f32 %v718, %v719
  %v721 = vrot.slane %v720, 2
  %v722 = vmax.f32 %v720, %v721
  %v723 = vrot.slane %v722, 1
  %v724 = vmax.f32 %v722, %v723
  %v725 = vsel %vm682, %v656, -inf
  %v726 = vrot.slane %v725, 4
  %v727 = vmax.f32 %v725, %v726
  %v728 = vrot.slane %v727, 2
  %v729 = vmax.f32 %v727, %v728
  %v730 = vrot.slane %v729, 1
  %v731 = vmax.f32 %v729, %v730
  %v732 = vsel %vm682, %v657, -inf
  %v733 = vrot.slane %v732, 4
  %v734 = vmax.f32 %v732, %v733
  %v735 = vrot.slane %v734, 2
  %v736 = vmax.f32 %v734, %v735
  %v737 = vrot.slane %v736, 1
  %v738 = vmax.f32 %v736, %v737
  %v739 = vsel %vm682, %v658, -inf
  %v740 = vrot.slane %v739, 4
  %v741 = vmax.f32 %v739, %v740
  %v742 = vrot.slane %v741, 2
  %v743 = vmax.f32 %v741, %v742
  %v744 = vrot.slane %v743, 1
  %v745 = vmax.f32 %v743, %v744
  %v746 = vsel %vm682, %v659, -inf
  %v747 = vrot.slane %v746, 4
  %v748 = vmax.f32 %v746, %v747
  %v749 = vrot.slane %v748, 2
  %v750 = vmax.f32 %v748, %v749
  %v751 = vrot.slane %v750, 1
  %v752 = vmax.f32 %v750, %v751
  %v753 = vsel %vm682, %v660, -inf
  %v754 = vrot.slane %v753, 4
  %v755 = vmax.f32 %v753, %v754
  %v756 = vrot.slane %v755, 2
  %v757 = vmax.f32 %v755, %v756
  %v758 = vrot.slane %v757, 1
  %v759 = vmax.f32 %v757, %v758
  %v760 = vsel %vm682, %v661, -inf
  %v761 = vrot.slane %v760, 4
  %v762 = vmax.f32 %v760, %v761
  %v763 = vrot.slane %v762, 2
  %v764 = vmax.f32 %v762, %v763
  %v765 = vrot.slane %v764, 1
  %v766 = vmax.f32 %v764, %v765
  %v767 = vsel %vm682, %v662, -inf
  %v768 = vrot.slane %v767, 4
  %v769 = vmax.f32 %v767, %v768
  %v770 = vrot.slane %v769, 2
  %v771 = vmax.f32 %v769, %v770
  %v772 = vrot.slane %v771, 1
  %v773 = vmax.f32 %v771, %v772
  %v774 = vsel %vm682, %v663, -inf
  %v775 = vrot.slane %v774, 4
  %v776 = vmax.f32 %v774, %v775
  %v777 = vrot.slane %v776, 2
  %v778 = vmax.f32 %v776, %v777
  %v779 = vrot.slane %v778, 1
  %v780 = vmax.f32 %v778, %v779
  %v781 = vsel %vm682, %v664, -inf
  %v782 = vrot.slane %v781, 4
  %v783 = vmax.f32 %v781, %v782
  %v784 = vrot.slane %v783, 2
  %v785 = vmax.f32 %v783, %v784
  %v786 = vrot.slane %v785, 1
  %v787 = vmax.f32 %v785, %v786
  %v788 = vsel %vm682, %v665, -inf
  %v789 = vrot.slane %v788, 4
  %v790 = vmax.f32 %v788, %v789
  %v791 = vrot.slane %v790, 2
  %v792 = vmax.f32 %v790, %v791
  %v793 = vrot.slane %v792, 1
  %v794 = vmax.f32 %v792, %v793
  %v795 = vsel %vm682, %v666, -inf
  %v796 = vrot.slane %v795, 4
  %v797 = vmax.f32 %v795, %v796
  %v798 = vrot.slane %v797, 2
  %v799 = vmax.f32 %v797, %v798
  %v800 = vrot.slane %v799, 1
  %v801 = vmax.f32 %v799, %v800
  %v802 = vsel %vm682, %v667, -inf
  %v803 = vrot.slane %v802, 4
  %v804 = vmax.f32 %v802, %v803
  %v805 = vrot.slane %v804, 2
  %v806 = vmax.f32 %v804, %v805
  %v807 = vrot.slane %v806, 1
  %v808 = vmax.f32 %v806, %v807
  %v809 = vsel %vm682, %v668, -inf
  %v810 = vrot.slane %v809, 4
  %v811 = vmax.f32 %v809, %v810
  %v812 = vrot.slane %v811, 2
  %v813 = vmax.f32 %v811, %v812
  %v814 = vrot.slane %v813, 1
  %v815 = vmax.f32 %v813, %v814
  %v816 = vsel %vm682, %v669, -inf
  %v817 = vrot.slane %v816, 4
  %v818 = vmax.f32 %v816, %v817
  %v819 = vrot.slane %v818, 2
  %v820 = vmax.f32 %v818, %v819
  %v821 = vrot.slane %v820, 1
  %v822 = vmax.f32 %v820, %v821
  %v823 = vsel %vm682, %v670, -inf
  %v824 = vrot.slane %v823, 4
  %v825 = vmax.f32 %v823, %v824
  %v826 = vrot.slane %v825, 2
  %v827 = vmax.f32 %v825, %v826
  %v828 = vrot.slane %v827, 1
  %v829 = vmax.f32 %v827, %v828
  %v830 = vsel %vm682, %v671, -inf
  %v831 = vrot.slane %v830, 4
  %v832 = vmax.f32 %v830, %v831
  %v833 = vrot.slane %v832, 2
  %v834 = vmax.f32 %v832, %v833
  %v835 = vrot.slane %v834, 1
  %v836 = vmax.f32 %v834, %v835
  %v837 = vsel %vm682, %v672, -inf
  %v838 = vrot.slane %v837, 4
  %v839 = vmax.f32 %v837, %v838
  %v840 = vrot.slane %v839, 2
  %v841 = vmax.f32 %v839, %v840
  %v842 = vrot.slane %v841, 1
  %v843 = vmax.f32 %v841, %v842
  %v844 = vsel %vm682, %v673, -inf
  %v845 = vrot.slane %v844, 4
  %v846 = vmax.f32 %v844, %v845
  %v847 = vrot.slane %v846, 2
  %v848 = vmax.f32 %v846, %v847
  %v849 = vrot.slane %v848, 1
  %v850 = vmax.f32 %v848, %v849
  %v851 = vsel %vm682, %v674, -inf
  %v852 = vrot.slane %v851, 4
  %v853 = vmax.f32 %v851, %v852
  %v854 = vrot.slane %v853, 2
  %v855 = vmax.f32 %v853, %v854
  %v856 = vrot.slane %v855, 1
  %v857 = vmax.f32 %v855, %v856
  %v858 = vsel %vm682, %v675, -inf
  %v859 = vrot.slane %v858, 4
  %v860 = vmax.f32 %v858, %v859
  %v861 = vrot.slane %v860, 2
  %v862 = vmax.f32 %v860, %v861
  %v863 = vrot.slane %v862, 1
  %v864 = vmax.f32 %v862, %v863
  %v865 = vsel %vm682, %v676, -inf
  %v866 = vrot.slane %v865, 4
  %v867 = vmax.f32 %v865, %v866
  %v868 = vrot.slane %v867, 2
  %v869 = vmax.f32 %v867, %v868
  %v870 = vrot.slane %v869, 1
  %v871 = vmax.f32 %v869, %v870
  %v872 = vsel %vm682, %v677, -inf
  %v873 = vrot.slane %v872, 4
  %v874 = vmax.f32 %v872, %v873
  %v875 = vrot.slane %v874, 2
  %v876 = vmax.f32 %v874, %v875
  %v877 = vrot.slane %v876, 1
  %v878 = vmax.f32 %v876, %v877
  %v879 = vsel %vm682, %v678, -inf
  %v880 = vrot.slane %v879, 4
  %v881 = vmax.f32 %v879, %v880
  %v882 = vrot.slane %v881, 2
  %v883 = vmax.f32 %v881, %v882
  %v884 = vrot.slane %v883, 1
  %v885 = vmax.f32 %v883, %v884
  %v886 = vsel %vm682, %v679, -inf
  %v887 = vrot.slane %v886, 4
  %v888 = vmax.f32 %v886, %v887
  %v889 = vrot.slane %v888, 2
  %v890 = vmax.f32 %v888, %v889
  %v891 = vrot.slane %v890, 1
  %v892 = vmax.f32 %v890, %v891
  %v893 = vsel %vm682, %v680, -inf
  %v894 = vrot.slane %v893, 4
  %v895 = vmax.f32 %v893, %v894
  %v896 = vrot.slane %v895, 2
  %v897 = vmax.f32 %v895, %v896
  %v898 = vrot.slane %v897, 1
  %v899 = vmax.f32 %v897, %v898
  %v900 = vsel %vm682, %v681, -inf
  %v901 = vrot.slane %v900, 4
  %v902 = vmax.f32 %v900, %v901
  %v903 = vrot.slane %v902, 2
  %v904 = vmax.f32 %v902, %v903
  %v905 = vrot.slane %v904, 1
  %v906 = vmax.f32 %v904, %v905
  %vm939 = vcmask 1041409
  %v940 = vsel %vm939, %v696, %v689
  %vm941 = vcmask 1042434
  %v942 = vsel %vm941, %v703, %v940
  %vm943 = vcmask 1043459
  %v944 = vsel %vm943, %v710, %v942
  %vm945 = vcmask 1044484
  %v946 = vsel %vm945, %v717, %v944
  %vm947 = vcmask 1045509
  %v948 = vsel %vm947, %v724, %v946
  %vm949 = vcmask 1046534
  %v950 = vsel %vm949, %v731, %v948
  %vm951 = vcmask 1047559
  %v952 = vsel %vm951, %v738, %v950
  %v953 = vsel %vm939, %v752, %v745
  %v954 = vsel %vm941, %v759, %v953
  %v955 = vsel %vm943, %v766, %v954
  %v956 = vsel %vm945, %v773, %v955
  %v957 = vsel %vm947, %v780, %v956
  %v958 = vsel %vm949, %v787, %v957
  %v959 = vsel %vm951, %v794, %v958
  %v960 = vsel %vm939, %v808, %v801
  %v961 = vsel %vm941, %v815, %v960
  %v962 = vsel %vm943, %v822, %v961
  %v963 = vsel %vm945, %v829, %v962
  %v964 = vsel %vm947, %v836, %v963
  %v965 = vsel %vm949, %v843, %v964
  %v966 = vsel %vm951, %v850, %v965
  %v967 = vsel %vm939, %v864, %v857
  %v968 = vsel %vm941, %v871, %v967
  %v969 = vsel %vm943, %v878, %v968
  %v970 = vsel %vm945, %v885, %v969
  %v971 = vsel %vm947, %v892, %v970
  %v972 = vsel %vm949, %v899, %v971
  %v973 = vsel %vm951, %v906, %v972
  %978 = vst.msk [vmem:[%s5] sm:$0xff] %vm682, %v952
  %979 = vst.msk [vmem:[%s5 + $0x8] sm:$0xff] %vm682, %v959
  %980 = vst.msk [vmem:[%s5 + $0x10] sm:$0xff] %vm682, %v966
  %981 = vst.msk [vmem:[%s5 + $0x18] sm:$0xff] %vm682, %v973
  // Predicated region
  $region22: #{pointnet2_layer_forward.19} parent=0 // pred_check
    _
  $region23: #{pointnet2_layer_forward.19} parent=0 // pred_check_branch
    %983 = sbr.rel (0) target = $region25
  $region24: #{pointnet2_layer_forward.19} parent=0 // pred_region
    _
  $region25: #{pointnet2_layer_forward.19} parent=0 // pred_fallthru
    _
  // Predicated region
  $region26: #{pointnet2_layer_forward.19} parent=0 // pred_check
    _
  $region27: #{pointnet2_layer_forward.19} parent=0 // pred_check_branch
    %985 = sbr.rel (0) target = $region29
  $region28: #{pointnet2_layer_forward.19} parent=0 // pred_region
    _
  $region29: #{pointnet2_layer_forward.19} parent=0 // pred_fallthru
    _

// kernel: neg.16
$region0: #{neg.16}
  #allocation0 [shape = 's32[1]{0}', space=sflag, size = 0x4, scoped, tag = 'scoped memory for neg.16']
  %s0 = inlined_call_operand.vmem [shape: f32[2,8,16], index: 0, kind: input, shape index: {}]
  %s1 = inlined_call_operand.vmem [shape: f32[2,8,16], index: 1, kind: output, shape index: {}]
  %v2 = vld [vmem:[%s0] sm:$0xff]
  %3 = xla_tuple %v2
  %4 = xla_tuple %3
  %v5 = vxor.u32 %v2, 2147483648
  %6 = xla_tuple %v5
  %7 = vst [vmem:[%s1] sm:$0xff] %v5
  %s8 = scalar_lea.vmem %s0, 8
  %v9 = vld [vmem:[%s8] sm:$0xff]
  %10 = xla_tuple %v9
  %11 = xla_tuple %10
  %v12 = vxor.u32 %v9, 2147483648
  %13 = xla_tuple %v12
  %s14 = scalar_lea.vmem %s1, 8
  %15 = vst [vmem:[%s14] sm:$0xff] %v12

// kernel: pointnet2_layer_forward.21
$region0: #{pointnet2_layer_forward.21}
  #allocation0 [shape = 'u32[]', space=smem, size = 0x4, offset = 0x4, fixed_abs, tag = 'smem constant byte address 0x4 - core index']
  #allocation1 [shape = 'u32[144,128]{1,0:T(1,128)}', space=vmem, size = 0x12000, scoped, tag = 'internal scratch']
  %s0 = inlined_call_operand.vmem [shape: f32[2,8,8], index: 0, kind: input, shape index: {}]
  %s1 = inlined_call_operand.vmem [shape: f32[2,8,16], index: 1, kind: input, shape index: {}]
  %s2 = inlined_call_operand.vmem [shape: f32[2,8,16], index: 2, kind: output, shape index: {}]
  %s3 = sld [smem:[#allocation0]]
  $region41: #{pointnet2_layer_forward.21} parent=0
    _
  %s5 = ssub.s32 1, %s3
  %s6 = scalar_select 0, %s5, %s3
  loop: start=0, step=1, limit=4
  $region2: #{pointnet2_layer_forward.21} parent=0 // loop_pre_header
    _
  $region3: #{pointnet2_layer_forward.21} parent=0 // loop_header
    %s8 = sphi 0, %s12
    %p9 = scmp.ge.s32.totalorder %s8, 4
    %s15 = sphi 0, %s27
    %s16 = sphi 0, %s23
    %s17 = sphi 0, %s15
    %s18 = sphi 0, %s16
    %s19 = sphi 0, %s17
    %s20 = sphi 0, %s18
    %s32 = sphi 0, %s34
    %s35 = sphi 0, %s32
    %s36 = sphi 0, %s35
    %s52 = sphi 0, %s36
    %s58 = sphi 0, %s60
    %s61 = sphi 0, %s58
    %s62 = sphi 0, %s61
    %s78 = sphi 0, %s62
    %s86 = sphi 0, %s88
    %s89 = sphi 0, %s86
    %s90 = sphi 0, %s89
    %s106 = sphi 0, %s90
  $region4: #{pointnet2_layer_forward.21} parent=0 // loop_header_branch
    %11 = sbr.rel (%p9) target = $region8
  $region5: #{pointnet2_layer_forward.21} parent=0 // loop_body
    %s13 = ssub.s32 %s8, 1
    %s14 = ssub.s32 %s8, 2
    %s21 = sadd.s32 1, %s16
    %p22 = scmp.ge.s32.totalorder %s21, 1
    %s23 = scalar_select %p22, 0, %s21
    %s24 = sadd.s32 1, %s15
    %s25 = scalar_select %p22, %s24, %s15
    %p26 = scmp.ge.s32.totalorder %s25, 2
    %s27 = scalar_select %p26, 0, %s25
    %s28 = ssub.s32 %s15, %s27
    %s29 = ssub.s32 %s16, %s23
    %s30 = sor.u32 %s28, %s29
    %p31 = scmp.eq.s32.totalorder %s30, 0
    %s33 = sadd.s32 %s32, 1
    %s34 = scalar_select %p31, %s32, %s33
    %p37 = pneg %p31
    %p38 = scmp.eq.s32.totalorder %s8, 1
    %p39 = por %p37, %p38
    %p40 = scmp.ne.s32.totalorder %s32, %s35
    %p41 = scmp.eq.s32.totalorder %s8, 0
    %p42 = por %p40, %p41
    %p43 = scmp.ne.s32.totalorder %s32, %s35
    %p44 = scmp.eq.s32.totalorder %s13, 1
    %p45 = por %p43, %p44
    %p46 = scmp.ne.s32.totalorder %s35, %s36
    %p47 = scmp.eq.s32.totalorder %s13, 0
    %p48 = por %p46, %p47
    %p49 = scmp.ne.s32.totalorder %s35, %s36
    %p50 = scmp.eq.s32.totalorder %s14, 1
    %p51 = por %p49, %p50
    %p53 = scmp.ne.s32.totalorder %s36, %s52
    %p54 = scmp.eq.s32.totalorder %s14, 0
    %p55 = por %p53, %p54
    %s56 = ssub.s32 %s15, %s27
    %p57 = scmp.eq.s32.totalorder %s56, 0
    %s59 = sadd.s32 %s58, 1
    %s60 = scalar_select %p57, %s58, %s59
    %p63 = pneg %p57
    %p64 = scmp.eq.s32.totalorder %s8, 1
    %p65 = por %p63, %p64
    %p66 = scmp.ne.s32.totalorder %s58, %s61
    %p67 = scmp.eq.s32.totalorder %s8, 0
    %p68 = por %p66, %p67
    %p69 = scmp.ne.s32.totalorder %s58, %s61
    %p70 = scmp.eq.s32.totalorder %s13, 1
    %p71 = por %p69, %p70
    %p72 = scmp.ne.s32.totalorder %s61, %s62
    %p73 = scmp.eq.s32.totalorder %s13, 0
    %p74 = por %p72, %p73
    %p75 = scmp.ne.s32.totalorder %s61, %s62
    %p76 = scmp.eq.s32.totalorder %s14, 1
    %p77 = por %p75, %p76
    %p79 = scmp.ne.s32.totalorder %s62, %s78
    %p80 = scmp.eq.s32.totalorder %s14, 0
    %p81 = por %p79, %p80
    %s82 = ssub.s32 %s15, %s27
    %s83 = ssub.s32 %s16, %s23
    %s84 = sor.u32 %s82, %s83
    %p85 = scmp.eq.s32.totalorder %s84, 0
    %s87 = sadd.s32 %s86, 1
    %s88 = scalar_select %p85, %s86, %s87
    %p91 = pneg %p85
    %p92 = scmp.eq.s32.totalorder %s8, 1
    %p93 = por %p91, %p92
    %p94 = scmp.ne.s32.totalorder %s86, %s89
    %p95 = scmp.eq.s32.totalorder %s8, 0
    %p96 = por %p94, %p95
    %p97 = scmp.ne.s32.totalorder %s86, %s89
    %p98 = scmp.eq.s32.totalorder %s13, 1
    %p99 = por %p97, %p98
    %p100 = scmp.ne.s32.totalorder %s89, %s90
    %p101 = scmp.eq.s32.totalorder %s13, 0
    %p102 = por %p100, %p101
    %p103 = scmp.ne.s32.totalorder %s89, %s90
    %p104 = scmp.eq.s32.totalorder %s14, 1
    %p105 = por %p103, %p104
    %p107 = scmp.ne.s32.totalorder %s90, %s106
    %p108 = scmp.eq.s32.totalorder %s14, 0
    %p109 = por %p107, %p108
    %p110 = scmp.le.s32.totalorder 1, %s8
    %p111 = scmp.lt.s32.totalorder %s8, 3
    %p112 = pnand %p110, %p111
    %p113 = pneg %p112
    // Predicated region
    $region9: #{pointnet2_layer_forward.21} parent=5 // pred_check
      _
    $region10: #{pointnet2_layer_forward.21} parent=5 // pred_check_branch
      %115 = sbr.rel (%p112) target = $region12
    $region11: #{pointnet2_layer_forward.21} parent=5 // pred_region
      %s116 = ssub.s32 %s8, 1
    $region12: #{pointnet2_layer_forward.21} parent=5 // pred_fallthru
      _
    %p117 = scmp.lt.s32.totalorder %s8, 2
    // Predicated region
    $region13: #{pointnet2_layer_forward.21} parent=5 // pred_check
      %p118 = pneg %p117
    $region14: #{pointnet2_layer_forward.21} parent=5 // pred_check_branch
      %120 = sbr.rel (%p118) target = $region16
    $region15: #{pointnet2_layer_forward.21} parent=5 // pred_region
      // Predicated region
      $region17: #{pointnet2_layer_forward.21} parent=15 // pred_check
        %p121 = pneg %p42
      $region18: #{pointnet2_layer_forward.21} parent=15 // pred_check_branch
        %123 = sbr.rel (%p121) target = $region20
      $region19: #{pointnet2_layer_forward.21} parent=15 // pred_region
        %p124 = scmp.lt.s32.totalorder %s15, 1
        %s125 = scalar_select %p124, %s15, 1
        %p126 = scmp.lt.s32.totalorder %s16, 0
        %s127 = scalar_select %p126, %s16, 0
        %s128 = sadd.s32 %s127, %s125
        %s129 = smul.addr %s128, 8
        %s130 = scalar_lea.vmem %s0, %s129
      $region20: #{pointnet2_layer_forward.21} parent=15 // pred_fallthru
        _
      // Predicated region
      $region21: #{pointnet2_layer_forward.21} parent=15 // pred_check
        %p131 = pneg %p68
      $region22: #{pointnet2_layer_forward.21} parent=15 // pred_check_branch
        %133 = sbr.rel (%p131) target = $region24
      $region23: #{pointnet2_layer_forward.21} parent=15 // pred_region
        %p134 = scmp.lt.s32.totalorder %s15, 1
        %s135 = scalar_select %p134, %s15, 1
        %s136 = smul.addr %s135, 8
        %s137 = scalar_lea.vmem %s1, %s136
      $region24: #{pointnet2_layer_forward.21} parent=15 // pred_fallthru
        _
    $region16: #{pointnet2_layer_forward.21} parent=5 // pred_fallthru
      _
    %p138 = scmp.le.s32.totalorder 1, %s8
    %p139 = scmp.lt.s32.totalorder %s8, 3
    %p140 = pnand %p138, %p139
    %p141 = pneg %p140
    // Predicated region
    $region25: #{pointnet2_layer_forward.21} parent=5 // pred_check
      _
    $region26: #{pointnet2_layer_forward.21} parent=5 // pred_check_branch
      %143 = sbr.rel (%p140) target = $region28
    $region27: #{pointnet2_layer_forward.21} parent=5 // pred_region
      %s144 = ssub.s32 %s8, 1
      %p145 = scmp.lt.s32.totalorder %s17, 1
      %s146 = scalar_select %p145, %s17, 1
      %p147 = scmp.lt.s32.totalorder %s18, 0
      %s148 = scalar_select %p147, %s18, 0
      %s149 = sadd.s32 %s148, %s146
      %s150 = smul.addr %s149, 8
      %s151 = scalar_lea.vmem %s0, %s150
      %p152 = pneg %p48
      %p153 = pneg %p45
      %p154 = scmp.lt.s32.totalorder %s17, 1
      %s155 = scalar_select %p154, %s17, 1
      %s156 = smul.addr %s155, 8
      %s157 = scalar_lea.vmem %s1, %s156
      %p158 = pneg %p74
      %p159 = pneg %p71
      %p160 = pneg %p102
      %p161 = pneg %p99
      %p162 = scmp.lt.s32.totalorder %s17, 1
      %s163 = scalar_select %p162, %s17, 1
      %p164 = scmp.lt.s32.totalorder %s18, 0
      %s165 = scalar_select %p164, %s18, 0
      %s166 = sadd.s32 %s165, %s163
      %s167 = smul.addr %s166, 8
      %s168 = scalar_lea.vmem %s2, %s167
      %p169 = scmp.lt.s32.totalorder %s17, 1
      %s170 = scalar_select %p169, %s17, 1
      %p171 = scmp.lt.s32.totalorder %s18, 0
      %s172 = scalar_select %p171, %s18, 0
      %s173 = sadd.s32 %s172, %s170
      %s174 = smul.addr %s173, 8
      %s175 = scalar_lea.vmem %s0, %s174
      %p176 = scmp.lt.s32.totalorder %s17, 1
      %s177 = scalar_select %p176, %s17, 1
      %s178 = smul.addr %s177, 8
      %s179 = scalar_lea.vmem %s1, %s178
      %p180 = scmp.lt.s32.totalorder %s17, 1
      %s181 = scalar_select %p180, %s17, 1
      %p182 = scmp.lt.s32.totalorder %s18, 0
      %s183 = scalar_select %p182, %s18, 0
      %s184 = sadd.s32 %s183, %s181
      %s185 = smul.addr %s184, 8
      %s186 = scalar_lea.vmem %s2, %s185
      %v187 = vld [vmem:[%s175] sm:$0xff]
      %v188 = vld [vmem:[%s179] sm:$0xff]
      %v189 = vmul.f32 %v187, %v187
      %vm190 = vcmask 64512
      %v191 = vsel %vm190, %v189, 0.0
      %192 = vadd.xlane.f32.xlu0 %v191
      %v193 = vpop.xlane.xlu0 %192
      %v194 = vmul.f32 %v188, %v188
      %vm195 = vcmask 130048
      %v196 = vsel %vm195, %v194, 0.0
      %v197 = vrot.slane %v196, 4
      %v198 = vadd.f32 %v196, %v197
      %v199 = vrot.slane %v198, 2
      %v200 = vadd.f32 %v198, %v199
      %v201 = vrot.slane %v200, 1
      %v202 = vadd.f32 %v200, %v201
      %v204 = vsel %vm190, %v187, 0
      %206 = vmatprep.subr.mxu0 0.0
      %207 = vmatpush1.msra.mxu0 %v188
      %208 = vmatprep.subr.mxu0 0.0
      %209 = vmatpush1.msra.mxu0 0.0
      %210 = vmatprep.subr.mxu0 0.0
      %211 = vmatpush1.msra.mxu0 0.0
      %212 = vmatprep.subr.mxu0 0.0
      %213 = vmatpush1.msra.mxu0 0.0
      %214 = vmatprep.subr.mxu0 0.0
      %215 = vmatpush1.msra.mxu0 0.0
      %216 = vmatprep.subr.mxu0 0.0
      %217 = vmatpush1.msra.mxu0 0.0
      %218 = vmatprep.subr.mxu0 0.0
      %219 = vmatpush1.msra.mxu0 0.0
      %220 = vmatprep.subr.mxu0 0.0
      %221 = vmatpush1.msra.mxu0 0.0
      %222 = vmatprep.subr.mxu0 0.0
      %223 = vmatpush1.msra.mxu0 0.0
      %224 = vmatprep.subr.mxu0 0.0
      %225 = vmatpush1.msra.mxu0 0.0
      %226 = vmatprep.subr.mxu0 0.0
      %227 = vmatpush1.msra.mxu0 0.0
      %228 = vmatprep.subr.mxu0 0.0
      %229 = vmatpush1.msra.mxu0 0.0
      %230 = vmatprep.subr.mxu0 0.0
      %231 = vmatpush1.msra.mxu0 0.0
      %232 = vmatprep.subr.mxu0 0.0
      %233 = vmatpush1.msra.mxu0 0.0
      %234 = vmatprep.subr.mxu0 0.0
      %235 = vmatpush1.msra.mxu0 0.0
      %236 = vmatprep.subr.mxu0 0.0
      %237 = vmatpush1.msra.mxu0 0.0
      %238 = vmatprep.subr.mxu0 0.0
      %239 = vmatpush1.msra.mxu0 0.0
      %240 = vmatprep.subr.mxu0 0.0
      %241 = vmatpush1.msra.mxu0 0.0
      %242 = vmatprep.subr.mxu0 0.0
      %243 = vmatpush1.msra.mxu0 0.0
      %244 = vmatprep.subr.mxu0 0.0
      %245 = vmatpush1.msra.mxu0 0.0
      %246 = vmatprep.subr.mxu0 0.0
      %247 = vmatpush1.msra.mxu0 0.0
      %248 = vmatprep.subr.mxu0 0.0
      %249 = vmatpush1.msra.mxu0 0.0
      %250 = vmatprep.subr.mxu0 0.0
      %251 = vmatpush1.msra.mxu0 0.0
      %252 = vmatprep.subr.mxu0 0.0
      %253 = vmatpush1.msra.mxu0 0.0
      %254 = vmatprep.subr.mxu0 0.0
      %255 = vmatpush1.msra.mxu0 0.0
      %256 = vmatprep.subr.mxu0 0.0
      %257 = vmatpush1.msra.mxu0 0.0
      %258 = vmatprep.subr.mxu0 0.0
      %259 = vmatpush1.msra.mxu0 0.0
      %260 = vmatprep.subr.mxu0 0.0
      %261 = vmatpush1.msra.mxu0 0.0
      %262 = vmatprep.subr.mxu0 0.0
      %263 = vmatpush1.msra.mxu0 0.0
      %264 = vmatprep.subr.mxu0 0.0
      %265 = vmatpush1.msra.mxu0 0.0
      %266 = vmatprep.subr.mxu0 0.0
      %267 = vmatpush1.msra.mxu0 0.0
      %268 = vmatprep.subr.mxu0 0.0
      %269 = vmatpush1.msra.mxu0 0.0
      %270 = vmatprep.mubr.f32.mxu0 0.0
      %271 = vmatmul.mubr.f32.gmra.mrb[0].mxu0 %v204
      %v272 = vpop.f32.mrb[0].mxu0
      %v273 = vadd.f32 0.0, %v272
      %v274 = vpop.f32.mrb[0].mxu0
      %275 = vdwg.mxu0
      %v276 = vadd.f32 %v193, %v202
      %v277 = vmul.f32 %v273, 2.0
      %v278 = vsub.f32 %v276, %v277
      %v279 = vmax.f32 %v278, 0.0
      %280 = vst.msk [vmem:[%s186] sm:$0xff] %vm195, %v279
      %p281 = scmp.lt.s32.totalorder %s17, 1
      %s282 = scalar_select %p281, %s17, 1
      %p283 = scmp.lt.s32.totalorder %s18, 0
      %s284 = scalar_select %p283, %s18, 0
      %s285 = sadd.s32 %s284, %s282
      %s286 = smul.addr %s285, 8
      %s287 = scalar_lea.vmem %s2, %s286
      // Predicated region
      $region29: #{pointnet2_layer_forward.21} parent=27 // pred_check
        %p288 = pneg %p99
      $region30: #{pointnet2_layer_forward.21} parent=27 // pred_check_branch
        %290 = sbr.rel (%p288) target = $region32
      $region31: #{pointnet2_layer_forward.21} parent=27 // pred_region
        _
      $region32: #{pointnet2_layer_forward.21} parent=27 // pred_fallthru
        _
    $region28: #{pointnet2_layer_forward.21} parent=5 // pred_fallthru
      _
    %p291 = scmp.le.s32.totalorder 2, %s8
    // Predicated region
    $region33: #{pointnet2_layer_forward.21} parent=5 // pred_check
      %p292 = pneg %p291
    $region34: #{pointnet2_layer_forward.21} parent=5 // pred_check_branch
      %294 = sbr.rel (%p292) target = $region36
    $region35: #{pointnet2_layer_forward.21} parent=5 // pred_region
      %s295 = ssub.s32 %s8, 2
      // Predicated region
      $region37: #{pointnet2_layer_forward.21} parent=35 // pred_check
        %p296 = pneg %p105
      $region38: #{pointnet2_layer_forward.21} parent=35 // pred_check_branch
        %298 = sbr.rel (%p296) target = $region40
      $region39: #{pointnet2_layer_forward.21} parent=35 // pred_region
        %p299 = scmp.lt.s32.totalorder %s19, 1
        %s300 = scalar_select %p299, %s19, 1
        %p301 = scmp.lt.s32.totalorder %s20, 0
        %s302 = scalar_select %p301, %s20, 0
        %s303 = sadd.s32 %s302, %s300
        %s304 = smul.addr %s303, 8
        %s305 = scalar_lea.vmem %s2, %s304
      $region40: #{pointnet2_layer_forward.21} parent=35 // pred_fallthru
        _
    $region36: #{pointnet2_layer_forward.21} parent=5 // pred_fallthru
      _
  $region6: #{pointnet2_layer_forward.21} parent=0 // loop_footer
    %s12 = sadd.s32 1, %s8
  $region7: #{pointnet2_layer_forward.21} parent=0 // loop_footer_branch
    %7 = sbr.rel target = $region3
  $region8: #{pointnet2_layer_forward.21} parent=0 // loop_exit
    _

// kernel: pointnet2_layer_forward.22
$region0: #{pointnet2_layer_forward.22}
  #allocation0 [shape = 'u32[]', space=smem, size = 0x4, offset = 0x4, fixed_abs, tag = 'smem constant byte address 0x4 - core index']
  #allocation1 [shape = 'u32[144,128]{1,0:T(1,128)}', space=vmem, size = 0x12000, scoped, tag = 'internal scratch']
  %s0 = inlined_call_operand.vmem [shape: bf16[128,67], index: 0, kind: input, shape index: {}]
  %s1 = inlined_call_operand.vmem [shape: bf16[67,32], index: 1, kind: input, shape index: {}]
  %s2 = inlined_call_operand.vmem [shape: f32[1,32], index: 2, kind: input, shape index: {}]
  %s3 = inlined_call_operand.vmem [shape: bf16[32,64], index: 3, kind: input, shape index: {}]
  %s4 = inlined_call_operand.vmem [shape: f32[1,64], index: 4, kind: input, shape index: {}]
  %s5 = inlined_call_operand.vmem [shape: f32[16,64], index: 5, kind: output, shape index: {}]
  %s6 = sld [smem:[#allocation0]]
  $region30: #{pointnet2_layer_forward.22} parent=0
    _
  %s8 = ssub.s32 1, %s6
  %s9 = scalar_select 0, %s8, %s6
  // Predicated region
  $region2: #{pointnet2_layer_forward.22} parent=0 // pred_check
    _
  $region3: #{pointnet2_layer_forward.22} parent=0 // pred_check_branch
    %11 = sbr.rel (0) target = $region5
  $region4: #{pointnet2_layer_forward.22} parent=0 // pred_region
    _
  $region5: #{pointnet2_layer_forward.22} parent=0 // pred_fallthru
    _
  // Predicated region
  $region6: #{pointnet2_layer_forward.22} parent=0 // pred_check
    _
  $region7: #{pointnet2_layer_forward.22} parent=0 // pred_check_branch
    %13 = sbr.rel (0) target = $region9
  $region8: #{pointnet2_layer_forward.22} parent=0 // pred_region
    _
  $region9: #{pointnet2_layer_forward.22} parent=0 // pred_fallthru
    _
  // Predicated region
  $region10: #{pointnet2_layer_forward.22} parent=0 // pred_check
    _
  $region11: #{pointnet2_layer_forward.22} parent=0 // pred_check_branch
    %15 = sbr.rel (0) target = $region13
  $region12: #{pointnet2_layer_forward.22} parent=0 // pred_region
    _
  $region13: #{pointnet2_layer_forward.22} parent=0 // pred_fallthru
    _
  // Predicated region
  $region14: #{pointnet2_layer_forward.22} parent=0 // pred_check
    _
  $region15: #{pointnet2_layer_forward.22} parent=0 // pred_check_branch
    %17 = sbr.rel (0) target = $region17
  $region16: #{pointnet2_layer_forward.22} parent=0 // pred_region
    _
  $region17: #{pointnet2_layer_forward.22} parent=0 // pred_fallthru
    _
  // Predicated region
  $region18: #{pointnet2_layer_forward.22} parent=0 // pred_check
    _
  $region19: #{pointnet2_layer_forward.22} parent=0 // pred_check_branch
    %19 = sbr.rel (0) target = $region21
  $region20: #{pointnet2_layer_forward.22} parent=0 // pred_region
    _
  $region21: #{pointnet2_layer_forward.22} parent=0 // pred_fallthru
    _
  %v21 = vld [vmem:[%s0] sm:$0xf]
  %v22 = vld [vmem:[%s0 + $0x4] sm:$0xf]
  %v23 = vld [vmem:[%s0 + $0x8] sm:$0xf]
  %v24 = vld [vmem:[%s0 + $0xc] sm:$0xf]
  %v25 = vld [vmem:[%s0 + $0x10] sm:$0xf]
  %v26 = vld [vmem:[%s0 + $0x14] sm:$0xf]
  %v27 = vld [vmem:[%s0 + $0x18] sm:$0xf]
  %v28 = vld [vmem:[%s0 + $0x1c] sm:$0xf]
  %v29 = vld [vmem:[%s0 + $0x20] sm:$0xf]
  %v30 = vld [vmem:[%s0 + $0x24] sm:$0xf]
  %v31 = vld [vmem:[%s0 + $0x28] sm:$0xf]
  %v32 = vld [vmem:[%s0 + $0x2c] sm:$0xf]
  %v33 = vld [vmem:[%s0 + $0x30] sm:$0xf]
  %v34 = vld [vmem:[%s0 + $0x34] sm:$0xf]
  %v35 = vld [vmem:[%s0 + $0x38] sm:$0xf]
  %v36 = vld [vmem:[%s0 + $0x3c] sm:$0xf]
  %v37 = vld [vmem:[%s1] sm:$0xf]
  %v38 = vld [vmem:[%s1 + $0x4] sm:$0xf]
  %v39 = vld [vmem:[%s1 + $0x8] sm:$0xf]
  %v40 = vld [vmem:[%s1 + $0xc] sm:$0xf]
  %v41 = vld [vmem:[%s1 + $0x10] sm:$0xf]
  %v42 = vld [vmem:[%s1 + $0x14] sm:$0xf]
  %v43 = vld [vmem:[%s1 + $0x18] sm:$0xf]
  %v44 = vld [vmem:[%s1 + $0x1c] sm:$0xf]
  %v45 = vld [vmem:[%s1 + $0x20] sm:$0x3]
  %v46 = vld [vmem:[%s2] sm:$0x1]
  %v48 = vlaneseq
  %v49 = vshrl.u32 %v48, 7
  %v50 = vsub.s32 0, %v49
  %v51 = vrot.slane %v46, %v50
  %v69 = vunpack.c.l.b16 %v21
  %v70 = vunpack.c.l.b16 %v22
  %v71 = vunpack.c.l.b16 %v23
  %v72 = vunpack.c.l.b16 %v24
  %v73 = vunpack.c.l.b16 %v25
  %v74 = vunpack.c.l.b16 %v26
  %v75 = vunpack.c.l.b16 %v27
  %v76 = vunpack.c.l.b16 %v28
  %v77 = vunpack.c.l.b16 %v29
  %v78 = vunpack.c.l.b16 %v30
  %v79 = vunpack.c.l.b16 %v31
  %v80 = vunpack.c.l.b16 %v32
  %v81 = vunpack.c.l.b16 %v33
  %v82 = vunpack.c.l.b16 %v34
  %v83 = vunpack.c.l.b16 %v35
  %v84 = vunpack.c.l.b16 %v36
  %v85 = vpack.c.b16 %v70, %v69
  %v86 = vpack.c.b16 %v72, %v71
  %v87 = vpack.c.b16 %v74, %v73
  %v88 = vpack.c.b16 %v76, %v75
  %v89 = vpack.c.b16 %v78, %v77
  %v90 = vpack.c.b16 %v80, %v79
  %v91 = vpack.c.b16 %v82, %v81
  %v92 = vpack.c.b16 %v84, %v83
  %v102 = vunpack.c.l.b16 %v37
  %v103 = vunpack.c.l.b16 %v38
  %v104 = vunpack.c.l.b16 %v39
  %v105 = vunpack.c.l.b16 %v40
  %v106 = vunpack.c.l.b16 %v41
  %v107 = vunpack.c.l.b16 %v42
  %v108 = vunpack.c.l.b16 %v43
  %v109 = vunpack.c.l.b16 %v44
  %v110 = vunpack.c.l.b16 %v45
  %v111 = vpack.c.b16 %v103, %v102
  %v112 = vpack.c.b16 %v105, %v104
  %v113 = vpack.c.b16 %v107, %v106
  %v114 = vpack.c.b16 %v109, %v108
  %v115 = vpack.c.b16 %v110, %v110
  %vm120 = vcmask 547840
  %v122 = vsel %vm120, %v85, 0
  %v125 = vsel %vm120, %v86, 0
  %v128 = vsel %vm120, %v87, 0
  %v131 = vsel %vm120, %v88, 0
  %v134 = vsel %vm120, %v89, 0
  %v137 = vsel %vm120, %v90, 0
  %v140 = vsel %vm120, %v91, 0
  %v143 = vsel %vm120, %v92, 0
  %vm145 = vcmask 1040384
  %vm146 = vcmask 1041408
  %v147 = vsel %vm145, 4294967295, 65535
  %v148 = vsel %vm146, %v147, 0
  %v150 = vand.u32 %v115, %v148
  %152 = vmatprep.subr.bf16.mxu0 0
  %153 = vmatpush1.bf16.msra.mxu0 %v111
  %154 = vmatprep.subr.bf16.mxu0 0
  %155 = vmatpush1.bf16.msra.mxu0 %v112
  %156 = vmatprep.subr.bf16.mxu0 0
  %157 = vmatpush1.bf16.msra.mxu0 %v113
  %158 = vmatprep.subr.bf16.mxu0 0
  %159 = vmatpush1.bf16.msra.mxu0 %v114
  %160 = vmatprep.subr.bf16.mxu0 0
  %161 = vmatpush1.bf16.msra.mxu0 %v150
  %162 = vmatprep.subr.bf16.mxu0 0
  %163 = vmatpush1.bf16.msra.mxu0 0
  %164 = vmatprep.subr.bf16.mxu0 0
  %165 = vmatpush1.bf16.msra.mxu0 0
  %166 = vmatprep.subr.bf16.mxu0 0
  %167 = vmatpush1.bf16.msra.mxu0 0
  %168 = vmatprep.subr.bf16.mxu0 0
  %169 = vmatpush1.bf16.msra.mxu0 0
  %170 = vmatprep.subr.bf16.mxu0 0
  %171 = vmatpush1.bf16.msra.mxu0 0
  %172 = vmatprep.subr.bf16.mxu0 0
  %173 = vmatpush1.bf16.msra.mxu0 0
  %174 = vmatprep.subr.bf16.mxu0 0
  %175 = vmatpush1.bf16.msra.mxu0 0
  %176 = vmatprep.subr.bf16.mxu0 0
  %177 = vmatpush1.bf16.msra.mxu0 0
  %178 = vmatprep.subr.bf16.mxu0 0
  %179 = vmatpush1.bf16.msra.mxu0 0
  %180 = vmatprep.subr.bf16.mxu0 0
  %181 = vmatpush1.bf16.msra.mxu0 0
  %182 = vmatprep.subr.bf16.mxu0 0
  %183 = vmatpush1.bf16.msra.mxu0 0
  %184 = vmatprep.mubr.bf16.mxu0 0
  %185 = vmatmul.mubr.bf16.gmra.mrb[0].mxu0 %v122
  %v186 = vpop.f32.mrb[0].mxu0
  %v187 = vadd.f32 %v51, %v186
  %v188 = vpop.f32.mrb[0].mxu0
  %v189 = vpop.f32.mrb[0].mxu0
  %v190 = vadd.f32 %v51, %v189
  %v191 = vpop.f32.mrb[0].mxu0
  %192 = vmatprep.mubr.bf16.mxu0 0
  %193 = vmatmul.mubr.bf16.gmra.mrb[0].mxu0 %v125
  %v194 = vpop.f32.mrb[0].mxu0
  %v195 = vadd.f32 %v51, %v194
  %v196 = vpop.f32.mrb[0].mxu0
  %v197 = vpop.f32.mrb[0].mxu0
  %v198 = vadd.f32 %v51, %v197
  %v199 = vpop.f32.mrb[0].mxu0
  %200 = vmatprep.mubr.bf16.mxu0 0
  %201 = vmatmul.mubr.bf16.gmra.mrb[0].mxu0 %v128
  %v202 = vpop.f32.mrb[0].mxu0
  %v203 = vadd.f32 %v51, %v202
  %v204 = vpop.f32.mrb[0].mxu0
  %v205 = vpop.f32.mrb[0].mxu0
  %v206 = vadd.f32 %v51, %v205
  %v207 = vpop.f32.mrb[0].mxu0
  %208 = vmatprep.mubr.bf16.mxu0 0
  %209 = vmatmul.mubr.bf16.gmra.mrb[0].mxu0 %v131
  %v210 = vpop.f32.mrb[0].mxu0
  %v211 = vadd.f32 %v51, %v210
  %v212 = vpop.f32.mrb[0].mxu0
  %v213 = vpop.f32.mrb[0].mxu0
  %v214 = vadd.f32 %v51, %v213
  %v215 = vpop.f32.mrb[0].mxu0
  %216 = vmatprep.mubr.bf16.mxu0 0
  %217 = vmatmul.mubr.bf16.gmra.mrb[0].mxu0 %v134
  %v218 = vpop.f32.mrb[0].mxu0
  %v219 = vadd.f32 %v51, %v218
  %v220 = vpop.f32.mrb[0].mxu0
  %v221 = vpop.f32.mrb[0].mxu0
  %v222 = vadd.f32 %v51, %v221
  %v223 = vpop.f32.mrb[0].mxu0
  %224 = vmatprep.mubr.bf16.mxu0 0
  %225 = vmatmul.mubr.bf16.gmra.mrb[0].mxu0 %v137
  %v226 = vpop.f32.mrb[0].mxu0
  %v227 = vadd.f32 %v51, %v226
  %v228 = vpop.f32.mrb[0].mxu0
  %v229 = vpop.f32.mrb[0].mxu0
  %v230 = vadd.f32 %v51, %v229
  %v231 = vpop.f32.mrb[0].mxu0
  %232 = vmatprep.mubr.bf16.mxu0 0
  %233 = vmatmul.mubr.bf16.gmra.mrb[0].mxu0 %v140
  %v234 = vpop.f32.mrb[0].mxu0
  %v235 = vadd.f32 %v51, %v234
  %v236 = vpop.f32.mrb[0].mxu0
  %v237 = vpop.f32.mrb[0].mxu0
  %v238 = vadd.f32 %v51, %v237
  %v239 = vpop.f32.mrb[0].mxu0
  %240 = vmatprep.mubr.bf16.mxu0 0
  %241 = vmatmul.mubr.bf16.gmra.mrb[0].mxu0 %v143
  %v242 = vpop.f32.mrb[0].mxu0
  %v243 = vadd.f32 %v51, %v242
  %v244 = vpop.f32.mrb[0].mxu0
  %v245 = vpop.f32.mrb[0].mxu0
  %v246 = vadd.f32 %v51, %v245
  %v247 = vpop.f32.mrb[0].mxu0
  %248 = vdwg.mxu0
  %v249 = vmax.f32 %v187, 0.0
  %v250 = vmax.f32 %v190, 0.0
  %v251 = vmax.f32 %v195, 0.0
  %v252 = vmax.f32 %v198, 0.0
  %v253 = vmax.f32 %v203, 0.0
  %v254 = vmax.f32 %v206, 0.0
  %v255 = vmax.f32 %v211, 0.0
  %v256 = vmax.f32 %v214, 0.0
  %v257 = vmax.f32 %v219, 0.0
  %v258 = vmax.f32 %v222, 0.0
  %v259 = vmax.f32 %v227, 0.0
  %v260 = vmax.f32 %v230, 0.0
  %v261 = vmax.f32 %v235, 0.0
  %v262 = vmax.f32 %v238, 0.0
  %v263 = vmax.f32 %v243, 0.0
  %v264 = vmax.f32 %v246, 0.0
  %v265 = vpack.c.bf16 %v250, %v249
  %v266 = vpack.c.bf16 %v252, %v251
  %v267 = vpack.c.bf16 %v254, %v253
  %v268 = vpack.c.bf16 %v256, %v255
  %v269 = vpack.c.bf16 %v258, %v257
  %v270 = vpack.c.bf16 %v260, %v259
  %v271 = vpack.c.bf16 %v262, %v261
  %v272 = vpack.c.bf16 %v264, %v263
  %v273 = vld [vmem:[%s3] sm:$0xf]
  %v274 = vld [vmem:[%s3 + $0x4] sm:$0xf]
  %v275 = vld [vmem:[%s3 + $0x8] sm:$0xf]
  %v276 = vld [vmem:[%s3 + $0xc] sm:$0xf]
  %v277 = vld [vmem:[%s4] sm:$0x1]
  %v279 = vlaneseq
  %v280 = vshrl.u32 %v279, 7
  %v281 = vsub.s32 0, %v280
  %v282 = vrot.slane %v277, %v281
  %v288 = vunpack.c.l.b16 %v273
  %v289 = vunpack.c.l.b16 %v274
  %v290 = vunpack.c.l.b16 %v275
  %v291 = vunpack.c.l.b16 %v276
  %v292 = vpack.c.b16 %v289, %v288
  %v293 = vpack.c.b16 %v291, %v290
  %vm296 = vcmask 261120
  %v298 = vsel %vm296, %v265, 0
  %v301 = vsel %vm296, %v266, 0
  %v304 = vsel %vm296, %v267, 0
  %v307 = vsel %vm296, %v268, 0
  %v310 = vsel %vm296, %v269, 0
  %v313 = vsel %vm296, %v270, 0
  %v316 = vsel %vm296, %v271, 0
  %v319 = vsel %vm296, %v272, 0
  %321 = vmatprep.subr.bf16.mxu0 0
  %322 = vmatpush1.bf16.msra.mxu0 %v292
  %323 = vmatprep.subr.bf16.mxu0 0
  %324 = vmatpush1.bf16.msra.mxu0 %v293
  %325 = vmatprep.subr.bf16.mxu0 0
  %326 = vmatpush1.bf16.msra.mxu0 0
  %327 = vmatprep.subr.bf16.mxu0 0
  %328 = vmatpush1.bf16.msra.mxu0 0
  %329 = vmatprep.subr.bf16.mxu0 0
  %330 = vmatpush1.bf16.msra.mxu0 0
  %331 = vmatprep.subr.bf16.mxu0 0
  %332 = vmatpush1.bf16.msra.mxu0 0
  %333 = vmatprep.subr.bf16.mxu0 0
  %334 = vmatpush1.bf16.msra.mxu0 0
  %335 = vmatprep.subr.bf16.mxu0 0
  %336 = vmatpush1.bf16.msra.mxu0 0
  %337 = vmatprep.subr.bf16.mxu0 0
  %338 = vmatpush1.bf16.msra.mxu0 0
  %339 = vmatprep.subr.bf16.mxu0 0
  %340 = vmatpush1.bf16.msra.mxu0 0
  %341 = vmatprep.subr.bf16.mxu0 0
  %342 = vmatpush1.bf16.msra.mxu0 0
  %343 = vmatprep.subr.bf16.mxu0 0
  %344 = vmatpush1.bf16.msra.mxu0 0
  %345 = vmatprep.subr.bf16.mxu0 0
  %346 = vmatpush1.bf16.msra.mxu0 0
  %347 = vmatprep.subr.bf16.mxu0 0
  %348 = vmatpush1.bf16.msra.mxu0 0
  %349 = vmatprep.subr.bf16.mxu0 0
  %350 = vmatpush1.bf16.msra.mxu0 0
  %351 = vmatprep.subr.bf16.mxu0 0
  %352 = vmatpush1.bf16.msra.mxu0 0
  %353 = vmatprep.mubr.bf16.mxu0 0
  %354 = vmatmul.mubr.bf16.gmra.mrb[0].mxu0 %v298
  %v355 = vpop.f32.mrb[0].mxu0
  %v356 = vadd.f32 %v282, %v355
  %v357 = vpop.f32.mrb[0].mxu0
  %v358 = vpop.f32.mrb[0].mxu0
  %v359 = vadd.f32 %v282, %v358
  %v360 = vpop.f32.mrb[0].mxu0
  %361 = vmatprep.mubr.bf16.mxu0 0
  %362 = vmatmul.mubr.bf16.gmra.mrb[0].mxu0 %v301
  %v363 = vpop.f32.mrb[0].mxu0
  %v364 = vadd.f32 %v282, %v363
  %v365 = vpop.f32.mrb[0].mxu0
  %v366 = vpop.f32.mrb[0].mxu0
  %v367 = vadd.f32 %v282, %v366
  %v368 = vpop.f32.mrb[0].mxu0
  %369 = vmatprep.mubr.bf16.mxu0 0
  %370 = vmatmul.mubr.bf16.gmra.mrb[0].mxu0 %v304
  %v371 = vpop.f32.mrb[0].mxu0
  %v372 = vadd.f32 %v282, %v371
  %v373 = vpop.f32.mrb[0].mxu0
  %v374 = vpop.f32.mrb[0].mxu0
  %v375 = vadd.f32 %v282, %v374
  %v376 = vpop.f32.mrb[0].mxu0
  %377 = vmatprep.mubr.bf16.mxu0 0
  %378 = vmatmul.mubr.bf16.gmra.mrb[0].mxu0 %v307
  %v379 = vpop.f32.mrb[0].mxu0
  %v380 = vadd.f32 %v282, %v379
  %v381 = vpop.f32.mrb[0].mxu0
  %v382 = vpop.f32.mrb[0].mxu0
  %v383 = vadd.f32 %v282, %v382
  %v384 = vpop.f32.mrb[0].mxu0
  %385 = vmatprep.mubr.bf16.mxu0 0
  %386 = vmatmul.mubr.bf16.gmra.mrb[0].mxu0 %v310
  %v387 = vpop.f32.mrb[0].mxu0
  %v388 = vadd.f32 %v282, %v387
  %v389 = vpop.f32.mrb[0].mxu0
  %v390 = vpop.f32.mrb[0].mxu0
  %v391 = vadd.f32 %v282, %v390
  %v392 = vpop.f32.mrb[0].mxu0
  %393 = vmatprep.mubr.bf16.mxu0 0
  %394 = vmatmul.mubr.bf16.gmra.mrb[0].mxu0 %v313
  %v395 = vpop.f32.mrb[0].mxu0
  %v396 = vadd.f32 %v282, %v395
  %v397 = vpop.f32.mrb[0].mxu0
  %v398 = vpop.f32.mrb[0].mxu0
  %v399 = vadd.f32 %v282, %v398
  %v400 = vpop.f32.mrb[0].mxu0
  %401 = vmatprep.mubr.bf16.mxu0 0
  %402 = vmatmul.mubr.bf16.gmra.mrb[0].mxu0 %v316
  %v403 = vpop.f32.mrb[0].mxu0
  %v404 = vadd.f32 %v282, %v403
  %v405 = vpop.f32.mrb[0].mxu0
  %v406 = vpop.f32.mrb[0].mxu0
  %v407 = vadd.f32 %v282, %v406
  %v408 = vpop.f32.mrb[0].mxu0
  %409 = vmatprep.mubr.bf16.mxu0 0
  %410 = vmatmul.mubr.bf16.gmra.mrb[0].mxu0 %v319
  %v411 = vpop.f32.mrb[0].mxu0
  %v412 = vadd.f32 %v282, %v411
  %v413 = vpop.f32.mrb[0].mxu0
  %v414 = vpop.f32.mrb[0].mxu0
  %v415 = vadd.f32 %v282, %v414
  %v416 = vpop.f32.mrb[0].mxu0
  %417 = vdwg.mxu0
  %v418 = vmax.f32 %v356, 0.0
  %v419 = vmax.f32 %v359, 0.0
  %v420 = vmax.f32 %v364, 0.0
  %v421 = vmax.f32 %v367, 0.0
  %v422 = vmax.f32 %v372, 0.0
  %v423 = vmax.f32 %v375, 0.0
  %v424 = vmax.f32 %v380, 0.0
  %v425 = vmax.f32 %v383, 0.0
  %v426 = vmax.f32 %v388, 0.0
  %v427 = vmax.f32 %v391, 0.0
  %v428 = vmax.f32 %v396, 0.0
  %v429 = vmax.f32 %v399, 0.0
  %v430 = vmax.f32 %v404, 0.0
  %v431 = vmax.f32 %v407, 0.0
  %v432 = vmax.f32 %v412, 0.0
  %v433 = vmax.f32 %v415, 0.0
  %vm434 = vcmask 523264
  %v435 = vsel %vm434, %v418, -inf
  %v436 = vrot.slane %v435, 4
  %v437 = vmax.f32 %v435, %v436
  %v438 = vrot.slane %v437, 2
  %v439 = vmax.f32 %v437, %v438
  %v440 = vrot.slane %v439, 1
  %v441 = vmax.f32 %v439, %v440
  %v442 = vsel %vm434, %v419, -inf
  %v443 = vrot.slane %v442, 4
  %v444 = vmax.f32 %v442, %v443
  %v445 = vrot.slane %v444, 2
  %v446 = vmax.f32 %v444, %v445
  %v447 = vrot.slane %v446, 1
  %v448 = vmax.f32 %v446, %v447
  %v449 = vsel %vm434, %v420, -inf
  %v450 = vrot.slane %v449, 4
  %v451 = vmax.f32 %v449, %v450
  %v452 = vrot.slane %v451, 2
  %v453 = vmax.f32 %v451, %v452
  %v454 = vrot.slane %v453, 1
  %v455 = vmax.f32 %v453, %v454
  %v456 = vsel %vm434, %v421, -inf
  %v457 = vrot.slane %v456, 4
  %v458 = vmax.f32 %v456, %v457
  %v459 = vrot.slane %v458, 2
  %v460 = vmax.f32 %v458, %v459
  %v461 = vrot.slane %v460, 1
  %v462 = vmax.f32 %v460, %v461
  %v463 = vsel %vm434, %v422, -inf
  %v464 = vrot.slane %v463, 4
  %v465 = vmax.f32 %v463, %v464
  %v466 = vrot.slane %v465, 2
  %v467 = vmax.f32 %v465, %v466
  %v468 = vrot.slane %v467, 1
  %v469 = vmax.f32 %v467, %v468
  %v470 = vsel %vm434, %v423, -inf
  %v471 = vrot.slane %v470, 4
  %v472 = vmax.f32 %v470, %v471
  %v473 = vrot.slane %v472, 2
  %v474 = vmax.f32 %v472, %v473
  %v475 = vrot.slane %v474, 1
  %v476 = vmax.f32 %v474, %v475
  %v477 = vsel %vm434, %v424, -inf
  %v478 = vrot.slane %v477, 4
  %v479 = vmax.f32 %v477, %v478
  %v480 = vrot.slane %v479, 2
  %v481 = vmax.f32 %v479, %v480
  %v482 = vrot.slane %v481, 1
  %v483 = vmax.f32 %v481, %v482
  %v484 = vsel %vm434, %v425, -inf
  %v485 = vrot.slane %v484, 4
  %v486 = vmax.f32 %v484, %v485
  %v487 = vrot.slane %v486, 2
  %v488 = vmax.f32 %v486, %v487
  %v489 = vrot.slane %v488, 1
  %v490 = vmax.f32 %v488, %v489
  %v491 = vsel %vm434, %v426, -inf
  %v492 = vrot.slane %v491, 4
  %v493 = vmax.f32 %v491, %v492
  %v494 = vrot.slane %v493, 2
  %v495 = vmax.f32 %v493, %v494
  %v496 = vrot.slane %v495, 1
  %v497 = vmax.f32 %v495, %v496
  %v498 = vsel %vm434, %v427, -inf
  %v499 = vrot.slane %v498, 4
  %v500 = vmax.f32 %v498, %v499
  %v501 = vrot.slane %v500, 2
  %v502 = vmax.f32 %v500, %v501
  %v503 = vrot.slane %v502, 1
  %v504 = vmax.f32 %v502, %v503
  %v505 = vsel %vm434, %v428, -inf
  %v506 = vrot.slane %v505, 4
  %v507 = vmax.f32 %v505, %v506
  %v508 = vrot.slane %v507, 2
  %v509 = vmax.f32 %v507, %v508
  %v510 = vrot.slane %v509, 1
  %v511 = vmax.f32 %v509, %v510
  %v512 = vsel %vm434, %v429, -inf
  %v513 = vrot.slane %v512, 4
  %v514 = vmax.f32 %v512, %v513
  %v515 = vrot.slane %v514, 2
  %v516 = vmax.f32 %v514, %v515
  %v517 = vrot.slane %v516, 1
  %v518 = vmax.f32 %v516, %v517
  %v519 = vsel %vm434, %v430, -inf
  %v520 = vrot.slane %v519, 4
  %v521 = vmax.f32 %v519, %v520
  %v522 = vrot.slane %v521, 2
  %v523 = vmax.f32 %v521, %v522
  %v524 = vrot.slane %v523, 1
  %v525 = vmax.f32 %v523, %v524
  %v526 = vsel %vm434, %v431, -inf
  %v527 = vrot.slane %v526, 4
  %v528 = vmax.f32 %v526, %v527
  %v529 = vrot.slane %v528, 2
  %v530 = vmax.f32 %v528, %v529
  %v531 = vrot.slane %v530, 1
  %v532 = vmax.f32 %v530, %v531
  %v533 = vsel %vm434, %v432, -inf
  %v534 = vrot.slane %v533, 4
  %v535 = vmax.f32 %v533, %v534
  %v536 = vrot.slane %v535, 2
  %v537 = vmax.f32 %v535, %v536
  %v538 = vrot.slane %v537, 1
  %v539 = vmax.f32 %v537, %v538
  %v540 = vsel %vm434, %v433, -inf
  %v541 = vrot.slane %v540, 4
  %v542 = vmax.f32 %v540, %v541
  %v543 = vrot.slane %v542, 2
  %v544 = vmax.f32 %v542, %v543
  %v545 = vrot.slane %v544, 1
  %v546 = vmax.f32 %v544, %v545
  %vm563 = vcmask 1041409
  %v564 = vsel %vm563, %v448, %v441
  %vm565 = vcmask 1042434
  %v566 = vsel %vm565, %v455, %v564
  %vm567 = vcmask 1043459
  %v568 = vsel %vm567, %v462, %v566
  %vm569 = vcmask 1044484
  %v570 = vsel %vm569, %v469, %v568
  %vm571 = vcmask 1045509
  %v572 = vsel %vm571, %v476, %v570
  %vm573 = vcmask 1046534
  %v574 = vsel %vm573, %v483, %v572
  %vm575 = vcmask 1047559
  %v576 = vsel %vm575, %v490, %v574
  %v577 = vsel %vm563, %v504, %v497
  %v578 = vsel %vm565, %v511, %v577
  %v579 = vsel %vm567, %v518, %v578
  %v580 = vsel %vm569, %v525, %v579
  %v581 = vsel %vm571, %v532, %v580
  %v582 = vsel %vm573, %v539, %v581
  %v583 = vsel %vm575, %v546, %v582
  %586 = vst.msk [vmem:[%s5] sm:$0xff] %vm434, %v576
  %587 = vst.msk [vmem:[%s5 + $0x8] sm:$0xff] %vm434, %v583
  // Predicated region
  $region22: #{pointnet2_layer_forward.22} parent=0 // pred_check
    _
  $region23: #{pointnet2_layer_forward.22} parent=0 // pred_check_branch
    %589 = sbr.rel (0) target = $region25
  $region24: #{pointnet2_layer_forward.22} parent=0 // pred_region
    _
  $region25: #{pointnet2_layer_forward.22} parent=0 // pred_fallthru
    _
  // Predicated region
  $region26: #{pointnet2_layer_forward.22} parent=0 // pred_check
    _
  $region27: #{pointnet2_layer_forward.22} parent=0 // pred_check_branch
    %591 = sbr.rel (0) target = $region29
  $region28: #{pointnet2_layer_forward.22} parent=0 // pred_region
    _
  $region29: #{pointnet2_layer_forward.22} parent=0 // pred_fallthru
    _

// kernel: neg.18
$region0: #{neg.18}
  #allocation0 [shape = 's32[1]{0}', space=sflag, size = 0x4, scoped, tag = 'scoped memory for neg.18']
  %s0 = inlined_call_operand.vmem [shape: f32[2,16,8], index: 0, kind: input, shape index: {}]
  %s1 = inlined_call_operand.vmem [shape: f32[2,16,8], index: 1, kind: output, shape index: {}]
  %v2 = vld [vmem:[%s0] sm:$0xff]
  %3 = xla_tuple %v2
  %4 = xla_tuple %3
  %v5 = vxor.u32 %v2, 2147483648
  %6 = xla_tuple %v5
  %7 = vst [vmem:[%s1] sm:$0xff] %v5
  %s8 = scalar_lea.vmem %s0, 16
  %v9 = vld [vmem:[%s8] sm:$0xff]
  %10 = xla_tuple %v9
  %11 = xla_tuple %10
  %v12 = vxor.u32 %v9, 2147483648
  %13 = xla_tuple %v12
  %s14 = scalar_lea.vmem %s1, 16
  %15 = vst [vmem:[%s14] sm:$0xff] %v12
  %s16 = scalar_lea.vmem %s0, 8
  %v17 = vld [vmem:[%s16] sm:$0xff]
  %18 = xla_tuple %v17
  %19 = xla_tuple %18
  %v20 = vxor.u32 %v17, 2147483648
  %21 = xla_tuple %v20
  %s22 = scalar_lea.vmem %s1, 8
  %23 = vst [vmem:[%s22] sm:$0xff] %v20
  %s24 = scalar_lea.vmem %s0, 24
  %v25 = vld [vmem:[%s24] sm:$0xff]
  %26 = xla_tuple %v25
  %27 = xla_tuple %26
  %v28 = vxor.u32 %v25, 2147483648
  %29 = xla_tuple %v28
  %s30 = scalar_lea.vmem %s1, 24
  %31 = vst [vmem:[%s30] sm:$0xff] %v28

// kernel: pointnet2_layer_forward.24
$region0: #{pointnet2_layer_forward.24}
  #allocation0 [shape = 'u32[]', space=smem, size = 0x4, offset = 0x4, fixed_abs, tag = 'smem constant byte address 0x4 - core index']
  #allocation1 [shape = 'u32[144,128]{1,0:T(1,128)}', space=vmem, size = 0x12000, scoped, tag = 'internal scratch']
  %s0 = inlined_call_operand.vmem [shape: f32[2,16,8], index: 0, kind: input, shape index: {}]
  %s1 = inlined_call_operand.vmem [shape: f32[2,8,8], index: 1, kind: input, shape index: {}]
  %s2 = inlined_call_operand.vmem [shape: f32[2,16,8], index: 2, kind: output, shape index: {}]
  %s3 = sld [smem:[#allocation0]]
  $region41: #{pointnet2_layer_forward.24} parent=0
    _
  %s5 = ssub.s32 1, %s3
  %s6 = scalar_select 0, %s5, %s3
  loop: start=0, step=1, limit=4
  $region2: #{pointnet2_layer_forward.24} parent=0 // loop_pre_header
    _
  $region3: #{pointnet2_layer_forward.24} parent=0 // loop_header
    %s8 = sphi 0, %s12
    %p9 = scmp.ge.s32.totalorder %s8, 4
    %s15 = sphi 0, %s27
    %s16 = sphi 0, %s23
    %s17 = sphi 0, %s15
    %s18 = sphi 0, %s16
    %s19 = sphi 0, %s17
    %s20 = sphi 0, %s18
    %s32 = sphi 0, %s34
    %s35 = sphi 0, %s32
    %s36 = sphi 0, %s35
    %s52 = sphi 0, %s36
    %s58 = sphi 0, %s60
    %s61 = sphi 0, %s58
    %s62 = sphi 0, %s61
    %s78 = sphi 0, %s62
    %s86 = sphi 0, %s88
    %s89 = sphi 0, %s86
    %s90 = sphi 0, %s89
    %s106 = sphi 0, %s90
  $region4: #{pointnet2_layer_forward.24} parent=0 // loop_header_branch
    %11 = sbr.rel (%p9) target = $region8
  $region5: #{pointnet2_layer_forward.24} parent=0 // loop_body
    %s13 = ssub.s32 %s8, 1
    %s14 = ssub.s32 %s8, 2
    %s21 = sadd.s32 1, %s16
    %p22 = scmp.ge.s32.totalorder %s21, 1
    %s23 = scalar_select %p22, 0, %s21
    %s24 = sadd.s32 1, %s15
    %s25 = scalar_select %p22, %s24, %s15
    %p26 = scmp.ge.s32.totalorder %s25, 2
    %s27 = scalar_select %p26, 0, %s25
    %s28 = ssub.s32 %s15, %s27
    %s29 = ssub.s32 %s16, %s23
    %s30 = sor.u32 %s28, %s29
    %p31 = scmp.eq.s32.totalorder %s30, 0
    %s33 = sadd.s32 %s32, 1
    %s34 = scalar_select %p31, %s32, %s33
    %p37 = pneg %p31
    %p38 = scmp.eq.s32.totalorder %s8, 1
    %p39 = por %p37, %p38
    %p40 = scmp.ne.s32.totalorder %s32, %s35
    %p41 = scmp.eq.s32.totalorder %s8, 0
    %p42 = por %p40, %p41
    %p43 = scmp.ne.s32.totalorder %s32, %s35
    %p44 = scmp.eq.s32.totalorder %s13, 1
    %p45 = por %p43, %p44
    %p46 = scmp.ne.s32.totalorder %s35, %s36
    %p47 = scmp.eq.s32.totalorder %s13, 0
    %p48 = por %p46, %p47
    %p49 = scmp.ne.s32.totalorder %s35, %s36
    %p50 = scmp.eq.s32.totalorder %s14, 1
    %p51 = por %p49, %p50
    %p53 = scmp.ne.s32.totalorder %s36, %s52
    %p54 = scmp.eq.s32.totalorder %s14, 0
    %p55 = por %p53, %p54
    %s56 = ssub.s32 %s15, %s27
    %p57 = scmp.eq.s32.totalorder %s56, 0
    %s59 = sadd.s32 %s58, 1
    %s60 = scalar_select %p57, %s58, %s59
    %p63 = pneg %p57
    %p64 = scmp.eq.s32.totalorder %s8, 1
    %p65 = por %p63, %p64
    %p66 = scmp.ne.s32.totalorder %s58, %s61
    %p67 = scmp.eq.s32.totalorder %s8, 0
    %p68 = por %p66, %p67
    %p69 = scmp.ne.s32.totalorder %s58, %s61
    %p70 = scmp.eq.s32.totalorder %s13, 1
    %p71 = por %p69, %p70
    %p72 = scmp.ne.s32.totalorder %s61, %s62
    %p73 = scmp.eq.s32.totalorder %s13, 0
    %p74 = por %p72, %p73
    %p75 = scmp.ne.s32.totalorder %s61, %s62
    %p76 = scmp.eq.s32.totalorder %s14, 1
    %p77 = por %p75, %p76
    %p79 = scmp.ne.s32.totalorder %s62, %s78
    %p80 = scmp.eq.s32.totalorder %s14, 0
    %p81 = por %p79, %p80
    %s82 = ssub.s32 %s15, %s27
    %s83 = ssub.s32 %s16, %s23
    %s84 = sor.u32 %s82, %s83
    %p85 = scmp.eq.s32.totalorder %s84, 0
    %s87 = sadd.s32 %s86, 1
    %s88 = scalar_select %p85, %s86, %s87
    %p91 = pneg %p85
    %p92 = scmp.eq.s32.totalorder %s8, 1
    %p93 = por %p91, %p92
    %p94 = scmp.ne.s32.totalorder %s86, %s89
    %p95 = scmp.eq.s32.totalorder %s8, 0
    %p96 = por %p94, %p95
    %p97 = scmp.ne.s32.totalorder %s86, %s89
    %p98 = scmp.eq.s32.totalorder %s13, 1
    %p99 = por %p97, %p98
    %p100 = scmp.ne.s32.totalorder %s89, %s90
    %p101 = scmp.eq.s32.totalorder %s13, 0
    %p102 = por %p100, %p101
    %p103 = scmp.ne.s32.totalorder %s89, %s90
    %p104 = scmp.eq.s32.totalorder %s14, 1
    %p105 = por %p103, %p104
    %p107 = scmp.ne.s32.totalorder %s90, %s106
    %p108 = scmp.eq.s32.totalorder %s14, 0
    %p109 = por %p107, %p108
    %p110 = scmp.le.s32.totalorder 1, %s8
    %p111 = scmp.lt.s32.totalorder %s8, 3
    %p112 = pnand %p110, %p111
    %p113 = pneg %p112
    // Predicated region
    $region9: #{pointnet2_layer_forward.24} parent=5 // pred_check
      _
    $region10: #{pointnet2_layer_forward.24} parent=5 // pred_check_branch
      %115 = sbr.rel (%p112) target = $region12
    $region11: #{pointnet2_layer_forward.24} parent=5 // pred_region
      %s116 = ssub.s32 %s8, 1
    $region12: #{pointnet2_layer_forward.24} parent=5 // pred_fallthru
      _
    %p117 = scmp.lt.s32.totalorder %s8, 2
    // Predicated region
    $region13: #{pointnet2_layer_forward.24} parent=5 // pred_check
      %p118 = pneg %p117
    $region14: #{pointnet2_layer_forward.24} parent=5 // pred_check_branch
      %120 = sbr.rel (%p118) target = $region16
    $region15: #{pointnet2_layer_forward.24} parent=5 // pred_region
      // Predicated region
      $region17: #{pointnet2_layer_forward.24} parent=15 // pred_check
        %p121 = pneg %p42
      $region18: #{pointnet2_layer_forward.24} parent=15 // pred_check_branch
        %123 = sbr.rel (%p121) target = $region20
      $region19: #{pointnet2_layer_forward.24} parent=15 // pred_region
        %s124 = smul.u32 2, %s16
        %p125 = scmp.lt.s32.totalorder %s15, 1
        %s126 = scalar_select %p125, %s15, 1
        %p127 = scmp.lt.s32.totalorder %s124, 1
        %s128 = scalar_select %p127, %s124, 1
        %s129 = smul.addr %s126, 2
        %s130 = sadd.s32 %s128, %s129
        %s131 = smul.addr %s130, 8
        %s132 = scalar_lea.vmem %s0, %s131
        %s133 = smul.u32 2, %s16
      $region20: #{pointnet2_layer_forward.24} parent=15 // pred_fallthru
        _
      // Predicated region
      $region21: #{pointnet2_layer_forward.24} parent=15 // pred_check
        %p134 = pneg %p68
      $region22: #{pointnet2_layer_forward.24} parent=15 // pred_check_branch
        %136 = sbr.rel (%p134) target = $region24
      $region23: #{pointnet2_layer_forward.24} parent=15 // pred_region
        %p137 = scmp.lt.s32.totalorder %s15, 1
        %s138 = scalar_select %p137, %s15, 1
        %s139 = smul.addr %s138, 8
        %s140 = scalar_lea.vmem %s1, %s139
      $region24: #{pointnet2_layer_forward.24} parent=15 // pred_fallthru
        _
    $region16: #{pointnet2_layer_forward.24} parent=5 // pred_fallthru
      _
    %p141 = scmp.le.s32.totalorder 1, %s8
    %p142 = scmp.lt.s32.totalorder %s8, 3
    %p143 = pnand %p141, %p142
    %p144 = pneg %p143
    // Predicated region
    $region25: #{pointnet2_layer_forward.24} parent=5 // pred_check
      _
    $region26: #{pointnet2_layer_forward.24} parent=5 // pred_check_branch
      %146 = sbr.rel (%p143) target = $region28
    $region27: #{pointnet2_layer_forward.24} parent=5 // pred_region
      %s147 = ssub.s32 %s8, 1
      %s148 = smul.u32 2, %s18
      %p149 = scmp.lt.s32.totalorder %s17, 1
      %s150 = scalar_select %p149, %s17, 1
      %p151 = scmp.lt.s32.totalorder %s148, 1
      %s152 = scalar_select %p151, %s148, 1
      %s153 = smul.addr %s150, 2
      %s154 = sadd.s32 %s152, %s153
      %s155 = smul.addr %s154, 8
      %s156 = scalar_lea.vmem %s0, %s155
      %p157 = pneg %p48
      %p158 = pneg %p45
      %p159 = scmp.lt.s32.totalorder %s17, 1
      %s160 = scalar_select %p159, %s17, 1
      %s161 = smul.addr %s160, 8
      %s162 = scalar_lea.vmem %s1, %s161
      %p163 = pneg %p74
      %p164 = pneg %p71
      %p165 = pneg %p102
      %p166 = pneg %p99
      %s167 = smul.u32 2, %s18
      %p168 = scmp.lt.s32.totalorder %s17, 1
      %s169 = scalar_select %p168, %s17, 1
      %p170 = scmp.lt.s32.totalorder %s167, 1
      %s171 = scalar_select %p170, %s167, 1
      %s172 = smul.addr %s169, 2
      %s173 = sadd.s32 %s171, %s172
      %s174 = smul.addr %s173, 8
      %s175 = scalar_lea.vmem %s2, %s174
      %s176 = smul.u32 2, %s18
      %p177 = scmp.lt.s32.totalorder %s17, 1
      %s178 = scalar_select %p177, %s17, 1
      %p179 = scmp.lt.s32.totalorder %s176, 1
      %s180 = scalar_select %p179, %s176, 1
      %s181 = smul.addr %s178, 2
      %s182 = sadd.s32 %s180, %s181
      %s183 = smul.addr %s182, 8
      %s184 = scalar_lea.vmem %s0, %s183
      %s185 = smul.u32 2, %s18
      %p186 = scmp.lt.s32.totalorder %s17, 1
      %s187 = scalar_select %p186, %s17, 1
      %s188 = smul.addr %s187, 8
      %s189 = scalar_lea.vmem %s1, %s188
      %s190 = smul.u32 2, %s18
      %p191 = scmp.lt.s32.totalorder %s17, 1
      %s192 = scalar_select %p191, %s17, 1
      %p193 = scmp.lt.s32.totalorder %s190, 1
      %s194 = scalar_select %p193, %s190, 1
      %s195 = smul.addr %s192, 2
      %s196 = sadd.s32 %s194, %s195
      %s197 = smul.addr %s196, 8
      %s198 = scalar_lea.vmem %s2, %s197
      %s199 = smul.u32 2, %s18
      %v200 = vld [vmem:[%s184] sm:$0xff]
      %v201 = vld [vmem:[%s184 + $0x8] sm:$0xff]
      %v202 = vld [vmem:[%s189] sm:$0xff]
      %v203 = vmul.f32 %v200, %v200
      %v204 = vmul.f32 %v201, %v201
      %vm205 = vcmask 64512
      %v206 = vsel %vm205, %v203, 0.0
      %207 = vadd.xlane.f32.xlu0 %v206
      %v208 = vpop.xlane.xlu0 %207
      %v209 = vsel %vm205, %v204, 0.0
      %210 = vadd.xlane.f32.xlu0 %v209
      %v211 = vpop.xlane.xlu0 %210
      %v212 = vmul.f32 %v202, %v202
      %v213 = vsel %vm205, %v212, 0.0
      %v214 = vrot.slane %v213, 4
      %v215 = vadd.f32 %v213, %v214
      %v216 = vrot.slane %v215, 2
      %v217 = vadd.f32 %v215, %v216
      %v218 = vrot.slane %v217, 1
      %v219 = vadd.f32 %v217, %v218
      %v221 = vsel %vm205, %v200, 0
      %v224 = vsel %vm205, %v201, 0
      %226 = vmatprep.subr.mxu0 0.0
      %227 = vmatpush1.msra.mxu0 %v202
      %228 = vmatprep.subr.mxu0 0.0
      %229 = vmatpush1.msra.mxu0 0.0
      %230 = vmatprep.subr.mxu0 0.0
      %231 = vmatpush1.msra.mxu0 0.0
      %232 = vmatprep.subr.mxu0 0.0
      %233 = vmatpush1.msra.mxu0 0.0
      %234 = vmatprep.subr.mxu0 0.0
      %235 = vmatpush1.msra.mxu0 0.0
      %236 = vmatprep.subr.mxu0 0.0
      %237 = vmatpush1.msra.mxu0 0.0
      %238 = vmatprep.subr.mxu0 0.0
      %239 = vmatpush1.msra.mxu0 0.0
      %240 = vmatprep.subr.mxu0 0.0
      %241 = vmatpush1.msra.mxu0 0.0
      %242 = vmatprep.subr.mxu0 0.0
      %243 = vmatpush1.msra.mxu0 0.0
      %244 = vmatprep.subr.mxu0 0.0
      %245 = vmatpush1.msra.mxu0 0.0
      %246 = vmatprep.subr.mxu0 0.0
      %247 = vmatpush1.msra.mxu0 0.0
      %248 = vmatprep.subr.mxu0 0.0
      %249 = vmatpush1.msra.mxu0 0.0
      %250 = vmatprep.subr.mxu0 0.0
      %251 = vmatpush1.msra.mxu0 0.0
      %252 = vmatprep.subr.mxu0 0.0
      %253 = vmatpush1.msra.mxu0 0.0
      %254 = vmatprep.subr.mxu0 0.0
      %255 = vmatpush1.msra.mxu0 0.0
      %256 = vmatprep.subr.mxu0 0.0
      %257 = vmatpush1.msra.mxu0 0.0
      %258 = vmatprep.subr.mxu0 0.0
      %259 = vmatpush1.msra.mxu0 0.0
      %260 = vmatprep.subr.mxu0 0.0
      %261 = vmatpush1.msra.mxu0 0.0
      %262 = vmatprep.subr.mxu0 0.0
      %263 = vmatpush1.msra.mxu0 0.0
      %264 = vmatprep.subr.mxu0 0.0
      %265 = vmatpush1.msra.mxu0 0.0
      %266 = vmatprep.subr.mxu0 0.0
      %267 = vmatpush1.msra.mxu0 0.0
      %268 = vmatprep.subr.mxu0 0.0
      %269 = vmatpush1.msra.mxu0 0.0
      %270 = vmatprep.subr.mxu0 0.0
      %271 = vmatpush1.msra.mxu0 0.0
      %272 = vmatprep.subr.mxu0 0.0
      %273 = vmatpush1.msra.mxu0 0.0
      %274 = vmatprep.subr.mxu0 0.0
      %275 = vmatpush1.msra.mxu0 0.0
      %276 = vmatprep.subr.mxu0 0.0
      %277 = vmatpush1.msra.mxu0 0.0
      %278 = vmatprep.subr.mxu0 0.0
      %279 = vmatpush1.msra.mxu0 0.0
      %280 = vmatprep.subr.mxu0 0.0
      %281 = vmatpush1.msra.mxu0 0.0
      %282 = vmatprep.subr.mxu0 0.0
      %283 = vmatpush1.msra.mxu0 0.0
      %284 = vmatprep.subr.mxu0 0.0
      %285 = vmatpush1.msra.mxu0 0.0
      %286 = vmatprep.subr.mxu0 0.0
      %287 = vmatpush1.msra.mxu0 0.0
      %288 = vmatprep.subr.mxu0 0.0
      %289 = vmatpush1.msra.mxu0 0.0
      %290 = vmatprep.mubr.f32.mxu0 0.0
      %291 = vmatmul.mubr.f32.gmra.mrb[0].mxu0 %v221
      %v292 = vpop.f32.mrb[0].mxu0
      %v293 = vadd.f32 0.0, %v292
      %v294 = vpop.f32.mrb[0].mxu0
      %295 = vmatprep.mubr.f32.mxu0 0.0
      %296 = vmatmul.mubr.f32.gmra.mrb[0].mxu0 %v224
      %v297 = vpop.f32.mrb[0].mxu0
      %v298 = vadd.f32 0.0, %v297
      %v299 = vpop.f32.mrb[0].mxu0
      %300 = vdwg.mxu0
      %v301 = vadd.f32 %v208, %v219
      %v302 = vadd.f32 %v211, %v219
      %v303 = vmul.f32 %v293, 2.0
      %v304 = vmul.f32 %v298, 2.0
      %v305 = vsub.f32 %v301, %v303
      %v306 = vsub.f32 %v302, %v304
      %v307 = vmax.f32 %v305, 0.0
      %v308 = vmax.f32 %v306, 0.0
      %309 = vst.msk [vmem:[%s198] sm:$0xff] %vm205, %v307
      %310 = vst.msk [vmem:[%s198 + $0x8] sm:$0xff] %vm205, %v308
      %s311 = smul.u32 2, %s18
      %p312 = scmp.lt.s32.totalorder %s17, 1
      %s313 = scalar_select %p312, %s17, 1
      %p314 = scmp.lt.s32.totalorder %s311, 1
      %s315 = scalar_select %p314, %s311, 1
      %s316 = smul.addr %s313, 2
      %s317 = sadd.s32 %s315, %s316
      %s318 = smul.addr %s317, 8
      %s319 = scalar_lea.vmem %s2, %s318
      // Predicated region
      $region29: #{pointnet2_layer_forward.24} parent=27 // pred_check
        %p320 = pneg %p99
      $region30: #{pointnet2_layer_forward.24} parent=27 // pred_check_branch
        %322 = sbr.rel (%p320) target = $region32
      $region31: #{pointnet2_layer_forward.24} parent=27 // pred_region
        %s323 = smul.u32 2, %s18
      $region32: #{pointnet2_layer_forward.24} parent=27 // pred_fallthru
        _
    $region28: #{pointnet2_layer_forward.24} parent=5 // pred_fallthru
      _
    %p324 = scmp.le.s32.totalorder 2, %s8
    // Predicated region
    $region33: #{pointnet2_layer_forward.24} parent=5 // pred_check
      %p325 = pneg %p324
    $region34: #{pointnet2_layer_forward.24} parent=5 // pred_check_branch
      %327 = sbr.rel (%p325) target = $region36
    $region35: #{pointnet2_layer_forward.24} parent=5 // pred_region
      %s328 = ssub.s32 %s8, 2
      // Predicated region
      $region37: #{pointnet2_layer_forward.24} parent=35 // pred_check
        %p329 = pneg %p105
      $region38: #{pointnet2_layer_forward.24} parent=35 // pred_check_branch
        %331 = sbr.rel (%p329) target = $region40
      $region39: #{pointnet2_layer_forward.24} parent=35 // pred_region
        %s332 = smul.u32 2, %s20
        %p333 = scmp.lt.s32.totalorder %s19, 1
        %s334 = scalar_select %p333, %s19, 1
        %p335 = scmp.lt.s32.totalorder %s332, 1
        %s336 = scalar_select %p335, %s332, 1
        %s337 = smul.addr %s334, 2
        %s338 = sadd.s32 %s336, %s337
        %s339 = smul.addr %s338, 8
        %s340 = scalar_lea.vmem %s2, %s339
      $region40: #{pointnet2_layer_forward.24} parent=35 // pred_fallthru
        _
    $region36: #{pointnet2_layer_forward.24} parent=5 // pred_fallthru
      _
  $region6: #{pointnet2_layer_forward.24} parent=0 // loop_footer
    %s12 = sadd.s32 1, %s8
  $region7: #{pointnet2_layer_forward.24} parent=0 // loop_footer_branch
    %7 = sbr.rel target = $region3
  $region8: #{pointnet2_layer_forward.24} parent=0 // loop_exit
    _

// kernel: neg.20
$region0: #{neg.20}
  #allocation0 [shape = 's32[1]{0}', space=sflag, size = 0x4, scoped, tag = 'scoped memory for neg.20']
  %s0 = inlined_call_operand.vmem [shape: f32[2,32,16], index: 0, kind: input, shape index: {}]
  %s1 = inlined_call_operand.vmem [shape: f32[2,32,16], index: 1, kind: output, shape index: {}]
  %v2 = vld [vmem:[%s0] sm:$0xff]
  %3 = xla_tuple %v2
  %4 = xla_tuple %3
  %v5 = vxor.u32 %v2, 2147483648
  %6 = xla_tuple %v5
  %7 = vst [vmem:[%s1] sm:$0xff] %v5
  %s8 = scalar_lea.vmem %s0, 32
  %v9 = vld [vmem:[%s8] sm:$0xff]
  %10 = xla_tuple %v9
  %11 = xla_tuple %10
  %v12 = vxor.u32 %v9, 2147483648
  %13 = xla_tuple %v12
  %s14 = scalar_lea.vmem %s1, 32
  %15 = vst [vmem:[%s14] sm:$0xff] %v12
  %s16 = scalar_lea.vmem %s0, 8
  %v17 = vld [vmem:[%s16] sm:$0xff]
  %18 = xla_tuple %v17
  %19 = xla_tuple %18
  %v20 = vxor.u32 %v17, 2147483648
  %21 = xla_tuple %v20
  %s22 = scalar_lea.vmem %s1, 8
  %23 = vst [vmem:[%s22] sm:$0xff] %v20
  %s24 = scalar_lea.vmem %s0, 40
  %v25 = vld [vmem:[%s24] sm:$0xff]
  %26 = xla_tuple %v25
  %27 = xla_tuple %26
  %v28 = vxor.u32 %v25, 2147483648
  %29 = xla_tuple %v28
  %s30 = scalar_lea.vmem %s1, 40
  %31 = vst [vmem:[%s30] sm:$0xff] %v28
  %s32 = scalar_lea.vmem %s0, 16
  %v33 = vld [vmem:[%s32] sm:$0xff]
  %34 = xla_tuple %v33
  %35 = xla_tuple %34
  %v36 = vxor.u32 %v33, 2147483648
  %37 = xla_tuple %v36
  %s38 = scalar_lea.vmem %s1, 16
  %39 = vst [vmem:[%s38] sm:$0xff] %v36
  %s40 = scalar_lea.vmem %s0, 48
  %v41 = vld [vmem:[%s40] sm:$0xff]
  %42 = xla_tuple %v41
  %43 = xla_tuple %42
  %v44 = vxor.u32 %v41, 2147483648
  %45 = xla_tuple %v44
  %s46 = scalar_lea.vmem %s1, 48
  %47 = vst [vmem:[%s46] sm:$0xff] %v44
  %s48 = scalar_lea.vmem %s0, 24
  %v49 = vld [vmem:[%s48] sm:$0xff]
  %50 = xla_tuple %v49
  %51 = xla_tuple %50
  %v52 = vxor.u32 %v49, 2147483648
  %53 = xla_tuple %v52
  %s54 = scalar_lea.vmem %s1, 24
  %55 = vst [vmem:[%s54] sm:$0xff] %v52
  %s56 = scalar_lea.vmem %s0, 56
  %v57 = vld [vmem:[%s56] sm:$0xff]
  %58 = xla_tuple %v57
  %59 = xla_tuple %58
  %v60 = vxor.u32 %v57, 2147483648
  %61 = xla_tuple %v60
  %s62 = scalar_lea.vmem %s1, 56
  %63 = vst [vmem:[%s62] sm:$0xff] %v60

// kernel: pointnet2_layer_forward.26
$region0: #{pointnet2_layer_forward.26}
  #allocation0 [shape = 'u32[]', space=smem, size = 0x4, offset = 0x4, fixed_abs, tag = 'smem constant byte address 0x4 - core index']
  #allocation1 [shape = 'u32[144,128]{1,0:T(1,128)}', space=vmem, size = 0x12000, scoped, tag = 'internal scratch']
  %s0 = inlined_call_operand.vmem [shape: f32[2,32,8], index: 0, kind: input, shape index: {}]
  %s1 = inlined_call_operand.vmem [shape: f32[2,8,16], index: 1, kind: input, shape index: {}]
  %s2 = inlined_call_operand.vmem [shape: f32[2,32,16], index: 2, kind: output, shape index: {}]
  %s3 = sld [smem:[#allocation0]]
  $region41: #{pointnet2_layer_forward.26} parent=0
    _
  %s5 = ssub.s32 1, %s3
  %s6 = scalar_select 0, %s5, %s3
  loop: start=0, step=1, limit=4
  $region2: #{pointnet2_layer_forward.26} parent=0 // loop_pre_header
    _
  $region3: #{pointnet2_layer_forward.26} parent=0 // loop_header
    %s8 = sphi 0, %s12
    %p9 = scmp.ge.s32.totalorder %s8, 4
    %s15 = sphi 0, %s27
    %s16 = sphi 0, %s23
    %s17 = sphi 0, %s15
    %s18 = sphi 0, %s16
    %s19 = sphi 0, %s17
    %s20 = sphi 0, %s18
    %s32 = sphi 0, %s34
    %s35 = sphi 0, %s32
    %s36 = sphi 0, %s35
    %s52 = sphi 0, %s36
    %s58 = sphi 0, %s60
    %s61 = sphi 0, %s58
    %s62 = sphi 0, %s61
    %s78 = sphi 0, %s62
    %s86 = sphi 0, %s88
    %s89 = sphi 0, %s86
    %s90 = sphi 0, %s89
    %s106 = sphi 0, %s90
  $region4: #{pointnet2_layer_forward.26} parent=0 // loop_header_branch
    %11 = sbr.rel (%p9) target = $region8
  $region5: #{pointnet2_layer_forward.26} parent=0 // loop_body
    %s13 = ssub.s32 %s8, 1
    %s14 = ssub.s32 %s8, 2
    %s21 = sadd.s32 1, %s16
    %p22 = scmp.ge.s32.totalorder %s21, 1
    %s23 = scalar_select %p22, 0, %s21
    %s24 = sadd.s32 1, %s15
    %s25 = scalar_select %p22, %s24, %s15
    %p26 = scmp.ge.s32.totalorder %s25, 2
    %s27 = scalar_select %p26, 0, %s25
    %s28 = ssub.s32 %s15, %s27
    %s29 = ssub.s32 %s16, %s23
    %s30 = sor.u32 %s28, %s29
    %p31 = scmp.eq.s32.totalorder %s30, 0
    %s33 = sadd.s32 %s32, 1
    %s34 = scalar_select %p31, %s32, %s33
    %p37 = pneg %p31
    %p38 = scmp.eq.s32.totalorder %s8, 1
    %p39 = por %p37, %p38
    %p40 = scmp.ne.s32.totalorder %s32, %s35
    %p41 = scmp.eq.s32.totalorder %s8, 0
    %p42 = por %p40, %p41
    %p43 = scmp.ne.s32.totalorder %s32, %s35
    %p44 = scmp.eq.s32.totalorder %s13, 1
    %p45 = por %p43, %p44
    %p46 = scmp.ne.s32.totalorder %s35, %s36
    %p47 = scmp.eq.s32.totalorder %s13, 0
    %p48 = por %p46, %p47
    %p49 = scmp.ne.s32.totalorder %s35, %s36
    %p50 = scmp.eq.s32.totalorder %s14, 1
    %p51 = por %p49, %p50
    %p53 = scmp.ne.s32.totalorder %s36, %s52
    %p54 = scmp.eq.s32.totalorder %s14, 0
    %p55 = por %p53, %p54
    %s56 = ssub.s32 %s15, %s27
    %p57 = scmp.eq.s32.totalorder %s56, 0
    %s59 = sadd.s32 %s58, 1
    %s60 = scalar_select %p57, %s58, %s59
    %p63 = pneg %p57
    %p64 = scmp.eq.s32.totalorder %s8, 1
    %p65 = por %p63, %p64
    %p66 = scmp.ne.s32.totalorder %s58, %s61
    %p67 = scmp.eq.s32.totalorder %s8, 0
    %p68 = por %p66, %p67
    %p69 = scmp.ne.s32.totalorder %s58, %s61
    %p70 = scmp.eq.s32.totalorder %s13, 1
    %p71 = por %p69, %p70
    %p72 = scmp.ne.s32.totalorder %s61, %s62
    %p73 = scmp.eq.s32.totalorder %s13, 0
    %p74 = por %p72, %p73
    %p75 = scmp.ne.s32.totalorder %s61, %s62
    %p76 = scmp.eq.s32.totalorder %s14, 1
    %p77 = por %p75, %p76
    %p79 = scmp.ne.s32.totalorder %s62, %s78
    %p80 = scmp.eq.s32.totalorder %s14, 0
    %p81 = por %p79, %p80
    %s82 = ssub.s32 %s15, %s27
    %s83 = ssub.s32 %s16, %s23
    %s84 = sor.u32 %s82, %s83
    %p85 = scmp.eq.s32.totalorder %s84, 0
    %s87 = sadd.s32 %s86, 1
    %s88 = scalar_select %p85, %s86, %s87
    %p91 = pneg %p85
    %p92 = scmp.eq.s32.totalorder %s8, 1
    %p93 = por %p91, %p92
    %p94 = scmp.ne.s32.totalorder %s86, %s89
    %p95 = scmp.eq.s32.totalorder %s8, 0
    %p96 = por %p94, %p95
    %p97 = scmp.ne.s32.totalorder %s86, %s89
    %p98 = scmp.eq.s32.totalorder %s13, 1
    %p99 = por %p97, %p98
    %p100 = scmp.ne.s32.totalorder %s89, %s90
    %p101 = scmp.eq.s32.totalorder %s13, 0
    %p102 = por %p100, %p101
    %p103 = scmp.ne.s32.totalorder %s89, %s90
    %p104 = scmp.eq.s32.totalorder %s14, 1
    %p105 = por %p103, %p104
    %p107 = scmp.ne.s32.totalorder %s90, %s106
    %p108 = scmp.eq.s32.totalorder %s14, 0
    %p109 = por %p107, %p108
    %p110 = scmp.le.s32.totalorder 1, %s8
    %p111 = scmp.lt.s32.totalorder %s8, 3
    %p112 = pnand %p110, %p111
    %p113 = pneg %p112
    // Predicated region
    $region9: #{pointnet2_layer_forward.26} parent=5 // pred_check
      _
    $region10: #{pointnet2_layer_forward.26} parent=5 // pred_check_branch
      %115 = sbr.rel (%p112) target = $region12
    $region11: #{pointnet2_layer_forward.26} parent=5 // pred_region
      %s116 = ssub.s32 %s8, 1
    $region12: #{pointnet2_layer_forward.26} parent=5 // pred_fallthru
      _
    %p117 = scmp.lt.s32.totalorder %s8, 2
    // Predicated region
    $region13: #{pointnet2_layer_forward.26} parent=5 // pred_check
      %p118 = pneg %p117
    $region14: #{pointnet2_layer_forward.26} parent=5 // pred_check_branch
      %120 = sbr.rel (%p118) target = $region16
    $region15: #{pointnet2_layer_forward.26} parent=5 // pred_region
      // Predicated region
      $region17: #{pointnet2_layer_forward.26} parent=15 // pred_check
        %p121 = pneg %p42
      $region18: #{pointnet2_layer_forward.26} parent=15 // pred_check_branch
        %123 = sbr.rel (%p121) target = $region20
      $region19: #{pointnet2_layer_forward.26} parent=15 // pred_region
        %s124 = smul.u32 4, %s16
        %p125 = scmp.lt.s32.totalorder %s15, 1
        %s126 = scalar_select %p125, %s15, 1
        %p127 = scmp.lt.s32.totalorder %s124, 3
        %s128 = scalar_select %p127, %s124, 3
        %s129 = smul.addr %s126, 4
        %s130 = sadd.s32 %s128, %s129
        %s131 = smul.addr %s130, 8
        %s132 = scalar_lea.vmem %s0, %s131
        %s133 = smul.u32 4, %s16
      $region20: #{pointnet2_layer_forward.26} parent=15 // pred_fallthru
        _
      // Predicated region
      $region21: #{pointnet2_layer_forward.26} parent=15 // pred_check
        %p134 = pneg %p68
      $region22: #{pointnet2_layer_forward.26} parent=15 // pred_check_branch
        %136 = sbr.rel (%p134) target = $region24
      $region23: #{pointnet2_layer_forward.26} parent=15 // pred_region
        %p137 = scmp.lt.s32.totalorder %s15, 1
        %s138 = scalar_select %p137, %s15, 1
        %s139 = smul.addr %s138, 8
        %s140 = scalar_lea.vmem %s1, %s139
      $region24: #{pointnet2_layer_forward.26} parent=15 // pred_fallthru
        _
    $region16: #{pointnet2_layer_forward.26} parent=5 // pred_fallthru
      _
    %p141 = scmp.le.s32.totalorder 1, %s8
    %p142 = scmp.lt.s32.totalorder %s8, 3
    %p143 = pnand %p141, %p142
    %p144 = pneg %p143
    // Predicated region
    $region25: #{pointnet2_layer_forward.26} parent=5 // pred_check
      _
    $region26: #{pointnet2_layer_forward.26} parent=5 // pred_check_branch
      %146 = sbr.rel (%p143) target = $region28
    $region27: #{pointnet2_layer_forward.26} parent=5 // pred_region
      %s147 = ssub.s32 %s8, 1
      %s148 = smul.u32 4, %s18
      %p149 = scmp.lt.s32.totalorder %s17, 1
      %s150 = scalar_select %p149, %s17, 1
      %p151 = scmp.lt.s32.totalorder %s148, 3
      %s152 = scalar_select %p151, %s148, 3
      %s153 = smul.addr %s150, 4
      %s154 = sadd.s32 %s152, %s153
      %s155 = smul.addr %s154, 8
      %s156 = scalar_lea.vmem %s0, %s155
      %p157 = pneg %p48
      %p158 = pneg %p45
      %p159 = scmp.lt.s32.totalorder %s17, 1
      %s160 = scalar_select %p159, %s17, 1
      %s161 = smul.addr %s160, 8
      %s162 = scalar_lea.vmem %s1, %s161
      %p163 = pneg %p74
      %p164 = pneg %p71
      %p165 = pneg %p102
      %p166 = pneg %p99
      %s167 = smul.u32 4, %s18
      %p168 = scmp.lt.s32.totalorder %s17, 1
      %s169 = scalar_select %p168, %s17, 1
      %p170 = scmp.lt.s32.totalorder %s167, 3
      %s171 = scalar_select %p170, %s167, 3
      %s172 = smul.addr %s169, 4
      %s173 = sadd.s32 %s171, %s172
      %s174 = smul.addr %s173, 8
      %s175 = scalar_lea.vmem %s2, %s174
      %s176 = smul.u32 4, %s18
      %p177 = scmp.lt.s32.totalorder %s17, 1
      %s178 = scalar_select %p177, %s17, 1
      %p179 = scmp.lt.s32.totalorder %s176, 3
      %s180 = scalar_select %p179, %s176, 3
      %s181 = smul.addr %s178, 4
      %s182 = sadd.s32 %s180, %s181
      %s183 = smul.addr %s182, 8
      %s184 = scalar_lea.vmem %s0, %s183
      %s185 = smul.u32 4, %s18
      %p186 = scmp.lt.s32.totalorder %s17, 1
      %s187 = scalar_select %p186, %s17, 1
      %s188 = smul.addr %s187, 8
      %s189 = scalar_lea.vmem %s1, %s188
      %s190 = smul.u32 4, %s18
      %p191 = scmp.lt.s32.totalorder %s17, 1
      %s192 = scalar_select %p191, %s17, 1
      %p193 = scmp.lt.s32.totalorder %s190, 3
      %s194 = scalar_select %p193, %s190, 3
      %s195 = smul.addr %s192, 4
      %s196 = sadd.s32 %s194, %s195
      %s197 = smul.addr %s196, 8
      %s198 = scalar_lea.vmem %s2, %s197
      %s199 = smul.u32 4, %s18
      %v200 = vld [vmem:[%s184] sm:$0xff]
      %v201 = vld [vmem:[%s184 + $0x8] sm:$0xff]
      %v202 = vld [vmem:[%s184 + $0x10] sm:$0xff]
      %v203 = vld [vmem:[%s184 + $0x18] sm:$0xff]
      %v204 = vld [vmem:[%s189] sm:$0xff]
      %v205 = vmul.f32 %v200, %v200
      %v206 = vmul.f32 %v201, %v201
      %v207 = vmul.f32 %v202, %v202
      %v208 = vmul.f32 %v203, %v203
      %vm209 = vcmask 64512
      %v210 = vsel %vm209, %v205, 0.0
      %211 = vadd.xlane.f32.xlu0 %v210
      %v212 = vpop.xlane.xlu0 %211
      %v213 = vsel %vm209, %v206, 0.0
      %214 = vadd.xlane.f32.xlu0 %v213
      %v215 = vpop.xlane.xlu0 %214
      %v216 = vsel %vm209, %v207, 0.0
      %217 = vadd.xlane.f32.xlu0 %v216
      %v218 = vpop.xlane.xlu0 %217
      %v219 = vsel %vm209, %v208, 0.0
      %220 = vadd.xlane.f32.xlu0 %v219
      %v221 = vpop.xlane.xlu0 %220
      %v222 = vmul.f32 %v204, %v204
      %vm223 = vcmask 130048
      %v224 = vsel %vm223, %v222, 0.0
      %v225 = vrot.slane %v224, 4
      %v226 = vadd.f32 %v224, %v225
      %v227 = vrot.slane %v226, 2
      %v228 = vadd.f32 %v226, %v227
      %v229 = vrot.slane %v228, 1
      %v230 = vadd.f32 %v228, %v229
      %v232 = vsel %vm209, %v200, 0
      %v235 = vsel %vm209, %v201, 0
      %v238 = vsel %vm209, %v202, 0
      %v241 = vsel %vm209, %v203, 0
      %243 = vmatprep.subr.mxu0 0.0
      %244 = vmatpush1.msra.mxu0 %v204
      %245 = vmatprep.subr.mxu0 0.0
      %246 = vmatpush1.msra.mxu0 0.0
      %247 = vmatprep.subr.mxu0 0.0
      %248 = vmatpush1.msra.mxu0 0.0
      %249 = vmatprep.subr.mxu0 0.0
      %250 = vmatpush1.msra.mxu0 0.0
      %251 = vmatprep.subr.mxu0 0.0
      %252 = vmatpush1.msra.mxu0 0.0
      %253 = vmatprep.subr.mxu0 0.0
      %254 = vmatpush1.msra.mxu0 0.0
      %255 = vmatprep.subr.mxu0 0.0
      %256 = vmatpush1.msra.mxu0 0.0
      %257 = vmatprep.subr.mxu0 0.0
      %258 = vmatpush1.msra.mxu0 0.0
      %259 = vmatprep.subr.mxu0 0.0
      %260 = vmatpush1.msra.mxu0 0.0
      %261 = vmatprep.subr.mxu0 0.0
      %262 = vmatpush1.msra.mxu0 0.0
      %263 = vmatprep.subr.mxu0 0.0
      %264 = vmatpush1.msra.mxu0 0.0
      %265 = vmatprep.subr.mxu0 0.0
      %266 = vmatpush1.msra.mxu0 0.0
      %267 = vmatprep.subr.mxu0 0.0
      %268 = vmatpush1.msra.mxu0 0.0
      %269 = vmatprep.subr.mxu0 0.0
      %270 = vmatpush1.msra.mxu0 0.0
      %271 = vmatprep.subr.mxu0 0.0
      %272 = vmatpush1.msra.mxu0 0.0
      %273 = vmatprep.subr.mxu0 0.0
      %274 = vmatpush1.msra.mxu0 0.0
      %275 = vmatprep.subr.mxu0 0.0
      %276 = vmatpush1.msra.mxu0 0.0
      %277 = vmatprep.subr.mxu0 0.0
      %278 = vmatpush1.msra.mxu0 0.0
      %279 = vmatprep.subr.mxu0 0.0
      %280 = vmatpush1.msra.mxu0 0.0
      %281 = vmatprep.subr.mxu0 0.0
      %282 = vmatpush1.msra.mxu0 0.0
      %283 = vmatprep.subr.mxu0 0.0
      %284 = vmatpush1.msra.mxu0 0.0
      %285 = vmatprep.subr.mxu0 0.0
      %286 = vmatpush1.msra.mxu0 0.0
      %287 = vmatprep.subr.mxu0 0.0
      %288 = vmatpush1.msra.mxu0 0.0
      %289 = vmatprep.subr.mxu0 0.0
      %290 = vmatpush1.msra.mxu0 0.0
      %291 = vmatprep.subr.mxu0 0.0
      %292 = vmatpush1.msra.mxu0 0.0
      %293 = vmatprep.subr.mxu0 0.0
      %294 = vmatpush1.msra.mxu0 0.0
      %295 = vmatprep.subr.mxu0 0.0
      %296 = vmatpush1.msra.mxu0 0.0
      %297 = vmatprep.subr.mxu0 0.0
      %298 = vmatpush1.msra.mxu0 0.0
      %299 = vmatprep.subr.mxu0 0.0
      %300 = vmatpush1.msra.mxu0 0.0
      %301 = vmatprep.subr.mxu0 0.0
      %302 = vmatpush1.msra.mxu0 0.0
      %303 = vmatprep.subr.mxu0 0.0
      %304 = vmatpush1.msra.mxu0 0.0
      %305 = vmatprep.subr.mxu0 0.0
      %306 = vmatpush1.msra.mxu0 0.0
      %307 = vmatprep.mubr.f32.mxu0 0.0
      %308 = vmatmul.mubr.f32.gmra.mrb[0].mxu0 %v232
      %v309 = vpop.f32.mrb[0].mxu0
      %v310 = vadd.f32 0.0, %v309
      %v311 = vpop.f32.mrb[0].mxu0
      %312 = vmatprep.mubr.f32.mxu0 0.0
      %313 = vmatmul.mubr.f32.gmra.mrb[0].mxu0 %v235
      %v314 = vpop.f32.mrb[0].mxu0
      %v315 = vadd.f32 0.0, %v314
      %v316 = vpop.f32.mrb[0].mxu0
      %317 = vmatprep.mubr.f32.mxu0 0.0
      %318 = vmatmul.mubr.f32.gmra.mrb[0].mxu0 %v238
      %v319 = vpop.f32.mrb[0].mxu0
      %v320 = vadd.f32 0.0, %v319
      %v321 = vpop.f32.mrb[0].mxu0
      %322 = vmatprep.mubr.f32.mxu0 0.0
      %323 = vmatmul.mubr.f32.gmra.mrb[0].mxu0 %v241
      %v324 = vpop.f32.mrb[0].mxu0
      %v325 = vadd.f32 0.0, %v324
      %v326 = vpop.f32.mrb[0].mxu0
      %327 = vdwg.mxu0
      %v328 = vadd.f32 %v212, %v230
      %v329 = vadd.f32 %v215, %v230
      %v330 = vadd.f32 %v218, %v230
      %v331 = vadd.f32 %v221, %v230
      %v332 = vmul.f32 %v310, 2.0
      %v333 = vmul.f32 %v315, 2.0
      %v334 = vmul.f32 %v320, 2.0
      %v335 = vmul.f32 %v325, 2.0
      %v336 = vsub.f32 %v328, %v332
      %v337 = vsub.f32 %v329, %v333
      %v338 = vsub.f32 %v330, %v334
      %v339 = vsub.f32 %v331, %v335
      %v340 = vmax.f32 %v336, 0.0
      %v341 = vmax.f32 %v337, 0.0
      %v342 = vmax.f32 %v338, 0.0
      %v343 = vmax.f32 %v339, 0.0
      %344 = vst.msk [vmem:[%s198] sm:$0xff] %vm223, %v340
      %345 = vst.msk [vmem:[%s198 + $0x8] sm:$0xff] %vm223, %v341
      %346 = vst.msk [vmem:[%s198 + $0x10] sm:$0xff] %vm223, %v342
      %347 = vst.msk [vmem:[%s198 + $0x18] sm:$0xff] %vm223, %v343
      %s348 = smul.u32 4, %s18
      %p349 = scmp.lt.s32.totalorder %s17, 1
      %s350 = scalar_select %p349, %s17, 1
      %p351 = scmp.lt.s32.totalorder %s348, 3
      %s352 = scalar_select %p351, %s348, 3
      %s353 = smul.addr %s350, 4
      %s354 = sadd.s32 %s352, %s353
      %s355 = smul.addr %s354, 8
      %s356 = scalar_lea.vmem %s2, %s355
      // Predicated region
      $region29: #{pointnet2_layer_forward.26} parent=27 // pred_check
        %p357 = pneg %p99
      $region30: #{pointnet2_layer_forward.26} parent=27 // pred_check_branch
        %359 = sbr.rel (%p357) target = $region32
      $region31: #{pointnet2_layer_forward.26} parent=27 // pred_region
        %s360 = smul.u32 4, %s18
      $region32: #{pointnet2_layer_forward.26} parent=27 // pred_fallthru
        _
    $region28: #{pointnet2_layer_forward.26} parent=5 // pred_fallthru
      _
    %p361 = scmp.le.s32.totalorder 2, %s8
    // Predicated region
    $region33: #{pointnet2_layer_forward.26} parent=5 // pred_check
      %p362 = pneg %p361
    $region34: #{pointnet2_layer_forward.26} parent=5 // pred_check_branch
      %364 = sbr.rel (%p362) target = $region36
    $region35: #{pointnet2_layer_forward.26} parent=5 // pred_region
      %s365 = ssub.s32 %s8, 2
      // Predicated region
      $region37: #{pointnet2_layer_forward.26} parent=35 // pred_check
        %p366 = pneg %p105
      $region38: #{pointnet2_layer_forward.26} parent=35 // pred_check_branch
        %368 = sbr.rel (%p366) target = $region40
      $region39: #{pointnet2_layer_forward.26} parent=35 // pred_region
        %s369 = smul.u32 4, %s20
        %p370 = scmp.lt.s32.totalorder %s19, 1
        %s371 = scalar_select %p370, %s19, 1
        %p372 = scmp.lt.s32.totalorder %s369, 3
        %s373 = scalar_select %p372, %s369, 3
        %s374 = smul.addr %s371, 4
        %s375 = sadd.s32 %s373, %s374
        %s376 = smul.addr %s375, 8
        %s377 = scalar_lea.vmem %s2, %s376
      $region40: #{pointnet2_layer_forward.26} parent=35 // pred_fallthru
        _
    $region36: #{pointnet2_layer_forward.26} parent=5 // pred_fallthru
      _
  $region6: #{pointnet2_layer_forward.26} parent=0 // loop_footer
    %s12 = sadd.s32 1, %s8
  $region7: #{pointnet2_layer_forward.26} parent=0 // loop_footer_branch
    %7 = sbr.rel target = $region3
  $region8: #{pointnet2_layer_forward.26} parent=0 // loop_exit
    _

// kernel: pointnet2_layer_forward.25
$region0: #{pointnet2_layer_forward.25}
  #allocation0 [shape = 'u32[]', space=smem, size = 0x4, offset = 0x4, fixed_abs, tag = 'smem constant byte address 0x4 - core index']
  #allocation1 [shape = 'u32[144,128]{1,0:T(1,128)}', space=vmem, size = 0x12000, scoped, tag = 'internal scratch']
  %s0 = inlined_call_operand.vmem [shape: bf16[32,192], index: 0, kind: input, shape index: {}]
  %s1 = inlined_call_operand.vmem [shape: bf16[192,64], index: 1, kind: input, shape index: {}]
  %s2 = inlined_call_operand.vmem [shape: f32[1,64], index: 2, kind: input, shape index: {}]
  %s3 = inlined_call_operand.vmem [shape: f32[32,64], index: 3, kind: output, shape index: {}]
  %s4 = sld [smem:[#allocation0]]
  $region22: #{pointnet2_layer_forward.25} parent=0
    _
  %s6 = ssub.s32 1, %s4
  %s7 = scalar_select 0, %s6, %s4
  // Predicated region
  $region2: #{pointnet2_layer_forward.25} parent=0 // pred_check
    _
  $region3: #{pointnet2_layer_forward.25} parent=0 // pred_check_branch
    %9 = sbr.rel (0) target = $region5
  $region4: #{pointnet2_layer_forward.25} parent=0 // pred_region
    _
  $region5: #{pointnet2_layer_forward.25} parent=0 // pred_fallthru
    _
  // Predicated region
  $region6: #{pointnet2_layer_forward.25} parent=0 // pred_check
    _
  $region7: #{pointnet2_layer_forward.25} parent=0 // pred_check_branch
    %11 = sbr.rel (0) target = $region9
  $region8: #{pointnet2_layer_forward.25} parent=0 // pred_region
    _
  $region9: #{pointnet2_layer_forward.25} parent=0 // pred_fallthru
    _
  // Predicated region
  $region10: #{pointnet2_layer_forward.25} parent=0 // pred_check
    _
  $region11: #{pointnet2_layer_forward.25} parent=0 // pred_check_branch
    %13 = sbr.rel (0) target = $region13
  $region12: #{pointnet2_layer_forward.25} parent=0 // pred_region
    _
  $region13: #{pointnet2_layer_forward.25} parent=0 // pred_fallthru
    _
  %v15 = vld [vmem:[%s0] sm:$0xff]
  %v16 = vld [vmem:[%s0 + $0x8] sm:$0xff]
  %v17 = vld [vmem:[%s0 + $0x10] sm:$0xff]
  %v18 = vld [vmem:[%s0 + $0x18] sm:$0xff]
  %v19 = vld [vmem:[%s1] sm:$0xf]
  %v20 = vld [vmem:[%s1 + $0x4] sm:$0xf]
  %v21 = vld [vmem:[%s1 + $0x8] sm:$0xf]
  %v22 = vld [vmem:[%s1 + $0xc] sm:$0xf]
  %v23 = vld [vmem:[%s1 + $0x10] sm:$0xf]
  %v24 = vld [vmem:[%s1 + $0x14] sm:$0xf]
  %v25 = vld [vmem:[%s1 + $0x18] sm:$0xf]
  %v26 = vld [vmem:[%s1 + $0x1c] sm:$0xf]
  %v27 = vld [vmem:[%s1 + $0x20] sm:$0xf]
  %v28 = vld [vmem:[%s1 + $0x24] sm:$0xf]
  %v29 = vld [vmem:[%s1 + $0x28] sm:$0xf]
  %v30 = vld [vmem:[%s1 + $0x2c] sm:$0xf]
  %v31 = vld [vmem:[%s1 + $0x30] sm:$0xf]
  %v32 = vld [vmem:[%s1 + $0x34] sm:$0xf]
  %v33 = vld [vmem:[%s1 + $0x38] sm:$0xf]
  %v34 = vld [vmem:[%s1 + $0x3c] sm:$0xf]
  %v35 = vld [vmem:[%s1 + $0x40] sm:$0xf]
  %v36 = vld [vmem:[%s1 + $0x44] sm:$0xf]
  %v37 = vld [vmem:[%s1 + $0x48] sm:$0xf]
  %v38 = vld [vmem:[%s1 + $0x4c] sm:$0xf]
  %v39 = vld [vmem:[%s1 + $0x50] sm:$0xf]
  %v40 = vld [vmem:[%s1 + $0x54] sm:$0xf]
  %v41 = vld [vmem:[%s1 + $0x58] sm:$0xf]
  %v42 = vld [vmem:[%s1 + $0x5c] sm:$0xf]
  %v43 = vld [vmem:[%s2] sm:$0x1]
  %v45 = vlaneseq
  %v46 = vshrl.u32 %v45, 7
  %v47 = vsub.s32 0, %v46
  %v48 = vrot.slane %v43, %v47
  %v54 = vunpack.c.l.b16 %v15
  %v55 = vunpack.c.h.b16 %v15
  %v56 = vunpack.c.l.b16 %v16
  %v57 = vunpack.c.h.b16 %v16
  %v58 = vunpack.c.l.b16 %v17
  %v59 = vunpack.c.h.b16 %v17
  %v60 = vunpack.c.l.b16 %v18
  %v61 = vunpack.c.h.b16 %v18
  %v62 = vpack.c.b16 %v56, %v54
  %v63 = vpack.c.b16 %v57, %v55
  %v64 = vpack.c.b16 %v60, %v58
  %v65 = vpack.c.b16 %v61, %v59
  %v92 = vunpack.c.l.b16 %v19
  %v93 = vunpack.c.l.b16 %v20
  %v94 = vunpack.c.l.b16 %v21
  %v95 = vunpack.c.l.b16 %v22
  %v96 = vunpack.c.l.b16 %v23
  %v97 = vunpack.c.l.b16 %v24
  %v98 = vunpack.c.l.b16 %v25
  %v99 = vunpack.c.l.b16 %v26
  %v100 = vunpack.c.l.b16 %v27
  %v101 = vunpack.c.l.b16 %v28
  %v102 = vunpack.c.l.b16 %v29
  %v103 = vunpack.c.l.b16 %v30
  %v104 = vunpack.c.l.b16 %v31
  %v105 = vunpack.c.l.b16 %v32
  %v106 = vunpack.c.l.b16 %v33
  %v107 = vunpack.c.l.b16 %v34
  %v108 = vunpack.c.l.b16 %v35
  %v109 = vunpack.c.l.b16 %v36
  %v110 = vunpack.c.l.b16 %v37
  %v111 = vunpack.c.l.b16 %v38
  %v112 = vunpack.c.l.b16 %v39
  %v113 = vunpack.c.l.b16 %v40
  %v114 = vunpack.c.l.b16 %v41
  %v115 = vunpack.c.l.b16 %v42
  %v116 = vpack.c.b16 %v93, %v92
  %v117 = vpack.c.b16 %v95, %v94
  %v118 = vpack.c.b16 %v97, %v96
  %v119 = vpack.c.b16 %v99, %v98
  %v120 = vpack.c.b16 %v101, %v100
  %v121 = vpack.c.b16 %v103, %v102
  %v122 = vpack.c.b16 %v105, %v104
  %v123 = vpack.c.b16 %v107, %v106
  %v124 = vpack.c.b16 %v109, %v108
  %v125 = vpack.c.b16 %v111, %v110
  %v126 = vpack.c.b16 %v113, %v112
  %v127 = vpack.c.b16 %v115, %v114
  %vm140 = vcmask 523264
  %v142 = vsel %vm140, %v63, 0
  %v145 = vsel %vm140, %v65, 0
  %147 = vmatprep.subr.bf16.mxu0 0
  %148 = vmatpush1.bf16.msra.mxu0 %v116
  %149 = vmatprep.subr.bf16.mxu0 0
  %150 = vmatpush1.bf16.msra.mxu0 %v117
  %151 = vmatprep.subr.bf16.mxu0 0
  %152 = vmatpush1.bf16.msra.mxu0 %v118
  %153 = vmatprep.subr.bf16.mxu0 0
  %154 = vmatpush1.bf16.msra.mxu0 %v119
  %155 = vmatprep.subr.bf16.mxu0 0
  %156 = vmatpush1.bf16.msra.mxu0 %v120
  %157 = vmatprep.subr.bf16.mxu0 0
  %158 = vmatpush1.bf16.msra.mxu0 %v121
  %159 = vmatprep.subr.bf16.mxu0 0
  %160 = vmatpush1.bf16.msra.mxu0 %v122
  %161 = vmatprep.subr.bf16.mxu0 0
  %162 = vmatpush1.bf16.msra.mxu0 %v123
  %163 = vmatprep.subr.bf16.mxu0 0
  %164 = vmatpush1.bf16.msra.mxu0 %v124
  %165 = vmatprep.subr.bf16.mxu0 0
  %166 = vmatpush1.bf16.msra.mxu0 %v125
  %167 = vmatprep.subr.bf16.mxu0 0
  %168 = vmatpush1.bf16.msra.mxu0 %v126
  %169 = vmatprep.subr.bf16.mxu0 0
  %170 = vmatpush1.bf16.msra.mxu0 %v127
  %171 = vmatprep.subr.bf16.mxu0 0
  %172 = vmatpush1.bf16.msra.mxu0 0
  %173 = vmatprep.subr.bf16.mxu0 0
  %174 = vmatpush1.bf16.msra.mxu0 0
  %175 = vmatprep.subr.bf16.mxu0 0
  %176 = vmatpush1.bf16.msra.mxu0 0
  %177 = vmatprep.subr.bf16.mxu0 0
  %178 = vmatpush1.bf16.msra.mxu0 0
  %179 = vmatprep.mubr.bf16.mxu0 %v142
  %180 = vmatmul.mubr.bf16.gmra.mrb[0].mxu0 %v62
  %v181 = vpop.f32.mrb[0].mxu0
  %v182 = vadd.f32 %v48, %v181
  %v183 = vpop.f32.mrb[0].mxu0
  %v184 = vpop.f32.mrb[0].mxu0
  %v185 = vadd.f32 %v48, %v184
  %v186 = vpop.f32.mrb[0].mxu0
  %187 = vmatprep.mubr.bf16.mxu0 %v145
  %188 = vmatmul.mubr.bf16.gmra.mrb[0].mxu0 %v64
  %v189 = vpop.f32.mrb[0].mxu0
  %v190 = vadd.f32 %v48, %v189
  %v191 = vpop.f32.mrb[0].mxu0
  %v192 = vpop.f32.mrb[0].mxu0
  %v193 = vadd.f32 %v48, %v192
  %v194 = vpop.f32.mrb[0].mxu0
  %195 = vdwg.mxu0
  %v196 = vmax.f32 %v182, 0.0
  %v197 = vmax.f32 %v185, 0.0
  %v198 = vmax.f32 %v190, 0.0
  %v199 = vmax.f32 %v193, 0.0
  %200 = vst.msk [vmem:[%s3] sm:$0xff] %vm140, %v196
  %201 = vst.msk [vmem:[%s3 + $0x8] sm:$0xff] %vm140, %v197
  %202 = vst.msk [vmem:[%s3 + $0x10] sm:$0xff] %vm140, %v198
  %203 = vst.msk [vmem:[%s3 + $0x18] sm:$0xff] %vm140, %v199
  // Predicated region
  $region14: #{pointnet2_layer_forward.25} parent=0 // pred_check
    _
  $region15: #{pointnet2_layer_forward.25} parent=0 // pred_check_branch
    %205 = sbr.rel (0) target = $region17
  $region16: #{pointnet2_layer_forward.25} parent=0 // pred_region
    _
  $region17: #{pointnet2_layer_forward.25} parent=0 // pred_fallthru
    _
  // Predicated region
  $region18: #{pointnet2_layer_forward.25} parent=0 // pred_check
    _
  $region19: #{pointnet2_layer_forward.25} parent=0 // pred_check_branch
    %207 = sbr.rel (0) target = $region21
  $region20: #{pointnet2_layer_forward.25} parent=0 // pred_region
    _
  $region21: #{pointnet2_layer_forward.25} parent=0 // pred_fallthru
    _

// kernel: neg.22
$region0: #{neg.22}
  #allocation0 [shape = 's32[1]{0}', space=sflag, size = 0x4, scoped, tag = 'scoped memory for neg.22']
  %s0 = inlined_call_operand.vmem [shape: f32[2,64,32], index: 0, kind: input, shape index: {}]
  %s1 = inlined_call_operand.vmem [shape: f32[2,64,32], index: 1, kind: output, shape index: {}]
  %v2 = vld [vmem:[%s0] sm:$0xff]
  %3 = xla_tuple %v2
  %4 = xla_tuple %3
  %v5 = vxor.u32 %v2, 2147483648
  %6 = xla_tuple %v5
  %7 = vst [vmem:[%s1] sm:$0xff] %v5
  %s8 = scalar_lea.vmem %s0, 64
  %v9 = vld [vmem:[%s8] sm:$0xff]
  %10 = xla_tuple %v9
  %11 = xla_tuple %10
  %v12 = vxor.u32 %v9, 2147483648
  %13 = xla_tuple %v12
  %s14 = scalar_lea.vmem %s1, 64
  %15 = vst [vmem:[%s14] sm:$0xff] %v12
  %s16 = scalar_lea.vmem %s0, 8
  %v17 = vld [vmem:[%s16] sm:$0xff]
  %18 = xla_tuple %v17
  %19 = xla_tuple %18
  %v20 = vxor.u32 %v17, 2147483648
  %21 = xla_tuple %v20
  %s22 = scalar_lea.vmem %s1, 8
  %23 = vst [vmem:[%s22] sm:$0xff] %v20
  %s24 = scalar_lea.vmem %s0, 72
  %v25 = vld [vmem:[%s24] sm:$0xff]
  %26 = xla_tuple %v25
  %27 = xla_tuple %26
  %v28 = vxor.u32 %v25, 2147483648
  %29 = xla_tuple %v28
  %s30 = scalar_lea.vmem %s1, 72
  %31 = vst [vmem:[%s30] sm:$0xff] %v28
  %s32 = scalar_lea.vmem %s0, 16
  %v33 = vld [vmem:[%s32] sm:$0xff]
  %34 = xla_tuple %v33
  %35 = xla_tuple %34
  %v36 = vxor.u32 %v33, 2147483648
  %37 = xla_tuple %v36
  %s38 = scalar_lea.vmem %s1, 16
  %39 = vst [vmem:[%s38] sm:$0xff] %v36
  %s40 = scalar_lea.vmem %s0, 80
  %v41 = vld [vmem:[%s40] sm:$0xff]
  %42 = xla_tuple %v41
  %43 = xla_tuple %42
  %v44 = vxor.u32 %v41, 2147483648
  %45 = xla_tuple %v44
  %s46 = scalar_lea.vmem %s1, 80
  %47 = vst [vmem:[%s46] sm:$0xff] %v44
  %s48 = scalar_lea.vmem %s0, 24
  %v49 = vld [vmem:[%s48] sm:$0xff]
  %50 = xla_tuple %v49
  %51 = xla_tuple %50
  %v52 = vxor.u32 %v49, 2147483648
  %53 = xla_tuple %v52
  %s54 = scalar_lea.vmem %s1, 24
  %55 = vst [vmem:[%s54] sm:$0xff] %v52
  %s56 = scalar_lea.vmem %s0, 88
  %v57 = vld [vmem:[%s56] sm:$0xff]
  %58 = xla_tuple %v57
  %59 = xla_tuple %58
  %v60 = vxor.u32 %v57, 2147483648
  %61 = xla_tuple %v60
  %s62 = scalar_lea.vmem %s1, 88
  %63 = vst [vmem:[%s62] sm:$0xff] %v60
  %s64 = scalar_lea.vmem %s0, 32
  %v65 = vld [vmem:[%s64] sm:$0xff]
  %66 = xla_tuple %v65
  %67 = xla_tuple %66
  %v68 = vxor.u32 %v65, 2147483648
  %69 = xla_tuple %v68
  %s70 = scalar_lea.vmem %s1, 32
  %71 = vst [vmem:[%s70] sm:$0xff] %v68
  %s72 = scalar_lea.vmem %s0, 96
  %v73 = vld [vmem:[%s72] sm:$0xff]
  %74 = xla_tuple %v73
  %75 = xla_tuple %74
  %v76 = vxor.u32 %v73, 2147483648
  %77 = xla_tuple %v76
  %s78 = scalar_lea.vmem %s1, 96
  %79 = vst [vmem:[%s78] sm:$0xff] %v76
  %s80 = scalar_lea.vmem %s0, 40
  %v81 = vld [vmem:[%s80] sm:$0xff]
  %82 = xla_tuple %v81
  %83 = xla_tuple %82
  %v84 = vxor.u32 %v81, 2147483648
  %85 = xla_tuple %v84
  %s86 = scalar_lea.vmem %s1, 40
  %87 = vst [vmem:[%s86] sm:$0xff] %v84
  %s88 = scalar_lea.vmem %s0, 104
  %v89 = vld [vmem:[%s88] sm:$0xff]
  %90 = xla_tuple %v89
  %91 = xla_tuple %90
  %v92 = vxor.u32 %v89, 2147483648
  %93 = xla_tuple %v92
  %s94 = scalar_lea.vmem %s1, 104
  %95 = vst [vmem:[%s94] sm:$0xff] %v92
  %s96 = scalar_lea.vmem %s0, 48
  %v97 = vld [vmem:[%s96] sm:$0xff]
  %98 = xla_tuple %v97
  %99 = xla_tuple %98
  %v100 = vxor.u32 %v97, 2147483648
  %101 = xla_tuple %v100
  %s102 = scalar_lea.vmem %s1, 48
  %103 = vst [vmem:[%s102] sm:$0xff] %v100
  %s104 = scalar_lea.vmem %s0, 112
  %v105 = vld [vmem:[%s104] sm:$0xff]
  %106 = xla_tuple %v105
  %107 = xla_tuple %106
  %v108 = vxor.u32 %v105, 2147483648
  %109 = xla_tuple %v108
  %s110 = scalar_lea.vmem %s1, 112
  %111 = vst [vmem:[%s110] sm:$0xff] %v108
  %s112 = scalar_lea.vmem %s0, 56
  %v113 = vld [vmem:[%s112] sm:$0xff]
  %114 = xla_tuple %v113
  %115 = xla_tuple %114
  %v116 = vxor.u32 %v113, 2147483648
  %117 = xla_tuple %v116
  %s118 = scalar_lea.vmem %s1, 56
  %119 = vst [vmem:[%s118] sm:$0xff] %v116
  %s120 = scalar_lea.vmem %s0, 120
  %v121 = vld [vmem:[%s120] sm:$0xff]
  %122 = xla_tuple %v121
  %123 = xla_tuple %122
  %v124 = vxor.u32 %v121, 2147483648
  %125 = xla_tuple %v124
  %s126 = scalar_lea.vmem %s1, 120
  %127 = vst [vmem:[%s126] sm:$0xff] %v124

// kernel: pointnet2_layer_forward.27
$region0: #{pointnet2_layer_forward.27}
  #allocation0 [shape = 'u32[]', space=smem, size = 0x4, offset = 0x4, fixed_abs, tag = 'smem constant byte address 0x4 - core index']
  #allocation1 [shape = 'u32[144,128]{1,0:T(1,128)}', space=vmem, size = 0x12000, scoped, tag = 'internal scratch']
  %s0 = inlined_call_operand.vmem [shape: bf16[64,96], index: 0, kind: input, shape index: {}]
  %s1 = inlined_call_operand.vmem [shape: bf16[96,32], index: 1, kind: input, shape index: {}]
  %s2 = inlined_call_operand.vmem [shape: f32[1,32], index: 2, kind: input, shape index: {}]
  %s3 = inlined_call_operand.vmem [shape: f32[64,32], index: 3, kind: output, shape index: {}]
  %s4 = sld [smem:[#allocation0]]
  $region22: #{pointnet2_layer_forward.27} parent=0
    _
  %s6 = ssub.s32 1, %s4
  %s7 = scalar_select 0, %s6, %s4
  // Predicated region
  $region2: #{pointnet2_layer_forward.27} parent=0 // pred_check
    _
  $region3: #{pointnet2_layer_forward.27} parent=0 // pred_check_branch
    %9 = sbr.rel (0) target = $region5
  $region4: #{pointnet2_layer_forward.27} parent=0 // pred_region
    _
  $region5: #{pointnet2_layer_forward.27} parent=0 // pred_fallthru
    _
  // Predicated region
  $region6: #{pointnet2_layer_forward.27} parent=0 // pred_check
    _
  $region7: #{pointnet2_layer_forward.27} parent=0 // pred_check_branch
    %11 = sbr.rel (0) target = $region9
  $region8: #{pointnet2_layer_forward.27} parent=0 // pred_region
    _
  $region9: #{pointnet2_layer_forward.27} parent=0 // pred_fallthru
    _
  // Predicated region
  $region10: #{pointnet2_layer_forward.27} parent=0 // pred_check
    _
  $region11: #{pointnet2_layer_forward.27} parent=0 // pred_check_branch
    %13 = sbr.rel (0) target = $region13
  $region12: #{pointnet2_layer_forward.27} parent=0 // pred_region
    _
  $region13: #{pointnet2_layer_forward.27} parent=0 // pred_fallthru
    _
  %v15 = vld [vmem:[%s0] sm:$0xf]
  %v16 = vld [vmem:[%s0 + $0x4] sm:$0xf]
  %v17 = vld [vmem:[%s0 + $0x8] sm:$0xf]
  %v18 = vld [vmem:[%s0 + $0xc] sm:$0xf]
  %v19 = vld [vmem:[%s0 + $0x10] sm:$0xf]
  %v20 = vld [vmem:[%s0 + $0x14] sm:$0xf]
  %v21 = vld [vmem:[%s0 + $0x18] sm:$0xf]
  %v22 = vld [vmem:[%s0 + $0x1c] sm:$0xf]
  %v23 = vld [vmem:[%s1] sm:$0xf]
  %v24 = vld [vmem:[%s1 + $0x4] sm:$0xf]
  %v25 = vld [vmem:[%s1 + $0x8] sm:$0xf]
  %v26 = vld [vmem:[%s1 + $0xc] sm:$0xf]
  %v27 = vld [vmem:[%s1 + $0x10] sm:$0xf]
  %v28 = vld [vmem:[%s1 + $0x14] sm:$0xf]
  %v29 = vld [vmem:[%s1 + $0x18] sm:$0xf]
  %v30 = vld [vmem:[%s1 + $0x1c] sm:$0xf]
  %v31 = vld [vmem:[%s1 + $0x20] sm:$0xf]
  %v32 = vld [vmem:[%s1 + $0x24] sm:$0xf]
  %v33 = vld [vmem:[%s1 + $0x28] sm:$0xf]
  %v34 = vld [vmem:[%s1 + $0x2c] sm:$0xf]
  %v35 = vld [vmem:[%s2] sm:$0x1]
  %v37 = vlaneseq
  %v38 = vshrl.u32 %v37, 7
  %v39 = vsub.s32 0, %v38
  %v40 = vrot.slane %v35, %v39
  %v50 = vunpack.c.l.b16 %v15
  %v51 = vunpack.c.l.b16 %v16
  %v52 = vunpack.c.l.b16 %v17
  %v53 = vunpack.c.l.b16 %v18
  %v54 = vunpack.c.l.b16 %v19
  %v55 = vunpack.c.l.b16 %v20
  %v56 = vunpack.c.l.b16 %v21
  %v57 = vunpack.c.l.b16 %v22
  %v58 = vpack.c.b16 %v51, %v50
  %v59 = vpack.c.b16 %v53, %v52
  %v60 = vpack.c.b16 %v55, %v54
  %v61 = vpack.c.b16 %v57, %v56
  %v74 = vunpack.c.l.b16 %v23
  %v75 = vunpack.c.l.b16 %v24
  %v76 = vunpack.c.l.b16 %v25
  %v77 = vunpack.c.l.b16 %v26
  %v78 = vunpack.c.l.b16 %v27
  %v79 = vunpack.c.l.b16 %v28
  %v80 = vunpack.c.l.b16 %v29
  %v81 = vunpack.c.l.b16 %v30
  %v82 = vunpack.c.l.b16 %v31
  %v83 = vunpack.c.l.b16 %v32
  %v84 = vunpack.c.l.b16 %v33
  %v85 = vunpack.c.l.b16 %v34
  %v86 = vpack.c.b16 %v75, %v74
  %v87 = vpack.c.b16 %v77, %v76
  %v88 = vpack.c.b16 %v79, %v78
  %v89 = vpack.c.b16 %v81, %v80
  %v90 = vpack.c.b16 %v83, %v82
  %v91 = vpack.c.b16 %v85, %v84
  %vm98 = vcmask 785408
  %v100 = vsel %vm98, %v58, 0
  %v103 = vsel %vm98, %v59, 0
  %v106 = vsel %vm98, %v60, 0
  %v109 = vsel %vm98, %v61, 0
  %111 = vmatprep.subr.bf16.mxu0 0
  %112 = vmatpush1.bf16.msra.mxu0 %v86
  %113 = vmatprep.subr.bf16.mxu0 0
  %114 = vmatpush1.bf16.msra.mxu0 %v87
  %115 = vmatprep.subr.bf16.mxu0 0
  %116 = vmatpush1.bf16.msra.mxu0 %v88
  %117 = vmatprep.subr.bf16.mxu0 0
  %118 = vmatpush1.bf16.msra.mxu0 %v89
  %119 = vmatprep.subr.bf16.mxu0 0
  %120 = vmatpush1.bf16.msra.mxu0 %v90
  %121 = vmatprep.subr.bf16.mxu0 0
  %122 = vmatpush1.bf16.msra.mxu0 %v91
  %123 = vmatprep.subr.bf16.mxu0 0
  %124 = vmatpush1.bf16.msra.mxu0 0
  %125 = vmatprep.subr.bf16.mxu0 0
  %126 = vmatpush1.bf16.msra.mxu0 0
  %127 = vmatprep.subr.bf16.mxu0 0
  %128 = vmatpush1.bf16.msra.mxu0 0
  %129 = vmatprep.subr.bf16.mxu0 0
  %130 = vmatpush1.bf16.msra.mxu0 0
  %131 = vmatprep.subr.bf16.mxu0 0
  %132 = vmatpush1.bf16.msra.mxu0 0
  %133 = vmatprep.subr.bf16.mxu0 0
  %134 = vmatpush1.bf16.msra.mxu0 0
  %135 = vmatprep.subr.bf16.mxu0 0
  %136 = vmatpush1.bf16.msra.mxu0 0
  %137 = vmatprep.subr.bf16.mxu0 0
  %138 = vmatpush1.bf16.msra.mxu0 0
  %139 = vmatprep.subr.bf16.mxu0 0
  %140 = vmatpush1.bf16.msra.mxu0 0
  %141 = vmatprep.subr.bf16.mxu0 0
  %142 = vmatpush1.bf16.msra.mxu0 0
  %143 = vmatprep.mubr.bf16.mxu0 0
  %144 = vmatmul.mubr.bf16.gmra.mrb[0].mxu0 %v100
  %v145 = vpop.f32.mrb[0].mxu0
  %v146 = vadd.f32 %v40, %v145
  %v147 = vpop.f32.mrb[0].mxu0
  %v148 = vpop.f32.mrb[0].mxu0
  %v149 = vadd.f32 %v40, %v148
  %v150 = vpop.f32.mrb[0].mxu0
  %151 = vmatprep.mubr.bf16.mxu0 0
  %152 = vmatmul.mubr.bf16.gmra.mrb[0].mxu0 %v103
  %v153 = vpop.f32.mrb[0].mxu0
  %v154 = vadd.f32 %v40, %v153
  %v155 = vpop.f32.mrb[0].mxu0
  %v156 = vpop.f32.mrb[0].mxu0
  %v157 = vadd.f32 %v40, %v156
  %v158 = vpop.f32.mrb[0].mxu0
  %159 = vmatprep.mubr.bf16.mxu0 0
  %160 = vmatmul.mubr.bf16.gmra.mrb[0].mxu0 %v106
  %v161 = vpop.f32.mrb[0].mxu0
  %v162 = vadd.f32 %v40, %v161
  %v163 = vpop.f32.mrb[0].mxu0
  %v164 = vpop.f32.mrb[0].mxu0
  %v165 = vadd.f32 %v40, %v164
  %v166 = vpop.f32.mrb[0].mxu0
  %167 = vmatprep.mubr.bf16.mxu0 0
  %168 = vmatmul.mubr.bf16.gmra.mrb[0].mxu0 %v109
  %v169 = vpop.f32.mrb[0].mxu0
  %v170 = vadd.f32 %v40, %v169
  %v171 = vpop.f32.mrb[0].mxu0
  %v172 = vpop.f32.mrb[0].mxu0
  %v173 = vadd.f32 %v40, %v172
  %v174 = vpop.f32.mrb[0].mxu0
  %175 = vdwg.mxu0
  %v176 = vmax.f32 %v146, 0.0
  %v177 = vmax.f32 %v149, 0.0
  %v178 = vmax.f32 %v154, 0.0
  %v179 = vmax.f32 %v157, 0.0
  %v180 = vmax.f32 %v162, 0.0
  %v181 = vmax.f32 %v165, 0.0
  %v182 = vmax.f32 %v170, 0.0
  %v183 = vmax.f32 %v173, 0.0
  %vm184 = vcmask 261120
  %185 = vst.msk [vmem:[%s3] sm:$0xff] %vm184, %v176
  %186 = vst.msk [vmem:[%s3 + $0x8] sm:$0xff] %vm184, %v177
  %187 = vst.msk [vmem:[%s3 + $0x10] sm:$0xff] %vm184, %v178
  %188 = vst.msk [vmem:[%s3 + $0x18] sm:$0xff] %vm184, %v179
  %189 = vst.msk [vmem:[%s3 + $0x20] sm:$0xff] %vm184, %v180
  %190 = vst.msk [vmem:[%s3 + $0x28] sm:$0xff] %vm184, %v181
  %191 = vst.msk [vmem:[%s3 + $0x30] sm:$0xff] %vm184, %v182
  %192 = vst.msk [vmem:[%s3 + $0x38] sm:$0xff] %vm184, %v183
  // Predicated region
  $region14: #{pointnet2_layer_forward.27} parent=0 // pred_check
    _
  $region15: #{pointnet2_layer_forward.27} parent=0 // pred_check_branch
    %194 = sbr.rel (0) target = $region17
  $region16: #{pointnet2_layer_forward.27} parent=0 // pred_region
    _
  $region17: #{pointnet2_layer_forward.27} parent=0 // pred_fallthru
    _
  // Predicated region
  $region18: #{pointnet2_layer_forward.27} parent=0 // pred_check
    _
  $region19: #{pointnet2_layer_forward.27} parent=0 // pred_check_branch
    %196 = sbr.rel (0) target = $region21
  $region20: #{pointnet2_layer_forward.27} parent=0 // pred_region
    _
  $region21: #{pointnet2_layer_forward.27} parent=0 // pred_fallthru
    _

// kernel: pointnet2_layer_forward.28
$region0: #{pointnet2_layer_forward.28}
  #allocation0 [shape = 'u32[]', space=smem, size = 0x4, offset = 0x4, fixed_abs, tag = 'smem constant byte address 0x4 - core index']
  #allocation1 [shape = 'u32[144,128]{1,0:T(1,128)}', space=vmem, size = 0x12000, scoped, tag = 'internal scratch']
  %s0 = inlined_call_operand.vmem [shape: f32[2,64,8], index: 0, kind: input, shape index: {}]
  %s1 = inlined_call_operand.vmem [shape: f32[2,8,32], index: 1, kind: input, shape index: {}]
  %s2 = inlined_call_operand.vmem [shape: f32[2,64,32], index: 2, kind: output, shape index: {}]
  %s3 = sld [smem:[#allocation0]]
  $region41: #{pointnet2_layer_forward.28} parent=0
    _
  %s5 = ssub.s32 1, %s3
  %s6 = scalar_select 0, %s5, %s3
  loop: start=0, step=1, limit=4
  $region2: #{pointnet2_layer_forward.28} parent=0 // loop_pre_header
    _
  $region3: #{pointnet2_layer_forward.28} parent=0 // loop_header
    %s8 = sphi 0, %s12
    %p9 = scmp.ge.s32.totalorder %s8, 4
    %s15 = sphi 0, %s27
    %s16 = sphi 0, %s23
    %s17 = sphi 0, %s15
    %s18 = sphi 0, %s16
    %s19 = sphi 0, %s17
    %s20 = sphi 0, %s18
    %s32 = sphi 0, %s34
    %s35 = sphi 0, %s32
    %s36 = sphi 0, %s35
    %s52 = sphi 0, %s36
    %s58 = sphi 0, %s60
    %s61 = sphi 0, %s58
    %s62 = sphi 0, %s61
    %s78 = sphi 0, %s62
    %s86 = sphi 0, %s88
    %s89 = sphi 0, %s86
    %s90 = sphi 0, %s89
    %s106 = sphi 0, %s90
  $region4: #{pointnet2_layer_forward.28} parent=0 // loop_header_branch
    %11 = sbr.rel (%p9) target = $region8
  $region5: #{pointnet2_layer_forward.28} parent=0 // loop_body
    %s13 = ssub.s32 %s8, 1
    %s14 = ssub.s32 %s8, 2
    %s21 = sadd.s32 1, %s16
    %p22 = scmp.ge.s32.totalorder %s21, 1
    %s23 = scalar_select %p22, 0, %s21
    %s24 = sadd.s32 1, %s15
    %s25 = scalar_select %p22, %s24, %s15
    %p26 = scmp.ge.s32.totalorder %s25, 2
    %s27 = scalar_select %p26, 0, %s25
    %s28 = ssub.s32 %s15, %s27
    %s29 = ssub.s32 %s16, %s23
    %s30 = sor.u32 %s28, %s29
    %p31 = scmp.eq.s32.totalorder %s30, 0
    %s33 = sadd.s32 %s32, 1
    %s34 = scalar_select %p31, %s32, %s33
    %p37 = pneg %p31
    %p38 = scmp.eq.s32.totalorder %s8, 1
    %p39 = por %p37, %p38
    %p40 = scmp.ne.s32.totalorder %s32, %s35
    %p41 = scmp.eq.s32.totalorder %s8, 0
    %p42 = por %p40, %p41
    %p43 = scmp.ne.s32.totalorder %s32, %s35
    %p44 = scmp.eq.s32.totalorder %s13, 1
    %p45 = por %p43, %p44
    %p46 = scmp.ne.s32.totalorder %s35, %s36
    %p47 = scmp.eq.s32.totalorder %s13, 0
    %p48 = por %p46, %p47
    %p49 = scmp.ne.s32.totalorder %s35, %s36
    %p50 = scmp.eq.s32.totalorder %s14, 1
    %p51 = por %p49, %p50
    %p53 = scmp.ne.s32.totalorder %s36, %s52
    %p54 = scmp.eq.s32.totalorder %s14, 0
    %p55 = por %p53, %p54
    %s56 = ssub.s32 %s15, %s27
    %p57 = scmp.eq.s32.totalorder %s56, 0
    %s59 = sadd.s32 %s58, 1
    %s60 = scalar_select %p57, %s58, %s59
    %p63 = pneg %p57
    %p64 = scmp.eq.s32.totalorder %s8, 1
    %p65 = por %p63, %p64
    %p66 = scmp.ne.s32.totalorder %s58, %s61
    %p67 = scmp.eq.s32.totalorder %s8, 0
    %p68 = por %p66, %p67
    %p69 = scmp.ne.s32.totalorder %s58, %s61
    %p70 = scmp.eq.s32.totalorder %s13, 1
    %p71 = por %p69, %p70
    %p72 = scmp.ne.s32.totalorder %s61, %s62
    %p73 = scmp.eq.s32.totalorder %s13, 0
    %p74 = por %p72, %p73
    %p75 = scmp.ne.s32.totalorder %s61, %s62
    %p76 = scmp.eq.s32.totalorder %s14, 1
    %p77 = por %p75, %p76
    %p79 = scmp.ne.s32.totalorder %s62, %s78
    %p80 = scmp.eq.s32.totalorder %s14, 0
    %p81 = por %p79, %p80
    %s82 = ssub.s32 %s15, %s27
    %s83 = ssub.s32 %s16, %s23
    %s84 = sor.u32 %s82, %s83
    %p85 = scmp.eq.s32.totalorder %s84, 0
    %s87 = sadd.s32 %s86, 1
    %s88 = scalar_select %p85, %s86, %s87
    %p91 = pneg %p85
    %p92 = scmp.eq.s32.totalorder %s8, 1
    %p93 = por %p91, %p92
    %p94 = scmp.ne.s32.totalorder %s86, %s89
    %p95 = scmp.eq.s32.totalorder %s8, 0
    %p96 = por %p94, %p95
    %p97 = scmp.ne.s32.totalorder %s86, %s89
    %p98 = scmp.eq.s32.totalorder %s13, 1
    %p99 = por %p97, %p98
    %p100 = scmp.ne.s32.totalorder %s89, %s90
    %p101 = scmp.eq.s32.totalorder %s13, 0
    %p102 = por %p100, %p101
    %p103 = scmp.ne.s32.totalorder %s89, %s90
    %p104 = scmp.eq.s32.totalorder %s14, 1
    %p105 = por %p103, %p104
    %p107 = scmp.ne.s32.totalorder %s90, %s106
    %p108 = scmp.eq.s32.totalorder %s14, 0
    %p109 = por %p107, %p108
    %p110 = scmp.le.s32.totalorder 1, %s8
    %p111 = scmp.lt.s32.totalorder %s8, 3
    %p112 = pnand %p110, %p111
    %p113 = pneg %p112
    // Predicated region
    $region9: #{pointnet2_layer_forward.28} parent=5 // pred_check
      _
    $region10: #{pointnet2_layer_forward.28} parent=5 // pred_check_branch
      %115 = sbr.rel (%p112) target = $region12
    $region11: #{pointnet2_layer_forward.28} parent=5 // pred_region
      %s116 = ssub.s32 %s8, 1
    $region12: #{pointnet2_layer_forward.28} parent=5 // pred_fallthru
      _
    %p117 = scmp.lt.s32.totalorder %s8, 2
    // Predicated region
    $region13: #{pointnet2_layer_forward.28} parent=5 // pred_check
      %p118 = pneg %p117
    $region14: #{pointnet2_layer_forward.28} parent=5 // pred_check_branch
      %120 = sbr.rel (%p118) target = $region16
    $region15: #{pointnet2_layer_forward.28} parent=5 // pred_region
      // Predicated region
      $region17: #{pointnet2_layer_forward.28} parent=15 // pred_check
        %p121 = pneg %p42
      $region18: #{pointnet2_layer_forward.28} parent=15 // pred_check_branch
        %123 = sbr.rel (%p121) target = $region20
      $region19: #{pointnet2_layer_forward.28} parent=15 // pred_region
        %s124 = smul.u32 8, %s16
        %p125 = scmp.lt.s32.totalorder %s15, 1
        %s126 = scalar_select %p125, %s15, 1
        %p127 = scmp.lt.s32.totalorder %s124, 7
        %s128 = scalar_select %p127, %s124, 7
        %s129 = smul.addr %s126, 8
        %s130 = sadd.s32 %s128, %s129
        %s131 = smul.addr %s130, 8
        %s132 = scalar_lea.vmem %s0, %s131
        %s133 = smul.u32 8, %s16
      $region20: #{pointnet2_layer_forward.28} parent=15 // pred_fallthru
        _
      // Predicated region
      $region21: #{pointnet2_layer_forward.28} parent=15 // pred_check
        %p134 = pneg %p68
      $region22: #{pointnet2_layer_forward.28} parent=15 // pred_check_branch
        %136 = sbr.rel (%p134) target = $region24
      $region23: #{pointnet2_layer_forward.28} parent=15 // pred_region
        %p137 = scmp.lt.s32.totalorder %s15, 1
        %s138 = scalar_select %p137, %s15, 1
        %s139 = smul.addr %s138, 8
        %s140 = scalar_lea.vmem %s1, %s139
      $region24: #{pointnet2_layer_forward.28} parent=15 // pred_fallthru
        _
    $region16: #{pointnet2_layer_forward.28} parent=5 // pred_fallthru
      _
    %p141 = scmp.le.s32.totalorder 1, %s8
    %p142 = scmp.lt.s32.totalorder %s8, 3
    %p143 = pnand %p141, %p142
    %p144 = pneg %p143
    // Predicated region
    $region25: #{pointnet2_layer_forward.28} parent=5 // pred_check
      _
    $region26: #{pointnet2_layer_forward.28} parent=5 // pred_check_branch
      %146 = sbr.rel (%p143) target = $region28
    $region27: #{pointnet2_layer_forward.28} parent=5 // pred_region
      %s147 = ssub.s32 %s8, 1
      %s148 = smul.u32 8, %s18
      %p149 = scmp.lt.s32.totalorder %s17, 1
      %s150 = scalar_select %p149, %s17, 1
      %p151 = scmp.lt.s32.totalorder %s148, 7
      %s152 = scalar_select %p151, %s148, 7
      %s153 = smul.addr %s150, 8
      %s154 = sadd.s32 %s152, %s153
      %s155 = smul.addr %s154, 8
      %s156 = scalar_lea.vmem %s0, %s155
      %p157 = pneg %p48
      %p158 = pneg %p45
      %p159 = scmp.lt.s32.totalorder %s17, 1
      %s160 = scalar_select %p159, %s17, 1
      %s161 = smul.addr %s160, 8
      %s162 = scalar_lea.vmem %s1, %s161
      %p163 = pneg %p74
      %p164 = pneg %p71
      %p165 = pneg %p102
      %p166 = pneg %p99
      %s167 = smul.u32 8, %s18
      %p168 = scmp.lt.s32.totalorder %s17, 1
      %s169 = scalar_select %p168, %s17, 1
      %p170 = scmp.lt.s32.totalorder %s167, 7
      %s171 = scalar_select %p170, %s167, 7
      %s172 = smul.addr %s169, 8
      %s173 = sadd.s32 %s171, %s172
      %s174 = smul.addr %s173, 8
      %s175 = scalar_lea.vmem %s2, %s174
      %s176 = smul.u32 8, %s18
      %p177 = scmp.lt.s32.totalorder %s17, 1
      %s178 = scalar_select %p177, %s17, 1
      %p179 = scmp.lt.s32.totalorder %s176, 7
      %s180 = scalar_select %p179, %s176, 7
      %s181 = smul.addr %s178, 8
      %s182 = sadd.s32 %s180, %s181
      %s183 = smul.addr %s182, 8
      %s184 = scalar_lea.vmem %s0, %s183
      %s185 = smul.u32 8, %s18
      %p186 = scmp.lt.s32.totalorder %s17, 1
      %s187 = scalar_select %p186, %s17, 1
      %s188 = smul.addr %s187, 8
      %s189 = scalar_lea.vmem %s1, %s188
      %s190 = smul.u32 8, %s18
      %p191 = scmp.lt.s32.totalorder %s17, 1
      %s192 = scalar_select %p191, %s17, 1
      %p193 = scmp.lt.s32.totalorder %s190, 7
      %s194 = scalar_select %p193, %s190, 7
      %s195 = smul.addr %s192, 8
      %s196 = sadd.s32 %s194, %s195
      %s197 = smul.addr %s196, 8
      %s198 = scalar_lea.vmem %s2, %s197
      %s199 = smul.u32 8, %s18
      %v200 = vld [vmem:[%s184] sm:$0xff]
      %v201 = vld [vmem:[%s184 + $0x8] sm:$0xff]
      %v202 = vld [vmem:[%s184 + $0x10] sm:$0xff]
      %v203 = vld [vmem:[%s184 + $0x18] sm:$0xff]
      %v204 = vld [vmem:[%s184 + $0x20] sm:$0xff]
      %v205 = vld [vmem:[%s184 + $0x28] sm:$0xff]
      %v206 = vld [vmem:[%s184 + $0x30] sm:$0xff]
      %v207 = vld [vmem:[%s184 + $0x38] sm:$0xff]
      %v208 = vld [vmem:[%s189] sm:$0xff]
      %v209 = vmul.f32 %v200, %v200
      %v210 = vmul.f32 %v201, %v201
      %v211 = vmul.f32 %v202, %v202
      %v212 = vmul.f32 %v203, %v203
      %v213 = vmul.f32 %v204, %v204
      %v214 = vmul.f32 %v205, %v205
      %v215 = vmul.f32 %v206, %v206
      %v216 = vmul.f32 %v207, %v207
      %vm217 = vcmask 64512
      %v218 = vsel %vm217, %v209, 0.0
      %219 = vadd.xlane.f32.xlu0 %v218
      %v220 = vpop.xlane.xlu0 %219
      %v221 = vsel %vm217, %v210, 0.0
      %222 = vadd.xlane.f32.xlu0 %v221
      %v223 = vpop.xlane.xlu0 %222
      %v224 = vsel %vm217, %v211, 0.0
      %225 = vadd.xlane.f32.xlu0 %v224
      %v226 = vpop.xlane.xlu0 %225
      %v227 = vsel %vm217, %v212, 0.0
      %228 = vadd.xlane.f32.xlu0 %v227
      %v229 = vpop.xlane.xlu0 %228
      %v230 = vsel %vm217, %v213, 0.0
      %231 = vadd.xlane.f32.xlu0 %v230
      %v232 = vpop.xlane.xlu0 %231
      %v233 = vsel %vm217, %v214, 0.0
      %234 = vadd.xlane.f32.xlu0 %v233
      %v235 = vpop.xlane.xlu0 %234
      %v236 = vsel %vm217, %v215, 0.0
      %237 = vadd.xlane.f32.xlu0 %v236
      %v238 = vpop.xlane.xlu0 %237
      %v239 = vsel %vm217, %v216, 0.0
      %240 = vadd.xlane.f32.xlu0 %v239
      %v241 = vpop.xlane.xlu0 %240
      %v242 = vmul.f32 %v208, %v208
      %vm243 = vcmask 261120
      %v244 = vsel %vm243, %v242, 0.0
      %v245 = vrot.slane %v244, 4
      %v246 = vadd.f32 %v244, %v245
      %v247 = vrot.slane %v246, 2
      %v248 = vadd.f32 %v246, %v247
      %v249 = vrot.slane %v248, 1
      %v250 = vadd.f32 %v248, %v249
      %v252 = vsel %vm217, %v200, 0
      %v255 = vsel %vm217, %v201, 0
      %v258 = vsel %vm217, %v202, 0
      %v261 = vsel %vm217, %v203, 0
      %v264 = vsel %vm217, %v204, 0
      %v267 = vsel %vm217, %v205, 0
      %v270 = vsel %vm217, %v206, 0
      %v273 = vsel %vm217, %v207, 0
      %275 = vmatprep.subr.mxu0 0.0
      %276 = vmatpush1.msra.mxu0 %v208
      %277 = vmatprep.subr.mxu0 0.0
      %278 = vmatpush1.msra.mxu0 0.0
      %279 = vmatprep.subr.mxu0 0.0
      %280 = vmatpush1.msra.mxu0 0.0
      %281 = vmatprep.subr.mxu0 0.0
      %282 = vmatpush1.msra.mxu0 0.0
      %283 = vmatprep.subr.mxu0 0.0
      %284 = vmatpush1.msra.mxu0 0.0
      %285 = vmatprep.subr.mxu0 0.0
      %286 = vmatpush1.msra.mxu0 0.0
      %287 = vmatprep.subr.mxu0 0.0
      %288 = vmatpush1.msra.mxu0 0.0
      %289 = vmatprep.subr.mxu0 0.0
      %290 = vmatpush1.msra.mxu0 0.0
      %291 = vmatprep.subr.mxu0 0.0
      %292 = vmatpush1.msra.mxu0 0.0
      %293 = vmatprep.subr.mxu0 0.0
      %294 = vmatpush1.msra.mxu0 0.0
      %295 = vmatprep.subr.mxu0 0.0
      %296 = vmatpush1.msra.mxu0 0.0
      %297 = vmatprep.subr.mxu0 0.0
      %298 = vmatpush1.msra.mxu0 0.0
      %299 = vmatprep.subr.mxu0 0.0
      %300 = vmatpush1.msra.mxu0 0.0
      %301 = vmatprep.subr.mxu0 0.0
      %302 = vmatpush1.msra.mxu0 0.0
      %303 = vmatprep.subr.mxu0 0.0
      %304 = vmatpush1.msra.mxu0 0.0
      %305 = vmatprep.subr.mxu0 0.0
      %306 = vmatpush1.msra.mxu0 0.0
      %307 = vmatprep.subr.mxu0 0.0
      %308 = vmatpush1.msra.mxu0 0.0
      %309 = vmatprep.subr.mxu0 0.0
      %310 = vmatpush1.msra.mxu0 0.0
      %311 = vmatprep.subr.mxu0 0.0
      %312 = vmatpush1.msra.mxu0 0.0
      %313 = vmatprep.subr.mxu0 0.0
      %314 = vmatpush1.msra.mxu0 0.0
      %315 = vmatprep.subr.mxu0 0.0
      %316 = vmatpush1.msra.mxu0 0.0
      %317 = vmatprep.subr.mxu0 0.0
      %318 = vmatpush1.msra.mxu0 0.0
      %319 = vmatprep.subr.mxu0 0.0
      %320 = vmatpush1.msra.mxu0 0.0
      %321 = vmatprep.subr.mxu0 0.0
      %322 = vmatpush1.msra.mxu0 0.0
      %323 = vmatprep.subr.mxu0 0.0
      %324 = vmatpush1.msra.mxu0 0.0
      %325 = vmatprep.subr.mxu0 0.0
      %326 = vmatpush1.msra.mxu0 0.0
      %327 = vmatprep.subr.mxu0 0.0
      %328 = vmatpush1.msra.mxu0 0.0
      %329 = vmatprep.subr.mxu0 0.0
      %330 = vmatpush1.msra.mxu0 0.0
      %331 = vmatprep.subr.mxu0 0.0
      %332 = vmatpush1.msra.mxu0 0.0
      %333 = vmatprep.subr.mxu0 0.0
      %334 = vmatpush1.msra.mxu0 0.0
      %335 = vmatprep.subr.mxu0 0.0
      %336 = vmatpush1.msra.mxu0 0.0
      %337 = vmatprep.subr.mxu0 0.0
      %338 = vmatpush1.msra.mxu0 0.0
      %339 = vmatprep.mubr.f32.mxu0 0.0
      %340 = vmatmul.mubr.f32.gmra.mrb[0].mxu0 %v252
      %v341 = vpop.f32.mrb[0].mxu0
      %v342 = vadd.f32 0.0, %v341
      %v343 = vpop.f32.mrb[0].mxu0
      %344 = vmatprep.mubr.f32.mxu0 0.0
      %345 = vmatmul.mubr.f32.gmra.mrb[0].mxu0 %v255
      %v346 = vpop.f32.mrb[0].mxu0
      %v347 = vadd.f32 0.0, %v346
      %v348 = vpop.f32.mrb[0].mxu0
      %349 = vmatprep.mubr.f32.mxu0 0.0
      %350 = vmatmul.mubr.f32.gmra.mrb[0].mxu0 %v258
      %v351 = vpop.f32.mrb[0].mxu0
      %v352 = vadd.f32 0.0, %v351
      %v353 = vpop.f32.mrb[0].mxu0
      %354 = vmatprep.mubr.f32.mxu0 0.0
      %355 = vmatmul.mubr.f32.gmra.mrb[0].mxu0 %v261
      %v356 = vpop.f32.mrb[0].mxu0
      %v357 = vadd.f32 0.0, %v356
      %v358 = vpop.f32.mrb[0].mxu0
      %359 = vmatprep.mubr.f32.mxu0 0.0
      %360 = vmatmul.mubr.f32.gmra.mrb[0].mxu0 %v264
      %v361 = vpop.f32.mrb[0].mxu0
      %v362 = vadd.f32 0.0, %v361
      %v363 = vpop.f32.mrb[0].mxu0
      %364 = vmatprep.mubr.f32.mxu0 0.0
      %365 = vmatmul.mubr.f32.gmra.mrb[0].mxu0 %v267
      %v366 = vpop.f32.mrb[0].mxu0
      %v367 = vadd.f32 0.0, %v366
      %v368 = vpop.f32.mrb[0].mxu0
      %369 = vmatprep.mubr.f32.mxu0 0.0
      %370 = vmatmul.mubr.f32.gmra.mrb[0].mxu0 %v270
      %v371 = vpop.f32.mrb[0].mxu0
      %v372 = vadd.f32 0.0, %v371
      %v373 = vpop.f32.mrb[0].mxu0
      %374 = vmatprep.mubr.f32.mxu0 0.0
      %375 = vmatmul.mubr.f32.gmra.mrb[0].mxu0 %v273
      %v376 = vpop.f32.mrb[0].mxu0
      %v377 = vadd.f32 0.0, %v376
      %v378 = vpop.f32.mrb[0].mxu0
      %379 = vdwg.mxu0
      %v380 = vadd.f32 %v220, %v250
      %v381 = vadd.f32 %v223, %v250
      %v382 = vadd.f32 %v226, %v250
      %v383 = vadd.f32 %v229, %v250
      %v384 = vadd.f32 %v232, %v250
      %v385 = vadd.f32 %v235, %v250
      %v386 = vadd.f32 %v238, %v250
      %v387 = vadd.f32 %v241, %v250
      %v388 = vmul.f32 %v342, 2.0
      %v389 = vmul.f32 %v347, 2.0
      %v390 = vmul.f32 %v352, 2.0
      %v391 = vmul.f32 %v357, 2.0
      %v392 = vmul.f32 %v362, 2.0
      %v393 = vmul.f32 %v367, 2.0
      %v394 = vmul.f32 %v372, 2.0
      %v395 = vmul.f32 %v377, 2.0
      %v396 = vsub.f32 %v380, %v388
      %v397 = vsub.f32 %v381, %v389
      %v398 = vsub.f32 %v382, %v390
      %v399 = vsub.f32 %v383, %v391
      %v400 = vsub.f32 %v384, %v392
      %v401 = vsub.f32 %v385, %v393
      %v402 = vsub.f32 %v386, %v394
      %v403 = vsub.f32 %v387, %v395
      %v404 = vmax.f32 %v396, 0.0
      %v405 = vmax.f32 %v397, 0.0
      %v406 = vmax.f32 %v398, 0.0
      %v407 = vmax.f32 %v399, 0.0
      %v408 = vmax.f32 %v400, 0.0
      %v409 = vmax.f32 %v401, 0.0
      %v410 = vmax.f32 %v402, 0.0
      %v411 = vmax.f32 %v403, 0.0
      %412 = vst.msk [vmem:[%s198] sm:$0xff] %vm243, %v404
      %413 = vst.msk [vmem:[%s198 + $0x8] sm:$0xff] %vm243, %v405
      %414 = vst.msk [vmem:[%s198 + $0x10] sm:$0xff] %vm243, %v406
      %415 = vst.msk [vmem:[%s198 + $0x18] sm:$0xff] %vm243, %v407
      %416 = vst.msk [vmem:[%s198 + $0x20] sm:$0xff] %vm243, %v408
      %417 = vst.msk [vmem:[%s198 + $0x28] sm:$0xff] %vm243, %v409
      %418 = vst.msk [vmem:[%s198 + $0x30] sm:$0xff] %vm243, %v410
      %419 = vst.msk [vmem:[%s198 + $0x38] sm:$0xff] %vm243, %v411
      %s420 = smul.u32 8, %s18
      %p421 = scmp.lt.s32.totalorder %s17, 1
      %s422 = scalar_select %p421, %s17, 1
      %p423 = scmp.lt.s32.totalorder %s420, 7
      %s424 = scalar_select %p423, %s420, 7
      %s425 = smul.addr %s422, 8
      %s426 = sadd.s32 %s424, %s425
      %s427 = smul.addr %s426, 8
      %s428 = scalar_lea.vmem %s2, %s427
      // Predicated region
      $region29: #{pointnet2_layer_forward.28} parent=27 // pred_check
        %p429 = pneg %p99
      $region30: #{pointnet2_layer_forward.28} parent=27 // pred_check_branch
        %431 = sbr.rel (%p429) target = $region32
      $region31: #{pointnet2_layer_forward.28} parent=27 // pred_region
        %s432 = smul.u32 8, %s18
      $region32: #{pointnet2_layer_forward.28} parent=27 // pred_fallthru
        _
    $region28: #{pointnet2_layer_forward.28} parent=5 // pred_fallthru
      _
    %p433 = scmp.le.s32.totalorder 2, %s8
    // Predicated region
    $region33: #{pointnet2_layer_forward.28} parent=5 // pred_check
      %p434 = pneg %p433
    $region34: #{pointnet2_layer_forward.28} parent=5 // pred_check_branch
      %436 = sbr.rel (%p434) target = $region36
    $region35: #{pointnet2_layer_forward.28} parent=5 // pred_region
      %s437 = ssub.s32 %s8, 2
      // Predicated region
      $region37: #{pointnet2_layer_forward.28} parent=35 // pred_check
        %p438 = pneg %p105
      $region38: #{pointnet2_layer_forward.28} parent=35 // pred_check_branch
        %440 = sbr.rel (%p438) target = $region40
      $region39: #{pointnet2_layer_forward.28} parent=35 // pred_region
        %s441 = smul.u32 8, %s20
        %p442 = scmp.lt.s32.totalorder %s19, 1
        %s443 = scalar_select %p442, %s19, 1
        %p444 = scmp.lt.s32.totalorder %s441, 7
        %s445 = scalar_select %p444, %s441, 7
        %s446 = smul.addr %s443, 8
        %s447 = sadd.s32 %s445, %s446
        %s448 = smul.addr %s447, 8
        %s449 = scalar_lea.vmem %s2, %s448
      $region40: #{pointnet2_layer_forward.28} parent=35 // pred_fallthru
        _
    $region36: #{pointnet2_layer_forward.28} parent=5 // pred_fallthru
      _
  $region6: #{pointnet2_layer_forward.28} parent=0 // loop_footer
    %s12 = sadd.s32 1, %s8
  $region7: #{pointnet2_layer_forward.28} parent=0 // loop_footer_branch
    %7 = sbr.rel target = $region3
  $region8: #{pointnet2_layer_forward.28} parent=0 // loop_exit
    _

// kernel: pointnet2_layer_forward.29
$region0: #{pointnet2_layer_forward.29}
  #allocation0 [shape = 'u32[]', space=smem, size = 0x4, offset = 0x4, fixed_abs, tag = 'smem constant byte address 0x4 - core index']
  #allocation1 [shape = 'u32[144,128]{1,0:T(1,128)}', space=vmem, size = 0x12000, scoped, tag = 'internal scratch']
  %s0 = inlined_call_operand.vmem [shape: bf16[128,33], index: 0, kind: input, shape index: {}]
  %s1 = inlined_call_operand.vmem [shape: bf16[33,32], index: 1, kind: input, shape index: {}]
  %s2 = inlined_call_operand.vmem [shape: f32[1,32], index: 2, kind: input, shape index: {}]
  %s3 = inlined_call_operand.vmem [shape: f32[128,32], index: 3, kind: output, shape index: {}]
  %s4 = sld [smem:[#allocation0]]
  $region22: #{pointnet2_layer_forward.29} parent=0
    _
  %s6 = ssub.s32 1, %s4
  %s7 = scalar_select 0, %s6, %s4
  // Predicated region
  $region2: #{pointnet2_layer_forward.29} parent=0 // pred_check
    _
  $region3: #{pointnet2_layer_forward.29} parent=0 // pred_check_branch
    %9 = sbr.rel (0) target = $region5
  $region4: #{pointnet2_layer_forward.29} parent=0 // pred_region
    _
  $region5: #{pointnet2_layer_forward.29} parent=0 // pred_fallthru
    _
  // Predicated region
  $region6: #{pointnet2_layer_forward.29} parent=0 // pred_check
    _
  $region7: #{pointnet2_layer_forward.29} parent=0 // pred_check_branch
    %11 = sbr.rel (0) target = $region9
  $region8: #{pointnet2_layer_forward.29} parent=0 // pred_region
    _
  $region9: #{pointnet2_layer_forward.29} parent=0 // pred_fallthru
    _
  // Predicated region
  $region10: #{pointnet2_layer_forward.29} parent=0 // pred_check
    _
  $region11: #{pointnet2_layer_forward.29} parent=0 // pred_check_branch
    %13 = sbr.rel (0) target = $region13
  $region12: #{pointnet2_layer_forward.29} parent=0 // pred_region
    _
  $region13: #{pointnet2_layer_forward.29} parent=0 // pred_fallthru
    _
  %v15 = vld [vmem:[%s0] sm:$0xf]
  %v16 = vld [vmem:[%s0 + $0x4] sm:$0xf]
  %v17 = vld [vmem:[%s0 + $0x8] sm:$0xf]
  %v18 = vld [vmem:[%s0 + $0xc] sm:$0xf]
  %v19 = vld [vmem:[%s0 + $0x10] sm:$0xf]
  %v20 = vld [vmem:[%s0 + $0x14] sm:$0xf]
  %v21 = vld [vmem:[%s0 + $0x18] sm:$0xf]
  %v22 = vld [vmem:[%s0 + $0x1c] sm:$0xf]
  %v23 = vld [vmem:[%s0 + $0x20] sm:$0xf]
  %v24 = vld [vmem:[%s0 + $0x24] sm:$0xf]
  %v25 = vld [vmem:[%s0 + $0x28] sm:$0xf]
  %v26 = vld [vmem:[%s0 + $0x2c] sm:$0xf]
  %v27 = vld [vmem:[%s0 + $0x30] sm:$0xf]
  %v28 = vld [vmem:[%s0 + $0x34] sm:$0xf]
  %v29 = vld [vmem:[%s0 + $0x38] sm:$0xf]
  %v30 = vld [vmem:[%s0 + $0x3c] sm:$0xf]
  %v31 = vld [vmem:[%s1] sm:$0xf]
  %v32 = vld [vmem:[%s1 + $0x4] sm:$0xf]
  %v33 = vld [vmem:[%s1 + $0x8] sm:$0xf]
  %v34 = vld [vmem:[%s1 + $0xc] sm:$0xf]
  %v35 = vld [vmem:[%s1 + $0x10] sm:$0x1]
  %v36 = vld [vmem:[%s2] sm:$0x1]
  %v38 = vlaneseq
  %v39 = vshrl.u32 %v38, 7
  %v40 = vsub.s32 0, %v39
  %v41 = vrot.slane %v36, %v40
  %v59 = vunpack.c.l.b16 %v15
  %v60 = vunpack.c.l.b16 %v16
  %v61 = vunpack.c.l.b16 %v17
  %v62 = vunpack.c.l.b16 %v18
  %v63 = vunpack.c.l.b16 %v19
  %v64 = vunpack.c.l.b16 %v20
  %v65 = vunpack.c.l.b16 %v21
  %v66 = vunpack.c.l.b16 %v22
  %v67 = vunpack.c.l.b16 %v23
  %v68 = vunpack.c.l.b16 %v24
  %v69 = vunpack.c.l.b16 %v25
  %v70 = vunpack.c.l.b16 %v26
  %v71 = vunpack.c.l.b16 %v27
  %v72 = vunpack.c.l.b16 %v28
  %v73 = vunpack.c.l.b16 %v29
  %v74 = vunpack.c.l.b16 %v30
  %v75 = vpack.c.b16 %v60, %v59
  %v76 = vpack.c.b16 %v62, %v61
  %v77 = vpack.c.b16 %v64, %v63
  %v78 = vpack.c.b16 %v66, %v65
  %v79 = vpack.c.b16 %v68, %v67
  %v80 = vpack.c.b16 %v70, %v69
  %v81 = vpack.c.b16 %v72, %v71
  %v82 = vpack.c.b16 %v74, %v73
  %v88 = vunpack.c.l.b16 %v31
  %v89 = vunpack.c.l.b16 %v32
  %v90 = vunpack.c.l.b16 %v33
  %v91 = vunpack.c.l.b16 %v34
  %v92 = vunpack.c.l.b16 %v35
  %v93 = vpack.c.b16 %v89, %v88
  %v94 = vpack.c.b16 %v91, %v90
  %v95 = vpack.c.b16 %v92, %v92
  %vm98 = vcmask 269312
  %v100 = vsel %vm98, %v75, 0
  %v103 = vsel %vm98, %v76, 0
  %v106 = vsel %vm98, %v77, 0
  %v109 = vsel %vm98, %v78, 0
  %v112 = vsel %vm98, %v79, 0
  %v115 = vsel %vm98, %v80, 0
  %v118 = vsel %vm98, %v81, 0
  %v121 = vsel %vm98, %v82, 0
  %vm123 = vcmask 1040384
  %v124 = vsel 0, 4294967295, 65535
  %v125 = vsel %vm123, %v124, 0
  %v127 = vand.u32 %v95, %v125
  %129 = vmatprep.subr.bf16.mxu0 0
  %130 = vmatpush1.bf16.msra.mxu0 %v93
  %131 = vmatprep.subr.bf16.mxu0 0
  %132 = vmatpush1.bf16.msra.mxu0 %v94
  %133 = vmatprep.subr.bf16.mxu0 0
  %134 = vmatpush1.bf16.msra.mxu0 %v127
  %135 = vmatprep.subr.bf16.mxu0 0
  %136 = vmatpush1.bf16.msra.mxu0 0
  %137 = vmatprep.subr.bf16.mxu0 0
  %138 = vmatpush1.bf16.msra.mxu0 0
  %139 = vmatprep.subr.bf16.mxu0 0
  %140 = vmatpush1.bf16.msra.mxu0 0
  %141 = vmatprep.subr.bf16.mxu0 0
  %142 = vmatpush1.bf16.msra.mxu0 0
  %143 = vmatprep.subr.bf16.mxu0 0
  %144 = vmatpush1.bf16.msra.mxu0 0
  %145 = vmatprep.subr.bf16.mxu0 0
  %146 = vmatpush1.bf16.msra.mxu0 0
  %147 = vmatprep.subr.bf16.mxu0 0
  %148 = vmatpush1.bf16.msra.mxu0 0
  %149 = vmatprep.subr.bf16.mxu0 0
  %150 = vmatpush1.bf16.msra.mxu0 0
  %151 = vmatprep.subr.bf16.mxu0 0
  %152 = vmatpush1.bf16.msra.mxu0 0
  %153 = vmatprep.subr.bf16.mxu0 0
  %154 = vmatpush1.bf16.msra.mxu0 0
  %155 = vmatprep.subr.bf16.mxu0 0
  %156 = vmatpush1.bf16.msra.mxu0 0
  %157 = vmatprep.subr.bf16.mxu0 0
  %158 = vmatpush1.bf16.msra.mxu0 0
  %159 = vmatprep.subr.bf16.mxu0 0
  %160 = vmatpush1.bf16.msra.mxu0 0
  %161 = vmatprep.mubr.bf16.mxu0 0
  %162 = vmatmul.mubr.bf16.gmra.mrb[0].mxu0 %v100
  %v163 = vpop.f32.mrb[0].mxu0
  %v164 = vadd.f32 %v41, %v163
  %v165 = vpop.f32.mrb[0].mxu0
  %v166 = vpop.f32.mrb[0].mxu0
  %v167 = vadd.f32 %v41, %v166
  %v168 = vpop.f32.mrb[0].mxu0
  %169 = vmatprep.mubr.bf16.mxu0 0
  %170 = vmatmul.mubr.bf16.gmra.mrb[0].mxu0 %v103
  %v171 = vpop.f32.mrb[0].mxu0
  %v172 = vadd.f32 %v41, %v171
  %v173 = vpop.f32.mrb[0].mxu0
  %v174 = vpop.f32.mrb[0].mxu0
  %v175 = vadd.f32 %v41, %v174
  %v176 = vpop.f32.mrb[0].mxu0
  %177 = vmatprep.mubr.bf16.mxu0 0
  %178 = vmatmul.mubr.bf16.gmra.mrb[0].mxu0 %v106
  %v179 = vpop.f32.mrb[0].mxu0
  %v180 = vadd.f32 %v41, %v179
  %v181 = vpop.f32.mrb[0].mxu0
  %v182 = vpop.f32.mrb[0].mxu0
  %v183 = vadd.f32 %v41, %v182
  %v184 = vpop.f32.mrb[0].mxu0
  %185 = vmatprep.mubr.bf16.mxu0 0
  %186 = vmatmul.mubr.bf16.gmra.mrb[0].mxu0 %v109
  %v187 = vpop.f32.mrb[0].mxu0
  %v188 = vadd.f32 %v41, %v187
  %v189 = vpop.f32.mrb[0].mxu0
  %v190 = vpop.f32.mrb[0].mxu0
  %v191 = vadd.f32 %v41, %v190
  %v192 = vpop.f32.mrb[0].mxu0
  %193 = vmatprep.mubr.bf16.mxu0 0
  %194 = vmatmul.mubr.bf16.gmra.mrb[0].mxu0 %v112
  %v195 = vpop.f32.mrb[0].mxu0
  %v196 = vadd.f32 %v41, %v195
  %v197 = vpop.f32.mrb[0].mxu0
  %v198 = vpop.f32.mrb[0].mxu0
  %v199 = vadd.f32 %v41, %v198
  %v200 = vpop.f32.mrb[0].mxu0
  %201 = vmatprep.mubr.bf16.mxu0 0
  %202 = vmatmul.mubr.bf16.gmra.mrb[0].mxu0 %v115
  %v203 = vpop.f32.mrb[0].mxu0
  %v204 = vadd.f32 %v41, %v203
  %v205 = vpop.f32.mrb[0].mxu0
  %v206 = vpop.f32.mrb[0].mxu0
  %v207 = vadd.f32 %v41, %v206
  %v208 = vpop.f32.mrb[0].mxu0
  %209 = vmatprep.mubr.bf16.mxu0 0
  %210 = vmatmul.mubr.bf16.gmra.mrb[0].mxu0 %v118
  %v211 = vpop.f32.mrb[0].mxu0
  %v212 = vadd.f32 %v41, %v211
  %v213 = vpop.f32.mrb[0].mxu0
  %v214 = vpop.f32.mrb[0].mxu0
  %v215 = vadd.f32 %v41, %v214
  %v216 = vpop.f32.mrb[0].mxu0
  %217 = vmatprep.mubr.bf16.mxu0 0
  %218 = vmatmul.mubr.bf16.gmra.mrb[0].mxu0 %v121
  %v219 = vpop.f32.mrb[0].mxu0
  %v220 = vadd.f32 %v41, %v219
  %v221 = vpop.f32.mrb[0].mxu0
  %v222 = vpop.f32.mrb[0].mxu0
  %v223 = vadd.f32 %v41, %v222
  %v224 = vpop.f32.mrb[0].mxu0
  %225 = vdwg.mxu0
  %v226 = vmax.f32 %v164, 0.0
  %v227 = vmax.f32 %v167, 0.0
  %v228 = vmax.f32 %v172, 0.0
  %v229 = vmax.f32 %v175, 0.0
  %v230 = vmax.f32 %v180, 0.0
  %v231 = vmax.f32 %v183, 0.0
  %v232 = vmax.f32 %v188, 0.0
  %v233 = vmax.f32 %v191, 0.0
  %v234 = vmax.f32 %v196, 0.0
  %v235 = vmax.f32 %v199, 0.0
  %v236 = vmax.f32 %v204, 0.0
  %v237 = vmax.f32 %v207, 0.0
  %v238 = vmax.f32 %v212, 0.0
  %v239 = vmax.f32 %v215, 0.0
  %v240 = vmax.f32 %v220, 0.0
  %v241 = vmax.f32 %v223, 0.0
  %vm242 = vcmask 261120
  %243 = vst.msk [vmem:[%s3] sm:$0xff] %vm242, %v226
  %244 = vst.msk [vmem:[%s3 + $0x8] sm:$0xff] %vm242, %v227
  %245 = vst.msk [vmem:[%s3 + $0x10] sm:$0xff] %vm242, %v228
  %246 = vst.msk [vmem:[%s3 + $0x18] sm:$0xff] %vm242, %v229
  %247 = vst.msk [vmem:[%s3 + $0x20] sm:$0xff] %vm242, %v230
  %248 = vst.msk [vmem:[%s3 + $0x28] sm:$0xff] %vm242, %v231
  %249 = vst.msk [vmem:[%s3 + $0x30] sm:$0xff] %vm242, %v232
  %250 = vst.msk [vmem:[%s3 + $0x38] sm:$0xff] %vm242, %v233
  %251 = vst.msk [vmem:[%s3 + $0x40] sm:$0xff] %vm242, %v234
  %252 = vst.msk [vmem:[%s3 + $0x48] sm:$0xff] %vm242, %v235
  %253 = vst.msk [vmem:[%s3 + $0x50] sm:$0xff] %vm242, %v236
  %254 = vst.msk [vmem:[%s3 + $0x58] sm:$0xff] %vm242, %v237
  %255 = vst.msk [vmem:[%s3 + $0x60] sm:$0xff] %vm242, %v238
  %256 = vst.msk [vmem:[%s3 + $0x68] sm:$0xff] %vm242, %v239
  %257 = vst.msk [vmem:[%s3 + $0x70] sm:$0xff] %vm242, %v240
  %258 = vst.msk [vmem:[%s3 + $0x78] sm:$0xff] %vm242, %v241
  // Predicated region
  $region14: #{pointnet2_layer_forward.29} parent=0 // pred_check
    _
  $region15: #{pointnet2_layer_forward.29} parent=0 // pred_check_branch
    %260 = sbr.rel (0) target = $region17
  $region16: #{pointnet2_layer_forward.29} parent=0 // pred_region
    _
  $region17: #{pointnet2_layer_forward.29} parent=0 // pred_fallthru
    _
  // Predicated region
  $region18: #{pointnet2_layer_forward.29} parent=0 // pred_check
    _
  $region19: #{pointnet2_layer_forward.29} parent=0 // pred_check_branch
    %262 = sbr.rel (0) target = $region21
  $region20: #{pointnet2_layer_forward.29} parent=0 // pred_region
    _
  $region21: #{pointnet2_layer_forward.29} parent=0 // pred_fallthru
    _

</llo_original>
